<compile_context>
chip_gen: v7x
topology: tpu7x:2x2x1
jax: 0.10.0
libtpu: 0.0.40
codegen_flags: <defaults>
</compile_context>

<pallas_src>
import jax
import jax.numpy as jnp
import numpy as np
from jax import lax
from jax.experimental import pallas as pl
from jax.experimental.pallas import tpu as pltpu

BN_EPS = 1e-5


def _zero_border(ref):
    """Zero only the 1-pixel spatial border of a (H+2, W+2, C) VMEM scratch."""
    Hp2, Wp2, C = ref.shape
    ref[0:1, :, :] = jnp.zeros((1, Wp2, C), ref.dtype)
    ref[Hp2 - 1:Hp2, :, :] = jnp.zeros((1, Wp2, C), ref.dtype)
    ref[1:Hp2 - 1, 0:1, :] = jnp.zeros((Hp2 - 2, 1, C), ref.dtype)
    ref[1:Hp2 - 1, Wp2 - 1:Wp2, :] = jnp.zeros((Hp2 - 2, 1, C), ref.dtype)


def _decoder_block_kernel(x_ref, w1_ref, s1_ref, t1_ref, w2_ref, b2_ref,
                          o_ref, xpad_ref, midpad_ref, col1_ref, col2_ref):
    H, W, Cin = x_ref.shape
    Cmid = s1_ref.shape[1]
    HW = H * W

    # Zero only the 1-px borders (interiors are fully overwritten below).  Done
    # every step so it stays correct under "parallel" semantics (per-core
    # scratch persists across grid steps).
    _zero_border(xpad_ref)
    _zero_border(midpad_ref)

    # Fold the conv padding into the kernel: copy the unpadded image into the
    # interior of the zero-bordered scratch.
    xpad_ref[1:H + 1, 1:W + 1, :] = x_ref[...]

    # ---- ConvBnRelu: 3x3 conv (pad=1) as ONE im2col matmul, K = 9*Cin -------
    # col1[:, (ky*3+kx)*Cin : +Cin] = xpad[ky:ky+H, kx:kx+W, :]  (tap-major K)
    for ky in range(3):
        for kx in range(3):
            t = ky * 3 + kx
            col1_ref[:, t * Cin:(t + 1) * Cin] = (
                xpad_ref[ky:ky + H, kx:kx + W, :].reshape(HW, Cin))
    acc = jnp.dot(col1_ref[...], w1_ref[...],
                  preferred_element_type=jnp.float32)           # (HW, Cmid)
    # folded BatchNorm (eval) + conv bias -> per-channel scale/shift, then ReLU,
    # applied once on the whole slab.
    mid = jnp.maximum(acc * s1_ref[...] + t1_ref[...], 0.0)
    midpad_ref[1:H + 1, 1:W + 1, :] = (
        mid.reshape(H, W, Cmid).astype(midpad_ref.dtype))

    # ---- ConvTranspose2d(k=4, s=2, p=1) + ReLU via sub-pixel decomposition ---
    # out[2m+py, 2n+px, :] = relu( b2 +
    #   sum_{a,b in {0,1}} mid_pad[m+py+a, n+px+b, :] @ W2[3-py-2a, 3-px-2b] )
    # Per parity: one matmul with K = 4*Cmid (the 4 shifted windows stacked
    # channel-wise in col2; w2_ref[2*py+px] holds the matching (4*Cmid, Cout)
    # weight, pre-stacked on the host).
    b2 = b2_ref[...]                                            # (1, Cout)
    for py in range(2):
        for px in range(2):
            for a in range(2):
                for b in range(2):
                    j = a * 2 + b
                    col2_ref[:, j * Cmid:(j + 1) * Cmid] = (
                        midpad_ref[py + a:py + a + H,
                                   px + b:px + b + W, :].reshape(HW, Cmid))
            acc2 = jnp.dot(col2_ref[...], w2_ref[2 * py + px],
                           preferred_element_type=jnp.float32)  # (HW, Cout)
            y = jnp.maximum(acc2 + b2, 0.0)
            # flat (HW, Cout) parity slab, bf16, no in-kernel relayout.
            o_ref[2 * py + px] = y.astype(o_ref.dtype)


def _vmem_limit_bytes():
    """Generation-aware VMEM limit: ~112 MiB on v5e/v6e, ~56 MiB on v7x."""
    cap = 64 * 1024 * 1024
    try:
        cap = int(pltpu.get_tpu_info().vmem_capacity_bytes)
    except Exception:
        pass
    return min(cap - cap // 8, 112 * 1024 * 1024)


def _decoder_block_packed(x_nhwc_bf16, kern_params):
    """Runs the kernel; returns parity-major packed (N, 4, H*W, Cout) bf16."""
    w1, s1, t1, w2p, b2 = kern_params
    N, H, W, Cin = x_nhwc_bf16.shape
    Cmid = s1.shape[1]
    Cout = b2.shape[1]

    grid_spec = pltpu.PrefetchScalarGridSpec(
        num_scalar_prefetch=0,
        grid=(N,),                            # one image per grid step
        in_specs=[
            pl.BlockSpec((pl.Squeezed(), H, W, Cin), lambda n: (n, 0, 0, 0)),
            # Constant-index weight/scale specs (see production TODO above for
            # single-buffering them on v7x).
            pl.BlockSpec((9 * Cin, Cmid), lambda n: (0, 0)),
            pl.BlockSpec((1, Cmid), lambda n: (0, 0)),
            pl.BlockSpec((1, Cmid), lambda n: (0, 0)),
            pl.BlockSpec((4, 4 * Cmid, Cout), lambda n: (0, 0, 0)),
            pl.BlockSpec((1, Cout), lambda n: (0, 0)),
        ],
        out_specs=pl.BlockSpec((pl.Squeezed(), 4, H * W, Cout),
                               lambda n: (n, 0, 0, 0)),
        scratch_shapes=[
            pltpu.VMEM((H + 2, W + 2, Cin), jnp.bfloat16),   # zero-bordered x
            pltpu.VMEM((H + 2, W + 2, Cmid), jnp.bfloat16),  # zero-bordered mid
            pltpu.VMEM((H * W, 9 * Cin), jnp.bfloat16),      # conv im2col slab
            pltpu.VMEM((H * W, 4 * Cmid), jnp.bfloat16),     # deconv col slab
        ],
    )

    return pl.pallas_call(
        _decoder_block_kernel,
        out_shape=jax.ShapeDtypeStruct((N, 4, H * W, Cout), jnp.bfloat16),
        grid_spec=grid_spec,
        compiler_params=pltpu.CompilerParams(
            dimension_semantics=("parallel",),   # v7x: shard batch over 2 TCs
            vmem_limit_bytes=_vmem_limit_bytes(),
        ),
    )(x_nhwc_bf16, w1, s1, t1, w2p, b2)


@jax.jit
def decoder_block(x_nchw, kern_params):
    """NCHW f32 in -> NCHW f32 out, matching the PyTorch module (eval mode)."""
    N, Cin, H, W = x_nchw.shape
    Cout = kern_params[4].shape[1]
    # bf16 activations (f32 MXU accumulation inside the kernel); cast before the
    # layout transpose so half the bytes move.
    x_nhwc = jnp.transpose(x_nchw.astype(jnp.bfloat16), (0, 2, 3, 1))
    yp = _decoder_block_packed(x_nhwc, kern_params)      # (N, 4, H*W, Cout) bf16
    # Single fused de-interleave + NHWC->NCHW transpose, done in bf16:
    # (N, py, px, m, n, c) -> (N, c, m, py, n, px) -> (N, C, 2H, 2W)
    y = yp.reshape(N, 2, 2, H, W, Cout)
    y = jnp.transpose(y, (0, 5, 3, 1, 4, 2))
    y = y.reshape(N, Cout, 2 * H, 2 * W)
    return y.astype(jnp.float32)


def init_params(key, in_ch, mid_ch, out_ch):
    k = jax.random.split(key, 8)
    # Conv2d(in, mid, 3, pad=1): weight [Cmid, Cin, 3, 3], bias [Cmid]
    w1_t = 0.1 * jax.random.normal(k[0], (mid_ch, in_ch, 3, 3), jnp.float32)
    b1 = 0.1 * jax.random.normal(k[1], (mid_ch,), jnp.float32)
    # BatchNorm2d(mid): eval-mode running stats + affine
    gamma = 1.0 + 0.1 * jax.random.normal(k[2], (mid_ch,), jnp.float32)
    beta = 0.1 * jax.random.normal(k[3], (mid_ch,), jnp.float32)
    rmean = 0.1 * jax.random.normal(k[4], (mid_ch,), jnp.float32)
    rvar = jnp.abs(jax.random.normal(k[5], (mid_ch,), jnp.float32)) + 0.5
    # ConvTranspose2d(mid, out, 4, 2, 1): weight [Cmid, Cout, 4, 4], bias [Cout]
    w2_t = 0.1 * jax.random.normal(k[6], (mid_ch, out_ch, 4, 4), jnp.float32)
    b2 = 0.1 * jax.random.normal(k[7], (out_ch,), jnp.float32)

    # fold conv1 bias + BN (eval) into per-channel scale/shift (applied in f32)
    scale = gamma / jnp.sqrt(rvar + BN_EPS)
    shift = beta + (b1 - rmean) * scale

    # conv1 weight, im2col-ready: (9*Cin, Cmid), K ordered (tap=ky*3+kx, cin)
    w1 = jnp.transpose(w1_t, (2, 3, 1, 0)).reshape(9 * in_ch, mid_ch)
    w1 = w1.astype(jnp.bfloat16)

    # deconv weight, per output parity p=2*py+px: (4*Cmid, Cout) with K blocks
    # (a*2+b) = W2[:, :, 3-py-2a, 3-px-2b]
    pblocks = []
    for py in range(2):
        for px in range(2):
            blocks = [w2_t[:, :, 3 - py - 2 * a, 3 - px - 2 * b]
                      for a in range(2) for b in range(2)]
            pblocks.append(jnp.concatenate(blocks, axis=0))      # (4*Cmid, Cout)
    w2p = jnp.stack(pblocks, axis=0).astype(jnp.bfloat16)        # (4, 4*Cmid, Cout)

    kern_params = (w1, scale.reshape(1, mid_ch), shift.reshape(1, mid_ch),
                   w2p, b2.reshape(1, out_ch))
    torch_params = (w1_t, b1, gamma, beta, rmean, rvar, w2_t, b2)
    return kern_params, torch_params


def reference_nhwc(x_nhwc, torch_params):
    """Pure-JAX f32 reference mirroring the literal PyTorch forward (eval mode)."""
    w1_t, b1, gamma, beta, rmean, rvar, w2_t, b2 = torch_params
    w1_hwio = jnp.transpose(w1_t, (2, 3, 1, 0))
    y = lax.conv_general_dilated(
        x_nhwc, w1_hwio, (1, 1), ((1, 1), (1, 1)),
        dimension_numbers=('NHWC', 'HWIO', 'NHWC'),
        precision=lax.Precision.HIGHEST)
    y = y + b1
    y = (y - rmean) / jnp.sqrt(rvar + BN_EPS) * gamma + beta
    y = jnp.maximum(y, 0.0)
    w2_flip = w2_t[:, :, ::-1, ::-1]
    w2_hwio = jnp.transpose(w2_flip, (2, 3, 0, 1))
    z = lax.conv_general_dilated(
        y, w2_hwio, (1, 1), ((2, 2), (2, 2)), lhs_dilation=(2, 2),
        dimension_numbers=('NHWC', 'HWIO', 'NHWC'),
        precision=lax.Precision.HIGHEST)
    return jnp.maximum(z + b2, 0.0)


def reference_nhwc_bf16(x_nhwc, torch_params):
    """Same math with the kernel's bf16 quantization points (f32 accumulation).

    The kernel additionally rounds its final output to bf16; the tight tolerance
    below accounts for that."""
    w1_t, b1, gamma, beta, rmean, rvar, w2_t, b2 = torch_params
    f32 = jnp.float32
    xq = x_nhwc.astype(jnp.bfloat16).astype(f32)
    w1q = w1_t.astype(jnp.bfloat16).astype(f32)
    w2q = w2_t.astype(jnp.bfloat16).astype(f32)
    scale = gamma / jnp.sqrt(rvar + BN_EPS)
    shift = beta + (b1 - rmean) * scale
    w1_hwio = jnp.transpose(w1q, (2, 3, 1, 0))
    y = lax.conv_general_dilated(
        xq, w1_hwio, (1, 1), ((1, 1), (1, 1)),
        dimension_numbers=('NHWC', 'HWIO', 'NHWC'),
        precision=lax.Precision.HIGHEST)
    y = jnp.maximum(y * scale + shift, 0.0)
    y = y.astype(jnp.bfloat16).astype(f32)            # mid activations stored bf16
    w2_flip = w2q[:, :, ::-1, ::-1]
    w2_hwio = jnp.transpose(w2_flip, (2, 3, 0, 1))
    z = lax.conv_general_dilated(
        y, w2_hwio, (1, 1), ((2, 2), (2, 2)), lhs_dilation=(2, 2),
        dimension_numbers=('NHWC', 'HWIO', 'NHWC'),
        precision=lax.Precision.HIGHEST)
    return jnp.maximum(z + b2, 0.0)


if __name__ == "__main__":
    N, Cin, H, W = 2, 8, 16, 16      # small NCHW input, like the PyTorch module
    Cmid, Cout = 16, 8

    key = jax.random.PRNGKey(0)
    kx, kp = jax.random.split(key)
    x_nchw = jax.random.normal(kx, (N, Cin, H, W), jnp.float32)
    kern_params, torch_params = init_params(kp, Cin, Cmid, Cout)

    y = decoder_block(x_nchw, kern_params)
    y = jax.block_until_ready(y)
    assert y.shape == (N, Cout, 2 * H, 2 * W), y.shape

    x_nhwc = jnp.transpose(x_nchw, (0, 2, 3, 1))
    # tight check against a reference mirroring the kernel's bf16 quantization
    # (kernel output itself is additionally rounded to bf16 -> ~0.4% extra rel).
    ref_bf = jnp.transpose(reference_nhwc_bf16(x_nhwc, torch_params), (0, 3, 1, 2))
    np.testing.assert_allclose(np.asarray(y), np.asarray(ref_bf),
                               rtol=1.5e-2, atol=1.5e-2)
    # loose check against the literal f32 PyTorch-semantics reference
    ref_f32 = jnp.transpose(reference_nhwc(x_nhwc, torch_params), (0, 3, 1, 2))
    np.testing.assert_allclose(np.asarray(y), np.asarray(ref_f32),
                               rtol=6e-2, atol=6e-2)

    print("KERNEL_OK")
</pallas_src>

<mosaic_0001>
module attributes {stable_mosaic.version = 11 : i64} {
  func.func @_decoder_block_kernel(%arg0: i32, %arg1: memref<1x16x16x8xbf16, #tpu.memory_space<vmem>>, %arg2: memref<72x16xbf16, #tpu.memory_space<vmem>>, %arg3: memref<1x16xf32, #tpu.memory_space<vmem>>, %arg4: memref<1x16xf32, #tpu.memory_space<vmem>>, %arg5: memref<4x64x8xbf16, #tpu.memory_space<vmem>>, %arg6: memref<1x8xf32, #tpu.memory_space<vmem>>, %arg7: memref<1x4x256x8xbf16, #tpu.memory_space<vmem>>, %arg8: memref<18x18x8xbf16, #tpu.memory_space<vmem>>, %arg9: memref<18x18x16xbf16, #tpu.memory_space<vmem>>, %arg10: memref<256x72xbf16, #tpu.memory_space<vmem>>, %arg11: memref<256x64xbf16, #tpu.memory_space<vmem>>) attributes {dimension_semantics = [#tpu.dimension_semantics<parallel>], iteration_bounds = array<i64: 2>, scalar_prefetch = 0 : i64, scratch_operands = 4 : i64, tpu.core_type = #tpu.core_type<tc>, window_params = [{transform_indices = @transform_0, window_bounds = array<i64: 1, 16, 16, 8>}, {pipeline_mode = #tpu.pipeline_mode<synchronous>, transform_indices = @transform_1, window_bounds = array<i64: 72, 16>}, {pipeline_mode = #tpu.pipeline_mode<synchronous>, transform_indices = @transform_2, window_bounds = array<i64: 1, 16>}, {pipeline_mode = #tpu.pipeline_mode<synchronous>, transform_indices = @transform_3, window_bounds = array<i64: 1, 16>}, {pipeline_mode = #tpu.pipeline_mode<synchronous>, transform_indices = @transform_4, window_bounds = array<i64: 4, 64, 8>}, {pipeline_mode = #tpu.pipeline_mode<synchronous>, transform_indices = @transform_5, window_bounds = array<i64: 1, 8>}, {transform_indices = @transform_6, window_bounds = array<i64: 1, 4, 256, 8>}]} {
    %cst = arith.constant 0.000000e+00 : bf16
    %0 = vector.broadcast %cst : bf16 to vector<1x18x8xbf16>
    %c0 = arith.constant 0 : index
    %c0_0 = arith.constant 0 : index
    %c0_1 = arith.constant 0 : index
    %1 = vector.load %arg8[%c0, %c0_0, %c0_1] : memref<18x18x8xbf16, #tpu.memory_space<vmem>>, vector<1x18x8xbf16>
    tpu.vector_store %arg8[%c0, %c0_0, %c0_1], %0 {strides = array<i32>} : memref<18x18x8xbf16, #tpu.memory_space<vmem>>, vector<1x18x8xbf16>,
    %cst_2 = arith.constant 0.000000e+00 : bf16
    %2 = vector.broadcast %cst_2 : bf16 to vector<1x18x8xbf16>
    %c17 = arith.constant 17 : index
    %c0_3 = arith.constant 0 : index
    %c0_4 = arith.constant 0 : index
    %3 = vector.load %arg8[%c17, %c0_3, %c0_4] : memref<18x18x8xbf16, #tpu.memory_space<vmem>>, vector<1x18x8xbf16>
    tpu.vector_store %arg8[%c17, %c0_3, %c0_4], %2 {strides = array<i32>} : memref<18x18x8xbf16, #tpu.memory_space<vmem>>, vector<1x18x8xbf16>,
    %cst_5 = arith.constant 0.000000e+00 : bf16
    %4 = vector.broadcast %cst_5 : bf16 to vector<16x1x8xbf16>
    %c1 = arith.constant 1 : index
    %c0_6 = arith.constant 0 : index
    %c0_7 = arith.constant 0 : index
    %5 = vector.load %arg8[%c1, %c0_6, %c0_7] : memref<18x18x8xbf16, #tpu.memory_space<vmem>>, vector<16x1x8xbf16>
    tpu.vector_store %arg8[%c1, %c0_6, %c0_7], %4 {strides = array<i32>} : memref<18x18x8xbf16, #tpu.memory_space<vmem>>, vector<16x1x8xbf16>,
    %cst_8 = arith.constant 0.000000e+00 : bf16
    %6 = vector.broadcast %cst_8 : bf16 to vector<16x1x8xbf16>
    %c1_9 = arith.constant 1 : index
    %c17_10 = arith.constant 17 : index
    %c0_11 = arith.constant 0 : index
    %7 = vector.load %arg8[%c1_9, %c17_10, %c0_11] : memref<18x18x8xbf16, #tpu.memory_space<vmem>>, vector<16x1x8xbf16>
    tpu.vector_store %arg8[%c1_9, %c17_10, %c0_11], %6 {strides = array<i32>} : memref<18x18x8xbf16, #tpu.memory_space<vmem>>, vector<16x1x8xbf16>,
    %cst_12 = arith.constant 0.000000e+00 : bf16
    %8 = vector.broadcast %cst_12 : bf16 to vector<1x18x16xbf16>
    %c0_13 = arith.constant 0 : index
    %c0_14 = arith.constant 0 : index
    %c0_15 = arith.constant 0 : index
    %9 = vector.load %arg9[%c0_13, %c0_14, %c0_15] : memref<18x18x16xbf16, #tpu.memory_space<vmem>>, vector<1x18x16xbf16>
    tpu.vector_store %arg9[%c0_13, %c0_14, %c0_15], %8 {strides = array<i32>} : memref<18x18x16xbf16, #tpu.memory_space<vmem>>, vector<1x18x16xbf16>,
    %cst_16 = arith.constant 0.000000e+00 : bf16
    %10 = vector.broadcast %cst_16 : bf16 to vector<1x18x16xbf16>
    %c17_17 = arith.constant 17 : index
    %c0_18 = arith.constant 0 : index
    %c0_19 = arith.constant 0 : index
    %11 = vector.load %arg9[%c17_17, %c0_18, %c0_19] : memref<18x18x16xbf16, #tpu.memory_space<vmem>>, vector<1x18x16xbf16>
    tpu.vector_store %arg9[%c17_17, %c0_18, %c0_19], %10 {strides = array<i32>} : memref<18x18x16xbf16, #tpu.memory_space<vmem>>, vector<1x18x16xbf16>,
    %cst_20 = arith.constant 0.000000e+00 : bf16
    %12 = vector.broadcast %cst_20 : bf16 to vector<16x1x16xbf16>
    %c1_21 = arith.constant 1 : index
    %c0_22 = arith.constant 0 : index
    %c0_23 = arith.constant 0 : index
    %13 = vector.load %arg9[%c1_21, %c0_22, %c0_23] : memref<18x18x16xbf16, #tpu.memory_space<vmem>>, vector<16x1x16xbf16>
    tpu.vector_store %arg9[%c1_21, %c0_22, %c0_23], %12 {strides = array<i32>} : memref<18x18x16xbf16, #tpu.memory_space<vmem>>, vector<16x1x16xbf16>,
    %cst_24 = arith.constant 0.000000e+00 : bf16
    %14 = vector.broadcast %cst_24 : bf16 to vector<16x1x16xbf16>
    %c1_25 = arith.constant 1 : index
    %c17_26 = arith.constant 17 : index
    %c0_27 = arith.constant 0 : index
    %15 = vector.load %arg9[%c1_25, %c17_26, %c0_27] : memref<18x18x16xbf16, #tpu.memory_space<vmem>>, vector<16x1x16xbf16>
    tpu.vector_store %arg9[%c1_25, %c17_26, %c0_27], %14 {strides = array<i32>} : memref<18x18x16xbf16, #tpu.memory_space<vmem>>, vector<16x1x16xbf16>,
    %c0_28 = arith.constant 0 : index
    %c0_29 = arith.constant 0 : index
    %c0_30 = arith.constant 0 : index
    %c0_31 = arith.constant 0 : index
    %16 = vector.load %arg1[%c0_28, %c0_29, %c0_30, %c0_31] : memref<1x16x16x8xbf16, #tpu.memory_space<vmem>>, vector<1x16x16x8xbf16>
    %17 = vector.shape_cast %16 : vector<1x16x16x8xbf16> to vector<16x16x8xbf16>
    %c1_32 = arith.constant 1 : index
    %c1_33 = arith.constant 1 : index
    %c0_34 = arith.constant 0 : index
    %18 = vector.load %arg8[%c1_32, %c1_33, %c0_34] : memref<18x18x8xbf16, #tpu.memory_space<vmem>>, vector<16x16x8xbf16>
    tpu.vector_store %arg8[%c1_32, %c1_33, %c0_34], %17 {strides = array<i32>} : memref<18x18x8xbf16, #tpu.memory_space<vmem>>, vector<16x16x8xbf16>,
    %c0_35 = arith.constant 0 : index
    %c0_36 = arith.constant 0 : index
    %c0_37 = arith.constant 0 : index
    %19 = vector.load %arg8[%c0_35, %c0_36, %c0_37] : memref<18x18x8xbf16, #tpu.memory_space<vmem>>, vector<16x16x8xbf16>
    %20 = vector.shape_cast %19 : vector<16x16x8xbf16> to vector<256x8xbf16>
    %c0_38 = arith.constant 0 : index
    %c0_39 = arith.constant 0 : index
    %21 = vector.load %arg10[%c0_38, %c0_39] : memref<256x72xbf16, #tpu.memory_space<vmem>>, vector<256x8xbf16>
    tpu.vector_store %arg10[%c0_38, %c0_39], %20 {strides = array<i32>} : memref<256x72xbf16, #tpu.memory_space<vmem>>, vector<256x8xbf16>,
    %c0_40 = arith.constant 0 : index
    %c1_41 = arith.constant 1 : index
    %c0_42 = arith.constant 0 : index
    %22 = vector.load %arg8[%c0_40, %c1_41, %c0_42] : memref<18x18x8xbf16, #tpu.memory_space<vmem>>, vector<16x16x8xbf16>
    %23 = vector.shape_cast %22 : vector<16x16x8xbf16> to vector<256x8xbf16>
    %c0_43 = arith.constant 0 : index
    %c8 = arith.constant 8 : index
    %24 = vector.load %arg10[%c0_43, %c8] : memref<256x72xbf16, #tpu.memory_space<vmem>>, vector<256x8xbf16>
    tpu.vector_store %arg10[%c0_43, %c8], %23 {strides = array<i32>} : memref<256x72xbf16, #tpu.memory_space<vmem>>, vector<256x8xbf16>,
    %c0_44 = arith.constant 0 : index
    %c2 = arith.constant 2 : index
    %c0_45 = arith.constant 0 : index
    %25 = vector.load %arg8[%c0_44, %c2, %c0_45] : memref<18x18x8xbf16, #tpu.memory_space<vmem>>, vector<16x16x8xbf16>
    %26 = vector.shape_cast %25 : vector<16x16x8xbf16> to vector<256x8xbf16>
    %c0_46 = arith.constant 0 : index
    %c16 = arith.constant 16 : index
    %27 = vector.load %arg10[%c0_46, %c16] : memref<256x72xbf16, #tpu.memory_space<vmem>>, vector<256x8xbf16>
    tpu.vector_store %arg10[%c0_46, %c16], %26 {strides = array<i32>} : memref<256x72xbf16, #tpu.memory_space<vmem>>, vector<256x8xbf16>,
    %c1_47 = arith.constant 1 : index
    %c0_48 = arith.constant 0 : index
    %c0_49 = arith.constant 0 : index
    %28 = vector.load %arg8[%c1_47, %c0_48, %c0_49] : memref<18x18x8xbf16, #tpu.memory_space<vmem>>, vector<16x16x8xbf16>
    %29 = vector.shape_cast %28 : vector<16x16x8xbf16> to vector<256x8xbf16>
    %c0_50 = arith.constant 0 : index
    %c24 = arith.constant 24 : index
    %30 = vector.load %arg10[%c0_50, %c24] : memref<256x72xbf16, #tpu.memory_space<vmem>>, vector<256x8xbf16>
    tpu.vector_store %arg10[%c0_50, %c24], %29 {strides = array<i32>} : memref<256x72xbf16, #tpu.memory_space<vmem>>, vector<256x8xbf16>,
    %c1_51 = arith.constant 1 : index
    %c1_52 = arith.constant 1 : index
    %c0_53 = arith.constant 0 : index
    %31 = vector.load %arg8[%c1_51, %c1_52, %c0_53] : memref<18x18x8xbf16, #tpu.memory_space<vmem>>, vector<16x16x8xbf16>
    %32 = vector.shape_cast %31 : vector<16x16x8xbf16> to vector<256x8xbf16>
    %c0_54 = arith.constant 0 : index
    %c32 = arith.constant 32 : index
    %33 = vector.load %arg10[%c0_54, %c32] : memref<256x72xbf16, #tpu.memory_space<vmem>>, vector<256x8xbf16>
    tpu.vector_store %arg10[%c0_54, %c32], %32 {strides = array<i32>} : memref<256x72xbf16, #tpu.memory_space<vmem>>, vector<256x8xbf16>,
    %c1_55 = arith.constant 1 : index
    %c2_56 = arith.constant 2 : index
    %c0_57 = arith.constant 0 : index
    %34 = vector.load %arg8[%c1_55, %c2_56, %c0_57] : memref<18x18x8xbf16, #tpu.memory_space<vmem>>, vector<16x16x8xbf16>
    %35 = vector.shape_cast %34 : vector<16x16x8xbf16> to vector<256x8xbf16>
    %c0_58 = arith.constant 0 : index
    %c40 = arith.constant 40 : index
    %36 = vector.load %arg10[%c0_58, %c40] : memref<256x72xbf16, #tpu.memory_space<vmem>>, vector<256x8xbf16>
    tpu.vector_store %arg10[%c0_58, %c40], %35 {strides = array<i32>} : memref<256x72xbf16, #tpu.memory_space<vmem>>, vector<256x8xbf16>,
    %c2_59 = arith.constant 2 : index
    %c0_60 = arith.constant 0 : index
    %c0_61 = arith.constant 0 : index
    %37 = vector.load %arg8[%c2_59, %c0_60, %c0_61] : memref<18x18x8xbf16, #tpu.memory_space<vmem>>, vector<16x16x8xbf16>
    %38 = vector.shape_cast %37 : vector<16x16x8xbf16> to vector<256x8xbf16>
    %c0_62 = arith.constant 0 : index
    %c48 = arith.constant 48 : index
    %39 = vector.load %arg10[%c0_62, %c48] : memref<256x72xbf16, #tpu.memory_space<vmem>>, vector<256x8xbf16>
    tpu.vector_store %arg10[%c0_62, %c48], %38 {strides = array<i32>} : memref<256x72xbf16, #tpu.memory_space<vmem>>, vector<256x8xbf16>,
    %c2_63 = arith.constant 2 : index
    %c1_64 = arith.constant 1 : index
    %c0_65 = arith.constant 0 : index
    %40 = vector.load %arg8[%c2_63, %c1_64, %c0_65] : memref<18x18x8xbf16, #tpu.memory_space<vmem>>, vector<16x16x8xbf16>
    %41 = vector.shape_cast %40 : vector<16x16x8xbf16> to vector<256x8xbf16>
    %c0_66 = arith.constant 0 : index
    %c56 = arith.constant 56 : index
    %42 = vector.load %arg10[%c0_66, %c56] : memref<256x72xbf16, #tpu.memory_space<vmem>>, vector<256x8xbf16>
    tpu.vector_store %arg10[%c0_66, %c56], %41 {strides = array<i32>} : memref<256x72xbf16, #tpu.memory_space<vmem>>, vector<256x8xbf16>,
    %c2_67 = arith.constant 2 : index
    %c2_68 = arith.constant 2 : index
    %c0_69 = arith.constant 0 : index
    %43 = vector.load %arg8[%c2_67, %c2_68, %c0_69] : memref<18x18x8xbf16, #tpu.memory_space<vmem>>, vector<16x16x8xbf16>
    %44 = vector.shape_cast %43 : vector<16x16x8xbf16> to vector<256x8xbf16>
    %c0_70 = arith.constant 0 : index
    %c64 = arith.constant 64 : index
    %45 = vector.load %arg10[%c0_70, %c64] : memref<256x72xbf16, #tpu.memory_space<vmem>>, vector<256x8xbf16>
    tpu.vector_store %arg10[%c0_70, %c64], %44 {strides = array<i32>} : memref<256x72xbf16, #tpu.memory_space<vmem>>, vector<256x8xbf16>,
    %c0_71 = arith.constant 0 : index
    %c0_72 = arith.constant 0 : index
    %46 = vector.load %arg10[%c0_71, %c0_72] : memref<256x72xbf16, #tpu.memory_space<vmem>>, vector<256x72xbf16>
    %c0_73 = arith.constant 0 : index
    %c0_74 = arith.constant 0 : index
    %47 = vector.load %arg2[%c0_73, %c0_74] : memref<72x16xbf16, #tpu.memory_space<vmem>>, vector<72x16xbf16>
    %cst_75 = arith.constant dense<0.000000e+00> : vector<256x16xf32>
    %48 = tpu.matmul %46, %47, %cst_75 {dimension_numbers = #tpu.dot_dimension_numbers<[1], [0], [0], [1], [0, 0, 1, 1], [], []>} : vector<256x72xbf16>, vector<72x16xbf16>, vector<256x16xf32> -> vector<256x16xf32>
    %c0_76 = arith.constant 0 : index
    %c0_77 = arith.constant 0 : index
    %49 = vector.load %arg3[%c0_76, %c0_77] : memref<1x16xf32, #tpu.memory_space<vmem>>, vector<1x16xf32>
    %50 = vector.broadcast %49 : vector<1x16xf32> to vector<256x16xf32>
    %51 = arith.mulf %48, %50 : vector<256x16xf32>
    %c0_78 = arith.constant 0 : index
    %c0_79 = arith.constant 0 : index
    %52 = vector.load %arg4[%c0_78, %c0_79] : memref<1x16xf32, #tpu.memory_space<vmem>>, vector<1x16xf32>
    %53 = vector.broadcast %52 : vector<1x16xf32> to vector<256x16xf32>
    %54 = arith.addf %51, %53 : vector<256x16xf32>
    %cst_80 = arith.constant 0.000000e+00 : f32
    %55 = vector.broadcast %cst_80 : f32 to vector<256x16xf32>
    %56 = arith.maximumf %54, %55 : vector<256x16xf32>
    %57 = vector.shape_cast %56 : vector<256x16xf32> to vector<16x16x16xf32>
    %58 = arith.truncf %57 : vector<16x16x16xf32> to vector<16x16x16xbf16>
    %c1_81 = arith.constant 1 : index
    %c1_82 = arith.constant 1 : index
    %c0_83 = arith.constant 0 : index
    %59 = vector.load %arg9[%c1_81, %c1_82, %c0_83] : memref<18x18x16xbf16, #tpu.memory_space<vmem>>, vector<16x16x16xbf16>
    tpu.vector_store %arg9[%c1_81, %c1_82, %c0_83], %58 {strides = array<i32>} : memref<18x18x16xbf16, #tpu.memory_space<vmem>>, vector<16x16x16xbf16>,
    %c0_84 = arith.constant 0 : index
    %c0_85 = arith.constant 0 : index
    %60 = vector.load %arg6[%c0_84, %c0_85] : memref<1x8xf32, #tpu.memory_space<vmem>>, vector<1x8xf32>
    %c0_86 = arith.constant 0 : index
    %c0_87 = arith.constant 0 : index
    %c0_88 = arith.constant 0 : index
    %61 = vector.load %arg9[%c0_86, %c0_87, %c0_88] : memref<18x18x16xbf16, #tpu.memory_space<vmem>>, vector<16x16x16xbf16>
    %62 = vector.shape_cast %61 : vector<16x16x16xbf16> to vector<256x16xbf16>
    %c0_89 = arith.constant 0 : index
    %c0_90 = arith.constant 0 : index
    %63 = vector.load %arg11[%c0_89, %c0_90] : memref<256x64xbf16, #tpu.memory_space<vmem>>, vector<256x16xbf16>
    tpu.vector_store %arg11[%c0_89, %c0_90], %62 {strides = array<i32>} : memref<256x64xbf16, #tpu.memory_space<vmem>>, vector<256x16xbf16>,
    %c0_91 = arith.constant 0 : index
    %c1_92 = arith.constant 1 : index
    %c0_93 = arith.constant 0 : index
    %64 = vector.load %arg9[%c0_91, %c1_92, %c0_93] : memref<18x18x16xbf16, #tpu.memory_space<vmem>>, vector<16x16x16xbf16>
    %65 = vector.shape_cast %64 : vector<16x16x16xbf16> to vector<256x16xbf16>
    %c0_94 = arith.constant 0 : index
    %c16_95 = arith.constant 16 : index
    %66 = vector.load %arg11[%c0_94, %c16_95] : memref<256x64xbf16, #tpu.memory_space<vmem>>, vector<256x16xbf16>
    tpu.vector_store %arg11[%c0_94, %c16_95], %65 {strides = array<i32>} : memref<256x64xbf16, #tpu.memory_space<vmem>>, vector<256x16xbf16>,
    %c1_96 = arith.constant 1 : index
    %c0_97 = arith.constant 0 : index
    %c0_98 = arith.constant 0 : index
    %67 = vector.load %arg9[%c1_96, %c0_97, %c0_98] : memref<18x18x16xbf16, #tpu.memory_space<vmem>>, vector<16x16x16xbf16>
    %68 = vector.shape_cast %67 : vector<16x16x16xbf16> to vector<256x16xbf16>
    %c0_99 = arith.constant 0 : index
    %c32_100 = arith.constant 32 : index
    %69 = vector.load %arg11[%c0_99, %c32_100] : memref<256x64xbf16, #tpu.memory_space<vmem>>, vector<256x16xbf16>
    tpu.vector_store %arg11[%c0_99, %c32_100], %68 {strides = array<i32>} : memref<256x64xbf16, #tpu.memory_space<vmem>>, vector<256x16xbf16>,
    %c1_101 = arith.constant 1 : index
    %c1_102 = arith.constant 1 : index
    %c0_103 = arith.constant 0 : index
    %70 = vector.load %arg9[%c1_101, %c1_102, %c0_103] : memref<18x18x16xbf16, #tpu.memory_space<vmem>>, vector<16x16x16xbf16>
    %71 = vector.shape_cast %70 : vector<16x16x16xbf16> to vector<256x16xbf16>
    %c0_104 = arith.constant 0 : index
    %c48_105 = arith.constant 48 : index
    %72 = vector.load %arg11[%c0_104, %c48_105] : memref<256x64xbf16, #tpu.memory_space<vmem>>, vector<256x16xbf16>
    tpu.vector_store %arg11[%c0_104, %c48_105], %71 {strides = array<i32>} : memref<256x64xbf16, #tpu.memory_space<vmem>>, vector<256x16xbf16>,
    %c0_106 = arith.constant 0 : index
    %c0_107 = arith.constant 0 : index
    %73 = vector.load %arg11[%c0_106, %c0_107] : memref<256x64xbf16, #tpu.memory_space<vmem>>, vector<256x64xbf16>
    %c0_108 = arith.constant 0 : index
    %c0_109 = arith.constant 0 : index
    %c0_110 = arith.constant 0 : index
    %74 = vector.load %arg5[%c0_108, %c0_109, %c0_110] : memref<4x64x8xbf16, #tpu.memory_space<vmem>>, vector<1x64x8xbf16>
    %75 = vector.shape_cast %74 : vector<1x64x8xbf16> to vector<64x8xbf16>
    %cst_111 = arith.constant dense<0.000000e+00> : vector<256x8xf32>
    %76 = tpu.matmul %73, %75, %cst_111 {dimension_numbers = #tpu.dot_dimension_numbers<[1], [0], [0], [1], [0, 0, 1, 1], [], []>} : vector<256x64xbf16>, vector<64x8xbf16>, vector<256x8xf32> -> vector<256x8xf32>
    %77 = vector.broadcast %60 : vector<1x8xf32> to vector<256x8xf32>
    %78 = arith.addf %76, %77 : vector<256x8xf32>
    %cst_112 = arith.constant 0.000000e+00 : f32
    %79 = vector.broadcast %cst_112 : f32 to vector<256x8xf32>
    %80 = arith.maximumf %78, %79 : vector<256x8xf32>
    %81 = arith.truncf %80 : vector<256x8xf32> to vector<256x8xbf16>
    %c0_113 = arith.constant 0 : index
    %c0_114 = arith.constant 0 : index
    %c0_115 = arith.constant 0 : index
    %c0_116 = arith.constant 0 : index
    %82 = vector.load %arg7[%c0_113, %c0_114, %c0_115, %c0_116] : memref<1x4x256x8xbf16, #tpu.memory_space<vmem>>, vector<1x1x256x8xbf16>
    %83 = vector.shape_cast %82 : vector<1x1x256x8xbf16> to vector<256x8xbf16>
    %84 = vector.shape_cast %81 : vector<256x8xbf16> to vector<1x1x256x8xbf16>
    tpu.vector_store %arg7[%c0_113, %c0_114, %c0_115, %c0_116], %84 {strides = array<i32>} : memref<1x4x256x8xbf16, #tpu.memory_space<vmem>>, vector<1x1x256x8xbf16>,
    %c0_117 = arith.constant 0 : index
    %c1_118 = arith.constant 1 : index
    %c0_119 = arith.constant 0 : index
    %85 = vector.load %arg9[%c0_117, %c1_118, %c0_119] : memref<18x18x16xbf16, #tpu.memory_space<vmem>>, vector<16x16x16xbf16>
    %86 = vector.shape_cast %85 : vector<16x16x16xbf16> to vector<256x16xbf16>
    %c0_120 = arith.constant 0 : index
    %c0_121 = arith.constant 0 : index
    %87 = vector.load %arg11[%c0_120, %c0_121] : memref<256x64xbf16, #tpu.memory_space<vmem>>, vector<256x16xbf16>
    tpu.vector_store %arg11[%c0_120, %c0_121], %86 {strides = array<i32>} : memref<256x64xbf16, #tpu.memory_space<vmem>>, vector<256x16xbf16>,
    %c0_122 = arith.constant 0 : index
    %c2_123 = arith.constant 2 : index
    %c0_124 = arith.constant 0 : index
    %88 = vector.load %arg9[%c0_122, %c2_123, %c0_124] : memref<18x18x16xbf16, #tpu.memory_space<vmem>>, vector<16x16x16xbf16>
    %89 = vector.shape_cast %88 : vector<16x16x16xbf16> to vector<256x16xbf16>
    %c0_125 = arith.constant 0 : index
    %c16_126 = arith.constant 16 : index
    %90 = vector.load %arg11[%c0_125, %c16_126] : memref<256x64xbf16, #tpu.memory_space<vmem>>, vector<256x16xbf16>
    tpu.vector_store %arg11[%c0_125, %c16_126], %89 {strides = array<i32>} : memref<256x64xbf16, #tpu.memory_space<vmem>>, vector<256x16xbf16>,
    %c1_127 = arith.constant 1 : index
    %c1_128 = arith.constant 1 : index
    %c0_129 = arith.constant 0 : index
    %91 = vector.load %arg9[%c1_127, %c1_128, %c0_129] : memref<18x18x16xbf16, #tpu.memory_space<vmem>>, vector<16x16x16xbf16>
    %92 = vector.shape_cast %91 : vector<16x16x16xbf16> to vector<256x16xbf16>
    %c0_130 = arith.constant 0 : index
    %c32_131 = arith.constant 32 : index
    %93 = vector.load %arg11[%c0_130, %c32_131] : memref<256x64xbf16, #tpu.memory_space<vmem>>, vector<256x16xbf16>
    tpu.vector_store %arg11[%c0_130, %c32_131], %92 {strides = array<i32>} : memref<256x64xbf16, #tpu.memory_space<vmem>>, vector<256x16xbf16>,
    %c1_132 = arith.constant 1 : index
    %c2_133 = arith.constant 2 : index
    %c0_134 = arith.constant 0 : index
    %94 = vector.load %arg9[%c1_132, %c2_133, %c0_134] : memref<18x18x16xbf16, #tpu.memory_space<vmem>>, vector<16x16x16xbf16>
    %95 = vector.shape_cast %94 : vector<16x16x16xbf16> to vector<256x16xbf16>
    %c0_135 = arith.constant 0 : index
    %c48_136 = arith.constant 48 : index
    %96 = vector.load %arg11[%c0_135, %c48_136] : memref<256x64xbf16, #tpu.memory_space<vmem>>, vector<256x16xbf16>
    tpu.vector_store %arg11[%c0_135, %c48_136], %95 {strides = array<i32>} : memref<256x64xbf16, #tpu.memory_space<vmem>>, vector<256x16xbf16>,
    %c0_137 = arith.constant 0 : index
    %c0_138 = arith.constant 0 : index
    %97 = vector.load %arg11[%c0_137, %c0_138] : memref<256x64xbf16, #tpu.memory_space<vmem>>, vector<256x64xbf16>
    %c1_139 = arith.constant 1 : index
    %c0_140 = arith.constant 0 : index
    %c0_141 = arith.constant 0 : index
    %98 = vector.load %arg5[%c1_139, %c0_140, %c0_141] : memref<4x64x8xbf16, #tpu.memory_space<vmem>>, vector<1x64x8xbf16>
    %99 = vector.shape_cast %98 : vector<1x64x8xbf16> to vector<64x8xbf16>
    %cst_142 = arith.constant dense<0.000000e+00> : vector<256x8xf32>
    %100 = tpu.matmul %97, %99, %cst_142 {dimension_numbers = #tpu.dot_dimension_numbers<[1], [0], [0], [1], [0, 0, 1, 1], [], []>} : vector<256x64xbf16>, vector<64x8xbf16>, vector<256x8xf32> -> vector<256x8xf32>
    %101 = vector.broadcast %60 : vector<1x8xf32> to vector<256x8xf32>
    %102 = arith.addf %100, %101 : vector<256x8xf32>
    %cst_143 = arith.constant 0.000000e+00 : f32
    %103 = vector.broadcast %cst_143 : f32 to vector<256x8xf32>
    %104 = arith.maximumf %102, %103 : vector<256x8xf32>
    %105 = arith.truncf %104 : vector<256x8xf32> to vector<256x8xbf16>
    %c0_144 = arith.constant 0 : index
    %c1_145 = arith.constant 1 : index
    %c0_146 = arith.constant 0 : index
    %c0_147 = arith.constant 0 : index
    %106 = vector.load %arg7[%c0_144, %c1_145, %c0_146, %c0_147] : memref<1x4x256x8xbf16, #tpu.memory_space<vmem>>, vector<1x1x256x8xbf16>
    %107 = vector.shape_cast %106 : vector<1x1x256x8xbf16> to vector<256x8xbf16>
    %108 = vector.shape_cast %105 : vector<256x8xbf16> to vector<1x1x256x8xbf16>
    tpu.vector_store %arg7[%c0_144, %c1_145, %c0_146, %c0_147], %108 {strides = array<i32>} : memref<1x4x256x8xbf16, #tpu.memory_space<vmem>>, vector<1x1x256x8xbf16>,
    %c1_148 = arith.constant 1 : index
    %c0_149 = arith.constant 0 : index
    %c0_150 = arith.constant 0 : index
    %109 = vector.load %arg9[%c1_148, %c0_149, %c0_150] : memref<18x18x16xbf16, #tpu.memory_space<vmem>>, vector<16x16x16xbf16>
    %110 = vector.shape_cast %109 : vector<16x16x16xbf16> to vector<256x16xbf16>
    %c0_151 = arith.constant 0 : index
    %c0_152 = arith.constant 0 : index
    %111 = vector.load %arg11[%c0_151, %c0_152] : memref<256x64xbf16, #tpu.memory_space<vmem>>, vector<256x16xbf16>
    tpu.vector_store %arg11[%c0_151, %c0_152], %110 {strides = array<i32>} : memref<256x64xbf16, #tpu.memory_space<vmem>>, vector<256x16xbf16>,
    %c1_153 = arith.constant 1 : index
    %c1_154 = arith.constant 1 : index
    %c0_155 = arith.constant 0 : index
    %112 = vector.load %arg9[%c1_153, %c1_154, %c0_155] : memref<18x18x16xbf16, #tpu.memory_space<vmem>>, vector<16x16x16xbf16>
    %113 = vector.shape_cast %112 : vector<16x16x16xbf16> to vector<256x16xbf16>
    %c0_156 = arith.constant 0 : index
    %c16_157 = arith.constant 16 : index
    %114 = vector.load %arg11[%c0_156, %c16_157] : memref<256x64xbf16, #tpu.memory_space<vmem>>, vector<256x16xbf16>
    tpu.vector_store %arg11[%c0_156, %c16_157], %113 {strides = array<i32>} : memref<256x64xbf16, #tpu.memory_space<vmem>>, vector<256x16xbf16>,
    %c2_158 = arith.constant 2 : index
    %c0_159 = arith.constant 0 : index
    %c0_160 = arith.constant 0 : index
    %115 = vector.load %arg9[%c2_158, %c0_159, %c0_160] : memref<18x18x16xbf16, #tpu.memory_space<vmem>>, vector<16x16x16xbf16>
    %116 = vector.shape_cast %115 : vector<16x16x16xbf16> to vector<256x16xbf16>
    %c0_161 = arith.constant 0 : index
    %c32_162 = arith.constant 32 : index
    %117 = vector.load %arg11[%c0_161, %c32_162] : memref<256x64xbf16, #tpu.memory_space<vmem>>, vector<256x16xbf16>
    tpu.vector_store %arg11[%c0_161, %c32_162], %116 {strides = array<i32>} : memref<256x64xbf16, #tpu.memory_space<vmem>>, vector<256x16xbf16>,
    %c2_163 = arith.constant 2 : index
    %c1_164 = arith.constant 1 : index
    %c0_165 = arith.constant 0 : index
    %118 = vector.load %arg9[%c2_163, %c1_164, %c0_165] : memref<18x18x16xbf16, #tpu.memory_space<vmem>>, vector<16x16x16xbf16>
    %119 = vector.shape_cast %118 : vector<16x16x16xbf16> to vector<256x16xbf16>
    %c0_166 = arith.constant 0 : index
    %c48_167 = arith.constant 48 : index
    %120 = vector.load %arg11[%c0_166, %c48_167] : memref<256x64xbf16, #tpu.memory_space<vmem>>, vector<256x16xbf16>
    tpu.vector_store %arg11[%c0_166, %c48_167], %119 {strides = array<i32>} : memref<256x64xbf16, #tpu.memory_space<vmem>>, vector<256x16xbf16>,
    %c0_168 = arith.constant 0 : index
    %c0_169 = arith.constant 0 : index
    %121 = vector.load %arg11[%c0_168, %c0_169] : memref<256x64xbf16, #tpu.memory_space<vmem>>, vector<256x64xbf16>
    %c2_170 = arith.constant 2 : index
    %c0_171 = arith.constant 0 : index
    %c0_172 = arith.constant 0 : index
    %122 = vector.load %arg5[%c2_170, %c0_171, %c0_172] : memref<4x64x8xbf16, #tpu.memory_space<vmem>>, vector<1x64x8xbf16>
    %123 = vector.shape_cast %122 : vector<1x64x8xbf16> to vector<64x8xbf16>
    %cst_173 = arith.constant dense<0.000000e+00> : vector<256x8xf32>
    %124 = tpu.matmul %121, %123, %cst_173 {dimension_numbers = #tpu.dot_dimension_numbers<[1], [0], [0], [1], [0, 0, 1, 1], [], []>} : vector<256x64xbf16>, vector<64x8xbf16>, vector<256x8xf32> -> vector<256x8xf32>
    %125 = vector.broadcast %60 : vector<1x8xf32> to vector<256x8xf32>
    %126 = arith.addf %124, %125 : vector<256x8xf32>
    %cst_174 = arith.constant 0.000000e+00 : f32
    %127 = vector.broadcast %cst_174 : f32 to vector<256x8xf32>
    %128 = arith.maximumf %126, %127 : vector<256x8xf32>
    %129 = arith.truncf %128 : vector<256x8xf32> to vector<256x8xbf16>
    %c0_175 = arith.constant 0 : index
    %c2_176 = arith.constant 2 : index
    %c0_177 = arith.constant 0 : index
    %c0_178 = arith.constant 0 : index
    %130 = vector.load %arg7[%c0_175, %c2_176, %c0_177, %c0_178] : memref<1x4x256x8xbf16, #tpu.memory_space<vmem>>, vector<1x1x256x8xbf16>
    %131 = vector.shape_cast %130 : vector<1x1x256x8xbf16> to vector<256x8xbf16>
    %132 = vector.shape_cast %129 : vector<256x8xbf16> to vector<1x1x256x8xbf16>
    tpu.vector_store %arg7[%c0_175, %c2_176, %c0_177, %c0_178], %132 {strides = array<i32>} : memref<1x4x256x8xbf16, #tpu.memory_space<vmem>>, vector<1x1x256x8xbf16>,
    %c1_179 = arith.constant 1 : index
    %c1_180 = arith.constant 1 : index
    %c0_181 = arith.constant 0 : index
    %133 = vector.load %arg9[%c1_179, %c1_180, %c0_181] : memref<18x18x16xbf16, #tpu.memory_space<vmem>>, vector<16x16x16xbf16>
    %134 = vector.shape_cast %133 : vector<16x16x16xbf16> to vector<256x16xbf16>
    %c0_182 = arith.constant 0 : index
    %c0_183 = arith.constant 0 : index
    %135 = vector.load %arg11[%c0_182, %c0_183] : memref<256x64xbf16, #tpu.memory_space<vmem>>, vector<256x16xbf16>
    tpu.vector_store %arg11[%c0_182, %c0_183], %134 {strides = array<i32>} : memref<256x64xbf16, #tpu.memory_space<vmem>>, vector<256x16xbf16>,
    %c1_184 = arith.constant 1 : index
    %c2_185 = arith.constant 2 : index
    %c0_186 = arith.constant 0 : index
    %136 = vector.load %arg9[%c1_184, %c2_185, %c0_186] : memref<18x18x16xbf16, #tpu.memory_space<vmem>>, vector<16x16x16xbf16>
    %137 = vector.shape_cast %136 : vector<16x16x16xbf16> to vector<256x16xbf16>
    %c0_187 = arith.constant 0 : index
    %c16_188 = arith.constant 16 : index
    %138 = vector.load %arg11[%c0_187, %c16_188] : memref<256x64xbf16, #tpu.memory_space<vmem>>, vector<256x16xbf16>
    tpu.vector_store %arg11[%c0_187, %c16_188], %137 {strides = array<i32>} : memref<256x64xbf16, #tpu.memory_space<vmem>>, vector<256x16xbf16>,
    %c2_189 = arith.constant 2 : index
    %c1_190 = arith.constant 1 : index
    %c0_191 = arith.constant 0 : index
    %139 = vector.load %arg9[%c2_189, %c1_190, %c0_191] : memref<18x18x16xbf16, #tpu.memory_space<vmem>>, vector<16x16x16xbf16>
    %140 = vector.shape_cast %139 : vector<16x16x16xbf16> to vector<256x16xbf16>
    %c0_192 = arith.constant 0 : index
    %c32_193 = arith.constant 32 : index
    %141 = vector.load %arg11[%c0_192, %c32_193] : memref<256x64xbf16, #tpu.memory_space<vmem>>, vector<256x16xbf16>
    tpu.vector_store %arg11[%c0_192, %c32_193], %140 {strides = array<i32>} : memref<256x64xbf16, #tpu.memory_space<vmem>>, vector<256x16xbf16>,
    %c2_194 = arith.constant 2 : index
    %c2_195 = arith.constant 2 : index
    %c0_196 = arith.constant 0 : index
    %142 = vector.load %arg9[%c2_194, %c2_195, %c0_196] : memref<18x18x16xbf16, #tpu.memory_space<vmem>>, vector<16x16x16xbf16>
    %143 = vector.shape_cast %142 : vector<16x16x16xbf16> to vector<256x16xbf16>
    %c0_197 = arith.constant 0 : index
    %c48_198 = arith.constant 48 : index
    %144 = vector.load %arg11[%c0_197, %c48_198] : memref<256x64xbf16, #tpu.memory_space<vmem>>, vector<256x16xbf16>
    tpu.vector_store %arg11[%c0_197, %c48_198], %143 {strides = array<i32>} : memref<256x64xbf16, #tpu.memory_space<vmem>>, vector<256x16xbf16>,
    %c0_199 = arith.constant 0 : index
    %c0_200 = arith.constant 0 : index
    %145 = vector.load %arg11[%c0_199, %c0_200] : memref<256x64xbf16, #tpu.memory_space<vmem>>, vector<256x64xbf16>
    %c3 = arith.constant 3 : index
    %c0_201 = arith.constant 0 : index
    %c0_202 = arith.constant 0 : index
    %146 = vector.load %arg5[%c3, %c0_201, %c0_202] : memref<4x64x8xbf16, #tpu.memory_space<vmem>>, vector<1x64x8xbf16>
    %147 = vector.shape_cast %146 : vector<1x64x8xbf16> to vector<64x8xbf16>
    %cst_203 = arith.constant dense<0.000000e+00> : vector<256x8xf32>
    %148 = tpu.matmul %145, %147, %cst_203 {dimension_numbers = #tpu.dot_dimension_numbers<[1], [0], [0], [1], [0, 0, 1, 1], [], []>} : vector<256x64xbf16>, vector<64x8xbf16>, vector<256x8xf32> -> vector<256x8xf32>
    %149 = vector.broadcast %60 : vector<1x8xf32> to vector<256x8xf32>
    %150 = arith.addf %148, %149 : vector<256x8xf32>
    %cst_204 = arith.constant 0.000000e+00 : f32
    %151 = vector.broadcast %cst_204 : f32 to vector<256x8xf32>
    %152 = arith.maximumf %150, %151 : vector<256x8xf32>
    %153 = arith.truncf %152 : vector<256x8xf32> to vector<256x8xbf16>
    %c0_205 = arith.constant 0 : index
    %c3_206 = arith.constant 3 : index
    %c0_207 = arith.constant 0 : index
    %c0_208 = arith.constant 0 : index
    %154 = vector.load %arg7[%c0_205, %c3_206, %c0_207, %c0_208] : memref<1x4x256x8xbf16, #tpu.memory_space<vmem>>, vector<1x1x256x8xbf16>
    %155 = vector.shape_cast %154 : vector<1x1x256x8xbf16> to vector<256x8xbf16>
    %156 = vector.shape_cast %153 : vector<256x8xbf16> to vector<1x1x256x8xbf16>
    tpu.vector_store %arg7[%c0_205, %c3_206, %c0_207, %c0_208], %156 {strides = array<i32>} : memref<1x4x256x8xbf16, #tpu.memory_space<vmem>>, vector<1x1x256x8xbf16>,
    return
  }
  func.func @transform_0(%arg0: i32) -> (i32, i32, i32, i32) {
    %c0_i32 = arith.constant 0 : i32
    %c0_i32_0 = arith.constant 0 : i32
    %c0_i32_1 = arith.constant 0 : i32
    %c0_i32_2 = arith.constant 0 : i32
    return %arg0, %c0_i32, %c0_i32_0, %c0_i32_1 : i32, i32, i32, i32
  }
  func.func @transform_1(%arg0: i32) -> (i32, i32) {
    %c0_i32 = arith.constant 0 : i32
    %c0_i32_0 = arith.constant 0 : i32
    %c0_i32_1 = arith.constant 0 : i32
    return %c0_i32, %c0_i32_0 : i32, i32
  }
  func.func @transform_2(%arg0: i32) -> (i32, i32) {
    %c0_i32 = arith.constant 0 : i32
    %c0_i32_0 = arith.constant 0 : i32
    %c0_i32_1 = arith.constant 0 : i32
    return %c0_i32, %c0_i32_0 : i32, i32
  }
  func.func @transform_3(%arg0: i32) -> (i32, i32) {
    %c0_i32 = arith.constant 0 : i32
    %c0_i32_0 = arith.constant 0 : i32
    %c0_i32_1 = arith.constant 0 : i32
    return %c0_i32, %c0_i32_0 : i32, i32
  }
  func.func @transform_4(%arg0: i32) -> (i32, i32, i32) {
    %c0_i32 = arith.constant 0 : i32
    %c0_i32_0 = arith.constant 0 : i32
    %c0_i32_1 = arith.constant 0 : i32
    %c0_i32_2 = arith.constant 0 : i32
    return %c0_i32, %c0_i32_0, %c0_i32_1 : i32, i32, i32
  }
  func.func @transform_5(%arg0: i32) -> (i32, i32) {
    %c0_i32 = arith.constant 0 : i32
    %c0_i32_0 = arith.constant 0 : i32
    %c0_i32_1 = arith.constant 0 : i32
    return %c0_i32, %c0_i32_0 : i32, i32
  }
  func.func @transform_6(%arg0: i32) -> (i32, i32, i32, i32) {
    %c0_i32 = arith.constant 0 : i32
    %c0_i32_0 = arith.constant 0 : i32
    %c0_i32_1 = arith.constant 0 : i32
    %c0_i32_2 = arith.constant 0 : i32
    return %arg0, %c0_i32, %c0_i32_0, %c0_i32_1 : i32, i32, i32, i32
  }
}

</mosaic_0001>

<llo_original>
// kernel: decoder_block.1
$region0: #{decoder_block.1}
  #allocation0 [shape = 'u32[]', space=smem, size = 0x4, offset = 0x4, fixed_abs, tag = 'smem constant byte address 0x4 - core index']
  #allocation1 [shape = 'u32[144,128]{1,0:T(1,128)}', space=vmem, size = 0x12000, scoped, tag = 'internal scratch']
  #allocation2 [shape = 'bf16[18,18,8]{2,1,0:T(8,128)(2,1)}', space=vmem, size = 0x1b000, scoped, tag = 'scratch operand']
  #allocation3 [shape = 'bf16[18,18,16]{2,1,0:T(8,128)(2,1)}', space=vmem, size = 0x1b000, scoped, tag = 'scratch operand']
  #allocation4 [shape = 'bf16[256,72]{1,0:T(16,128)(2,1)}', space=vmem, size = 0x10000, scoped, tag = 'scratch operand']
  #allocation5 [shape = 'bf16[256,64]{1,0:T(16,128)(2,1)}', space=vmem, size = 0x10000, scoped, tag = 'scratch operand']
  %s0 = inlined_call_operand.vmem [shape: bf16[2,16,16,8], index: 0, kind: input, shape index: {}]
  %s1 = inlined_call_operand.vmem [shape: bf16[72,16], index: 1, kind: input, shape index: {}]
  %s2 = inlined_call_operand.vmem [shape: f32[1,16], index: 2, kind: input, shape index: {}]
  %s3 = inlined_call_operand.vmem [shape: f32[1,16], index: 3, kind: input, shape index: {}]
  %s4 = inlined_call_operand.vmem [shape: bf16[4,64,8], index: 4, kind: input, shape index: {}]
  %s5 = inlined_call_operand.vmem [shape: f32[1,8], index: 5, kind: input, shape index: {}]
  %s6 = inlined_call_operand.vmem [shape: bf16[2,4,256,8], index: 6, kind: output, shape index: {}]
  %s7 = sld [smem:[#allocation0]]
  $region57: #{decoder_block.1} parent=0
    _
  %s9 = ssub.s32 1, %s7
  %s10 = scalar_select 0, %s9, %s7
  loop: start=0, step=1, limit=4
  $region2: #{decoder_block.1} parent=0 // loop_pre_header
    _
  $region3: #{decoder_block.1} parent=0 // loop_header
    %s12 = sphi 0, %s16
    %p13 = scmp.ge.s32.totalorder %s12, 4
    %s22 = sphi 0, %s24
    %s25 = sphi 0, %s22
    %s26 = sphi 0, %s25
    %s42 = sphi 0, %s26
    %s46 = sphi 0, %s46
    %s48 = sphi 0, %s46
    %s49 = sphi 0, %s48
    %s63 = sphi 0, %s49
    %s67 = sphi 0, %s67
    %s69 = sphi 0, %s67
    %s70 = sphi 0, %s69
    %s84 = sphi 0, %s70
    %s88 = sphi 0, %s88
    %s90 = sphi 0, %s88
    %s91 = sphi 0, %s90
    %s105 = sphi 0, %s91
    %s109 = sphi 0, %s109
    %s111 = sphi 0, %s109
    %s112 = sphi 0, %s111
    %s126 = sphi 0, %s112
    %s130 = sphi 0, %s130
    %s132 = sphi 0, %s130
    %s133 = sphi 0, %s132
    %s147 = sphi 0, %s133
    %s153 = sphi 0, %s155
    %s156 = sphi 0, %s153
    %s157 = sphi 0, %s156
    %s173 = sphi 0, %s157
  $region4: #{decoder_block.1} parent=0 // loop_header_branch
    %15 = sbr.rel (%p13) target = $region8
  $region5: #{decoder_block.1} parent=0 // loop_body
    %s17 = ssub.s32 %s12, 1
    %s18 = ssub.s32 %s12, 2
    %s19 = sadd.s32 %s12, 1
    %s20 = ssub.s32 %s12, %s19
    %p21 = scmp.eq.s32.totalorder %s20, 0
    %s23 = sadd.s32 %s22, 1
    %s24 = scalar_select %p21, %s22, %s23
    %p27 = pneg %p21
    %p28 = scmp.eq.s32.totalorder %s12, 1
    %p29 = por %p27, %p28
    %p30 = scmp.ne.s32.totalorder %s22, %s25
    %p31 = scmp.eq.s32.totalorder %s12, 0
    %p32 = por %p30, %p31
    %p33 = scmp.ne.s32.totalorder %s22, %s25
    %p34 = scmp.eq.s32.totalorder %s17, 1
    %p35 = por %p33, %p34
    %p36 = scmp.ne.s32.totalorder %s25, %s26
    %p37 = scmp.eq.s32.totalorder %s17, 0
    %p38 = por %p36, %p37
    %p39 = scmp.ne.s32.totalorder %s25, %s26
    %p40 = scmp.eq.s32.totalorder %s18, 1
    %p41 = por %p39, %p40
    %p43 = scmp.ne.s32.totalorder %s26, %s42
    %p44 = scmp.eq.s32.totalorder %s18, 0
    %p45 = por %p43, %p44
    %s47 = sadd.s32 %s46, 1
    %p50 = scmp.eq.s32.totalorder %s12, 1
    %p51 = scmp.ne.s32.totalorder %s46, %s48
    %p52 = scmp.eq.s32.totalorder %s12, 0
    %p53 = por %p51, %p52
    %p54 = scmp.ne.s32.totalorder %s46, %s48
    %p55 = scmp.eq.s32.totalorder %s17, 1
    %p56 = por %p54, %p55
    %p57 = scmp.ne.s32.totalorder %s48, %s49
    %p58 = scmp.eq.s32.totalorder %s17, 0
    %p59 = por %p57, %p58
    %p60 = scmp.ne.s32.totalorder %s48, %s49
    %p61 = scmp.eq.s32.totalorder %s18, 1
    %p62 = por %p60, %p61
    %p64 = scmp.ne.s32.totalorder %s49, %s63
    %p65 = scmp.eq.s32.totalorder %s18, 0
    %p66 = por %p64, %p65
    %s68 = sadd.s32 %s67, 1
    %p71 = scmp.eq.s32.totalorder %s12, 1
    %p72 = scmp.ne.s32.totalorder %s67, %s69
    %p73 = scmp.eq.s32.totalorder %s12, 0
    %p74 = por %p72, %p73
    %p75 = scmp.ne.s32.totalorder %s67, %s69
    %p76 = scmp.eq.s32.totalorder %s17, 1
    %p77 = por %p75, %p76
    %p78 = scmp.ne.s32.totalorder %s69, %s70
    %p79 = scmp.eq.s32.totalorder %s17, 0
    %p80 = por %p78, %p79
    %p81 = scmp.ne.s32.totalorder %s69, %s70
    %p82 = scmp.eq.s32.totalorder %s18, 1
    %p83 = por %p81, %p82
    %p85 = scmp.ne.s32.totalorder %s70, %s84
    %p86 = scmp.eq.s32.totalorder %s18, 0
    %p87 = por %p85, %p86
    %s89 = sadd.s32 %s88, 1
    %p92 = scmp.eq.s32.totalorder %s12, 1
    %p93 = scmp.ne.s32.totalorder %s88, %s90
    %p94 = scmp.eq.s32.totalorder %s12, 0
    %p95 = por %p93, %p94
    %p96 = scmp.ne.s32.totalorder %s88, %s90
    %p97 = scmp.eq.s32.totalorder %s17, 1
    %p98 = por %p96, %p97
    %p99 = scmp.ne.s32.totalorder %s90, %s91
    %p100 = scmp.eq.s32.totalorder %s17, 0
    %p101 = por %p99, %p100
    %p102 = scmp.ne.s32.totalorder %s90, %s91
    %p103 = scmp.eq.s32.totalorder %s18, 1
    %p104 = por %p102, %p103
    %p106 = scmp.ne.s32.totalorder %s91, %s105
    %p107 = scmp.eq.s32.totalorder %s18, 0
    %p108 = por %p106, %p107
    %s110 = sadd.s32 %s109, 1
    %p113 = scmp.eq.s32.totalorder %s12, 1
    %p114 = scmp.ne.s32.totalorder %s109, %s111
    %p115 = scmp.eq.s32.totalorder %s12, 0
    %p116 = por %p114, %p115
    %p117 = scmp.ne.s32.totalorder %s109, %s111
    %p118 = scmp.eq.s32.totalorder %s17, 1
    %p119 = por %p117, %p118
    %p120 = scmp.ne.s32.totalorder %s111, %s112
    %p121 = scmp.eq.s32.totalorder %s17, 0
    %p122 = por %p120, %p121
    %p123 = scmp.ne.s32.totalorder %s111, %s112
    %p124 = scmp.eq.s32.totalorder %s18, 1
    %p125 = por %p123, %p124
    %p127 = scmp.ne.s32.totalorder %s112, %s126
    %p128 = scmp.eq.s32.totalorder %s18, 0
    %p129 = por %p127, %p128
    %s131 = sadd.s32 %s130, 1
    %p134 = scmp.eq.s32.totalorder %s12, 1
    %p135 = scmp.ne.s32.totalorder %s130, %s132
    %p136 = scmp.eq.s32.totalorder %s12, 0
    %p137 = por %p135, %p136
    %p138 = scmp.ne.s32.totalorder %s130, %s132
    %p139 = scmp.eq.s32.totalorder %s17, 1
    %p140 = por %p138, %p139
    %p141 = scmp.ne.s32.totalorder %s132, %s133
    %p142 = scmp.eq.s32.totalorder %s17, 0
    %p143 = por %p141, %p142
    %p144 = scmp.ne.s32.totalorder %s132, %s133
    %p145 = scmp.eq.s32.totalorder %s18, 1
    %p146 = por %p144, %p145
    %p148 = scmp.ne.s32.totalorder %s133, %s147
    %p149 = scmp.eq.s32.totalorder %s18, 0
    %p150 = por %p148, %p149
    %s151 = ssub.s32 %s12, %s19
    %p152 = scmp.eq.s32.totalorder %s151, 0
    %s154 = sadd.s32 %s153, 1
    %s155 = scalar_select %p152, %s153, %s154
    %p158 = pneg %p152
    %p159 = scmp.eq.s32.totalorder %s12, 1
    %p160 = por %p158, %p159
    %p161 = scmp.ne.s32.totalorder %s153, %s156
    %p162 = scmp.eq.s32.totalorder %s12, 0
    %p163 = por %p161, %p162
    %p164 = scmp.ne.s32.totalorder %s153, %s156
    %p165 = scmp.eq.s32.totalorder %s17, 1
    %p166 = por %p164, %p165
    %p167 = scmp.ne.s32.totalorder %s156, %s157
    %p168 = scmp.eq.s32.totalorder %s17, 0
    %p169 = por %p167, %p168
    %p170 = scmp.ne.s32.totalorder %s156, %s157
    %p171 = scmp.eq.s32.totalorder %s18, 1
    %p172 = por %p170, %p171
    %p174 = scmp.ne.s32.totalorder %s157, %s173
    %p175 = scmp.eq.s32.totalorder %s18, 0
    %p176 = por %p174, %p175
    %p177 = scmp.le.s32.totalorder 1, %s12
    %p178 = scmp.lt.s32.totalorder %s12, 3
    %p179 = pnand %p177, %p178
    %p180 = pneg %p179
    // Predicated region
    $region9: #{decoder_block.1} parent=5 // pred_check
      _
    $region10: #{decoder_block.1} parent=5 // pred_check_branch
      %182 = sbr.rel (%p179) target = $region12
    $region11: #{decoder_block.1} parent=5 // pred_region
      %s183 = ssub.s32 %s12, 1
      // Predicated region
      $region13: #{decoder_block.1} parent=11 // pred_check
        %p184 = pneg %p59
      $region14: #{decoder_block.1} parent=11 // pred_check_branch
        %186 = sbr.rel (%p184) target = $region16
      $region15: #{decoder_block.1} parent=11 // pred_region
        _
      $region16: #{decoder_block.1} parent=11 // pred_fallthru
        _
      // Predicated region
      $region17: #{decoder_block.1} parent=11 // pred_check
        %p187 = pneg %p80
      $region18: #{decoder_block.1} parent=11 // pred_check_branch
        %189 = sbr.rel (%p187) target = $region20
      $region19: #{decoder_block.1} parent=11 // pred_region
        _
      $region20: #{decoder_block.1} parent=11 // pred_fallthru
        _
      // Predicated region
      $region21: #{decoder_block.1} parent=11 // pred_check
        %p190 = pneg %p101
      $region22: #{decoder_block.1} parent=11 // pred_check_branch
        %192 = sbr.rel (%p190) target = $region24
      $region23: #{decoder_block.1} parent=11 // pred_region
        _
      $region24: #{decoder_block.1} parent=11 // pred_fallthru
        _
      // Predicated region
      $region25: #{decoder_block.1} parent=11 // pred_check
        %p193 = pneg %p122
      $region26: #{decoder_block.1} parent=11 // pred_check_branch
        %195 = sbr.rel (%p193) target = $region28
      $region27: #{decoder_block.1} parent=11 // pred_region
        _
      $region28: #{decoder_block.1} parent=11 // pred_fallthru
        _
      // Predicated region
      $region29: #{decoder_block.1} parent=11 // pred_check
        %p196 = pneg %p143
      $region30: #{decoder_block.1} parent=11 // pred_check_branch
        %198 = sbr.rel (%p196) target = $region32
      $region31: #{decoder_block.1} parent=11 // pred_region
        _
      $region32: #{decoder_block.1} parent=11 // pred_fallthru
        _
    $region12: #{decoder_block.1} parent=5 // pred_fallthru
      _
    %p199 = scmp.lt.s32.totalorder %s12, 2
    // Predicated region
    $region33: #{decoder_block.1} parent=5 // pred_check
      %p200 = pneg %p199
    $region34: #{decoder_block.1} parent=5 // pred_check_branch
      %202 = sbr.rel (%p200) target = $region36
    $region35: #{decoder_block.1} parent=5 // pred_region
      // Predicated region
      $region37: #{decoder_block.1} parent=35 // pred_check
        %p203 = pneg %p32
      $region38: #{decoder_block.1} parent=35 // pred_check_branch
        %205 = sbr.rel (%p203) target = $region40
      $region39: #{decoder_block.1} parent=35 // pred_region
        %p206 = scmp.lt.s32.totalorder %s12, 1
        %s207 = scalar_select %p206, %s12, 1
        %s208 = smul.addr %s207, 32
        %s209 = smul.addr %s208, 4
        %s210 = scalar_lea.vmem %s0, %s209
      $region40: #{decoder_block.1} parent=35 // pred_fallthru
        _
    $region36: #{decoder_block.1} parent=5 // pred_fallthru
      _
    %p211 = scmp.le.s32.totalorder 1, %s12
    %p212 = scmp.lt.s32.totalorder %s12, 3
    %p213 = pnand %p211, %p212
    %p214 = pneg %p213
    // Predicated region
    $region41: #{decoder_block.1} parent=5 // pred_check
      _
    $region42: #{decoder_block.1} parent=5 // pred_check_branch
      %216 = sbr.rel (%p213) target = $region44
    $region43: #{decoder_block.1} parent=5 // pred_region
      %s217 = ssub.s32 %s12, 1
      %p218 = scmp.lt.s32.totalorder %s17, 1
      %s219 = scalar_select %p218, %s17, 1
      %s220 = smul.addr %s219, 32
      %s221 = smul.addr %s220, 4
      %s222 = scalar_lea.vmem %s0, %s221
      %p223 = pneg %p38
      %p224 = pneg %p35
      %p225 = pneg %p59
      %p226 = pneg %p56
      %p227 = pneg %p80
      %p228 = pneg %p77
      %p229 = pneg %p101
      %p230 = pneg %p98
      %p231 = pneg %p122
      %p232 = pneg %p119
      %p233 = pneg %p143
      %p234 = pneg %p140
      %p235 = pneg %p169
      %p236 = pneg %p166
      %p237 = scmp.lt.s32.totalorder %s17, 1
      %s238 = scalar_select %p237, %s17, 1
      %s239 = smul.addr %s238, 128
      %s240 = smul.addr %s239, 4
      %s241 = scalar_lea.vmem %s6, %s240
      %p242 = scmp.lt.s32.totalorder %s17, 1
      %s243 = scalar_select %p242, %s17, 1
      %s244 = smul.addr %s243, 32
      %s245 = smul.addr %s244, 4
      %s246 = scalar_lea.vmem %s0, %s245
      %p247 = scmp.lt.s32.totalorder %s17, 1
      %s248 = scalar_select %p247, %s17, 1
      %s249 = smul.addr %s248, 128
      %s250 = smul.addr %s249, 4
      %s251 = scalar_lea.vmem %s6, %s250
      %vm253 = vcmask 60416
      %254 = vst.msk [vmem:[#allocation2] sm:$0xf] %vm253, 0
      %255 = vst.msk [vmem:[#allocation2 + $0x4] sm:$0xf] %vm253, 0
      %vm256 = vcmask 57344
      %257 = vst.msk [vmem:[#allocation2 + $0x8] sm:$0x1] %vm256, 0
      %s258 = scalar_lea.vmem [#allocation2], 204
      %259 = vst.msk [vmem:[%s258] sm:$0xf] %vm253, 0
      %260 = vst.msk [vmem:[%s258 + $0x4] sm:$0xf] %vm253, 0
      %261 = vst.msk [vmem:[%s258 + $0x8] sm:$0x1] %vm256, 0
      %s262 = scalar_lea.vmem [#allocation2], 12
      %vm263 = vcmask 57344
      %vm264 = vsmask.f32 256
      %vm265 = vmand %vm263, %vm264
      %v266 = vld [vmem:[%s262] sm:$0x1]
      %v267 = vsel %vm265, 0, %v266
      %268 = vst [vmem:[%s262] sm:$0x1] %v267
      %v269 = vld [vmem:[%s262 + $0xc] sm:$0x1]
      %v270 = vsel %vm265, 0, %v269
      %271 = vst [vmem:[%s262 + $0xc] sm:$0x1] %v270
      %v272 = vld [vmem:[%s262 + $0x18] sm:$0x1]
      %v273 = vsel %vm265, 0, %v272
      %274 = vst [vmem:[%s262 + $0x18] sm:$0x1] %v273
      %v275 = vld [vmem:[%s262 + $0x24] sm:$0x1]
      %v276 = vsel %vm265, 0, %v275
      %277 = vst [vmem:[%s262 + $0x24] sm:$0x1] %v276
      %v278 = vld [vmem:[%s262 + $0x30] sm:$0x1]
      %v279 = vsel %vm265, 0, %v278
      %280 = vst [vmem:[%s262 + $0x30] sm:$0x1] %v279
      %v281 = vld [vmem:[%s262 + $0x3c] sm:$0x1]
      %v282 = vsel %vm265, 0, %v281
      %283 = vst [vmem:[%s262 + $0x3c] sm:$0x1] %v282
      %v284 = vld [vmem:[%s262 + $0x48] sm:$0x1]
      %v285 = vsel %vm265, 0, %v284
      %286 = vst [vmem:[%s262 + $0x48] sm:$0x1] %v285
      %v287 = vld [vmem:[%s262 + $0x54] sm:$0x1]
      %v288 = vsel %vm265, 0, %v287
      %289 = vst [vmem:[%s262 + $0x54] sm:$0x1] %v288
      %v290 = vld [vmem:[%s262 + $0x60] sm:$0x1]
      %v291 = vsel %vm265, 0, %v290
      %292 = vst [vmem:[%s262 + $0x60] sm:$0x1] %v291
      %v293 = vld [vmem:[%s262 + $0x6c] sm:$0x1]
      %v294 = vsel %vm265, 0, %v293
      %295 = vst [vmem:[%s262 + $0x6c] sm:$0x1] %v294
      %v296 = vld [vmem:[%s262 + $0x78] sm:$0x1]
      %v297 = vsel %vm265, 0, %v296
      %298 = vst [vmem:[%s262 + $0x78] sm:$0x1] %v297
      %v299 = vld [vmem:[%s262 + $0x84] sm:$0x1]
      %v300 = vsel %vm265, 0, %v299
      %301 = vst [vmem:[%s262 + $0x84] sm:$0x1] %v300
      %v302 = vld [vmem:[%s262 + $0x90] sm:$0x1]
      %v303 = vsel %vm265, 0, %v302
      %304 = vst [vmem:[%s262 + $0x90] sm:$0x1] %v303
      %v305 = vld [vmem:[%s262 + $0x9c] sm:$0x1]
      %v306 = vsel %vm265, 0, %v305
      %307 = vst [vmem:[%s262 + $0x9c] sm:$0x1] %v306
      %v308 = vld [vmem:[%s262 + $0xa8] sm:$0x1]
      %v309 = vsel %vm265, 0, %v308
      %310 = vst [vmem:[%s262 + $0xa8] sm:$0x1] %v309
      %v311 = vld [vmem:[%s262 + $0xb4] sm:$0x1]
      %v312 = vsel %vm265, 0, %v311
      %313 = vst [vmem:[%s262 + $0xb4] sm:$0x1] %v312
      %vm314 = vsmask.f32 7938
      %vm315 = vmand %vm263, %vm314
      %v316 = vld [vmem:[%s262 + $0x8] sm:$0x1]
      %v317 = vsel %vm315, 0, %v316
      %318 = vst [vmem:[%s262 + $0x8] sm:$0x1] %v317
      %v319 = vld [vmem:[%s262 + $0x14] sm:$0x1]
      %v320 = vsel %vm315, 0, %v319
      %321 = vst [vmem:[%s262 + $0x14] sm:$0x1] %v320
      %v322 = vld [vmem:[%s262 + $0x20] sm:$0x1]
      %v323 = vsel %vm315, 0, %v322
      %324 = vst [vmem:[%s262 + $0x20] sm:$0x1] %v323
      %v325 = vld [vmem:[%s262 + $0x2c] sm:$0x1]
      %v326 = vsel %vm315, 0, %v325
      %327 = vst [vmem:[%s262 + $0x2c] sm:$0x1] %v326
      %v328 = vld [vmem:[%s262 + $0x38] sm:$0x1]
      %v329 = vsel %vm315, 0, %v328
      %330 = vst [vmem:[%s262 + $0x38] sm:$0x1] %v329
      %v331 = vld [vmem:[%s262 + $0x44] sm:$0x1]
      %v332 = vsel %vm315, 0, %v331
      %333 = vst [vmem:[%s262 + $0x44] sm:$0x1] %v332
      %v334 = vld [vmem:[%s262 + $0x50] sm:$0x1]
      %v335 = vsel %vm315, 0, %v334
      %336 = vst [vmem:[%s262 + $0x50] sm:$0x1] %v335
      %v337 = vld [vmem:[%s262 + $0x5c] sm:$0x1]
      %v338 = vsel %vm315, 0, %v337
      %339 = vst [vmem:[%s262 + $0x5c] sm:$0x1] %v338
      %v340 = vld [vmem:[%s262 + $0x68] sm:$0x1]
      %v341 = vsel %vm315, 0, %v340
      %342 = vst [vmem:[%s262 + $0x68] sm:$0x1] %v341
      %v343 = vld [vmem:[%s262 + $0x74] sm:$0x1]
      %v344 = vsel %vm315, 0, %v343
      %345 = vst [vmem:[%s262 + $0x74] sm:$0x1] %v344
      %v346 = vld [vmem:[%s262 + $0x80] sm:$0x1]
      %v347 = vsel %vm315, 0, %v346
      %348 = vst [vmem:[%s262 + $0x80] sm:$0x1] %v347
      %v349 = vld [vmem:[%s262 + $0x8c] sm:$0x1]
      %v350 = vsel %vm315, 0, %v349
      %351 = vst [vmem:[%s262 + $0x8c] sm:$0x1] %v350
      %v352 = vld [vmem:[%s262 + $0x98] sm:$0x1]
      %v353 = vsel %vm315, 0, %v352
      %354 = vst [vmem:[%s262 + $0x98] sm:$0x1] %v353
      %v355 = vld [vmem:[%s262 + $0xa4] sm:$0x1]
      %v356 = vsel %vm315, 0, %v355
      %357 = vst [vmem:[%s262 + $0xa4] sm:$0x1] %v356
      %v358 = vld [vmem:[%s262 + $0xb0] sm:$0x1]
      %v359 = vsel %vm315, 0, %v358
      %360 = vst [vmem:[%s262 + $0xb0] sm:$0x1] %v359
      %v361 = vld [vmem:[%s262 + $0xbc] sm:$0x1]
      %v362 = vsel %vm315, 0, %v361
      %363 = vst [vmem:[%s262 + $0xbc] sm:$0x1] %v362
      %vm364 = vcmask 125952
      %365 = vst.msk [vmem:[#allocation3] sm:$0xf] %vm364, 0
      %366 = vst.msk [vmem:[#allocation3 + $0x4] sm:$0xf] %vm364, 0
      %vm367 = vcmask 122880
      %368 = vst.msk [vmem:[#allocation3 + $0x8] sm:$0x1] %vm367, 0
      %s369 = scalar_lea.vmem [#allocation3], 204
      %370 = vst.msk [vmem:[%s369] sm:$0xf] %vm364, 0
      %371 = vst.msk [vmem:[%s369 + $0x4] sm:$0xf] %vm364, 0
      %372 = vst.msk [vmem:[%s369 + $0x8] sm:$0x1] %vm367, 0
      %s373 = scalar_lea.vmem [#allocation3], 12
      %vm374 = vcmask 122880
      %vm375 = vmand %vm374, %vm264
      %v376 = vld [vmem:[%s373] sm:$0x1]
      %v377 = vsel %vm375, 0, %v376
      %378 = vst [vmem:[%s373] sm:$0x1] %v377
      %v379 = vld [vmem:[%s373 + $0xc] sm:$0x1]
      %v380 = vsel %vm375, 0, %v379
      %381 = vst [vmem:[%s373 + $0xc] sm:$0x1] %v380
      %v382 = vld [vmem:[%s373 + $0x18] sm:$0x1]
      %v383 = vsel %vm375, 0, %v382
      %384 = vst [vmem:[%s373 + $0x18] sm:$0x1] %v383
      %v385 = vld [vmem:[%s373 + $0x24] sm:$0x1]
      %v386 = vsel %vm375, 0, %v385
      %387 = vst [vmem:[%s373 + $0x24] sm:$0x1] %v386
      %v388 = vld [vmem:[%s373 + $0x30] sm:$0x1]
      %v389 = vsel %vm375, 0, %v388
      %390 = vst [vmem:[%s373 + $0x30] sm:$0x1] %v389
      %v391 = vld [vmem:[%s373 + $0x3c] sm:$0x1]
      %v392 = vsel %vm375, 0, %v391
      %393 = vst [vmem:[%s373 + $0x3c] sm:$0x1] %v392
      %v394 = vld [vmem:[%s373 + $0x48] sm:$0x1]
      %v395 = vsel %vm375, 0, %v394
      %396 = vst [vmem:[%s373 + $0x48] sm:$0x1] %v395
      %v397 = vld [vmem:[%s373 + $0x54] sm:$0x1]
      %v398 = vsel %vm375, 0, %v397
      %399 = vst [vmem:[%s373 + $0x54] sm:$0x1] %v398
      %v400 = vld [vmem:[%s373 + $0x60] sm:$0x1]
      %v401 = vsel %vm375, 0, %v400
      %402 = vst [vmem:[%s373 + $0x60] sm:$0x1] %v401
      %v403 = vld [vmem:[%s373 + $0x6c] sm:$0x1]
      %v404 = vsel %vm375, 0, %v403
      %405 = vst [vmem:[%s373 + $0x6c] sm:$0x1] %v404
      %v406 = vld [vmem:[%s373 + $0x78] sm:$0x1]
      %v407 = vsel %vm375, 0, %v406
      %408 = vst [vmem:[%s373 + $0x78] sm:$0x1] %v407
      %v409 = vld [vmem:[%s373 + $0x84] sm:$0x1]
      %v410 = vsel %vm375, 0, %v409
      %411 = vst [vmem:[%s373 + $0x84] sm:$0x1] %v410
      %v412 = vld [vmem:[%s373 + $0x90] sm:$0x1]
      %v413 = vsel %vm375, 0, %v412
      %414 = vst [vmem:[%s373 + $0x90] sm:$0x1] %v413
      %v415 = vld [vmem:[%s373 + $0x9c] sm:$0x1]
      %v416 = vsel %vm375, 0, %v415
      %417 = vst [vmem:[%s373 + $0x9c] sm:$0x1] %v416
      %v418 = vld [vmem:[%s373 + $0xa8] sm:$0x1]
      %v419 = vsel %vm375, 0, %v418
      %420 = vst [vmem:[%s373 + $0xa8] sm:$0x1] %v419
      %v421 = vld [vmem:[%s373 + $0xb4] sm:$0x1]
      %v422 = vsel %vm375, 0, %v421
      %423 = vst [vmem:[%s373 + $0xb4] sm:$0x1] %v422
      %vm424 = vmand %vm374, %vm314
      %v425 = vld [vmem:[%s373 + $0x8] sm:$0x1]
      %v426 = vsel %vm424, 0, %v425
      %427 = vst [vmem:[%s373 + $0x8] sm:$0x1] %v426
      %v428 = vld [vmem:[%s373 + $0x14] sm:$0x1]
      %v429 = vsel %vm424, 0, %v428
      %430 = vst [vmem:[%s373 + $0x14] sm:$0x1] %v429
      %v431 = vld [vmem:[%s373 + $0x20] sm:$0x1]
      %v432 = vsel %vm424, 0, %v431
      %433 = vst [vmem:[%s373 + $0x20] sm:$0x1] %v432
      %v434 = vld [vmem:[%s373 + $0x2c] sm:$0x1]
      %v435 = vsel %vm424, 0, %v434
      %436 = vst [vmem:[%s373 + $0x2c] sm:$0x1] %v435
      %v437 = vld [vmem:[%s373 + $0x38] sm:$0x1]
      %v438 = vsel %vm424, 0, %v437
      %439 = vst [vmem:[%s373 + $0x38] sm:$0x1] %v438
      %v440 = vld [vmem:[%s373 + $0x44] sm:$0x1]
      %v441 = vsel %vm424, 0, %v440
      %442 = vst [vmem:[%s373 + $0x44] sm:$0x1] %v441
      %v443 = vld [vmem:[%s373 + $0x50] sm:$0x1]
      %v444 = vsel %vm424, 0, %v443
      %445 = vst [vmem:[%s373 + $0x50] sm:$0x1] %v444
      %v446 = vld [vmem:[%s373 + $0x5c] sm:$0x1]
      %v447 = vsel %vm424, 0, %v446
      %448 = vst [vmem:[%s373 + $0x5c] sm:$0x1] %v447
      %v449 = vld [vmem:[%s373 + $0x68] sm:$0x1]
      %v450 = vsel %vm424, 0, %v449
      %451 = vst [vmem:[%s373 + $0x68] sm:$0x1] %v450
      %v452 = vld [vmem:[%s373 + $0x74] sm:$0x1]
      %v453 = vsel %vm424, 0, %v452
      %454 = vst [vmem:[%s373 + $0x74] sm:$0x1] %v453
      %v455 = vld [vmem:[%s373 + $0x80] sm:$0x1]
      %v456 = vsel %vm424, 0, %v455
      %457 = vst [vmem:[%s373 + $0x80] sm:$0x1] %v456
      %v458 = vld [vmem:[%s373 + $0x8c] sm:$0x1]
      %v459 = vsel %vm424, 0, %v458
      %460 = vst [vmem:[%s373 + $0x8c] sm:$0x1] %v459
      %v461 = vld [vmem:[%s373 + $0x98] sm:$0x1]
      %v462 = vsel %vm424, 0, %v461
      %463 = vst [vmem:[%s373 + $0x98] sm:$0x1] %v462
      %v464 = vld [vmem:[%s373 + $0xa4] sm:$0x1]
      %v465 = vsel %vm424, 0, %v464
      %466 = vst [vmem:[%s373 + $0xa4] sm:$0x1] %v465
      %v467 = vld [vmem:[%s373 + $0xb0] sm:$0x1]
      %v468 = vsel %vm424, 0, %v467
      %469 = vst [vmem:[%s373 + $0xb0] sm:$0x1] %v468
      %v470 = vld [vmem:[%s373 + $0xbc] sm:$0x1]
      %v471 = vsel %vm424, 0, %v470
      %472 = vst [vmem:[%s373 + $0xbc] sm:$0x1] %v471
      %v473 = vld [vmem:[%s246] sm:$0xf]
      %v474 = vld [vmem:[%s246 + $0x4] sm:$0xf]
      %v475 = vld [vmem:[%s246 + $0x8] sm:$0xf]
      %v476 = vld [vmem:[%s246 + $0xc] sm:$0xf]
      %v477 = vld [vmem:[%s246 + $0x10] sm:$0xf]
      %v478 = vld [vmem:[%s246 + $0x14] sm:$0xf]
      %v479 = vld [vmem:[%s246 + $0x18] sm:$0xf]
      %v480 = vld [vmem:[%s246 + $0x1c] sm:$0xf]
      %v481 = vld [vmem:[%s246 + $0x20] sm:$0xf]
      %v482 = vld [vmem:[%s246 + $0x24] sm:$0xf]
      %v483 = vld [vmem:[%s246 + $0x28] sm:$0xf]
      %v484 = vld [vmem:[%s246 + $0x2c] sm:$0xf]
      %v485 = vld [vmem:[%s246 + $0x30] sm:$0xf]
      %v486 = vld [vmem:[%s246 + $0x34] sm:$0xf]
      %v487 = vld [vmem:[%s246 + $0x38] sm:$0xf]
      %v488 = vld [vmem:[%s246 + $0x3c] sm:$0xf]
      %v489 = vld [vmem:[%s246 + $0x40] sm:$0xf]
      %v490 = vld [vmem:[%s246 + $0x44] sm:$0xf]
      %v491 = vld [vmem:[%s246 + $0x48] sm:$0xf]
      %v492 = vld [vmem:[%s246 + $0x4c] sm:$0xf]
      %v493 = vld [vmem:[%s246 + $0x50] sm:$0xf]
      %v494 = vld [vmem:[%s246 + $0x54] sm:$0xf]
      %v495 = vld [vmem:[%s246 + $0x58] sm:$0xf]
      %v496 = vld [vmem:[%s246 + $0x5c] sm:$0xf]
      %v497 = vld [vmem:[%s246 + $0x60] sm:$0xf]
      %v498 = vld [vmem:[%s246 + $0x64] sm:$0xf]
      %v499 = vld [vmem:[%s246 + $0x68] sm:$0xf]
      %v500 = vld [vmem:[%s246 + $0x6c] sm:$0xf]
      %v501 = vld [vmem:[%s246 + $0x70] sm:$0xf]
      %v502 = vld [vmem:[%s246 + $0x74] sm:$0xf]
      %v503 = vld [vmem:[%s246 + $0x78] sm:$0xf]
      %v504 = vld [vmem:[%s246 + $0x7c] sm:$0xf]
      %vm505 = vsmask.f32 4368
      %vm506 = vmor %vm264, %vm505
      %v508 = vshrl.u32 %v473, 16
      %v510 = vrot.slane %v508, 7
      %v511 = vshll.u32 %v473, 16
      %v513 = vor.u32 %v510, %v511
      %v514 = vrot.slane %v510, 4
      %v516 = vshrl.u32 %v474, 16
      %v518 = vrot.slane %v516, 7
      %v519 = vshll.u32 %v474, 16
      %v521 = vor.u32 %v518, %v519
      %v522 = vsel %vm506, %v514, %v521
      %v523 = vrot.slane %v518, 4
      %v525 = vshrl.u32 %v475, 16
      %v527 = vrot.slane %v525, 7
      %v528 = vshll.u32 %v475, 16
      %v530 = vor.u32 %v527, %v528
      %v531 = vrot.slane %v527, 4
      %v533 = vshrl.u32 %v476, 16
      %v535 = vrot.slane %v533, 7
      %v536 = vshll.u32 %v476, 16
      %v538 = vor.u32 %v535, %v536
      %v539 = vsel %vm506, %v531, %v538
      %v540 = vrot.slane %v535, 4
      %v542 = vshrl.u32 %v477, 16
      %v544 = vrot.slane %v542, 7
      %v545 = vshll.u32 %v477, 16
      %v547 = vor.u32 %v544, %v545
      %v548 = vrot.slane %v544, 4
      %v550 = vshrl.u32 %v478, 16
      %v552 = vrot.slane %v550, 7
      %v553 = vshll.u32 %v478, 16
      %v555 = vor.u32 %v552, %v553
      %v556 = vsel %vm506, %v548, %v555
      %v557 = vrot.slane %v552, 4
      %v559 = vshrl.u32 %v479, 16
      %v561 = vrot.slane %v559, 7
      %v562 = vshll.u32 %v479, 16
      %v564 = vor.u32 %v561, %v562
      %v565 = vrot.slane %v561, 4
      %v567 = vshrl.u32 %v480, 16
      %v569 = vrot.slane %v567, 7
      %v570 = vshll.u32 %v480, 16
      %v572 = vor.u32 %v569, %v570
      %v573 = vsel %vm506, %v565, %v572
      %v574 = vrot.slane %v569, 4
      %v576 = vshrl.u32 %v481, 16
      %v578 = vrot.slane %v576, 7
      %v579 = vshll.u32 %v481, 16
      %v581 = vor.u32 %v578, %v579
      %v582 = vrot.slane %v578, 4
      %v584 = vshrl.u32 %v482, 16
      %v586 = vrot.slane %v584, 7
      %v587 = vshll.u32 %v482, 16
      %v589 = vor.u32 %v586, %v587
      %v590 = vsel %vm506, %v582, %v589
      %v591 = vrot.slane %v586, 4
      %v593 = vshrl.u32 %v483, 16
      %v595 = vrot.slane %v593, 7
      %v596 = vshll.u32 %v483, 16
      %v598 = vor.u32 %v595, %v596
      %v599 = vrot.slane %v595, 4
      %v601 = vshrl.u32 %v484, 16
      %v603 = vrot.slane %v601, 7
      %v604 = vshll.u32 %v484, 16
      %v606 = vor.u32 %v603, %v604
      %v607 = vsel %vm506, %v599, %v606
      %v608 = vrot.slane %v603, 4
      %v610 = vshrl.u32 %v485, 16
      %v612 = vrot.slane %v610, 7
      %v613 = vshll.u32 %v485, 16
      %v615 = vor.u32 %v612, %v613
      %v616 = vrot.slane %v612, 4
      %v618 = vshrl.u32 %v486, 16
      %v620 = vrot.slane %v618, 7
      %v621 = vshll.u32 %v486, 16
      %v623 = vor.u32 %v620, %v621
      %v624 = vsel %vm506, %v616, %v623
      %v625 = vrot.slane %v620, 4
      %v627 = vshrl.u32 %v487, 16
      %v629 = vrot.slane %v627, 7
      %v630 = vshll.u32 %v487, 16
      %v632 = vor.u32 %v629, %v630
      %v633 = vrot.slane %v629, 4
      %v635 = vshrl.u32 %v488, 16
      %v637 = vrot.slane %v635, 7
      %v638 = vshll.u32 %v488, 16
      %v640 = vor.u32 %v637, %v638
      %v641 = vsel %vm506, %v633, %v640
      %v642 = vrot.slane %v637, 4
      %v644 = vshrl.u32 %v489, 16
      %v646 = vrot.slane %v644, 7
      %v647 = vshll.u32 %v489, 16
      %v649 = vor.u32 %v646, %v647
      %v650 = vrot.slane %v646, 4
      %v652 = vshrl.u32 %v490, 16
      %v654 = vrot.slane %v652, 7
      %v655 = vshll.u32 %v490, 16
      %v657 = vor.u32 %v654, %v655
      %v658 = vsel %vm506, %v650, %v657
      %v659 = vrot.slane %v654, 4
      %v661 = vshrl.u32 %v491, 16
      %v663 = vrot.slane %v661, 7
      %v664 = vshll.u32 %v491, 16
      %v666 = vor.u32 %v663, %v664
      %v667 = vrot.slane %v663, 4
      %v669 = vshrl.u32 %v492, 16
      %v671 = vrot.slane %v669, 7
      %v672 = vshll.u32 %v492, 16
      %v674 = vor.u32 %v671, %v672
      %v675 = vsel %vm506, %v667, %v674
      %v676 = vrot.slane %v671, 4
      %v678 = vshrl.u32 %v493, 16
      %v680 = vrot.slane %v678, 7
      %v681 = vshll.u32 %v493, 16
      %v683 = vor.u32 %v680, %v681
      %v684 = vrot.slane %v680, 4
      %v686 = vshrl.u32 %v494, 16
      %v688 = vrot.slane %v686, 7
      %v689 = vshll.u32 %v494, 16
      %v691 = vor.u32 %v688, %v689
      %v692 = vsel %vm506, %v684, %v691
      %v693 = vrot.slane %v688, 4
      %v695 = vshrl.u32 %v495, 16
      %v697 = vrot.slane %v695, 7
      %v698 = vshll.u32 %v495, 16
      %v700 = vor.u32 %v697, %v698
      %v701 = vrot.slane %v697, 4
      %v703 = vshrl.u32 %v496, 16
      %v705 = vrot.slane %v703, 7
      %v706 = vshll.u32 %v496, 16
      %v708 = vor.u32 %v705, %v706
      %v709 = vsel %vm506, %v701, %v708
      %v710 = vrot.slane %v705, 4
      %v712 = vshrl.u32 %v497, 16
      %v714 = vrot.slane %v712, 7
      %v715 = vshll.u32 %v497, 16
      %v717 = vor.u32 %v714, %v715
      %v718 = vrot.slane %v714, 4
      %v720 = vshrl.u32 %v498, 16
      %v722 = vrot.slane %v720, 7
      %v723 = vshll.u32 %v498, 16
      %v725 = vor.u32 %v722, %v723
      %v726 = vsel %vm506, %v718, %v725
      %v727 = vrot.slane %v722, 4
      %v729 = vshrl.u32 %v499, 16
      %v731 = vrot.slane %v729, 7
      %v732 = vshll.u32 %v499, 16
      %v734 = vor.u32 %v731, %v732
      %v735 = vrot.slane %v731, 4
      %v737 = vshrl.u32 %v500, 16
      %v739 = vrot.slane %v737, 7
      %v740 = vshll.u32 %v500, 16
      %v742 = vor.u32 %v739, %v740
      %v743 = vsel %vm506, %v735, %v742
      %v744 = vrot.slane %v739, 4
      %v746 = vshrl.u32 %v501, 16
      %v748 = vrot.slane %v746, 7
      %v749 = vshll.u32 %v501, 16
      %v751 = vor.u32 %v748, %v749
      %v752 = vrot.slane %v748, 4
      %v754 = vshrl.u32 %v502, 16
      %v756 = vrot.slane %v754, 7
      %v757 = vshll.u32 %v502, 16
      %v759 = vor.u32 %v756, %v757
      %v760 = vsel %vm506, %v752, %v759
      %v761 = vrot.slane %v756, 4
      %v763 = vshrl.u32 %v503, 16
      %v765 = vrot.slane %v763, 7
      %v766 = vshll.u32 %v503, 16
      %v768 = vor.u32 %v765, %v766
      %v769 = vrot.slane %v765, 4
      %v771 = vshrl.u32 %v504, 16
      %v773 = vrot.slane %v771, 7
      %v774 = vshll.u32 %v504, 16
      %v776 = vor.u32 %v773, %v774
      %v777 = vsel %vm506, %v769, %v776
      %v778 = vrot.slane %v773, 4
      %vm827 = vcmask 60416
      %vm828 = vmand %vm827, %vm314
      %v829 = vld [vmem:[%s262] sm:$0xf]
      %v830 = vsel %vm828, %v513, %v829
      %831 = vst [vmem:[%s262] sm:$0xf] %v830
      %832 = vst.msk [vmem:[%s262 + $0x4] sm:$0xf] %vm253, %v522
      %v833 = vld [vmem:[%s262 + $0x8] sm:$0x1]
      %v834 = vsel %vm265, %v523, %v833
      %835 = vst [vmem:[%s262 + $0x8] sm:$0x1] %v834
      %v836 = vld [vmem:[%s262 + $0xc] sm:$0xf]
      %v837 = vsel %vm828, %v530, %v836
      %838 = vst [vmem:[%s262 + $0xc] sm:$0xf] %v837
      %839 = vst.msk [vmem:[%s262 + $0x10] sm:$0xf] %vm253, %v539
      %v840 = vld [vmem:[%s262 + $0x14] sm:$0x1]
      %v841 = vsel %vm265, %v540, %v840
      %842 = vst [vmem:[%s262 + $0x14] sm:$0x1] %v841
      %v843 = vld [vmem:[%s262 + $0x18] sm:$0xf]
      %v844 = vsel %vm828, %v547, %v843
      %845 = vst [vmem:[%s262 + $0x18] sm:$0xf] %v844
      %846 = vst.msk [vmem:[%s262 + $0x1c] sm:$0xf] %vm253, %v556
      %v847 = vld [vmem:[%s262 + $0x20] sm:$0x1]
      %v848 = vsel %vm265, %v557, %v847
      %849 = vst [vmem:[%s262 + $0x20] sm:$0x1] %v848
      %v850 = vld [vmem:[%s262 + $0x24] sm:$0xf]
      %v851 = vsel %vm828, %v564, %v850
      %852 = vst [vmem:[%s262 + $0x24] sm:$0xf] %v851
      %853 = vst.msk [vmem:[%s262 + $0x28] sm:$0xf] %vm253, %v573
      %v854 = vld [vmem:[%s262 + $0x2c] sm:$0x1]
      %v855 = vsel %vm265, %v574, %v854
      %856 = vst [vmem:[%s262 + $0x2c] sm:$0x1] %v855
      %v857 = vld [vmem:[%s262 + $0x30] sm:$0xf]
      %v858 = vsel %vm828, %v581, %v857
      %859 = vst [vmem:[%s262 + $0x30] sm:$0xf] %v858
      %860 = vst.msk [vmem:[%s262 + $0x34] sm:$0xf] %vm253, %v590
      %v861 = vld [vmem:[%s262 + $0x38] sm:$0x1]
      %v862 = vsel %vm265, %v591, %v861
      %863 = vst [vmem:[%s262 + $0x38] sm:$0x1] %v862
      %v864 = vld [vmem:[%s262 + $0x3c] sm:$0xf]
      %v865 = vsel %vm828, %v598, %v864
      %866 = vst [vmem:[%s262 + $0x3c] sm:$0xf] %v865
      %867 = vst.msk [vmem:[%s262 + $0x40] sm:$0xf] %vm253, %v607
      %v868 = vld [vmem:[%s262 + $0x44] sm:$0x1]
      %v869 = vsel %vm265, %v608, %v868
      %870 = vst [vmem:[%s262 + $0x44] sm:$0x1] %v869
      %v871 = vld [vmem:[%s262 + $0x48] sm:$0xf]
      %v872 = vsel %vm828, %v615, %v871
      %873 = vst [vmem:[%s262 + $0x48] sm:$0xf] %v872
      %874 = vst.msk [vmem:[%s262 + $0x4c] sm:$0xf] %vm253, %v624
      %v875 = vld [vmem:[%s262 + $0x50] sm:$0x1]
      %v876 = vsel %vm265, %v625, %v875
      %877 = vst [vmem:[%s262 + $0x50] sm:$0x1] %v876
      %v878 = vld [vmem:[%s262 + $0x54] sm:$0xf]
      %v879 = vsel %vm828, %v632, %v878
      %880 = vst [vmem:[%s262 + $0x54] sm:$0xf] %v879
      %881 = vst.msk [vmem:[%s262 + $0x58] sm:$0xf] %vm253, %v641
      %v882 = vld [vmem:[%s262 + $0x5c] sm:$0x1]
      %v883 = vsel %vm265, %v642, %v882
      %884 = vst [vmem:[%s262 + $0x5c] sm:$0x1] %v883
      %v885 = vld [vmem:[%s262 + $0x60] sm:$0xf]
      %v886 = vsel %vm828, %v649, %v885
      %887 = vst [vmem:[%s262 + $0x60] sm:$0xf] %v886
      %888 = vst.msk [vmem:[%s262 + $0x64] sm:$0xf] %vm253, %v658
      %v889 = vld [vmem:[%s262 + $0x68] sm:$0x1]
      %v890 = vsel %vm265, %v659, %v889
      %891 = vst [vmem:[%s262 + $0x68] sm:$0x1] %v890
      %v892 = vld [vmem:[%s262 + $0x6c] sm:$0xf]
      %v893 = vsel %vm828, %v666, %v892
      %894 = vst [vmem:[%s262 + $0x6c] sm:$0xf] %v893
      %895 = vst.msk [vmem:[%s262 + $0x70] sm:$0xf] %vm253, %v675
      %v896 = vld [vmem:[%s262 + $0x74] sm:$0x1]
      %v897 = vsel %vm265, %v676, %v896
      %898 = vst [vmem:[%s262 + $0x74] sm:$0x1] %v897
      %v899 = vld [vmem:[%s262 + $0x78] sm:$0xf]
      %v900 = vsel %vm828, %v683, %v899
      %901 = vst [vmem:[%s262 + $0x78] sm:$0xf] %v900
      %902 = vst.msk [vmem:[%s262 + $0x7c] sm:$0xf] %vm253, %v692
      %v903 = vld [vmem:[%s262 + $0x80] sm:$0x1]
      %v904 = vsel %vm265, %v693, %v903
      %905 = vst [vmem:[%s262 + $0x80] sm:$0x1] %v904
      %v906 = vld [vmem:[%s262 + $0x84] sm:$0xf]
      %v907 = vsel %vm828, %v700, %v906
      %908 = vst [vmem:[%s262 + $0x84] sm:$0xf] %v907
      %909 = vst.msk [vmem:[%s262 + $0x88] sm:$0xf] %vm253, %v709
      %v910 = vld [vmem:[%s262 + $0x8c] sm:$0x1]
      %v911 = vsel %vm265, %v710, %v910
      %912 = vst [vmem:[%s262 + $0x8c] sm:$0x1] %v911
      %v913 = vld [vmem:[%s262 + $0x90] sm:$0xf]
      %v914 = vsel %vm828, %v717, %v913
      %915 = vst [vmem:[%s262 + $0x90] sm:$0xf] %v914
      %916 = vst.msk [vmem:[%s262 + $0x94] sm:$0xf] %vm253, %v726
      %v917 = vld [vmem:[%s262 + $0x98] sm:$0x1]
      %v918 = vsel %vm265, %v727, %v917
      %919 = vst [vmem:[%s262 + $0x98] sm:$0x1] %v918
      %v920 = vld [vmem:[%s262 + $0x9c] sm:$0xf]
      %v921 = vsel %vm828, %v734, %v920
      %922 = vst [vmem:[%s262 + $0x9c] sm:$0xf] %v921
      %923 = vst.msk [vmem:[%s262 + $0xa0] sm:$0xf] %vm253, %v743
      %v924 = vld [vmem:[%s262 + $0xa4] sm:$0x1]
      %v925 = vsel %vm265, %v744, %v924
      %926 = vst [vmem:[%s262 + $0xa4] sm:$0x1] %v925
      %v927 = vld [vmem:[%s262 + $0xa8] sm:$0xf]
      %v928 = vsel %vm828, %v751, %v927
      %929 = vst [vmem:[%s262 + $0xa8] sm:$0xf] %v928
      %930 = vst.msk [vmem:[%s262 + $0xac] sm:$0xf] %vm253, %v760
      %v931 = vld [vmem:[%s262 + $0xb0] sm:$0x1]
      %v932 = vsel %vm265, %v761, %v931
      %933 = vst [vmem:[%s262 + $0xb0] sm:$0x1] %v932
      %v934 = vld [vmem:[%s262 + $0xb4] sm:$0xf]
      %v935 = vsel %vm828, %v768, %v934
      %936 = vst [vmem:[%s262 + $0xb4] sm:$0xf] %v935
      %937 = vst.msk [vmem:[%s262 + $0xb8] sm:$0xf] %vm253, %v777
      %v938 = vld [vmem:[%s262 + $0xbc] sm:$0x1]
      %v939 = vsel %vm265, %v778, %v938
      %940 = vst [vmem:[%s262 + $0xbc] sm:$0x1] %v939
      %v941 = vld [vmem:[#allocation2] sm:$0xf]
      %v942 = vld [vmem:[#allocation2 + $0x4] sm:$0xf]
      %v943 = vld [vmem:[#allocation2 + $0xc] sm:$0xf]
      %v944 = vld [vmem:[#allocation2 + $0x10] sm:$0xf]
      %v945 = vld [vmem:[#allocation2 + $0x18] sm:$0xf]
      %v946 = vld [vmem:[#allocation2 + $0x1c] sm:$0xf]
      %v947 = vld [vmem:[#allocation2 + $0x24] sm:$0xf]
      %v948 = vld [vmem:[#allocation2 + $0x28] sm:$0xf]
      %v949 = vld [vmem:[#allocation2 + $0x30] sm:$0xf]
      %v950 = vld [vmem:[#allocation2 + $0x34] sm:$0xf]
      %v951 = vld [vmem:[#allocation2 + $0x3c] sm:$0xf]
      %v952 = vld [vmem:[#allocation2 + $0x40] sm:$0xf]
      %v953 = vld [vmem:[#allocation2 + $0x48] sm:$0xf]
      %v954 = vld [vmem:[#allocation2 + $0x4c] sm:$0xf]
      %v955 = vld [vmem:[#allocation2 + $0x54] sm:$0xf]
      %v956 = vld [vmem:[#allocation2 + $0x58] sm:$0xf]
      %v957 = vld [vmem:[#allocation2 + $0x60] sm:$0xf]
      %v958 = vld [vmem:[#allocation2 + $0x64] sm:$0xf]
      %v959 = vld [vmem:[#allocation2 + $0x6c] sm:$0xf]
      %v960 = vld [vmem:[#allocation2 + $0x70] sm:$0xf]
      %v961 = vld [vmem:[#allocation2 + $0x78] sm:$0xf]
      %v962 = vld [vmem:[#allocation2 + $0x7c] sm:$0xf]
      %v963 = vld [vmem:[#allocation2 + $0x84] sm:$0xf]
      %v964 = vld [vmem:[#allocation2 + $0x88] sm:$0xf]
      %v965 = vld [vmem:[#allocation2 + $0x90] sm:$0xf]
      %v966 = vld [vmem:[#allocation2 + $0x94] sm:$0xf]
      %v967 = vld [vmem:[#allocation2 + $0x9c] sm:$0xf]
      %v968 = vld [vmem:[#allocation2 + $0xa0] sm:$0xf]
      %v969 = vld [vmem:[#allocation2 + $0xa8] sm:$0xf]
      %v970 = vld [vmem:[#allocation2 + $0xac] sm:$0xf]
      %v971 = vld [vmem:[#allocation2 + $0xb4] sm:$0xf]
      %v972 = vld [vmem:[#allocation2 + $0xb8] sm:$0xf]
      %v1005 = vunpack.c.l.b16 %v941
      %v1006 = vunpack.c.l.b16 %v942
      %v1007 = vunpack.c.l.b16 %v943
      %v1008 = vunpack.c.l.b16 %v944
      %v1009 = vunpack.c.l.b16 %v945
      %v1010 = vunpack.c.l.b16 %v946
      %v1011 = vunpack.c.l.b16 %v947
      %v1012 = vunpack.c.l.b16 %v948
      %v1013 = vunpack.c.l.b16 %v949
      %v1014 = vunpack.c.l.b16 %v950
      %v1015 = vunpack.c.l.b16 %v951
      %v1016 = vunpack.c.l.b16 %v952
      %v1017 = vunpack.c.l.b16 %v953
      %v1018 = vunpack.c.l.b16 %v954
      %v1019 = vunpack.c.l.b16 %v955
      %v1020 = vunpack.c.l.b16 %v956
      %v1021 = vunpack.c.l.b16 %v957
      %v1022 = vunpack.c.l.b16 %v958
      %v1023 = vunpack.c.l.b16 %v959
      %v1024 = vunpack.c.l.b16 %v960
      %v1025 = vunpack.c.l.b16 %v961
      %v1026 = vunpack.c.l.b16 %v962
      %v1027 = vunpack.c.l.b16 %v963
      %v1028 = vunpack.c.l.b16 %v964
      %v1029 = vunpack.c.l.b16 %v965
      %v1030 = vunpack.c.l.b16 %v966
      %v1031 = vunpack.c.l.b16 %v967
      %v1032 = vunpack.c.l.b16 %v968
      %v1033 = vunpack.c.l.b16 %v969
      %v1034 = vunpack.c.l.b16 %v970
      %v1035 = vunpack.c.l.b16 %v971
      %v1036 = vunpack.c.l.b16 %v972
      %v1037 = vpack.c.b16 %v1006, %v1005
      %v1038 = vpack.c.b16 %v1008, %v1007
      %v1039 = vpack.c.b16 %v1010, %v1009
      %v1040 = vpack.c.b16 %v1012, %v1011
      %v1041 = vpack.c.b16 %v1014, %v1013
      %v1042 = vpack.c.b16 %v1016, %v1015
      %v1043 = vpack.c.b16 %v1018, %v1017
      %v1044 = vpack.c.b16 %v1020, %v1019
      %v1045 = vpack.c.b16 %v1022, %v1021
      %v1046 = vpack.c.b16 %v1024, %v1023
      %v1047 = vpack.c.b16 %v1026, %v1025
      %v1048 = vpack.c.b16 %v1028, %v1027
      %v1049 = vpack.c.b16 %v1030, %v1029
      %v1050 = vpack.c.b16 %v1032, %v1031
      %v1051 = vpack.c.b16 %v1034, %v1033
      %v1052 = vpack.c.b16 %v1036, %v1035
      %vm1069 = vcmask 64512
      %1070 = vst.msk [vmem:[#allocation4] sm:$0xff] %vm1069, %v1037
      %1071 = vst.msk [vmem:[#allocation4 + $0x8] sm:$0xff] %vm1069, %v1038
      %1072 = vst.msk [vmem:[#allocation4 + $0x10] sm:$0xff] %vm1069, %v1039
      %1073 = vst.msk [vmem:[#allocation4 + $0x18] sm:$0xff] %vm1069, %v1040
      %1074 = vst.msk [vmem:[#allocation4 + $0x20] sm:$0xff] %vm1069, %v1041
      %1075 = vst.msk [vmem:[#allocation4 + $0x28] sm:$0xff] %vm1069, %v1042
      %1076 = vst.msk [vmem:[#allocation4 + $0x30] sm:$0xff] %vm1069, %v1043
      %1077 = vst.msk [vmem:[#allocation4 + $0x38] sm:$0xff] %vm1069, %v1044
      %1078 = vst.msk [vmem:[#allocation4 + $0x40] sm:$0xff] %vm1069, %v1045
      %1079 = vst.msk [vmem:[#allocation4 + $0x48] sm:$0xff] %vm1069, %v1046
      %1080 = vst.msk [vmem:[#allocation4 + $0x50] sm:$0xff] %vm1069, %v1047
      %1081 = vst.msk [vmem:[#allocation4 + $0x58] sm:$0xff] %vm1069, %v1048
      %1082 = vst.msk [vmem:[#allocation4 + $0x60] sm:$0xff] %vm1069, %v1049
      %1083 = vst.msk [vmem:[#allocation4 + $0x68] sm:$0xff] %vm1069, %v1050
      %1084 = vst.msk [vmem:[#allocation4 + $0x70] sm:$0xff] %vm1069, %v1051
      %1085 = vst.msk [vmem:[#allocation4 + $0x78] sm:$0xff] %vm1069, %v1052
      %v1086 = vld [vmem:[#allocation2] sm:$0xf]
      %v1087 = vld [vmem:[#allocation2 + $0x4] sm:$0xf]
      %v1088 = vld [vmem:[#allocation2 + $0x8] sm:$0x1]
      %v1089 = vld [vmem:[#allocation2 + $0xc] sm:$0xf]
      %v1090 = vld [vmem:[#allocation2 + $0x10] sm:$0xf]
      %v1091 = vld [vmem:[#allocation2 + $0x14] sm:$0x1]
      %v1092 = vld [vmem:[#allocation2 + $0x18] sm:$0xf]
      %v1093 = vld [vmem:[#allocation2 + $0x1c] sm:$0xf]
      %v1094 = vld [vmem:[#allocation2 + $0x20] sm:$0x1]
      %v1095 = vld [vmem:[#allocation2 + $0x24] sm:$0xf]
      %v1096 = vld [vmem:[#allocation2 + $0x28] sm:$0xf]
      %v1097 = vld [vmem:[#allocation2 + $0x2c] sm:$0x1]
      %v1098 = vld [vmem:[#allocation2 + $0x30] sm:$0xf]
      %v1099 = vld [vmem:[#allocation2 + $0x34] sm:$0xf]
      %v1100 = vld [vmem:[#allocation2 + $0x38] sm:$0x1]
      %v1101 = vld [vmem:[#allocation2 + $0x3c] sm:$0xf]
      %v1102 = vld [vmem:[#allocation2 + $0x40] sm:$0xf]
      %v1103 = vld [vmem:[#allocation2 + $0x44] sm:$0x1]
      %v1104 = vld [vmem:[#allocation2 + $0x48] sm:$0xf]
      %v1105 = vld [vmem:[#allocation2 + $0x4c] sm:$0xf]
      %v1106 = vld [vmem:[#allocation2 + $0x50] sm:$0x1]
      %v1107 = vld [vmem:[#allocation2 + $0x54] sm:$0xf]
      %v1108 = vld [vmem:[#allocation2 + $0x58] sm:$0xf]
      %v1109 = vld [vmem:[#allocation2 + $0x5c] sm:$0x1]
      %v1110 = vld [vmem:[#allocation2 + $0x60] sm:$0xf]
      %v1111 = vld [vmem:[#allocation2 + $0x64] sm:$0xf]
      %v1112 = vld [vmem:[#allocation2 + $0x68] sm:$0x1]
      %v1113 = vld [vmem:[#allocation2 + $0x6c] sm:$0xf]
      %v1114 = vld [vmem:[#allocation2 + $0x70] sm:$0xf]
      %v1115 = vld [vmem:[#allocation2 + $0x74] sm:$0x1]
      %v1116 = vld [vmem:[#allocation2 + $0x78] sm:$0xf]
      %v1117 = vld [vmem:[#allocation2 + $0x7c] sm:$0xf]
      %v1118 = vld [vmem:[#allocation2 + $0x80] sm:$0x1]
      %v1119 = vld [vmem:[#allocation2 + $0x84] sm:$0xf]
      %v1120 = vld [vmem:[#allocation2 + $0x88] sm:$0xf]
      %v1121 = vld [vmem:[#allocation2 + $0x8c] sm:$0x1]
      %v1122 = vld [vmem:[#allocation2 + $0x90] sm:$0xf]
      %v1123 = vld [vmem:[#allocation2 + $0x94] sm:$0xf]
      %v1124 = vld [vmem:[#allocation2 + $0x98] sm:$0x1]
      %v1125 = vld [vmem:[#allocation2 + $0x9c] sm:$0xf]
      %v1126 = vld [vmem:[#allocation2 + $0xa0] sm:$0xf]
      %v1127 = vld [vmem:[#allocation2 + $0xa4] sm:$0x1]
      %v1128 = vld [vmem:[#allocation2 + $0xa8] sm:$0xf]
      %v1129 = vld [vmem:[#allocation2 + $0xac] sm:$0xf]
      %v1130 = vld [vmem:[#allocation2 + $0xb0] sm:$0x1]
      %v1131 = vld [vmem:[#allocation2 + $0xb4] sm:$0xf]
      %v1132 = vld [vmem:[#allocation2 + $0xb8] sm:$0xf]
      %v1133 = vld [vmem:[#allocation2 + $0xbc] sm:$0x1]
      %vm1134 = vsmask.f32 3328
      %vm1135 = vsmask.f32 7440
      %vm1136 = vmor %vm1134, %vm1135
      %v1138 = vshrl.u32 %v1086, 16
      %v1140 = vrot.slane %v1138, 4
      %v1141 = vshll.u32 %v1086, 16
      %v1143 = vrot.slane %v1141, 5
      %v1144 = vor.u32 %v1140, %v1143
      %v1145 = vrot.slane %v1144, 4
      %v1147 = vshll.u32 %v1087, 16
      %v1149 = vrot.slane %v1147, 5
      %v1150 = vsel %vm1136, %v1145, %v1149
      %v1151 = vshrl.u32 %v1087, 16
      %v1153 = vrot.slane %v1151, 4
      %v1154 = vor.u32 %v1153, %v1149
      %v1155 = vrot.slane %v1154, 4
      %v1157 = vshll.u32 %v1088, 16
      %v1159 = vrot.slane %v1157, 5
      %v1160 = vsel %vm1136, %v1155, %v1159
      %v1162 = vshrl.u32 %v1089, 16
      %v1164 = vrot.slane %v1162, 4
      %v1165 = vshll.u32 %v1089, 16
      %v1167 = vrot.slane %v1165, 5
      %v1168 = vor.u32 %v1164, %v1167
      %v1169 = vrot.slane %v1168, 4
      %v1171 = vshll.u32 %v1090, 16
      %v1173 = vrot.slane %v1171, 5
      %v1174 = vsel %vm1136, %v1169, %v1173
      %v1175 = vshrl.u32 %v1090, 16
      %v1177 = vrot.slane %v1175, 4
      %v1178 = vor.u32 %v1177, %v1173
      %v1179 = vrot.slane %v1178, 4
      %v1181 = vshll.u32 %v1091, 16
      %v1183 = vrot.slane %v1181, 5
      %v1184 = vsel %vm1136, %v1179, %v1183
      %v1186 = vshrl.u32 %v1092, 16
      %v1188 = vrot.slane %v1186, 4
      %v1189 = vshll.u32 %v1092, 16
      %v1191 = vrot.slane %v1189, 5
      %v1192 = vor.u32 %v1188, %v1191
      %v1193 = vrot.slane %v1192, 4
      %v1195 = vshll.u32 %v1093, 16
      %v1197 = vrot.slane %v1195, 5
      %v1198 = vsel %vm1136, %v1193, %v1197
      %v1199 = vshrl.u32 %v1093, 16
      %v1201 = vrot.slane %v1199, 4
      %v1202 = vor.u32 %v1201, %v1197
      %v1203 = vrot.slane %v1202, 4
      %v1205 = vshll.u32 %v1094, 16
      %v1207 = vrot.slane %v1205, 5
      %v1208 = vsel %vm1136, %v1203, %v1207
      %v1210 = vshrl.u32 %v1095, 16
      %v1212 = vrot.slane %v1210, 4
      %v1213 = vshll.u32 %v1095, 16
      %v1215 = vrot.slane %v1213, 5
      %v1216 = vor.u32 %v1212, %v1215
      %v1217 = vrot.slane %v1216, 4
      %v1219 = vshll.u32 %v1096, 16
      %v1221 = vrot.slane %v1219, 5
      %v1222 = vsel %vm1136, %v1217, %v1221
      %v1223 = vshrl.u32 %v1096, 16
      %v1225 = vrot.slane %v1223, 4
      %v1226 = vor.u32 %v1225, %v1221
      %v1227 = vrot.slane %v1226, 4
      %v1229 = vshll.u32 %v1097, 16
      %v1231 = vrot.slane %v1229, 5
      %v1232 = vsel %vm1136, %v1227, %v1231
      %v1234 = vshrl.u32 %v1098, 16
      %v1236 = vrot.slane %v1234, 4
      %v1237 = vshll.u32 %v1098, 16
      %v1239 = vrot.slane %v1237, 5
      %v1240 = vor.u32 %v1236, %v1239
      %v1241 = vrot.slane %v1240, 4
      %v1243 = vshll.u32 %v1099, 16
      %v1245 = vrot.slane %v1243, 5
      %v1246 = vsel %vm1136, %v1241, %v1245
      %v1247 = vshrl.u32 %v1099, 16
      %v1249 = vrot.slane %v1247, 4
      %v1250 = vor.u32 %v1249, %v1245
      %v1251 = vrot.slane %v1250, 4
      %v1253 = vshll.u32 %v1100, 16
      %v1255 = vrot.slane %v1253, 5
      %v1256 = vsel %vm1136, %v1251, %v1255
      %v1258 = vshrl.u32 %v1101, 16
      %v1260 = vrot.slane %v1258, 4
      %v1261 = vshll.u32 %v1101, 16
      %v1263 = vrot.slane %v1261, 5
      %v1264 = vor.u32 %v1260, %v1263
      %v1265 = vrot.slane %v1264, 4
      %v1267 = vshll.u32 %v1102, 16
      %v1269 = vrot.slane %v1267, 5
      %v1270 = vsel %vm1136, %v1265, %v1269
      %v1271 = vshrl.u32 %v1102, 16
      %v1273 = vrot.slane %v1271, 4
      %v1274 = vor.u32 %v1273, %v1269
      %v1275 = vrot.slane %v1274, 4
      %v1277 = vshll.u32 %v1103, 16
      %v1279 = vrot.slane %v1277, 5
      %v1280 = vsel %vm1136, %v1275, %v1279
      %v1282 = vshrl.u32 %v1104, 16
      %v1284 = vrot.slane %v1282, 4
      %v1285 = vshll.u32 %v1104, 16
      %v1287 = vrot.slane %v1285, 5
      %v1288 = vor.u32 %v1284, %v1287
      %v1289 = vrot.slane %v1288, 4
      %v1291 = vshll.u32 %v1105, 16
      %v1293 = vrot.slane %v1291, 5
      %v1294 = vsel %vm1136, %v1289, %v1293
      %v1295 = vshrl.u32 %v1105, 16
      %v1297 = vrot.slane %v1295, 4
      %v1298 = vor.u32 %v1297, %v1293
      %v1299 = vrot.slane %v1298, 4
      %v1301 = vshll.u32 %v1106, 16
      %v1303 = vrot.slane %v1301, 5
      %v1304 = vsel %vm1136, %v1299, %v1303
      %v1306 = vshrl.u32 %v1107, 16
      %v1308 = vrot.slane %v1306, 4
      %v1309 = vshll.u32 %v1107, 16
      %v1311 = vrot.slane %v1309, 5
      %v1312 = vor.u32 %v1308, %v1311
      %v1313 = vrot.slane %v1312, 4
      %v1315 = vshll.u32 %v1108, 16
      %v1317 = vrot.slane %v1315, 5
      %v1318 = vsel %vm1136, %v1313, %v1317
      %v1319 = vshrl.u32 %v1108, 16
      %v1321 = vrot.slane %v1319, 4
      %v1322 = vor.u32 %v1321, %v1317
      %v1323 = vrot.slane %v1322, 4
      %v1325 = vshll.u32 %v1109, 16
      %v1327 = vrot.slane %v1325, 5
      %v1328 = vsel %vm1136, %v1323, %v1327
      %v1330 = vshrl.u32 %v1110, 16
      %v1332 = vrot.slane %v1330, 4
      %v1333 = vshll.u32 %v1110, 16
      %v1335 = vrot.slane %v1333, 5
      %v1336 = vor.u32 %v1332, %v1335
      %v1337 = vrot.slane %v1336, 4
      %v1339 = vshll.u32 %v1111, 16
      %v1341 = vrot.slane %v1339, 5
      %v1342 = vsel %vm1136, %v1337, %v1341
      %v1343 = vshrl.u32 %v1111, 16
      %v1345 = vrot.slane %v1343, 4
      %v1346 = vor.u32 %v1345, %v1341
      %v1347 = vrot.slane %v1346, 4
      %v1349 = vshll.u32 %v1112, 16
      %v1351 = vrot.slane %v1349, 5
      %v1352 = vsel %vm1136, %v1347, %v1351
      %v1354 = vshrl.u32 %v1113, 16
      %v1356 = vrot.slane %v1354, 4
      %v1357 = vshll.u32 %v1113, 16
      %v1359 = vrot.slane %v1357, 5
      %v1360 = vor.u32 %v1356, %v1359
      %v1361 = vrot.slane %v1360, 4
      %v1363 = vshll.u32 %v1114, 16
      %v1365 = vrot.slane %v1363, 5
      %v1366 = vsel %vm1136, %v1361, %v1365
      %v1367 = vshrl.u32 %v1114, 16
      %v1369 = vrot.slane %v1367, 4
      %v1370 = vor.u32 %v1369, %v1365
      %v1371 = vrot.slane %v1370, 4
      %v1373 = vshll.u32 %v1115, 16
      %v1375 = vrot.slane %v1373, 5
      %v1376 = vsel %vm1136, %v1371, %v1375
      %v1378 = vshrl.u32 %v1116, 16
      %v1380 = vrot.slane %v1378, 4
      %v1381 = vshll.u32 %v1116, 16
      %v1383 = vrot.slane %v1381, 5
      %v1384 = vor.u32 %v1380, %v1383
      %v1385 = vrot.slane %v1384, 4
      %v1387 = vshll.u32 %v1117, 16
      %v1389 = vrot.slane %v1387, 5
      %v1390 = vsel %vm1136, %v1385, %v1389
      %v1391 = vshrl.u32 %v1117, 16
      %v1393 = vrot.slane %v1391, 4
      %v1394 = vor.u32 %v1393, %v1389
      %v1395 = vrot.slane %v1394, 4
      %v1397 = vshll.u32 %v1118, 16
      %v1399 = vrot.slane %v1397, 5
      %v1400 = vsel %vm1136, %v1395, %v1399
      %v1402 = vshrl.u32 %v1119, 16
      %v1404 = vrot.slane %v1402, 4
      %v1405 = vshll.u32 %v1119, 16
      %v1407 = vrot.slane %v1405, 5
      %v1408 = vor.u32 %v1404, %v1407
      %v1409 = vrot.slane %v1408, 4
      %v1411 = vshll.u32 %v1120, 16
      %v1413 = vrot.slane %v1411, 5
      %v1414 = vsel %vm1136, %v1409, %v1413
      %v1415 = vshrl.u32 %v1120, 16
      %v1417 = vrot.slane %v1415, 4
      %v1418 = vor.u32 %v1417, %v1413
      %v1419 = vrot.slane %v1418, 4
      %v1421 = vshll.u32 %v1121, 16
      %v1423 = vrot.slane %v1421, 5
      %v1424 = vsel %vm1136, %v1419, %v1423
      %v1426 = vshrl.u32 %v1122, 16
      %v1428 = vrot.slane %v1426, 4
      %v1429 = vshll.u32 %v1122, 16
      %v1431 = vrot.slane %v1429, 5
      %v1432 = vor.u32 %v1428, %v1431
      %v1433 = vrot.slane %v1432, 4
      %v1435 = vshll.u32 %v1123, 16
      %v1437 = vrot.slane %v1435, 5
      %v1438 = vsel %vm1136, %v1433, %v1437
      %v1439 = vshrl.u32 %v1123, 16
      %v1441 = vrot.slane %v1439, 4
      %v1442 = vor.u32 %v1441, %v1437
      %v1443 = vrot.slane %v1442, 4
      %v1445 = vshll.u32 %v1124, 16
      %v1447 = vrot.slane %v1445, 5
      %v1448 = vsel %vm1136, %v1443, %v1447
      %v1450 = vshrl.u32 %v1125, 16
      %v1452 = vrot.slane %v1450, 4
      %v1453 = vshll.u32 %v1125, 16
      %v1455 = vrot.slane %v1453, 5
      %v1456 = vor.u32 %v1452, %v1455
      %v1457 = vrot.slane %v1456, 4
      %v1459 = vshll.u32 %v1126, 16
      %v1461 = vrot.slane %v1459, 5
      %v1462 = vsel %vm1136, %v1457, %v1461
      %v1463 = vshrl.u32 %v1126, 16
      %v1465 = vrot.slane %v1463, 4
      %v1466 = vor.u32 %v1465, %v1461
      %v1467 = vrot.slane %v1466, 4
      %v1469 = vshll.u32 %v1127, 16
      %v1471 = vrot.slane %v1469, 5
      %v1472 = vsel %vm1136, %v1467, %v1471
      %v1474 = vshrl.u32 %v1128, 16
      %v1476 = vrot.slane %v1474, 4
      %v1477 = vshll.u32 %v1128, 16
      %v1479 = vrot.slane %v1477, 5
      %v1480 = vor.u32 %v1476, %v1479
      %v1481 = vrot.slane %v1480, 4
      %v1483 = vshll.u32 %v1129, 16
      %v1485 = vrot.slane %v1483, 5
      %v1486 = vsel %vm1136, %v1481, %v1485
      %v1487 = vshrl.u32 %v1129, 16
      %v1489 = vrot.slane %v1487, 4
      %v1490 = vor.u32 %v1489, %v1485
      %v1491 = vrot.slane %v1490, 4
      %v1493 = vshll.u32 %v1130, 16
      %v1495 = vrot.slane %v1493, 5
      %v1496 = vsel %vm1136, %v1491, %v1495
      %v1498 = vshrl.u32 %v1131, 16
      %v1500 = vrot.slane %v1498, 4
      %v1501 = vshll.u32 %v1131, 16
      %v1503 = vrot.slane %v1501, 5
      %v1504 = vor.u32 %v1500, %v1503
      %v1505 = vrot.slane %v1504, 4
      %v1507 = vshll.u32 %v1132, 16
      %v1509 = vrot.slane %v1507, 5
      %v1510 = vsel %vm1136, %v1505, %v1509
      %v1511 = vshrl.u32 %v1132, 16
      %v1513 = vrot.slane %v1511, 4
      %v1514 = vor.u32 %v1513, %v1509
      %v1515 = vrot.slane %v1514, 4
      %v1517 = vshll.u32 %v1133, 16
      %v1519 = vrot.slane %v1517, 5
      %v1520 = vsel %vm1136, %v1515, %v1519
      %v1521 = vunpack.c.l.b16 %v1150
      %v1522 = vunpack.c.l.b16 %v1160
      %v1523 = vunpack.c.l.b16 %v1174
      %v1524 = vunpack.c.l.b16 %v1184
      %v1525 = vunpack.c.l.b16 %v1198
      %v1526 = vunpack.c.l.b16 %v1208
      %v1527 = vunpack.c.l.b16 %v1222
      %v1528 = vunpack.c.l.b16 %v1232
      %v1529 = vunpack.c.l.b16 %v1246
      %v1530 = vunpack.c.l.b16 %v1256
      %v1531 = vunpack.c.l.b16 %v1270
      %v1532 = vunpack.c.l.b16 %v1280
      %v1533 = vunpack.c.l.b16 %v1294
      %v1534 = vunpack.c.l.b16 %v1304
      %v1535 = vunpack.c.l.b16 %v1318
      %v1536 = vunpack.c.l.b16 %v1328
      %v1537 = vunpack.c.l.b16 %v1342
      %v1538 = vunpack.c.l.b16 %v1352
      %v1539 = vunpack.c.l.b16 %v1366
      %v1540 = vunpack.c.l.b16 %v1376
      %v1541 = vunpack.c.l.b16 %v1390
      %v1542 = vunpack.c.l.b16 %v1400
      %v1543 = vunpack.c.l.b16 %v1414
      %v1544 = vunpack.c.l.b16 %v1424
      %v1545 = vunpack.c.l.b16 %v1438
      %v1546 = vunpack.c.l.b16 %v1448
      %v1547 = vunpack.c.l.b16 %v1462
      %v1548 = vunpack.c.l.b16 %v1472
      %v1549 = vunpack.c.l.b16 %v1486
      %v1550 = vunpack.c.l.b16 %v1496
      %v1551 = vunpack.c.l.b16 %v1510
      %v1552 = vunpack.c.l.b16 %v1520
      %v1553 = vpack.c.b16 %v1522, %v1521
      %v1554 = vpack.c.b16 %v1524, %v1523
      %v1555 = vpack.c.b16 %v1526, %v1525
      %v1556 = vpack.c.b16 %v1528, %v1527
      %v1557 = vpack.c.b16 %v1530, %v1529
      %v1558 = vpack.c.b16 %v1532, %v1531
      %v1559 = vpack.c.b16 %v1534, %v1533
      %v1560 = vpack.c.b16 %v1536, %v1535
      %v1561 = vpack.c.b16 %v1538, %v1537
      %v1562 = vpack.c.b16 %v1540, %v1539
      %v1563 = vpack.c.b16 %v1542, %v1541
      %v1564 = vpack.c.b16 %v1544, %v1543
      %v1565 = vpack.c.b16 %v1546, %v1545
      %v1566 = vpack.c.b16 %v1548, %v1547
      %v1567 = vpack.c.b16 %v1550, %v1549
      %v1568 = vpack.c.b16 %v1552, %v1551
      %1569 = vrot.lane.b32.xlu0 %v1553, 8
      %v1570 = vpop.permute.xlu0 %1569
      %1571 = vrot.lane.b32.xlu0 %v1554, 8
      %v1572 = vpop.permute.xlu0 %1571
      %1573 = vrot.lane.b32.xlu0 %v1555, 8
      %v1574 = vpop.permute.xlu0 %1573
      %1575 = vrot.lane.b32.xlu0 %v1556, 8
      %v1576 = vpop.permute.xlu0 %1575
      %1577 = vrot.lane.b32.xlu0 %v1557, 8
      %v1578 = vpop.permute.xlu0 %1577
      %1579 = vrot.lane.b32.xlu0 %v1558, 8
      %v1580 = vpop.permute.xlu0 %1579
      %1581 = vrot.lane.b32.xlu0 %v1559, 8
      %v1582 = vpop.permute.xlu0 %1581
      %1583 = vrot.lane.b32.xlu0 %v1560, 8
      %v1584 = vpop.permute.xlu0 %1583
      %1585 = vrot.lane.b32.xlu0 %v1561, 8
      %v1586 = vpop.permute.xlu0 %1585
      %1587 = vrot.lane.b32.xlu0 %v1562, 8
      %v1588 = vpop.permute.xlu0 %1587
      %1589 = vrot.lane.b32.xlu0 %v1563, 8
      %v1590 = vpop.permute.xlu0 %1589
      %1591 = vrot.lane.b32.xlu0 %v1564, 8
      %v1592 = vpop.permute.xlu0 %1591
      %1593 = vrot.lane.b32.xlu0 %v1565, 8
      %v1594 = vpop.permute.xlu0 %1593
      %1595 = vrot.lane.b32.xlu0 %v1566, 8
      %v1596 = vpop.permute.xlu0 %1595
      %1597 = vrot.lane.b32.xlu0 %v1567, 8
      %v1598 = vpop.permute.xlu0 %1597
      %1599 = vrot.lane.b32.xlu0 %v1568, 8
      %v1600 = vpop.permute.xlu0 %1599
      %vm1617 = vcmask 130112
      %1618 = vst.msk [vmem:[#allocation4] sm:$0xff] %vm1617, %v1570
      %1619 = vst.msk [vmem:[#allocation4 + $0x8] sm:$0xff] %vm1617, %v1572
      %1620 = vst.msk [vmem:[#allocation4 + $0x10] sm:$0xff] %vm1617, %v1574
      %1621 = vst.msk [vmem:[#allocation4 + $0x18] sm:$0xff] %vm1617, %v1576
      %1622 = vst.msk [vmem:[#allocation4 + $0x20] sm:$0xff] %vm1617, %v1578
      %1623 = vst.msk [vmem:[#allocation4 + $0x28] sm:$0xff] %vm1617, %v1580
      %1624 = vst.msk [vmem:[#allocation4 + $0x30] sm:$0xff] %vm1617, %v1582
      %1625 = vst.msk [vmem:[#allocation4 + $0x38] sm:$0xff] %vm1617, %v1584
      %1626 = vst.msk [vmem:[#allocation4 + $0x40] sm:$0xff] %vm1617, %v1586
      %1627 = vst.msk [vmem:[#allocation4 + $0x48] sm:$0xff] %vm1617, %v1588
      %1628 = vst.msk [vmem:[#allocation4 + $0x50] sm:$0xff] %vm1617, %v1590
      %1629 = vst.msk [vmem:[#allocation4 + $0x58] sm:$0xff] %vm1617, %v1592
      %1630 = vst.msk [vmem:[#allocation4 + $0x60] sm:$0xff] %vm1617, %v1594
      %1631 = vst.msk [vmem:[#allocation4 + $0x68] sm:$0xff] %vm1617, %v1596
      %1632 = vst.msk [vmem:[#allocation4 + $0x70] sm:$0xff] %vm1617, %v1598
      %1633 = vst.msk [vmem:[#allocation4 + $0x78] sm:$0xff] %vm1617, %v1600
      %v1634 = vld [vmem:[#allocation2] sm:$0xe]
      %v1635 = vld [vmem:[#allocation2 + $0x4] sm:$0xf]
      %v1636 = vld [vmem:[#allocation2 + $0x8] sm:$0x1]
      %v1637 = vld [vmem:[#allocation2 + $0xc] sm:$0xe]
      %v1638 = vld [vmem:[#allocation2 + $0x10] sm:$0xf]
      %v1639 = vld [vmem:[#allocation2 + $0x14] sm:$0x1]
      %v1640 = vld [vmem:[#allocation2 + $0x18] sm:$0xe]
      %v1641 = vld [vmem:[#allocation2 + $0x1c] sm:$0xf]
      %v1642 = vld [vmem:[#allocation2 + $0x20] sm:$0x1]
      %v1643 = vld [vmem:[#allocation2 + $0x24] sm:$0xe]
      %v1644 = vld [vmem:[#allocation2 + $0x28] sm:$0xf]
      %v1645 = vld [vmem:[#allocation2 + $0x2c] sm:$0x1]
      %v1646 = vld [vmem:[#allocation2 + $0x30] sm:$0xe]
      %v1647 = vld [vmem:[#allocation2 + $0x34] sm:$0xf]
      %v1648 = vld [vmem:[#allocation2 + $0x38] sm:$0x1]
      %v1649 = vld [vmem:[#allocation2 + $0x3c] sm:$0xe]
      %v1650 = vld [vmem:[#allocation2 + $0x40] sm:$0xf]
      %v1651 = vld [vmem:[#allocation2 + $0x44] sm:$0x1]
      %v1652 = vld [vmem:[#allocation2 + $0x48] sm:$0xe]
      %v1653 = vld [vmem:[#allocation2 + $0x4c] sm:$0xf]
      %v1654 = vld [vmem:[#allocation2 + $0x50] sm:$0x1]
      %v1655 = vld [vmem:[#allocation2 + $0x54] sm:$0xe]
      %v1656 = vld [vmem:[#allocation2 + $0x58] sm:$0xf]
      %v1657 = vld [vmem:[#allocation2 + $0x5c] sm:$0x1]
      %v1658 = vld [vmem:[#allocation2 + $0x60] sm:$0xe]
      %v1659 = vld [vmem:[#allocation2 + $0x64] sm:$0xf]
      %v1660 = vld [vmem:[#allocation2 + $0x68] sm:$0x1]
      %v1661 = vld [vmem:[#allocation2 + $0x6c] sm:$0xe]
      %v1662 = vld [vmem:[#allocation2 + $0x70] sm:$0xf]
      %v1663 = vld [vmem:[#allocation2 + $0x74] sm:$0x1]
      %v1664 = vld [vmem:[#allocation2 + $0x78] sm:$0xe]
      %v1665 = vld [vmem:[#allocation2 + $0x7c] sm:$0xf]
      %v1666 = vld [vmem:[#allocation2 + $0x80] sm:$0x1]
      %v1667 = vld [vmem:[#allocation2 + $0x84] sm:$0xe]
      %v1668 = vld [vmem:[#allocation2 + $0x88] sm:$0xf]
      %v1669 = vld [vmem:[#allocation2 + $0x8c] sm:$0x1]
      %v1670 = vld [vmem:[#allocation2 + $0x90] sm:$0xe]
      %v1671 = vld [vmem:[#allocation2 + $0x94] sm:$0xf]
      %v1672 = vld [vmem:[#allocation2 + $0x98] sm:$0x1]
      %v1673 = vld [vmem:[#allocation2 + $0x9c] sm:$0xe]
      %v1674 = vld [vmem:[#allocation2 + $0xa0] sm:$0xf]
      %v1675 = vld [vmem:[#allocation2 + $0xa4] sm:$0x1]
      %v1676 = vld [vmem:[#allocation2 + $0xa8] sm:$0xe]
      %v1677 = vld [vmem:[#allocation2 + $0xac] sm:$0xf]
      %v1678 = vld [vmem:[#allocation2 + $0xb0] sm:$0x1]
      %v1679 = vld [vmem:[#allocation2 + $0xb4] sm:$0xe]
      %v1680 = vld [vmem:[#allocation2 + $0xb8] sm:$0xf]
      %v1681 = vld [vmem:[#allocation2 + $0xbc] sm:$0x1]
      %vm1730 = vcmask 1042432
      %vm1731 = vcmask 1046532
      %vm1732 = vmor %vm1730, %vm1731
      %v1733 = vrot.slane %v1634, 5
      %v1734 = vrot.slane %v1733, 4
      %v1735 = vrot.slane %v1635, 5
      %v1736 = vsel %vm1732, %v1734, %v1735
      %v1737 = vrot.slane %v1735, 4
      %v1738 = vrot.slane %v1636, 5
      %v1739 = vsel %vm1732, %v1737, %v1738
      %v1740 = vrot.slane %v1637, 5
      %v1741 = vrot.slane %v1740, 4
      %v1742 = vrot.slane %v1638, 5
      %v1743 = vsel %vm1732, %v1741, %v1742
      %v1744 = vrot.slane %v1742, 4
      %v1745 = vrot.slane %v1639, 5
      %v1746 = vsel %vm1732, %v1744, %v1745
      %v1747 = vrot.slane %v1640, 5
      %v1748 = vrot.slane %v1747, 4
      %v1749 = vrot.slane %v1641, 5
      %v1750 = vsel %vm1732, %v1748, %v1749
      %v1751 = vrot.slane %v1749, 4
      %v1752 = vrot.slane %v1642, 5
      %v1753 = vsel %vm1732, %v1751, %v1752
      %v1754 = vrot.slane %v1643, 5
      %v1755 = vrot.slane %v1754, 4
      %v1756 = vrot.slane %v1644, 5
      %v1757 = vsel %vm1732, %v1755, %v1756
      %v1758 = vrot.slane %v1756, 4
      %v1759 = vrot.slane %v1645, 5
      %v1760 = vsel %vm1732, %v1758, %v1759
      %v1761 = vrot.slane %v1646, 5
      %v1762 = vrot.slane %v1761, 4
      %v1763 = vrot.slane %v1647, 5
      %v1764 = vsel %vm1732, %v1762, %v1763
      %v1765 = vrot.slane %v1763, 4
      %v1766 = vrot.slane %v1648, 5
      %v1767 = vsel %vm1732, %v1765, %v1766
      %v1768 = vrot.slane %v1649, 5
      %v1769 = vrot.slane %v1768, 4
      %v1770 = vrot.slane %v1650, 5
      %v1771 = vsel %vm1732, %v1769, %v1770
      %v1772 = vrot.slane %v1770, 4
      %v1773 = vrot.slane %v1651, 5
      %v1774 = vsel %vm1732, %v1772, %v1773
      %v1775 = vrot.slane %v1652, 5
      %v1776 = vrot.slane %v1775, 4
      %v1777 = vrot.slane %v1653, 5
      %v1778 = vsel %vm1732, %v1776, %v1777
      %v1779 = vrot.slane %v1777, 4
      %v1780 = vrot.slane %v1654, 5
      %v1781 = vsel %vm1732, %v1779, %v1780
      %v1782 = vrot.slane %v1655, 5
      %v1783 = vrot.slane %v1782, 4
      %v1784 = vrot.slane %v1656, 5
      %v1785 = vsel %vm1732, %v1783, %v1784
      %v1786 = vrot.slane %v1784, 4
      %v1787 = vrot.slane %v1657, 5
      %v1788 = vsel %vm1732, %v1786, %v1787
      %v1789 = vrot.slane %v1658, 5
      %v1790 = vrot.slane %v1789, 4
      %v1791 = vrot.slane %v1659, 5
      %v1792 = vsel %vm1732, %v1790, %v1791
      %v1793 = vrot.slane %v1791, 4
      %v1794 = vrot.slane %v1660, 5
      %v1795 = vsel %vm1732, %v1793, %v1794
      %v1796 = vrot.slane %v1661, 5
      %v1797 = vrot.slane %v1796, 4
      %v1798 = vrot.slane %v1662, 5
      %v1799 = vsel %vm1732, %v1797, %v1798
      %v1800 = vrot.slane %v1798, 4
      %v1801 = vrot.slane %v1663, 5
      %v1802 = vsel %vm1732, %v1800, %v1801
      %v1803 = vrot.slane %v1664, 5
      %v1804 = vrot.slane %v1803, 4
      %v1805 = vrot.slane %v1665, 5
      %v1806 = vsel %vm1732, %v1804, %v1805
      %v1807 = vrot.slane %v1805, 4
      %v1808 = vrot.slane %v1666, 5
      %v1809 = vsel %vm1732, %v1807, %v1808
      %v1810 = vrot.slane %v1667, 5
      %v1811 = vrot.slane %v1810, 4
      %v1812 = vrot.slane %v1668, 5
      %v1813 = vsel %vm1732, %v1811, %v1812
      %v1814 = vrot.slane %v1812, 4
      %v1815 = vrot.slane %v1669, 5
      %v1816 = vsel %vm1732, %v1814, %v1815
      %v1817 = vrot.slane %v1670, 5
      %v1818 = vrot.slane %v1817, 4
      %v1819 = vrot.slane %v1671, 5
      %v1820 = vsel %vm1732, %v1818, %v1819
      %v1821 = vrot.slane %v1819, 4
      %v1822 = vrot.slane %v1672, 5
      %v1823 = vsel %vm1732, %v1821, %v1822
      %v1824 = vrot.slane %v1673, 5
      %v1825 = vrot.slane %v1824, 4
      %v1826 = vrot.slane %v1674, 5
      %v1827 = vsel %vm1732, %v1825, %v1826
      %v1828 = vrot.slane %v1826, 4
      %v1829 = vrot.slane %v1675, 5
      %v1830 = vsel %vm1732, %v1828, %v1829
      %v1831 = vrot.slane %v1676, 5
      %v1832 = vrot.slane %v1831, 4
      %v1833 = vrot.slane %v1677, 5
      %v1834 = vsel %vm1732, %v1832, %v1833
      %v1835 = vrot.slane %v1833, 4
      %v1836 = vrot.slane %v1678, 5
      %v1837 = vsel %vm1732, %v1835, %v1836
      %v1838 = vrot.slane %v1679, 5
      %v1839 = vrot.slane %v1838, 4
      %v1840 = vrot.slane %v1680, 5
      %v1841 = vsel %vm1732, %v1839, %v1840
      %v1842 = vrot.slane %v1840, 4
      %v1843 = vrot.slane %v1681, 5
      %v1844 = vsel %vm1732, %v1842, %v1843
      %v1845 = vunpack.c.l.b16 %v1736
      %v1846 = vunpack.c.l.b16 %v1739
      %v1847 = vunpack.c.l.b16 %v1743
      %v1848 = vunpack.c.l.b16 %v1746
      %v1849 = vunpack.c.l.b16 %v1750
      %v1850 = vunpack.c.l.b16 %v1753
      %v1851 = vunpack.c.l.b16 %v1757
      %v1852 = vunpack.c.l.b16 %v1760
      %v1853 = vunpack.c.l.b16 %v1764
      %v1854 = vunpack.c.l.b16 %v1767
      %v1855 = vunpack.c.l.b16 %v1771
      %v1856 = vunpack.c.l.b16 %v1774
      %v1857 = vunpack.c.l.b16 %v1778
      %v1858 = vunpack.c.l.b16 %v1781
      %v1859 = vunpack.c.l.b16 %v1785
      %v1860 = vunpack.c.l.b16 %v1788
      %v1861 = vunpack.c.l.b16 %v1792
      %v1862 = vunpack.c.l.b16 %v1795
      %v1863 = vunpack.c.l.b16 %v1799
      %v1864 = vunpack.c.l.b16 %v1802
      %v1865 = vunpack.c.l.b16 %v1806
      %v1866 = vunpack.c.l.b16 %v1809
      %v1867 = vunpack.c.l.b16 %v1813
      %v1868 = vunpack.c.l.b16 %v1816
      %v1869 = vunpack.c.l.b16 %v1820
      %v1870 = vunpack.c.l.b16 %v1823
      %v1871 = vunpack.c.l.b16 %v1827
      %v1872 = vunpack.c.l.b16 %v1830
      %v1873 = vunpack.c.l.b16 %v1834
      %v1874 = vunpack.c.l.b16 %v1837
      %v1875 = vunpack.c.l.b16 %v1841
      %v1876 = vunpack.c.l.b16 %v1844
      %v1877 = vpack.c.b16 %v1846, %v1845
      %v1878 = vpack.c.b16 %v1848, %v1847
      %v1879 = vpack.c.b16 %v1850, %v1849
      %v1880 = vpack.c.b16 %v1852, %v1851
      %v1881 = vpack.c.b16 %v1854, %v1853
      %v1882 = vpack.c.b16 %v1856, %v1855
      %v1883 = vpack.c.b16 %v1858, %v1857
      %v1884 = vpack.c.b16 %v1860, %v1859
      %v1885 = vpack.c.b16 %v1862, %v1861
      %v1886 = vpack.c.b16 %v1864, %v1863
      %v1887 = vpack.c.b16 %v1866, %v1865
      %v1888 = vpack.c.b16 %v1868, %v1867
      %v1889 = vpack.c.b16 %v1870, %v1869
      %v1890 = vpack.c.b16 %v1872, %v1871
      %v1891 = vpack.c.b16 %v1874, %v1873
      %v1892 = vpack.c.b16 %v1876, %v1875
      %1893 = vrot.lane.b32.xlu0 %v1877, 16
      %v1894 = vpop.permute.xlu0 %1893
      %1895 = vrot.lane.b32.xlu0 %v1878, 16
      %v1896 = vpop.permute.xlu0 %1895
      %1897 = vrot.lane.b32.xlu0 %v1879, 16
      %v1898 = vpop.permute.xlu0 %1897
      %1899 = vrot.lane.b32.xlu0 %v1880, 16
      %v1900 = vpop.permute.xlu0 %1899
      %1901 = vrot.lane.b32.xlu0 %v1881, 16
      %v1902 = vpop.permute.xlu0 %1901
      %1903 = vrot.lane.b32.xlu0 %v1882, 16
      %v1904 = vpop.permute.xlu0 %1903
      %1905 = vrot.lane.b32.xlu0 %v1883, 16
      %v1906 = vpop.permute.xlu0 %1905
      %1907 = vrot.lane.b32.xlu0 %v1884, 16
      %v1908 = vpop.permute.xlu0 %1907
      %1909 = vrot.lane.b32.xlu0 %v1885, 16
      %v1910 = vpop.permute.xlu0 %1909
      %1911 = vrot.lane.b32.xlu0 %v1886, 16
      %v1912 = vpop.permute.xlu0 %1911
      %1913 = vrot.lane.b32.xlu0 %v1887, 16
      %v1914 = vpop.permute.xlu0 %1913
      %1915 = vrot.lane.b32.xlu0 %v1888, 16
      %v1916 = vpop.permute.xlu0 %1915
      %1917 = vrot.lane.b32.xlu0 %v1889, 16
      %v1918 = vpop.permute.xlu0 %1917
      %1919 = vrot.lane.b32.xlu0 %v1890, 16
      %v1920 = vpop.permute.xlu0 %1919
      %1921 = vrot.lane.b32.xlu0 %v1891, 16
      %v1922 = vpop.permute.xlu0 %1921
      %1923 = vrot.lane.b32.xlu0 %v1892, 16
      %v1924 = vpop.permute.xlu0 %1923
      %vm1941 = vcmask 195712
      %1942 = vst.msk [vmem:[#allocation4] sm:$0xff] %vm1941, %v1894
      %1943 = vst.msk [vmem:[#allocation4 + $0x8] sm:$0xff] %vm1941, %v1896
      %1944 = vst.msk [vmem:[#allocation4 + $0x10] sm:$0xff] %vm1941, %v1898
      %1945 = vst.msk [vmem:[#allocation4 + $0x18] sm:$0xff] %vm1941, %v1900
      %1946 = vst.msk [vmem:[#allocation4 + $0x20] sm:$0xff] %vm1941, %v1902
      %1947 = vst.msk [vmem:[#allocation4 + $0x28] sm:$0xff] %vm1941, %v1904
      %1948 = vst.msk [vmem:[#allocation4 + $0x30] sm:$0xff] %vm1941, %v1906
      %1949 = vst.msk [vmem:[#allocation4 + $0x38] sm:$0xff] %vm1941, %v1908
      %1950 = vst.msk [vmem:[#allocation4 + $0x40] sm:$0xff] %vm1941, %v1910
      %1951 = vst.msk [vmem:[#allocation4 + $0x48] sm:$0xff] %vm1941, %v1912
      %1952 = vst.msk [vmem:[#allocation4 + $0x50] sm:$0xff] %vm1941, %v1914
      %1953 = vst.msk [vmem:[#allocation4 + $0x58] sm:$0xff] %vm1941, %v1916
      %1954 = vst.msk [vmem:[#allocation4 + $0x60] sm:$0xff] %vm1941, %v1918
      %1955 = vst.msk [vmem:[#allocation4 + $0x68] sm:$0xff] %vm1941, %v1920
      %1956 = vst.msk [vmem:[#allocation4 + $0x70] sm:$0xff] %vm1941, %v1922
      %1957 = vst.msk [vmem:[#allocation4 + $0x78] sm:$0xff] %vm1941, %v1924
      %v1958 = vld [vmem:[%s262] sm:$0xf]
      %v1959 = vld [vmem:[%s262 + $0x4] sm:$0xf]
      %v1960 = vld [vmem:[%s262 + $0xc] sm:$0xf]
      %v1961 = vld [vmem:[%s262 + $0x10] sm:$0xf]
      %v1962 = vld [vmem:[%s262 + $0x18] sm:$0xf]
      %v1963 = vld [vmem:[%s262 + $0x1c] sm:$0xf]
      %v1964 = vld [vmem:[%s262 + $0x24] sm:$0xf]
      %v1965 = vld [vmem:[%s262 + $0x28] sm:$0xf]
      %v1966 = vld [vmem:[%s262 + $0x30] sm:$0xf]
      %v1967 = vld [vmem:[%s262 + $0x34] sm:$0xf]
      %v1968 = vld [vmem:[%s262 + $0x3c] sm:$0xf]
      %v1969 = vld [vmem:[%s262 + $0x40] sm:$0xf]
      %v1970 = vld [vmem:[%s262 + $0x48] sm:$0xf]
      %v1971 = vld [vmem:[%s262 + $0x4c] sm:$0xf]
      %v1972 = vld [vmem:[%s262 + $0x54] sm:$0xf]
      %v1973 = vld [vmem:[%s262 + $0x58] sm:$0xf]
      %v1974 = vld [vmem:[%s262 + $0x60] sm:$0xf]
      %v1975 = vld [vmem:[%s262 + $0x64] sm:$0xf]
      %v1976 = vld [vmem:[%s262 + $0x6c] sm:$0xf]
      %v1977 = vld [vmem:[%s262 + $0x70] sm:$0xf]
      %v1978 = vld [vmem:[%s262 + $0x78] sm:$0xf]
      %v1979 = vld [vmem:[%s262 + $0x7c] sm:$0xf]
      %v1980 = vld [vmem:[%s262 + $0x84] sm:$0xf]
      %v1981 = vld [vmem:[%s262 + $0x88] sm:$0xf]
      %v1982 = vld [vmem:[%s262 + $0x90] sm:$0xf]
      %v1983 = vld [vmem:[%s262 + $0x94] sm:$0xf]
      %v1984 = vld [vmem:[%s262 + $0x9c] sm:$0xf]
      %v1985 = vld [vmem:[%s262 + $0xa0] sm:$0xf]
      %v1986 = vld [vmem:[%s262 + $0xa8] sm:$0xf]
      %v1987 = vld [vmem:[%s262 + $0xac] sm:$0xf]
      %v1988 = vld [vmem:[%s262 + $0xb4] sm:$0xf]
      %v1989 = vld [vmem:[%s262 + $0xb8] sm:$0xf]
      %v2022 = vunpack.c.l.b16 %v1958
      %v2023 = vunpack.c.l.b16 %v1959
      %v2024 = vunpack.c.l.b16 %v1960
      %v2025 = vunpack.c.l.b16 %v1961
      %v2026 = vunpack.c.l.b16 %v1962
      %v2027 = vunpack.c.l.b16 %v1963
      %v2028 = vunpack.c.l.b16 %v1964
      %v2029 = vunpack.c.l.b16 %v1965
      %v2030 = vunpack.c.l.b16 %v1966
      %v2031 = vunpack.c.l.b16 %v1967
      %v2032 = vunpack.c.l.b16 %v1968
      %v2033 = vunpack.c.l.b16 %v1969
      %v2034 = vunpack.c.l.b16 %v1970
      %v2035 = vunpack.c.l.b16 %v1971
      %v2036 = vunpack.c.l.b16 %v1972
      %v2037 = vunpack.c.l.b16 %v1973
      %v2038 = vunpack.c.l.b16 %v1974
      %v2039 = vunpack.c.l.b16 %v1975
      %v2040 = vunpack.c.l.b16 %v1976
      %v2041 = vunpack.c.l.b16 %v1977
      %v2042 = vunpack.c.l.b16 %v1978
      %v2043 = vunpack.c.l.b16 %v1979
      %v2044 = vunpack.c.l.b16 %v1980
      %v2045 = vunpack.c.l.b16 %v1981
      %v2046 = vunpack.c.l.b16 %v1982
      %v2047 = vunpack.c.l.b16 %v1983
      %v2048 = vunpack.c.l.b16 %v1984
      %v2049 = vunpack.c.l.b16 %v1985
      %v2050 = vunpack.c.l.b16 %v1986
      %v2051 = vunpack.c.l.b16 %v1987
      %v2052 = vunpack.c.l.b16 %v1988
      %v2053 = vunpack.c.l.b16 %v1989
      %v2054 = vpack.c.b16 %v2023, %v2022
      %v2055 = vpack.c.b16 %v2025, %v2024
      %v2056 = vpack.c.b16 %v2027, %v2026
      %v2057 = vpack.c.b16 %v2029, %v2028
      %v2058 = vpack.c.b16 %v2031, %v2030
      %v2059 = vpack.c.b16 %v2033, %v2032
      %v2060 = vpack.c.b16 %v2035, %v2034
      %v2061 = vpack.c.b16 %v2037, %v2036
      %v2062 = vpack.c.b16 %v2039, %v2038
      %v2063 = vpack.c.b16 %v2041, %v2040
      %v2064 = vpack.c.b16 %v2043, %v2042
      %v2065 = vpack.c.b16 %v2045, %v2044
      %v2066 = vpack.c.b16 %v2047, %v2046
      %v2067 = vpack.c.b16 %v2049, %v2048
      %v2068 = vpack.c.b16 %v2051, %v2050
      %v2069 = vpack.c.b16 %v2053, %v2052
      %2070 = vrot.lane.b32.xlu0 %v2054, 24
      %v2071 = vpop.permute.xlu0 %2070
      %2072 = vrot.lane.b32.xlu0 %v2055, 24
      %v2073 = vpop.permute.xlu0 %2072
      %2074 = vrot.lane.b32.xlu0 %v2056, 24
      %v2075 = vpop.permute.xlu0 %2074
      %2076 = vrot.lane.b32.xlu0 %v2057, 24
      %v2077 = vpop.permute.xlu0 %2076
      %2078 = vrot.lane.b32.xlu0 %v2058, 24
      %v2079 = vpop.permute.xlu0 %2078
      %2080 = vrot.lane.b32.xlu0 %v2059, 24
      %v2081 = vpop.permute.xlu0 %2080
      %2082 = vrot.lane.b32.xlu0 %v2060, 24
      %v2083 = vpop.permute.xlu0 %2082
      %2084 = vrot.lane.b32.xlu0 %v2061, 24
      %v2085 = vpop.permute.xlu0 %2084
      %2086 = vrot.lane.b32.xlu0 %v2062, 24
      %v2087 = vpop.permute.xlu0 %2086
      %2088 = vrot.lane.b32.xlu0 %v2063, 24
      %v2089 = vpop.permute.xlu0 %2088
      %2090 = vrot.lane.b32.xlu0 %v2064, 24
      %v2091 = vpop.permute.xlu0 %2090
      %2092 = vrot.lane.b32.xlu0 %v2065, 24
      %v2093 = vpop.permute.xlu0 %2092
      %2094 = vrot.lane.b32.xlu0 %v2066, 24
      %v2095 = vpop.permute.xlu0 %2094
      %2096 = vrot.lane.b32.xlu0 %v2067, 24
      %v2097 = vpop.permute.xlu0 %2096
      %2098 = vrot.lane.b32.xlu0 %v2068, 24
      %v2099 = vpop.permute.xlu0 %2098
      %2100 = vrot.lane.b32.xlu0 %v2069, 24
      %v2101 = vpop.permute.xlu0 %2100
      %vm2118 = vcmask 261312
      %2119 = vst.msk [vmem:[#allocation4] sm:$0xff] %vm2118, %v2071
      %2120 = vst.msk [vmem:[#allocation4 + $0x8] sm:$0xff] %vm2118, %v2073
      %2121 = vst.msk [vmem:[#allocation4 + $0x10] sm:$0xff] %vm2118, %v2075
      %2122 = vst.msk [vmem:[#allocation4 + $0x18] sm:$0xff] %vm2118, %v2077
      %2123 = vst.msk [vmem:[#allocation4 + $0x20] sm:$0xff] %vm2118, %v2079
      %2124 = vst.msk [vmem:[#allocation4 + $0x28] sm:$0xff] %vm2118, %v2081
      %2125 = vst.msk [vmem:[#allocation4 + $0x30] sm:$0xff] %vm2118, %v2083
      %2126 = vst.msk [vmem:[#allocation4 + $0x38] sm:$0xff] %vm2118, %v2085
      %2127 = vst.msk [vmem:[#allocation4 + $0x40] sm:$0xff] %vm2118, %v2087
      %2128 = vst.msk [vmem:[#allocation4 + $0x48] sm:$0xff] %vm2118, %v2089
      %2129 = vst.msk [vmem:[#allocation4 + $0x50] sm:$0xff] %vm2118, %v2091
      %2130 = vst.msk [vmem:[#allocation4 + $0x58] sm:$0xff] %vm2118, %v2093
      %2131 = vst.msk [vmem:[#allocation4 + $0x60] sm:$0xff] %vm2118, %v2095
      %2132 = vst.msk [vmem:[#allocation4 + $0x68] sm:$0xff] %vm2118, %v2097
      %2133 = vst.msk [vmem:[#allocation4 + $0x70] sm:$0xff] %vm2118, %v2099
      %2134 = vst.msk [vmem:[#allocation4 + $0x78] sm:$0xff] %vm2118, %v2101
      %v2135 = vld [vmem:[%s262] sm:$0xf]
      %v2136 = vld [vmem:[%s262 + $0x4] sm:$0xf]
      %v2137 = vld [vmem:[%s262 + $0x8] sm:$0x1]
      %v2138 = vld [vmem:[%s262 + $0xc] sm:$0xf]
      %v2139 = vld [vmem:[%s262 + $0x10] sm:$0xf]
      %v2140 = vld [vmem:[%s262 + $0x14] sm:$0x1]
      %v2141 = vld [vmem:[%s262 + $0x18] sm:$0xf]
      %v2142 = vld [vmem:[%s262 + $0x1c] sm:$0xf]
      %v2143 = vld [vmem:[%s262 + $0x20] sm:$0x1]
      %v2144 = vld [vmem:[%s262 + $0x24] sm:$0xf]
      %v2145 = vld [vmem:[%s262 + $0x28] sm:$0xf]
      %v2146 = vld [vmem:[%s262 + $0x2c] sm:$0x1]
      %v2147 = vld [vmem:[%s262 + $0x30] sm:$0xf]
      %v2148 = vld [vmem:[%s262 + $0x34] sm:$0xf]
      %v2149 = vld [vmem:[%s262 + $0x38] sm:$0x1]
      %v2150 = vld [vmem:[%s262 + $0x3c] sm:$0xf]
      %v2151 = vld [vmem:[%s262 + $0x40] sm:$0xf]
      %v2152 = vld [vmem:[%s262 + $0x44] sm:$0x1]
      %v2153 = vld [vmem:[%s262 + $0x48] sm:$0xf]
      %v2154 = vld [vmem:[%s262 + $0x4c] sm:$0xf]
      %v2155 = vld [vmem:[%s262 + $0x50] sm:$0x1]
      %v2156 = vld [vmem:[%s262 + $0x54] sm:$0xf]
      %v2157 = vld [vmem:[%s262 + $0x58] sm:$0xf]
      %v2158 = vld [vmem:[%s262 + $0x5c] sm:$0x1]
      %v2159 = vld [vmem:[%s262 + $0x60] sm:$0xf]
      %v2160 = vld [vmem:[%s262 + $0x64] sm:$0xf]
      %v2161 = vld [vmem:[%s262 + $0x68] sm:$0x1]
      %v2162 = vld [vmem:[%s262 + $0x6c] sm:$0xf]
      %v2163 = vld [vmem:[%s262 + $0x70] sm:$0xf]
      %v2164 = vld [vmem:[%s262 + $0x74] sm:$0x1]
      %v2165 = vld [vmem:[%s262 + $0x78] sm:$0xf]
      %v2166 = vld [vmem:[%s262 + $0x7c] sm:$0xf]
      %v2167 = vld [vmem:[%s262 + $0x80] sm:$0x1]
      %v2168 = vld [vmem:[%s262 + $0x84] sm:$0xf]
      %v2169 = vld [vmem:[%s262 + $0x88] sm:$0xf]
      %v2170 = vld [vmem:[%s262 + $0x8c] sm:$0x1]
      %v2171 = vld [vmem:[%s262 + $0x90] sm:$0xf]
      %v2172 = vld [vmem:[%s262 + $0x94] sm:$0xf]
      %v2173 = vld [vmem:[%s262 + $0x98] sm:$0x1]
      %v2174 = vld [vmem:[%s262 + $0x9c] sm:$0xf]
      %v2175 = vld [vmem:[%s262 + $0xa0] sm:$0xf]
      %v2176 = vld [vmem:[%s262 + $0xa4] sm:$0x1]
      %v2177 = vld [vmem:[%s262 + $0xa8] sm:$0xf]
      %v2178 = vld [vmem:[%s262 + $0xac] sm:$0xf]
      %v2179 = vld [vmem:[%s262 + $0xb0] sm:$0x1]
      %v2180 = vld [vmem:[%s262 + $0xb4] sm:$0xf]
      %v2181 = vld [vmem:[%s262 + $0xb8] sm:$0xf]
      %v2182 = vld [vmem:[%s262 + $0xbc] sm:$0x1]
      %v2184 = vshrl.u32 %v2135, 16
      %v2186 = vrot.slane %v2184, 4
      %v2187 = vshll.u32 %v2135, 16
      %v2189 = vrot.slane %v2187, 5
      %v2190 = vor.u32 %v2186, %v2189
      %v2191 = vrot.slane %v2190, 4
      %v2193 = vshll.u32 %v2136, 16
      %v2195 = vrot.slane %v2193, 5
      %v2196 = vsel %vm1136, %v2191, %v2195
      %v2197 = vshrl.u32 %v2136, 16
      %v2199 = vrot.slane %v2197, 4
      %v2200 = vor.u32 %v2199, %v2195
      %v2201 = vrot.slane %v2200, 4
      %v2203 = vshll.u32 %v2137, 16
      %v2205 = vrot.slane %v2203, 5
      %v2206 = vsel %vm1136, %v2201, %v2205
      %v2208 = vshrl.u32 %v2138, 16
      %v2210 = vrot.slane %v2208, 4
      %v2211 = vshll.u32 %v2138, 16
      %v2213 = vrot.slane %v2211, 5
      %v2214 = vor.u32 %v2210, %v2213
      %v2215 = vrot.slane %v2214, 4
      %v2217 = vshll.u32 %v2139, 16
      %v2219 = vrot.slane %v2217, 5
      %v2220 = vsel %vm1136, %v2215, %v2219
      %v2221 = vshrl.u32 %v2139, 16
      %v2223 = vrot.slane %v2221, 4
      %v2224 = vor.u32 %v2223, %v2219
      %v2225 = vrot.slane %v2224, 4
      %v2227 = vshll.u32 %v2140, 16
      %v2229 = vrot.slane %v2227, 5
      %v2230 = vsel %vm1136, %v2225, %v2229
      %v2232 = vshrl.u32 %v2141, 16
      %v2234 = vrot.slane %v2232, 4
      %v2235 = vshll.u32 %v2141, 16
      %v2237 = vrot.slane %v2235, 5
      %v2238 = vor.u32 %v2234, %v2237
      %v2239 = vrot.slane %v2238, 4
      %v2241 = vshll.u32 %v2142, 16
      %v2243 = vrot.slane %v2241, 5
      %v2244 = vsel %vm1136, %v2239, %v2243
      %v2245 = vshrl.u32 %v2142, 16
      %v2247 = vrot.slane %v2245, 4
      %v2248 = vor.u32 %v2247, %v2243
      %v2249 = vrot.slane %v2248, 4
      %v2251 = vshll.u32 %v2143, 16
      %v2253 = vrot.slane %v2251, 5
      %v2254 = vsel %vm1136, %v2249, %v2253
      %v2256 = vshrl.u32 %v2144, 16
      %v2258 = vrot.slane %v2256, 4
      %v2259 = vshll.u32 %v2144, 16
      %v2261 = vrot.slane %v2259, 5
      %v2262 = vor.u32 %v2258, %v2261
      %v2263 = vrot.slane %v2262, 4
      %v2265 = vshll.u32 %v2145, 16
      %v2267 = vrot.slane %v2265, 5
      %v2268 = vsel %vm1136, %v2263, %v2267
      %v2269 = vshrl.u32 %v2145, 16
      %v2271 = vrot.slane %v2269, 4
      %v2272 = vor.u32 %v2271, %v2267
      %v2273 = vrot.slane %v2272, 4
      %v2275 = vshll.u32 %v2146, 16
      %v2277 = vrot.slane %v2275, 5
      %v2278 = vsel %vm1136, %v2273, %v2277
      %v2280 = vshrl.u32 %v2147, 16
      %v2282 = vrot.slane %v2280, 4
      %v2283 = vshll.u32 %v2147, 16
      %v2285 = vrot.slane %v2283, 5
      %v2286 = vor.u32 %v2282, %v2285
      %v2287 = vrot.slane %v2286, 4
      %v2289 = vshll.u32 %v2148, 16
      %v2291 = vrot.slane %v2289, 5
      %v2292 = vsel %vm1136, %v2287, %v2291
      %v2293 = vshrl.u32 %v2148, 16
      %v2295 = vrot.slane %v2293, 4
      %v2296 = vor.u32 %v2295, %v2291
      %v2297 = vrot.slane %v2296, 4
      %v2299 = vshll.u32 %v2149, 16
      %v2301 = vrot.slane %v2299, 5
      %v2302 = vsel %vm1136, %v2297, %v2301
      %v2304 = vshrl.u32 %v2150, 16
      %v2306 = vrot.slane %v2304, 4
      %v2307 = vshll.u32 %v2150, 16
      %v2309 = vrot.slane %v2307, 5
      %v2310 = vor.u32 %v2306, %v2309
      %v2311 = vrot.slane %v2310, 4
      %v2313 = vshll.u32 %v2151, 16
      %v2315 = vrot.slane %v2313, 5
      %v2316 = vsel %vm1136, %v2311, %v2315
      %v2317 = vshrl.u32 %v2151, 16
      %v2319 = vrot.slane %v2317, 4
      %v2320 = vor.u32 %v2319, %v2315
      %v2321 = vrot.slane %v2320, 4
      %v2323 = vshll.u32 %v2152, 16
      %v2325 = vrot.slane %v2323, 5
      %v2326 = vsel %vm1136, %v2321, %v2325
      %v2328 = vshrl.u32 %v2153, 16
      %v2330 = vrot.slane %v2328, 4
      %v2331 = vshll.u32 %v2153, 16
      %v2333 = vrot.slane %v2331, 5
      %v2334 = vor.u32 %v2330, %v2333
      %v2335 = vrot.slane %v2334, 4
      %v2337 = vshll.u32 %v2154, 16
      %v2339 = vrot.slane %v2337, 5
      %v2340 = vsel %vm1136, %v2335, %v2339
      %v2341 = vshrl.u32 %v2154, 16
      %v2343 = vrot.slane %v2341, 4
      %v2344 = vor.u32 %v2343, %v2339
      %v2345 = vrot.slane %v2344, 4
      %v2347 = vshll.u32 %v2155, 16
      %v2349 = vrot.slane %v2347, 5
      %v2350 = vsel %vm1136, %v2345, %v2349
      %v2352 = vshrl.u32 %v2156, 16
      %v2354 = vrot.slane %v2352, 4
      %v2355 = vshll.u32 %v2156, 16
      %v2357 = vrot.slane %v2355, 5
      %v2358 = vor.u32 %v2354, %v2357
      %v2359 = vrot.slane %v2358, 4
      %v2361 = vshll.u32 %v2157, 16
      %v2363 = vrot.slane %v2361, 5
      %v2364 = vsel %vm1136, %v2359, %v2363
      %v2365 = vshrl.u32 %v2157, 16
      %v2367 = vrot.slane %v2365, 4
      %v2368 = vor.u32 %v2367, %v2363
      %v2369 = vrot.slane %v2368, 4
      %v2371 = vshll.u32 %v2158, 16
      %v2373 = vrot.slane %v2371, 5
      %v2374 = vsel %vm1136, %v2369, %v2373
      %v2376 = vshrl.u32 %v2159, 16
      %v2378 = vrot.slane %v2376, 4
      %v2379 = vshll.u32 %v2159, 16
      %v2381 = vrot.slane %v2379, 5
      %v2382 = vor.u32 %v2378, %v2381
      %v2383 = vrot.slane %v2382, 4
      %v2385 = vshll.u32 %v2160, 16
      %v2387 = vrot.slane %v2385, 5
      %v2388 = vsel %vm1136, %v2383, %v2387
      %v2389 = vshrl.u32 %v2160, 16
      %v2391 = vrot.slane %v2389, 4
      %v2392 = vor.u32 %v2391, %v2387
      %v2393 = vrot.slane %v2392, 4
      %v2395 = vshll.u32 %v2161, 16
      %v2397 = vrot.slane %v2395, 5
      %v2398 = vsel %vm1136, %v2393, %v2397
      %v2400 = vshrl.u32 %v2162, 16
      %v2402 = vrot.slane %v2400, 4
      %v2403 = vshll.u32 %v2162, 16
      %v2405 = vrot.slane %v2403, 5
      %v2406 = vor.u32 %v2402, %v2405
      %v2407 = vrot.slane %v2406, 4
      %v2409 = vshll.u32 %v2163, 16
      %v2411 = vrot.slane %v2409, 5
      %v2412 = vsel %vm1136, %v2407, %v2411
      %v2413 = vshrl.u32 %v2163, 16
      %v2415 = vrot.slane %v2413, 4
      %v2416 = vor.u32 %v2415, %v2411
      %v2417 = vrot.slane %v2416, 4
      %v2419 = vshll.u32 %v2164, 16
      %v2421 = vrot.slane %v2419, 5
      %v2422 = vsel %vm1136, %v2417, %v2421
      %v2424 = vshrl.u32 %v2165, 16
      %v2426 = vrot.slane %v2424, 4
      %v2427 = vshll.u32 %v2165, 16
      %v2429 = vrot.slane %v2427, 5
      %v2430 = vor.u32 %v2426, %v2429
      %v2431 = vrot.slane %v2430, 4
      %v2433 = vshll.u32 %v2166, 16
      %v2435 = vrot.slane %v2433, 5
      %v2436 = vsel %vm1136, %v2431, %v2435
      %v2437 = vshrl.u32 %v2166, 16
      %v2439 = vrot.slane %v2437, 4
      %v2440 = vor.u32 %v2439, %v2435
      %v2441 = vrot.slane %v2440, 4
      %v2443 = vshll.u32 %v2167, 16
      %v2445 = vrot.slane %v2443, 5
      %v2446 = vsel %vm1136, %v2441, %v2445
      %v2448 = vshrl.u32 %v2168, 16
      %v2450 = vrot.slane %v2448, 4
      %v2451 = vshll.u32 %v2168, 16
      %v2453 = vrot.slane %v2451, 5
      %v2454 = vor.u32 %v2450, %v2453
      %v2455 = vrot.slane %v2454, 4
      %v2457 = vshll.u32 %v2169, 16
      %v2459 = vrot.slane %v2457, 5
      %v2460 = vsel %vm1136, %v2455, %v2459
      %v2461 = vshrl.u32 %v2169, 16
      %v2463 = vrot.slane %v2461, 4
      %v2464 = vor.u32 %v2463, %v2459
      %v2465 = vrot.slane %v2464, 4
      %v2467 = vshll.u32 %v2170, 16
      %v2469 = vrot.slane %v2467, 5
      %v2470 = vsel %vm1136, %v2465, %v2469
      %v2472 = vshrl.u32 %v2171, 16
      %v2474 = vrot.slane %v2472, 4
      %v2475 = vshll.u32 %v2171, 16
      %v2477 = vrot.slane %v2475, 5
      %v2478 = vor.u32 %v2474, %v2477
      %v2479 = vrot.slane %v2478, 4
      %v2481 = vshll.u32 %v2172, 16
      %v2483 = vrot.slane %v2481, 5
      %v2484 = vsel %vm1136, %v2479, %v2483
      %v2485 = vshrl.u32 %v2172, 16
      %v2487 = vrot.slane %v2485, 4
      %v2488 = vor.u32 %v2487, %v2483
      %v2489 = vrot.slane %v2488, 4
      %v2491 = vshll.u32 %v2173, 16
      %v2493 = vrot.slane %v2491, 5
      %v2494 = vsel %vm1136, %v2489, %v2493
      %v2496 = vshrl.u32 %v2174, 16
      %v2498 = vrot.slane %v2496, 4
      %v2499 = vshll.u32 %v2174, 16
      %v2501 = vrot.slane %v2499, 5
      %v2502 = vor.u32 %v2498, %v2501
      %v2503 = vrot.slane %v2502, 4
      %v2505 = vshll.u32 %v2175, 16
      %v2507 = vrot.slane %v2505, 5
      %v2508 = vsel %vm1136, %v2503, %v2507
      %v2509 = vshrl.u32 %v2175, 16
      %v2511 = vrot.slane %v2509, 4
      %v2512 = vor.u32 %v2511, %v2507
      %v2513 = vrot.slane %v2512, 4
      %v2515 = vshll.u32 %v2176, 16
      %v2517 = vrot.slane %v2515, 5
      %v2518 = vsel %vm1136, %v2513, %v2517
      %v2520 = vshrl.u32 %v2177, 16
      %v2522 = vrot.slane %v2520, 4
      %v2523 = vshll.u32 %v2177, 16
      %v2525 = vrot.slane %v2523, 5
      %v2526 = vor.u32 %v2522, %v2525
      %v2527 = vrot.slane %v2526, 4
      %v2529 = vshll.u32 %v2178, 16
      %v2531 = vrot.slane %v2529, 5
      %v2532 = vsel %vm1136, %v2527, %v2531
      %v2533 = vshrl.u32 %v2178, 16
      %v2535 = vrot.slane %v2533, 4
      %v2536 = vor.u32 %v2535, %v2531
      %v2537 = vrot.slane %v2536, 4
      %v2539 = vshll.u32 %v2179, 16
      %v2541 = vrot.slane %v2539, 5
      %v2542 = vsel %vm1136, %v2537, %v2541
      %v2544 = vshrl.u32 %v2180, 16
      %v2546 = vrot.slane %v2544, 4
      %v2547 = vshll.u32 %v2180, 16
      %v2549 = vrot.slane %v2547, 5
      %v2550 = vor.u32 %v2546, %v2549
      %v2551 = vrot.slane %v2550, 4
      %v2553 = vshll.u32 %v2181, 16
      %v2555 = vrot.slane %v2553, 5
      %v2556 = vsel %vm1136, %v2551, %v2555
      %v2557 = vshrl.u32 %v2181, 16
      %v2559 = vrot.slane %v2557, 4
      %v2560 = vor.u32 %v2559, %v2555
      %v2561 = vrot.slane %v2560, 4
      %v2563 = vshll.u32 %v2182, 16
      %v2565 = vrot.slane %v2563, 5
      %v2566 = vsel %vm1136, %v2561, %v2565
      %v2567 = vunpack.c.l.b16 %v2196
      %v2568 = vunpack.c.l.b16 %v2206
      %v2569 = vunpack.c.l.b16 %v2220
      %v2570 = vunpack.c.l.b16 %v2230
      %v2571 = vunpack.c.l.b16 %v2244
      %v2572 = vunpack.c.l.b16 %v2254
      %v2573 = vunpack.c.l.b16 %v2268
      %v2574 = vunpack.c.l.b16 %v2278
      %v2575 = vunpack.c.l.b16 %v2292
      %v2576 = vunpack.c.l.b16 %v2302
      %v2577 = vunpack.c.l.b16 %v2316
      %v2578 = vunpack.c.l.b16 %v2326
      %v2579 = vunpack.c.l.b16 %v2340
      %v2580 = vunpack.c.l.b16 %v2350
      %v2581 = vunpack.c.l.b16 %v2364
      %v2582 = vunpack.c.l.b16 %v2374
      %v2583 = vunpack.c.l.b16 %v2388
      %v2584 = vunpack.c.l.b16 %v2398
      %v2585 = vunpack.c.l.b16 %v2412
      %v2586 = vunpack.c.l.b16 %v2422
      %v2587 = vunpack.c.l.b16 %v2436
      %v2588 = vunpack.c.l.b16 %v2446
      %v2589 = vunpack.c.l.b16 %v2460
      %v2590 = vunpack.c.l.b16 %v2470
      %v2591 = vunpack.c.l.b16 %v2484
      %v2592 = vunpack.c.l.b16 %v2494
      %v2593 = vunpack.c.l.b16 %v2508
      %v2594 = vunpack.c.l.b16 %v2518
      %v2595 = vunpack.c.l.b16 %v2532
      %v2596 = vunpack.c.l.b16 %v2542
      %v2597 = vunpack.c.l.b16 %v2556
      %v2598 = vunpack.c.l.b16 %v2566
      %v2599 = vpack.c.b16 %v2568, %v2567
      %v2600 = vpack.c.b16 %v2570, %v2569
      %v2601 = vpack.c.b16 %v2572, %v2571
      %v2602 = vpack.c.b16 %v2574, %v2573
      %v2603 = vpack.c.b16 %v2576, %v2575
      %v2604 = vpack.c.b16 %v2578, %v2577
      %v2605 = vpack.c.b16 %v2580, %v2579
      %v2606 = vpack.c.b16 %v2582, %v2581
      %v2607 = vpack.c.b16 %v2584, %v2583
      %v2608 = vpack.c.b16 %v2586, %v2585
      %v2609 = vpack.c.b16 %v2588, %v2587
      %v2610 = vpack.c.b16 %v2590, %v2589
      %v2611 = vpack.c.b16 %v2592, %v2591
      %v2612 = vpack.c.b16 %v2594, %v2593
      %v2613 = vpack.c.b16 %v2596, %v2595
      %v2614 = vpack.c.b16 %v2598, %v2597
      %2615 = vrot.lane.b32.xlu0 %v2599, 32
      %v2616 = vpop.permute.xlu0 %2615
      %2617 = vrot.lane.b32.xlu0 %v2600, 32
      %v2618 = vpop.permute.xlu0 %2617
      %2619 = vrot.lane.b32.xlu0 %v2601, 32
      %v2620 = vpop.permute.xlu0 %2619
      %2621 = vrot.lane.b32.xlu0 %v2602, 32
      %v2622 = vpop.permute.xlu0 %2621
      %2623 = vrot.lane.b32.xlu0 %v2603, 32
      %v2624 = vpop.permute.xlu0 %2623
      %2625 = vrot.lane.b32.xlu0 %v2604, 32
      %v2626 = vpop.permute.xlu0 %2625
      %2627 = vrot.lane.b32.xlu0 %v2605, 32
      %v2628 = vpop.permute.xlu0 %2627
      %2629 = vrot.lane.b32.xlu0 %v2606, 32
      %v2630 = vpop.permute.xlu0 %2629
      %2631 = vrot.lane.b32.xlu0 %v2607, 32
      %v2632 = vpop.permute.xlu0 %2631
      %2633 = vrot.lane.b32.xlu0 %v2608, 32
      %v2634 = vpop.permute.xlu0 %2633
      %2635 = vrot.lane.b32.xlu0 %v2609, 32
      %v2636 = vpop.permute.xlu0 %2635
      %2637 = vrot.lane.b32.xlu0 %v2610, 32
      %v2638 = vpop.permute.xlu0 %2637
      %2639 = vrot.lane.b32.xlu0 %v2611, 32
      %v2640 = vpop.permute.xlu0 %2639
      %2641 = vrot.lane.b32.xlu0 %v2612, 32
      %v2642 = vpop.permute.xlu0 %2641
      %2643 = vrot.lane.b32.xlu0 %v2613, 32
      %v2644 = vpop.permute.xlu0 %2643
      %2645 = vrot.lane.b32.xlu0 %v2614, 32
      %v2646 = vpop.permute.xlu0 %2645
      %vm2663 = vcmask 326912
      %2664 = vst.msk [vmem:[#allocation4] sm:$0xff] %vm2663, %v2616
      %2665 = vst.msk [vmem:[#allocation4 + $0x8] sm:$0xff] %vm2663, %v2618
      %2666 = vst.msk [vmem:[#allocation4 + $0x10] sm:$0xff] %vm2663, %v2620
      %2667 = vst.msk [vmem:[#allocation4 + $0x18] sm:$0xff] %vm2663, %v2622
      %2668 = vst.msk [vmem:[#allocation4 + $0x20] sm:$0xff] %vm2663, %v2624
      %2669 = vst.msk [vmem:[#allocation4 + $0x28] sm:$0xff] %vm2663, %v2626
      %2670 = vst.msk [vmem:[#allocation4 + $0x30] sm:$0xff] %vm2663, %v2628
      %2671 = vst.msk [vmem:[#allocation4 + $0x38] sm:$0xff] %vm2663, %v2630
      %2672 = vst.msk [vmem:[#allocation4 + $0x40] sm:$0xff] %vm2663, %v2632
      %2673 = vst.msk [vmem:[#allocation4 + $0x48] sm:$0xff] %vm2663, %v2634
      %2674 = vst.msk [vmem:[#allocation4 + $0x50] sm:$0xff] %vm2663, %v2636
      %2675 = vst.msk [vmem:[#allocation4 + $0x58] sm:$0xff] %vm2663, %v2638
      %2676 = vst.msk [vmem:[#allocation4 + $0x60] sm:$0xff] %vm2663, %v2640
      %2677 = vst.msk [vmem:[#allocation4 + $0x68] sm:$0xff] %vm2663, %v2642
      %2678 = vst.msk [vmem:[#allocation4 + $0x70] sm:$0xff] %vm2663, %v2644
      %2679 = vst.msk [vmem:[#allocation4 + $0x78] sm:$0xff] %vm2663, %v2646
      %v2680 = vld [vmem:[%s262] sm:$0xe]
      %v2681 = vld [vmem:[%s262 + $0x4] sm:$0xf]
      %v2682 = vld [vmem:[%s262 + $0x8] sm:$0x1]
      %v2683 = vld [vmem:[%s262 + $0xc] sm:$0xe]
      %v2684 = vld [vmem:[%s262 + $0x10] sm:$0xf]
      %v2685 = vld [vmem:[%s262 + $0x14] sm:$0x1]
      %v2686 = vld [vmem:[%s262 + $0x18] sm:$0xe]
      %v2687 = vld [vmem:[%s262 + $0x1c] sm:$0xf]
      %v2688 = vld [vmem:[%s262 + $0x20] sm:$0x1]
      %v2689 = vld [vmem:[%s262 + $0x24] sm:$0xe]
      %v2690 = vld [vmem:[%s262 + $0x28] sm:$0xf]
      %v2691 = vld [vmem:[%s262 + $0x2c] sm:$0x1]
      %v2692 = vld [vmem:[%s262 + $0x30] sm:$0xe]
      %v2693 = vld [vmem:[%s262 + $0x34] sm:$0xf]
      %v2694 = vld [vmem:[%s262 + $0x38] sm:$0x1]
      %v2695 = vld [vmem:[%s262 + $0x3c] sm:$0xe]
      %v2696 = vld [vmem:[%s262 + $0x40] sm:$0xf]
      %v2697 = vld [vmem:[%s262 + $0x44] sm:$0x1]
      %v2698 = vld [vmem:[%s262 + $0x48] sm:$0xe]
      %v2699 = vld [vmem:[%s262 + $0x4c] sm:$0xf]
      %v2700 = vld [vmem:[%s262 + $0x50] sm:$0x1]
      %v2701 = vld [vmem:[%s262 + $0x54] sm:$0xe]
      %v2702 = vld [vmem:[%s262 + $0x58] sm:$0xf]
      %v2703 = vld [vmem:[%s262 + $0x5c] sm:$0x1]
      %v2704 = vld [vmem:[%s262 + $0x60] sm:$0xe]
      %v2705 = vld [vmem:[%s262 + $0x64] sm:$0xf]
      %v2706 = vld [vmem:[%s262 + $0x68] sm:$0x1]
      %v2707 = vld [vmem:[%s262 + $0x6c] sm:$0xe]
      %v2708 = vld [vmem:[%s262 + $0x70] sm:$0xf]
      %v2709 = vld [vmem:[%s262 + $0x74] sm:$0x1]
      %v2710 = vld [vmem:[%s262 + $0x78] sm:$0xe]
      %v2711 = vld [vmem:[%s262 + $0x7c] sm:$0xf]
      %v2712 = vld [vmem:[%s262 + $0x80] sm:$0x1]
      %v2713 = vld [vmem:[%s262 + $0x84] sm:$0xe]
      %v2714 = vld [vmem:[%s262 + $0x88] sm:$0xf]
      %v2715 = vld [vmem:[%s262 + $0x8c] sm:$0x1]
      %v2716 = vld [vmem:[%s262 + $0x90] sm:$0xe]
      %v2717 = vld [vmem:[%s262 + $0x94] sm:$0xf]
      %v2718 = vld [vmem:[%s262 + $0x98] sm:$0x1]
      %v2719 = vld [vmem:[%s262 + $0x9c] sm:$0xe]
      %v2720 = vld [vmem:[%s262 + $0xa0] sm:$0xf]
      %v2721 = vld [vmem:[%s262 + $0xa4] sm:$0x1]
      %v2722 = vld [vmem:[%s262 + $0xa8] sm:$0xe]
      %v2723 = vld [vmem:[%s262 + $0xac] sm:$0xf]
      %v2724 = vld [vmem:[%s262 + $0xb0] sm:$0x1]
      %v2725 = vld [vmem:[%s262 + $0xb4] sm:$0xe]
      %v2726 = vld [vmem:[%s262 + $0xb8] sm:$0xf]
      %v2727 = vld [vmem:[%s262 + $0xbc] sm:$0x1]
      %v2776 = vrot.slane %v2680, 5
      %v2777 = vrot.slane %v2776, 4
      %v2778 = vrot.slane %v2681, 5
      %v2779 = vsel %vm1732, %v2777, %v2778
      %v2780 = vrot.slane %v2778, 4
      %v2781 = vrot.slane %v2682, 5
      %v2782 = vsel %vm1732, %v2780, %v2781
      %v2783 = vrot.slane %v2683, 5
      %v2784 = vrot.slane %v2783, 4
      %v2785 = vrot.slane %v2684, 5
      %v2786 = vsel %vm1732, %v2784, %v2785
      %v2787 = vrot.slane %v2785, 4
      %v2788 = vrot.slane %v2685, 5
      %v2789 = vsel %vm1732, %v2787, %v2788
      %v2790 = vrot.slane %v2686, 5
      %v2791 = vrot.slane %v2790, 4
      %v2792 = vrot.slane %v2687, 5
      %v2793 = vsel %vm1732, %v2791, %v2792
      %v2794 = vrot.slane %v2792, 4
      %v2795 = vrot.slane %v2688, 5
      %v2796 = vsel %vm1732, %v2794, %v2795
      %v2797 = vrot.slane %v2689, 5
      %v2798 = vrot.slane %v2797, 4
      %v2799 = vrot.slane %v2690, 5
      %v2800 = vsel %vm1732, %v2798, %v2799
      %v2801 = vrot.slane %v2799, 4
      %v2802 = vrot.slane %v2691, 5
      %v2803 = vsel %vm1732, %v2801, %v2802
      %v2804 = vrot.slane %v2692, 5
      %v2805 = vrot.slane %v2804, 4
      %v2806 = vrot.slane %v2693, 5
      %v2807 = vsel %vm1732, %v2805, %v2806
      %v2808 = vrot.slane %v2806, 4
      %v2809 = vrot.slane %v2694, 5
      %v2810 = vsel %vm1732, %v2808, %v2809
      %v2811 = vrot.slane %v2695, 5
      %v2812 = vrot.slane %v2811, 4
      %v2813 = vrot.slane %v2696, 5
      %v2814 = vsel %vm1732, %v2812, %v2813
      %v2815 = vrot.slane %v2813, 4
      %v2816 = vrot.slane %v2697, 5
      %v2817 = vsel %vm1732, %v2815, %v2816
      %v2818 = vrot.slane %v2698, 5
      %v2819 = vrot.slane %v2818, 4
      %v2820 = vrot.slane %v2699, 5
      %v2821 = vsel %vm1732, %v2819, %v2820
      %v2822 = vrot.slane %v2820, 4
      %v2823 = vrot.slane %v2700, 5
      %v2824 = vsel %vm1732, %v2822, %v2823
      %v2825 = vrot.slane %v2701, 5
      %v2826 = vrot.slane %v2825, 4
      %v2827 = vrot.slane %v2702, 5
      %v2828 = vsel %vm1732, %v2826, %v2827
      %v2829 = vrot.slane %v2827, 4
      %v2830 = vrot.slane %v2703, 5
      %v2831 = vsel %vm1732, %v2829, %v2830
      %v2832 = vrot.slane %v2704, 5
      %v2833 = vrot.slane %v2832, 4
      %v2834 = vrot.slane %v2705, 5
      %v2835 = vsel %vm1732, %v2833, %v2834
      %v2836 = vrot.slane %v2834, 4
      %v2837 = vrot.slane %v2706, 5
      %v2838 = vsel %vm1732, %v2836, %v2837
      %v2839 = vrot.slane %v2707, 5
      %v2840 = vrot.slane %v2839, 4
      %v2841 = vrot.slane %v2708, 5
      %v2842 = vsel %vm1732, %v2840, %v2841
      %v2843 = vrot.slane %v2841, 4
      %v2844 = vrot.slane %v2709, 5
      %v2845 = vsel %vm1732, %v2843, %v2844
      %v2846 = vrot.slane %v2710, 5
      %v2847 = vrot.slane %v2846, 4
      %v2848 = vrot.slane %v2711, 5
      %v2849 = vsel %vm1732, %v2847, %v2848
      %v2850 = vrot.slane %v2848, 4
      %v2851 = vrot.slane %v2712, 5
      %v2852 = vsel %vm1732, %v2850, %v2851
      %v2853 = vrot.slane %v2713, 5
      %v2854 = vrot.slane %v2853, 4
      %v2855 = vrot.slane %v2714, 5
      %v2856 = vsel %vm1732, %v2854, %v2855
      %v2857 = vrot.slane %v2855, 4
      %v2858 = vrot.slane %v2715, 5
      %v2859 = vsel %vm1732, %v2857, %v2858
      %v2860 = vrot.slane %v2716, 5
      %v2861 = vrot.slane %v2860, 4
      %v2862 = vrot.slane %v2717, 5
      %v2863 = vsel %vm1732, %v2861, %v2862
      %v2864 = vrot.slane %v2862, 4
      %v2865 = vrot.slane %v2718, 5
      %v2866 = vsel %vm1732, %v2864, %v2865
      %v2867 = vrot.slane %v2719, 5
      %v2868 = vrot.slane %v2867, 4
      %v2869 = vrot.slane %v2720, 5
      %v2870 = vsel %vm1732, %v2868, %v2869
      %v2871 = vrot.slane %v2869, 4
      %v2872 = vrot.slane %v2721, 5
      %v2873 = vsel %vm1732, %v2871, %v2872
      %v2874 = vrot.slane %v2722, 5
      %v2875 = vrot.slane %v2874, 4
      %v2876 = vrot.slane %v2723, 5
      %v2877 = vsel %vm1732, %v2875, %v2876
      %v2878 = vrot.slane %v2876, 4
      %v2879 = vrot.slane %v2724, 5
      %v2880 = vsel %vm1732, %v2878, %v2879
      %v2881 = vrot.slane %v2725, 5
      %v2882 = vrot.slane %v2881, 4
      %v2883 = vrot.slane %v2726, 5
      %v2884 = vsel %vm1732, %v2882, %v2883
      %v2885 = vrot.slane %v2883, 4
      %v2886 = vrot.slane %v2727, 5
      %v2887 = vsel %vm1732, %v2885, %v2886
      %v2888 = vunpack.c.l.b16 %v2779
      %v2889 = vunpack.c.l.b16 %v2782
      %v2890 = vunpack.c.l.b16 %v2786
      %v2891 = vunpack.c.l.b16 %v2789
      %v2892 = vunpack.c.l.b16 %v2793
      %v2893 = vunpack.c.l.b16 %v2796
      %v2894 = vunpack.c.l.b16 %v2800
      %v2895 = vunpack.c.l.b16 %v2803
      %v2896 = vunpack.c.l.b16 %v2807
      %v2897 = vunpack.c.l.b16 %v2810
      %v2898 = vunpack.c.l.b16 %v2814
      %v2899 = vunpack.c.l.b16 %v2817
      %v2900 = vunpack.c.l.b16 %v2821
      %v2901 = vunpack.c.l.b16 %v2824
      %v2902 = vunpack.c.l.b16 %v2828
      %v2903 = vunpack.c.l.b16 %v2831
      %v2904 = vunpack.c.l.b16 %v2835
      %v2905 = vunpack.c.l.b16 %v2838
      %v2906 = vunpack.c.l.b16 %v2842
      %v2907 = vunpack.c.l.b16 %v2845
      %v2908 = vunpack.c.l.b16 %v2849
      %v2909 = vunpack.c.l.b16 %v2852
      %v2910 = vunpack.c.l.b16 %v2856
      %v2911 = vunpack.c.l.b16 %v2859
      %v2912 = vunpack.c.l.b16 %v2863
      %v2913 = vunpack.c.l.b16 %v2866
      %v2914 = vunpack.c.l.b16 %v2870
      %v2915 = vunpack.c.l.b16 %v2873
      %v2916 = vunpack.c.l.b16 %v2877
      %v2917 = vunpack.c.l.b16 %v2880
      %v2918 = vunpack.c.l.b16 %v2884
      %v2919 = vunpack.c.l.b16 %v2887
      %v2920 = vpack.c.b16 %v2889, %v2888
      %v2921 = vpack.c.b16 %v2891, %v2890
      %v2922 = vpack.c.b16 %v2893, %v2892
      %v2923 = vpack.c.b16 %v2895, %v2894
      %v2924 = vpack.c.b16 %v2897, %v2896
      %v2925 = vpack.c.b16 %v2899, %v2898
      %v2926 = vpack.c.b16 %v2901, %v2900
      %v2927 = vpack.c.b16 %v2903, %v2902
      %v2928 = vpack.c.b16 %v2905, %v2904
      %v2929 = vpack.c.b16 %v2907, %v2906
      %v2930 = vpack.c.b16 %v2909, %v2908
      %v2931 = vpack.c.b16 %v2911, %v2910
      %v2932 = vpack.c.b16 %v2913, %v2912
      %v2933 = vpack.c.b16 %v2915, %v2914
      %v2934 = vpack.c.b16 %v2917, %v2916
      %v2935 = vpack.c.b16 %v2919, %v2918
      %2936 = vrot.lane.b32.xlu0 %v2920, 40
      %v2937 = vpop.permute.xlu0 %2936
      %2938 = vrot.lane.b32.xlu0 %v2921, 40
      %v2939 = vpop.permute.xlu0 %2938
      %2940 = vrot.lane.b32.xlu0 %v2922, 40
      %v2941 = vpop.permute.xlu0 %2940
      %2942 = vrot.lane.b32.xlu0 %v2923, 40
      %v2943 = vpop.permute.xlu0 %2942
      %2944 = vrot.lane.b32.xlu0 %v2924, 40
      %v2945 = vpop.permute.xlu0 %2944
      %2946 = vrot.lane.b32.xlu0 %v2925, 40
      %v2947 = vpop.permute.xlu0 %2946
      %2948 = vrot.lane.b32.xlu0 %v2926, 40
      %v2949 = vpop.permute.xlu0 %2948
      %2950 = vrot.lane.b32.xlu0 %v2927, 40
      %v2951 = vpop.permute.xlu0 %2950
      %2952 = vrot.lane.b32.xlu0 %v2928, 40
      %v2953 = vpop.permute.xlu0 %2952
      %2954 = vrot.lane.b32.xlu0 %v2929, 40
      %v2955 = vpop.permute.xlu0 %2954
      %2956 = vrot.lane.b32.xlu0 %v2930, 40
      %v2957 = vpop.permute.xlu0 %2956
      %2958 = vrot.lane.b32.xlu0 %v2931, 40
      %v2959 = vpop.permute.xlu0 %2958
      %2960 = vrot.lane.b32.xlu0 %v2932, 40
      %v2961 = vpop.permute.xlu0 %2960
      %2962 = vrot.lane.b32.xlu0 %v2933, 40
      %v2963 = vpop.permute.xlu0 %2962
      %2964 = vrot.lane.b32.xlu0 %v2934, 40
      %v2965 = vpop.permute.xlu0 %2964
      %2966 = vrot.lane.b32.xlu0 %v2935, 40
      %v2967 = vpop.permute.xlu0 %2966
      %vm2984 = vcmask 392512
      %2985 = vst.msk [vmem:[#allocation4] sm:$0xff] %vm2984, %v2937
      %2986 = vst.msk [vmem:[#allocation4 + $0x8] sm:$0xff] %vm2984, %v2939
      %2987 = vst.msk [vmem:[#allocation4 + $0x10] sm:$0xff] %vm2984, %v2941
      %2988 = vst.msk [vmem:[#allocation4 + $0x18] sm:$0xff] %vm2984, %v2943
      %2989 = vst.msk [vmem:[#allocation4 + $0x20] sm:$0xff] %vm2984, %v2945
      %2990 = vst.msk [vmem:[#allocation4 + $0x28] sm:$0xff] %vm2984, %v2947
      %2991 = vst.msk [vmem:[#allocation4 + $0x30] sm:$0xff] %vm2984, %v2949
      %2992 = vst.msk [vmem:[#allocation4 + $0x38] sm:$0xff] %vm2984, %v2951
      %2993 = vst.msk [vmem:[#allocation4 + $0x40] sm:$0xff] %vm2984, %v2953
      %2994 = vst.msk [vmem:[#allocation4 + $0x48] sm:$0xff] %vm2984, %v2955
      %2995 = vst.msk [vmem:[#allocation4 + $0x50] sm:$0xff] %vm2984, %v2957
      %2996 = vst.msk [vmem:[#allocation4 + $0x58] sm:$0xff] %vm2984, %v2959
      %2997 = vst.msk [vmem:[#allocation4 + $0x60] sm:$0xff] %vm2984, %v2961
      %2998 = vst.msk [vmem:[#allocation4 + $0x68] sm:$0xff] %vm2984, %v2963
      %2999 = vst.msk [vmem:[#allocation4 + $0x70] sm:$0xff] %vm2984, %v2965
      %3000 = vst.msk [vmem:[#allocation4 + $0x78] sm:$0xff] %vm2984, %v2967
      %s3001 = scalar_lea.vmem [#allocation2], 24
      %v3002 = vld [vmem:[%s3001] sm:$0xf]
      %v3003 = vld [vmem:[%s3001 + $0x4] sm:$0xf]
      %v3004 = vld [vmem:[%s3001 + $0xc] sm:$0xf]
      %v3005 = vld [vmem:[%s3001 + $0x10] sm:$0xf]
      %v3006 = vld [vmem:[%s3001 + $0x18] sm:$0xf]
      %v3007 = vld [vmem:[%s3001 + $0x1c] sm:$0xf]
      %v3008 = vld [vmem:[%s3001 + $0x24] sm:$0xf]
      %v3009 = vld [vmem:[%s3001 + $0x28] sm:$0xf]
      %v3010 = vld [vmem:[%s3001 + $0x30] sm:$0xf]
      %v3011 = vld [vmem:[%s3001 + $0x34] sm:$0xf]
      %v3012 = vld [vmem:[%s3001 + $0x3c] sm:$0xf]
      %v3013 = vld [vmem:[%s3001 + $0x40] sm:$0xf]
      %v3014 = vld [vmem:[%s3001 + $0x48] sm:$0xf]
      %v3015 = vld [vmem:[%s3001 + $0x4c] sm:$0xf]
      %v3016 = vld [vmem:[%s3001 + $0x54] sm:$0xf]
      %v3017 = vld [vmem:[%s3001 + $0x58] sm:$0xf]
      %v3018 = vld [vmem:[%s3001 + $0x60] sm:$0xf]
      %v3019 = vld [vmem:[%s3001 + $0x64] sm:$0xf]
      %v3020 = vld [vmem:[%s3001 + $0x6c] sm:$0xf]
      %v3021 = vld [vmem:[%s3001 + $0x70] sm:$0xf]
      %v3022 = vld [vmem:[%s3001 + $0x78] sm:$0xf]
      %v3023 = vld [vmem:[%s3001 + $0x7c] sm:$0xf]
      %v3024 = vld [vmem:[%s3001 + $0x84] sm:$0xf]
      %v3025 = vld [vmem:[%s3001 + $0x88] sm:$0xf]
      %v3026 = vld [vmem:[%s3001 + $0x90] sm:$0xf]
      %v3027 = vld [vmem:[%s3001 + $0x94] sm:$0xf]
      %v3028 = vld [vmem:[%s3001 + $0x9c] sm:$0xf]
      %v3029 = vld [vmem:[%s3001 + $0xa0] sm:$0xf]
      %v3030 = vld [vmem:[%s3001 + $0xa8] sm:$0xf]
      %v3031 = vld [vmem:[%s3001 + $0xac] sm:$0xf]
      %v3032 = vld [vmem:[%s3001 + $0xb4] sm:$0xf]
      %v3033 = vld [vmem:[%s3001 + $0xb8] sm:$0xf]
      %v3066 = vunpack.c.l.b16 %v3002
      %v3067 = vunpack.c.l.b16 %v3003
      %v3068 = vunpack.c.l.b16 %v3004
      %v3069 = vunpack.c.l.b16 %v3005
      %v3070 = vunpack.c.l.b16 %v3006
      %v3071 = vunpack.c.l.b16 %v3007
      %v3072 = vunpack.c.l.b16 %v3008
      %v3073 = vunpack.c.l.b16 %v3009
      %v3074 = vunpack.c.l.b16 %v3010
      %v3075 = vunpack.c.l.b16 %v3011
      %v3076 = vunpack.c.l.b16 %v3012
      %v3077 = vunpack.c.l.b16 %v3013
      %v3078 = vunpack.c.l.b16 %v3014
      %v3079 = vunpack.c.l.b16 %v3015
      %v3080 = vunpack.c.l.b16 %v3016
      %v3081 = vunpack.c.l.b16 %v3017
      %v3082 = vunpack.c.l.b16 %v3018
      %v3083 = vunpack.c.l.b16 %v3019
      %v3084 = vunpack.c.l.b16 %v3020
      %v3085 = vunpack.c.l.b16 %v3021
      %v3086 = vunpack.c.l.b16 %v3022
      %v3087 = vunpack.c.l.b16 %v3023
      %v3088 = vunpack.c.l.b16 %v3024
      %v3089 = vunpack.c.l.b16 %v3025
      %v3090 = vunpack.c.l.b16 %v3026
      %v3091 = vunpack.c.l.b16 %v3027
      %v3092 = vunpack.c.l.b16 %v3028
      %v3093 = vunpack.c.l.b16 %v3029
      %v3094 = vunpack.c.l.b16 %v3030
      %v3095 = vunpack.c.l.b16 %v3031
      %v3096 = vunpack.c.l.b16 %v3032
      %v3097 = vunpack.c.l.b16 %v3033
      %v3098 = vpack.c.b16 %v3067, %v3066
      %v3099 = vpack.c.b16 %v3069, %v3068
      %v3100 = vpack.c.b16 %v3071, %v3070
      %v3101 = vpack.c.b16 %v3073, %v3072
      %v3102 = vpack.c.b16 %v3075, %v3074
      %v3103 = vpack.c.b16 %v3077, %v3076
      %v3104 = vpack.c.b16 %v3079, %v3078
      %v3105 = vpack.c.b16 %v3081, %v3080
      %v3106 = vpack.c.b16 %v3083, %v3082
      %v3107 = vpack.c.b16 %v3085, %v3084
      %v3108 = vpack.c.b16 %v3087, %v3086
      %v3109 = vpack.c.b16 %v3089, %v3088
      %v3110 = vpack.c.b16 %v3091, %v3090
      %v3111 = vpack.c.b16 %v3093, %v3092
      %v3112 = vpack.c.b16 %v3095, %v3094
      %v3113 = vpack.c.b16 %v3097, %v3096
      %3114 = vrot.lane.b32.xlu0 %v3098, 48
      %v3115 = vpop.permute.xlu0 %3114
      %3116 = vrot.lane.b32.xlu0 %v3099, 48
      %v3117 = vpop.permute.xlu0 %3116
      %3118 = vrot.lane.b32.xlu0 %v3100, 48
      %v3119 = vpop.permute.xlu0 %3118
      %3120 = vrot.lane.b32.xlu0 %v3101, 48
      %v3121 = vpop.permute.xlu0 %3120
      %3122 = vrot.lane.b32.xlu0 %v3102, 48
      %v3123 = vpop.permute.xlu0 %3122
      %3124 = vrot.lane.b32.xlu0 %v3103, 48
      %v3125 = vpop.permute.xlu0 %3124
      %3126 = vrot.lane.b32.xlu0 %v3104, 48
      %v3127 = vpop.permute.xlu0 %3126
      %3128 = vrot.lane.b32.xlu0 %v3105, 48
      %v3129 = vpop.permute.xlu0 %3128
      %3130 = vrot.lane.b32.xlu0 %v3106, 48
      %v3131 = vpop.permute.xlu0 %3130
      %3132 = vrot.lane.b32.xlu0 %v3107, 48
      %v3133 = vpop.permute.xlu0 %3132
      %3134 = vrot.lane.b32.xlu0 %v3108, 48
      %v3135 = vpop.permute.xlu0 %3134
      %3136 = vrot.lane.b32.xlu0 %v3109, 48
      %v3137 = vpop.permute.xlu0 %3136
      %3138 = vrot.lane.b32.xlu0 %v3110, 48
      %v3139 = vpop.permute.xlu0 %3138
      %3140 = vrot.lane.b32.xlu0 %v3111, 48
      %v3141 = vpop.permute.xlu0 %3140
      %3142 = vrot.lane.b32.xlu0 %v3112, 48
      %v3143 = vpop.permute.xlu0 %3142
      %3144 = vrot.lane.b32.xlu0 %v3113, 48
      %v3145 = vpop.permute.xlu0 %3144
      %vm3162 = vcmask 458112
      %3163 = vst.msk [vmem:[#allocation4] sm:$0xff] %vm3162, %v3115
      %3164 = vst.msk [vmem:[#allocation4 + $0x8] sm:$0xff] %vm3162, %v3117
      %3165 = vst.msk [vmem:[#allocation4 + $0x10] sm:$0xff] %vm3162, %v3119
      %3166 = vst.msk [vmem:[#allocation4 + $0x18] sm:$0xff] %vm3162, %v3121
      %3167 = vst.msk [vmem:[#allocation4 + $0x20] sm:$0xff] %vm3162, %v3123
      %3168 = vst.msk [vmem:[#allocation4 + $0x28] sm:$0xff] %vm3162, %v3125
      %3169 = vst.msk [vmem:[#allocation4 + $0x30] sm:$0xff] %vm3162, %v3127
      %3170 = vst.msk [vmem:[#allocation4 + $0x38] sm:$0xff] %vm3162, %v3129
      %3171 = vst.msk [vmem:[#allocation4 + $0x40] sm:$0xff] %vm3162, %v3131
      %3172 = vst.msk [vmem:[#allocation4 + $0x48] sm:$0xff] %vm3162, %v3133
      %3173 = vst.msk [vmem:[#allocation4 + $0x50] sm:$0xff] %vm3162, %v3135
      %3174 = vst.msk [vmem:[#allocation4 + $0x58] sm:$0xff] %vm3162, %v3137
      %3175 = vst.msk [vmem:[#allocation4 + $0x60] sm:$0xff] %vm3162, %v3139
      %3176 = vst.msk [vmem:[#allocation4 + $0x68] sm:$0xff] %vm3162, %v3141
      %3177 = vst.msk [vmem:[#allocation4 + $0x70] sm:$0xff] %vm3162, %v3143
      %3178 = vst.msk [vmem:[#allocation4 + $0x78] sm:$0xff] %vm3162, %v3145
      %v3179 = vld [vmem:[%s3001] sm:$0xf]
      %v3180 = vld [vmem:[%s3001 + $0x4] sm:$0xf]
      %v3181 = vld [vmem:[%s3001 + $0x8] sm:$0x1]
      %v3182 = vld [vmem:[%s3001 + $0xc] sm:$0xf]
      %v3183 = vld [vmem:[%s3001 + $0x10] sm:$0xf]
      %v3184 = vld [vmem:[%s3001 + $0x14] sm:$0x1]
      %v3185 = vld [vmem:[%s3001 + $0x18] sm:$0xf]
      %v3186 = vld [vmem:[%s3001 + $0x1c] sm:$0xf]
      %v3187 = vld [vmem:[%s3001 + $0x20] sm:$0x1]
      %v3188 = vld [vmem:[%s3001 + $0x24] sm:$0xf]
      %v3189 = vld [vmem:[%s3001 + $0x28] sm:$0xf]
      %v3190 = vld [vmem:[%s3001 + $0x2c] sm:$0x1]
      %v3191 = vld [vmem:[%s3001 + $0x30] sm:$0xf]
      %v3192 = vld [vmem:[%s3001 + $0x34] sm:$0xf]
      %v3193 = vld [vmem:[%s3001 + $0x38] sm:$0x1]
      %v3194 = vld [vmem:[%s3001 + $0x3c] sm:$0xf]
      %v3195 = vld [vmem:[%s3001 + $0x40] sm:$0xf]
      %v3196 = vld [vmem:[%s3001 + $0x44] sm:$0x1]
      %v3197 = vld [vmem:[%s3001 + $0x48] sm:$0xf]
      %v3198 = vld [vmem:[%s3001 + $0x4c] sm:$0xf]
      %v3199 = vld [vmem:[%s3001 + $0x50] sm:$0x1]
      %v3200 = vld [vmem:[%s3001 + $0x54] sm:$0xf]
      %v3201 = vld [vmem:[%s3001 + $0x58] sm:$0xf]
      %v3202 = vld [vmem:[%s3001 + $0x5c] sm:$0x1]
      %v3203 = vld [vmem:[%s3001 + $0x60] sm:$0xf]
      %v3204 = vld [vmem:[%s3001 + $0x64] sm:$0xf]
      %v3205 = vld [vmem:[%s3001 + $0x68] sm:$0x1]
      %v3206 = vld [vmem:[%s3001 + $0x6c] sm:$0xf]
      %v3207 = vld [vmem:[%s3001 + $0x70] sm:$0xf]
      %v3208 = vld [vmem:[%s3001 + $0x74] sm:$0x1]
      %v3209 = vld [vmem:[%s3001 + $0x78] sm:$0xf]
      %v3210 = vld [vmem:[%s3001 + $0x7c] sm:$0xf]
      %v3211 = vld [vmem:[%s3001 + $0x80] sm:$0x1]
      %v3212 = vld [vmem:[%s3001 + $0x84] sm:$0xf]
      %v3213 = vld [vmem:[%s3001 + $0x88] sm:$0xf]
      %v3214 = vld [vmem:[%s3001 + $0x8c] sm:$0x1]
      %v3215 = vld [vmem:[%s3001 + $0x90] sm:$0xf]
      %v3216 = vld [vmem:[%s3001 + $0x94] sm:$0xf]
      %v3217 = vld [vmem:[%s3001 + $0x98] sm:$0x1]
      %v3218 = vld [vmem:[%s3001 + $0x9c] sm:$0xf]
      %v3219 = vld [vmem:[%s3001 + $0xa0] sm:$0xf]
      %v3220 = vld [vmem:[%s3001 + $0xa4] sm:$0x1]
      %v3221 = vld [vmem:[%s3001 + $0xa8] sm:$0xf]
      %v3222 = vld [vmem:[%s3001 + $0xac] sm:$0xf]
      %v3223 = vld [vmem:[%s3001 + $0xb0] sm:$0x1]
      %v3224 = vld [vmem:[%s3001 + $0xb4] sm:$0xf]
      %v3225 = vld [vmem:[%s3001 + $0xb8] sm:$0xf]
      %v3226 = vld [vmem:[%s3001 + $0xbc] sm:$0x1]
      %v3228 = vshrl.u32 %v3179, 16
      %v3230 = vrot.slane %v3228, 4
      %v3231 = vshll.u32 %v3179, 16
      %v3233 = vrot.slane %v3231, 5
      %v3234 = vor.u32 %v3230, %v3233
      %v3235 = vrot.slane %v3234, 4
      %v3237 = vshll.u32 %v3180, 16
      %v3239 = vrot.slane %v3237, 5
      %v3240 = vsel %vm1136, %v3235, %v3239
      %v3241 = vshrl.u32 %v3180, 16
      %v3243 = vrot.slane %v3241, 4
      %v3244 = vor.u32 %v3243, %v3239
      %v3245 = vrot.slane %v3244, 4
      %v3247 = vshll.u32 %v3181, 16
      %v3249 = vrot.slane %v3247, 5
      %v3250 = vsel %vm1136, %v3245, %v3249
      %v3252 = vshrl.u32 %v3182, 16
      %v3254 = vrot.slane %v3252, 4
      %v3255 = vshll.u32 %v3182, 16
      %v3257 = vrot.slane %v3255, 5
      %v3258 = vor.u32 %v3254, %v3257
      %v3259 = vrot.slane %v3258, 4
      %v3261 = vshll.u32 %v3183, 16
      %v3263 = vrot.slane %v3261, 5
      %v3264 = vsel %vm1136, %v3259, %v3263
      %v3265 = vshrl.u32 %v3183, 16
      %v3267 = vrot.slane %v3265, 4
      %v3268 = vor.u32 %v3267, %v3263
      %v3269 = vrot.slane %v3268, 4
      %v3271 = vshll.u32 %v3184, 16
      %v3273 = vrot.slane %v3271, 5
      %v3274 = vsel %vm1136, %v3269, %v3273
      %v3276 = vshrl.u32 %v3185, 16
      %v3278 = vrot.slane %v3276, 4
      %v3279 = vshll.u32 %v3185, 16
      %v3281 = vrot.slane %v3279, 5
      %v3282 = vor.u32 %v3278, %v3281
      %v3283 = vrot.slane %v3282, 4
      %v3285 = vshll.u32 %v3186, 16
      %v3287 = vrot.slane %v3285, 5
      %v3288 = vsel %vm1136, %v3283, %v3287
      %v3289 = vshrl.u32 %v3186, 16
      %v3291 = vrot.slane %v3289, 4
      %v3292 = vor.u32 %v3291, %v3287
      %v3293 = vrot.slane %v3292, 4
      %v3295 = vshll.u32 %v3187, 16
      %v3297 = vrot.slane %v3295, 5
      %v3298 = vsel %vm1136, %v3293, %v3297
      %v3300 = vshrl.u32 %v3188, 16
      %v3302 = vrot.slane %v3300, 4
      %v3303 = vshll.u32 %v3188, 16
      %v3305 = vrot.slane %v3303, 5
      %v3306 = vor.u32 %v3302, %v3305
      %v3307 = vrot.slane %v3306, 4
      %v3309 = vshll.u32 %v3189, 16
      %v3311 = vrot.slane %v3309, 5
      %v3312 = vsel %vm1136, %v3307, %v3311
      %v3313 = vshrl.u32 %v3189, 16
      %v3315 = vrot.slane %v3313, 4
      %v3316 = vor.u32 %v3315, %v3311
      %v3317 = vrot.slane %v3316, 4
      %v3319 = vshll.u32 %v3190, 16
      %v3321 = vrot.slane %v3319, 5
      %v3322 = vsel %vm1136, %v3317, %v3321
      %v3324 = vshrl.u32 %v3191, 16
      %v3326 = vrot.slane %v3324, 4
      %v3327 = vshll.u32 %v3191, 16
      %v3329 = vrot.slane %v3327, 5
      %v3330 = vor.u32 %v3326, %v3329
      %v3331 = vrot.slane %v3330, 4
      %v3333 = vshll.u32 %v3192, 16
      %v3335 = vrot.slane %v3333, 5
      %v3336 = vsel %vm1136, %v3331, %v3335
      %v3337 = vshrl.u32 %v3192, 16
      %v3339 = vrot.slane %v3337, 4
      %v3340 = vor.u32 %v3339, %v3335
      %v3341 = vrot.slane %v3340, 4
      %v3343 = vshll.u32 %v3193, 16
      %v3345 = vrot.slane %v3343, 5
      %v3346 = vsel %vm1136, %v3341, %v3345
      %v3348 = vshrl.u32 %v3194, 16
      %v3350 = vrot.slane %v3348, 4
      %v3351 = vshll.u32 %v3194, 16
      %v3353 = vrot.slane %v3351, 5
      %v3354 = vor.u32 %v3350, %v3353
      %v3355 = vrot.slane %v3354, 4
      %v3357 = vshll.u32 %v3195, 16
      %v3359 = vrot.slane %v3357, 5
      %v3360 = vsel %vm1136, %v3355, %v3359
      %v3361 = vshrl.u32 %v3195, 16
      %v3363 = vrot.slane %v3361, 4
      %v3364 = vor.u32 %v3363, %v3359
      %v3365 = vrot.slane %v3364, 4
      %v3367 = vshll.u32 %v3196, 16
      %v3369 = vrot.slane %v3367, 5
      %v3370 = vsel %vm1136, %v3365, %v3369
      %v3372 = vshrl.u32 %v3197, 16
      %v3374 = vrot.slane %v3372, 4
      %v3375 = vshll.u32 %v3197, 16
      %v3377 = vrot.slane %v3375, 5
      %v3378 = vor.u32 %v3374, %v3377
      %v3379 = vrot.slane %v3378, 4
      %v3381 = vshll.u32 %v3198, 16
      %v3383 = vrot.slane %v3381, 5
      %v3384 = vsel %vm1136, %v3379, %v3383
      %v3385 = vshrl.u32 %v3198, 16
      %v3387 = vrot.slane %v3385, 4
      %v3388 = vor.u32 %v3387, %v3383
      %v3389 = vrot.slane %v3388, 4
      %v3391 = vshll.u32 %v3199, 16
      %v3393 = vrot.slane %v3391, 5
      %v3394 = vsel %vm1136, %v3389, %v3393
      %v3396 = vshrl.u32 %v3200, 16
      %v3398 = vrot.slane %v3396, 4
      %v3399 = vshll.u32 %v3200, 16
      %v3401 = vrot.slane %v3399, 5
      %v3402 = vor.u32 %v3398, %v3401
      %v3403 = vrot.slane %v3402, 4
      %v3405 = vshll.u32 %v3201, 16
      %v3407 = vrot.slane %v3405, 5
      %v3408 = vsel %vm1136, %v3403, %v3407
      %v3409 = vshrl.u32 %v3201, 16
      %v3411 = vrot.slane %v3409, 4
      %v3412 = vor.u32 %v3411, %v3407
      %v3413 = vrot.slane %v3412, 4
      %v3415 = vshll.u32 %v3202, 16
      %v3417 = vrot.slane %v3415, 5
      %v3418 = vsel %vm1136, %v3413, %v3417
      %v3420 = vshrl.u32 %v3203, 16
      %v3422 = vrot.slane %v3420, 4
      %v3423 = vshll.u32 %v3203, 16
      %v3425 = vrot.slane %v3423, 5
      %v3426 = vor.u32 %v3422, %v3425
      %v3427 = vrot.slane %v3426, 4
      %v3429 = vshll.u32 %v3204, 16
      %v3431 = vrot.slane %v3429, 5
      %v3432 = vsel %vm1136, %v3427, %v3431
      %v3433 = vshrl.u32 %v3204, 16
      %v3435 = vrot.slane %v3433, 4
      %v3436 = vor.u32 %v3435, %v3431
      %v3437 = vrot.slane %v3436, 4
      %v3439 = vshll.u32 %v3205, 16
      %v3441 = vrot.slane %v3439, 5
      %v3442 = vsel %vm1136, %v3437, %v3441
      %v3444 = vshrl.u32 %v3206, 16
      %v3446 = vrot.slane %v3444, 4
      %v3447 = vshll.u32 %v3206, 16
      %v3449 = vrot.slane %v3447, 5
      %v3450 = vor.u32 %v3446, %v3449
      %v3451 = vrot.slane %v3450, 4
      %v3453 = vshll.u32 %v3207, 16
      %v3455 = vrot.slane %v3453, 5
      %v3456 = vsel %vm1136, %v3451, %v3455
      %v3457 = vshrl.u32 %v3207, 16
      %v3459 = vrot.slane %v3457, 4
      %v3460 = vor.u32 %v3459, %v3455
      %v3461 = vrot.slane %v3460, 4
      %v3463 = vshll.u32 %v3208, 16
      %v3465 = vrot.slane %v3463, 5
      %v3466 = vsel %vm1136, %v3461, %v3465
      %v3468 = vshrl.u32 %v3209, 16
      %v3470 = vrot.slane %v3468, 4
      %v3471 = vshll.u32 %v3209, 16
      %v3473 = vrot.slane %v3471, 5
      %v3474 = vor.u32 %v3470, %v3473
      %v3475 = vrot.slane %v3474, 4
      %v3477 = vshll.u32 %v3210, 16
      %v3479 = vrot.slane %v3477, 5
      %v3480 = vsel %vm1136, %v3475, %v3479
      %v3481 = vshrl.u32 %v3210, 16
      %v3483 = vrot.slane %v3481, 4
      %v3484 = vor.u32 %v3483, %v3479
      %v3485 = vrot.slane %v3484, 4
      %v3487 = vshll.u32 %v3211, 16
      %v3489 = vrot.slane %v3487, 5
      %v3490 = vsel %vm1136, %v3485, %v3489
      %v3492 = vshrl.u32 %v3212, 16
      %v3494 = vrot.slane %v3492, 4
      %v3495 = vshll.u32 %v3212, 16
      %v3497 = vrot.slane %v3495, 5
      %v3498 = vor.u32 %v3494, %v3497
      %v3499 = vrot.slane %v3498, 4
      %v3501 = vshll.u32 %v3213, 16
      %v3503 = vrot.slane %v3501, 5
      %v3504 = vsel %vm1136, %v3499, %v3503
      %v3505 = vshrl.u32 %v3213, 16
      %v3507 = vrot.slane %v3505, 4
      %v3508 = vor.u32 %v3507, %v3503
      %v3509 = vrot.slane %v3508, 4
      %v3511 = vshll.u32 %v3214, 16
      %v3513 = vrot.slane %v3511, 5
      %v3514 = vsel %vm1136, %v3509, %v3513
      %v3516 = vshrl.u32 %v3215, 16
      %v3518 = vrot.slane %v3516, 4
      %v3519 = vshll.u32 %v3215, 16
      %v3521 = vrot.slane %v3519, 5
      %v3522 = vor.u32 %v3518, %v3521
      %v3523 = vrot.slane %v3522, 4
      %v3525 = vshll.u32 %v3216, 16
      %v3527 = vrot.slane %v3525, 5
      %v3528 = vsel %vm1136, %v3523, %v3527
      %v3529 = vshrl.u32 %v3216, 16
      %v3531 = vrot.slane %v3529, 4
      %v3532 = vor.u32 %v3531, %v3527
      %v3533 = vrot.slane %v3532, 4
      %v3535 = vshll.u32 %v3217, 16
      %v3537 = vrot.slane %v3535, 5
      %v3538 = vsel %vm1136, %v3533, %v3537
      %v3540 = vshrl.u32 %v3218, 16
      %v3542 = vrot.slane %v3540, 4
      %v3543 = vshll.u32 %v3218, 16
      %v3545 = vrot.slane %v3543, 5
      %v3546 = vor.u32 %v3542, %v3545
      %v3547 = vrot.slane %v3546, 4
      %v3549 = vshll.u32 %v3219, 16
      %v3551 = vrot.slane %v3549, 5
      %v3552 = vsel %vm1136, %v3547, %v3551
      %v3553 = vshrl.u32 %v3219, 16
      %v3555 = vrot.slane %v3553, 4
      %v3556 = vor.u32 %v3555, %v3551
      %v3557 = vrot.slane %v3556, 4
      %v3559 = vshll.u32 %v3220, 16
      %v3561 = vrot.slane %v3559, 5
      %v3562 = vsel %vm1136, %v3557, %v3561
      %v3564 = vshrl.u32 %v3221, 16
      %v3566 = vrot.slane %v3564, 4
      %v3567 = vshll.u32 %v3221, 16
      %v3569 = vrot.slane %v3567, 5
      %v3570 = vor.u32 %v3566, %v3569
      %v3571 = vrot.slane %v3570, 4
      %v3573 = vshll.u32 %v3222, 16
      %v3575 = vrot.slane %v3573, 5
      %v3576 = vsel %vm1136, %v3571, %v3575
      %v3577 = vshrl.u32 %v3222, 16
      %v3579 = vrot.slane %v3577, 4
      %v3580 = vor.u32 %v3579, %v3575
      %v3581 = vrot.slane %v3580, 4
      %v3583 = vshll.u32 %v3223, 16
      %v3585 = vrot.slane %v3583, 5
      %v3586 = vsel %vm1136, %v3581, %v3585
      %v3588 = vshrl.u32 %v3224, 16
      %v3590 = vrot.slane %v3588, 4
      %v3591 = vshll.u32 %v3224, 16
      %v3593 = vrot.slane %v3591, 5
      %v3594 = vor.u32 %v3590, %v3593
      %v3595 = vrot.slane %v3594, 4
      %v3597 = vshll.u32 %v3225, 16
      %v3599 = vrot.slane %v3597, 5
      %v3600 = vsel %vm1136, %v3595, %v3599
      %v3601 = vshrl.u32 %v3225, 16
      %v3603 = vrot.slane %v3601, 4
      %v3604 = vor.u32 %v3603, %v3599
      %v3605 = vrot.slane %v3604, 4
      %v3607 = vshll.u32 %v3226, 16
      %v3609 = vrot.slane %v3607, 5
      %v3610 = vsel %vm1136, %v3605, %v3609
      %v3611 = vunpack.c.l.b16 %v3240
      %v3612 = vunpack.c.l.b16 %v3250
      %v3613 = vunpack.c.l.b16 %v3264
      %v3614 = vunpack.c.l.b16 %v3274
      %v3615 = vunpack.c.l.b16 %v3288
      %v3616 = vunpack.c.l.b16 %v3298
      %v3617 = vunpack.c.l.b16 %v3312
      %v3618 = vunpack.c.l.b16 %v3322
      %v3619 = vunpack.c.l.b16 %v3336
      %v3620 = vunpack.c.l.b16 %v3346
      %v3621 = vunpack.c.l.b16 %v3360
      %v3622 = vunpack.c.l.b16 %v3370
      %v3623 = vunpack.c.l.b16 %v3384
      %v3624 = vunpack.c.l.b16 %v3394
      %v3625 = vunpack.c.l.b16 %v3408
      %v3626 = vunpack.c.l.b16 %v3418
      %v3627 = vunpack.c.l.b16 %v3432
      %v3628 = vunpack.c.l.b16 %v3442
      %v3629 = vunpack.c.l.b16 %v3456
      %v3630 = vunpack.c.l.b16 %v3466
      %v3631 = vunpack.c.l.b16 %v3480
      %v3632 = vunpack.c.l.b16 %v3490
      %v3633 = vunpack.c.l.b16 %v3504
      %v3634 = vunpack.c.l.b16 %v3514
      %v3635 = vunpack.c.l.b16 %v3528
      %v3636 = vunpack.c.l.b16 %v3538
      %v3637 = vunpack.c.l.b16 %v3552
      %v3638 = vunpack.c.l.b16 %v3562
      %v3639 = vunpack.c.l.b16 %v3576
      %v3640 = vunpack.c.l.b16 %v3586
      %v3641 = vunpack.c.l.b16 %v3600
      %v3642 = vunpack.c.l.b16 %v3610
      %v3643 = vpack.c.b16 %v3612, %v3611
      %v3644 = vpack.c.b16 %v3614, %v3613
      %v3645 = vpack.c.b16 %v3616, %v3615
      %v3646 = vpack.c.b16 %v3618, %v3617
      %v3647 = vpack.c.b16 %v3620, %v3619
      %v3648 = vpack.c.b16 %v3622, %v3621
      %v3649 = vpack.c.b16 %v3624, %v3623
      %v3650 = vpack.c.b16 %v3626, %v3625
      %v3651 = vpack.c.b16 %v3628, %v3627
      %v3652 = vpack.c.b16 %v3630, %v3629
      %v3653 = vpack.c.b16 %v3632, %v3631
      %v3654 = vpack.c.b16 %v3634, %v3633
      %v3655 = vpack.c.b16 %v3636, %v3635
      %v3656 = vpack.c.b16 %v3638, %v3637
      %v3657 = vpack.c.b16 %v3640, %v3639
      %v3658 = vpack.c.b16 %v3642, %v3641
      %3659 = vrot.lane.b32.xlu0 %v3643, 56
      %v3660 = vpop.permute.xlu0 %3659
      %3661 = vrot.lane.b32.xlu0 %v3644, 56
      %v3662 = vpop.permute.xlu0 %3661
      %3663 = vrot.lane.b32.xlu0 %v3645, 56
      %v3664 = vpop.permute.xlu0 %3663
      %3665 = vrot.lane.b32.xlu0 %v3646, 56
      %v3666 = vpop.permute.xlu0 %3665
      %3667 = vrot.lane.b32.xlu0 %v3647, 56
      %v3668 = vpop.permute.xlu0 %3667
      %3669 = vrot.lane.b32.xlu0 %v3648, 56
      %v3670 = vpop.permute.xlu0 %3669
      %3671 = vrot.lane.b32.xlu0 %v3649, 56
      %v3672 = vpop.permute.xlu0 %3671
      %3673 = vrot.lane.b32.xlu0 %v3650, 56
      %v3674 = vpop.permute.xlu0 %3673
      %3675 = vrot.lane.b32.xlu0 %v3651, 56
      %v3676 = vpop.permute.xlu0 %3675
      %3677 = vrot.lane.b32.xlu0 %v3652, 56
      %v3678 = vpop.permute.xlu0 %3677
      %3679 = vrot.lane.b32.xlu0 %v3653, 56
      %v3680 = vpop.permute.xlu0 %3679
      %3681 = vrot.lane.b32.xlu0 %v3654, 56
      %v3682 = vpop.permute.xlu0 %3681
      %3683 = vrot.lane.b32.xlu0 %v3655, 56
      %v3684 = vpop.permute.xlu0 %3683
      %3685 = vrot.lane.b32.xlu0 %v3656, 56
      %v3686 = vpop.permute.xlu0 %3685
      %3687 = vrot.lane.b32.xlu0 %v3657, 56
      %v3688 = vpop.permute.xlu0 %3687
      %3689 = vrot.lane.b32.xlu0 %v3658, 56
      %v3690 = vpop.permute.xlu0 %3689
      %vm3707 = vcmask 523712
      %3708 = vst.msk [vmem:[#allocation4] sm:$0xff] %vm3707, %v3660
      %3709 = vst.msk [vmem:[#allocation4 + $0x8] sm:$0xff] %vm3707, %v3662
      %3710 = vst.msk [vmem:[#allocation4 + $0x10] sm:$0xff] %vm3707, %v3664
      %3711 = vst.msk [vmem:[#allocation4 + $0x18] sm:$0xff] %vm3707, %v3666
      %3712 = vst.msk [vmem:[#allocation4 + $0x20] sm:$0xff] %vm3707, %v3668
      %3713 = vst.msk [vmem:[#allocation4 + $0x28] sm:$0xff] %vm3707, %v3670
      %3714 = vst.msk [vmem:[#allocation4 + $0x30] sm:$0xff] %vm3707, %v3672
      %3715 = vst.msk [vmem:[#allocation4 + $0x38] sm:$0xff] %vm3707, %v3674
      %3716 = vst.msk [vmem:[#allocation4 + $0x40] sm:$0xff] %vm3707, %v3676
      %3717 = vst.msk [vmem:[#allocation4 + $0x48] sm:$0xff] %vm3707, %v3678
      %3718 = vst.msk [vmem:[#allocation4 + $0x50] sm:$0xff] %vm3707, %v3680
      %3719 = vst.msk [vmem:[#allocation4 + $0x58] sm:$0xff] %vm3707, %v3682
      %3720 = vst.msk [vmem:[#allocation4 + $0x60] sm:$0xff] %vm3707, %v3684
      %3721 = vst.msk [vmem:[#allocation4 + $0x68] sm:$0xff] %vm3707, %v3686
      %3722 = vst.msk [vmem:[#allocation4 + $0x70] sm:$0xff] %vm3707, %v3688
      %3723 = vst.msk [vmem:[#allocation4 + $0x78] sm:$0xff] %vm3707, %v3690
      %v3724 = vld [vmem:[%s3001] sm:$0xe]
      %v3725 = vld [vmem:[%s3001 + $0x4] sm:$0xf]
      %v3726 = vld [vmem:[%s3001 + $0x8] sm:$0x1]
      %v3727 = vld [vmem:[%s3001 + $0xc] sm:$0xe]
      %v3728 = vld [vmem:[%s3001 + $0x10] sm:$0xf]
      %v3729 = vld [vmem:[%s3001 + $0x14] sm:$0x1]
      %v3730 = vld [vmem:[%s3001 + $0x18] sm:$0xe]
      %v3731 = vld [vmem:[%s3001 + $0x1c] sm:$0xf]
      %v3732 = vld [vmem:[%s3001 + $0x20] sm:$0x1]
      %v3733 = vld [vmem:[%s3001 + $0x24] sm:$0xe]
      %v3734 = vld [vmem:[%s3001 + $0x28] sm:$0xf]
      %v3735 = vld [vmem:[%s3001 + $0x2c] sm:$0x1]
      %v3736 = vld [vmem:[%s3001 + $0x30] sm:$0xe]
      %v3737 = vld [vmem:[%s3001 + $0x34] sm:$0xf]
      %v3738 = vld [vmem:[%s3001 + $0x38] sm:$0x1]
      %v3739 = vld [vmem:[%s3001 + $0x3c] sm:$0xe]
      %v3740 = vld [vmem:[%s3001 + $0x40] sm:$0xf]
      %v3741 = vld [vmem:[%s3001 + $0x44] sm:$0x1]
      %v3742 = vld [vmem:[%s3001 + $0x48] sm:$0xe]
      %v3743 = vld [vmem:[%s3001 + $0x4c] sm:$0xf]
      %v3744 = vld [vmem:[%s3001 + $0x50] sm:$0x1]
      %v3745 = vld [vmem:[%s3001 + $0x54] sm:$0xe]
      %v3746 = vld [vmem:[%s3001 + $0x58] sm:$0xf]
      %v3747 = vld [vmem:[%s3001 + $0x5c] sm:$0x1]
      %v3748 = vld [vmem:[%s3001 + $0x60] sm:$0xe]
      %v3749 = vld [vmem:[%s3001 + $0x64] sm:$0xf]
      %v3750 = vld [vmem:[%s3001 + $0x68] sm:$0x1]
      %v3751 = vld [vmem:[%s3001 + $0x6c] sm:$0xe]
      %v3752 = vld [vmem:[%s3001 + $0x70] sm:$0xf]
      %v3753 = vld [vmem:[%s3001 + $0x74] sm:$0x1]
      %v3754 = vld [vmem:[%s3001 + $0x78] sm:$0xe]
      %v3755 = vld [vmem:[%s3001 + $0x7c] sm:$0xf]
      %v3756 = vld [vmem:[%s3001 + $0x80] sm:$0x1]
      %v3757 = vld [vmem:[%s3001 + $0x84] sm:$0xe]
      %v3758 = vld [vmem:[%s3001 + $0x88] sm:$0xf]
      %v3759 = vld [vmem:[%s3001 + $0x8c] sm:$0x1]
      %v3760 = vld [vmem:[%s3001 + $0x90] sm:$0xe]
      %v3761 = vld [vmem:[%s3001 + $0x94] sm:$0xf]
      %v3762 = vld [vmem:[%s3001 + $0x98] sm:$0x1]
      %v3763 = vld [vmem:[%s3001 + $0x9c] sm:$0xe]
      %v3764 = vld [vmem:[%s3001 + $0xa0] sm:$0xf]
      %v3765 = vld [vmem:[%s3001 + $0xa4] sm:$0x1]
      %v3766 = vld [vmem:[%s3001 + $0xa8] sm:$0xe]
      %v3767 = vld [vmem:[%s3001 + $0xac] sm:$0xf]
      %v3768 = vld [vmem:[%s3001 + $0xb0] sm:$0x1]
      %v3769 = vld [vmem:[%s3001 + $0xb4] sm:$0xe]
      %v3770 = vld [vmem:[%s3001 + $0xb8] sm:$0xf]
      %v3771 = vld [vmem:[%s3001 + $0xbc] sm:$0x1]
      %v3820 = vrot.slane %v3724, 5
      %v3821 = vrot.slane %v3820, 4
      %v3822 = vrot.slane %v3725, 5
      %v3823 = vsel %vm1732, %v3821, %v3822
      %v3824 = vrot.slane %v3822, 4
      %v3825 = vrot.slane %v3726, 5
      %v3826 = vsel %vm1732, %v3824, %v3825
      %v3827 = vrot.slane %v3727, 5
      %v3828 = vrot.slane %v3827, 4
      %v3829 = vrot.slane %v3728, 5
      %v3830 = vsel %vm1732, %v3828, %v3829
      %v3831 = vrot.slane %v3829, 4
      %v3832 = vrot.slane %v3729, 5
      %v3833 = vsel %vm1732, %v3831, %v3832
      %v3834 = vrot.slane %v3730, 5
      %v3835 = vrot.slane %v3834, 4
      %v3836 = vrot.slane %v3731, 5
      %v3837 = vsel %vm1732, %v3835, %v3836
      %v3838 = vrot.slane %v3836, 4
      %v3839 = vrot.slane %v3732, 5
      %v3840 = vsel %vm1732, %v3838, %v3839
      %v3841 = vrot.slane %v3733, 5
      %v3842 = vrot.slane %v3841, 4
      %v3843 = vrot.slane %v3734, 5
      %v3844 = vsel %vm1732, %v3842, %v3843
      %v3845 = vrot.slane %v3843, 4
      %v3846 = vrot.slane %v3735, 5
      %v3847 = vsel %vm1732, %v3845, %v3846
      %v3848 = vrot.slane %v3736, 5
      %v3849 = vrot.slane %v3848, 4
      %v3850 = vrot.slane %v3737, 5
      %v3851 = vsel %vm1732, %v3849, %v3850
      %v3852 = vrot.slane %v3850, 4
      %v3853 = vrot.slane %v3738, 5
      %v3854 = vsel %vm1732, %v3852, %v3853
      %v3855 = vrot.slane %v3739, 5
      %v3856 = vrot.slane %v3855, 4
      %v3857 = vrot.slane %v3740, 5
      %v3858 = vsel %vm1732, %v3856, %v3857
      %v3859 = vrot.slane %v3857, 4
      %v3860 = vrot.slane %v3741, 5
      %v3861 = vsel %vm1732, %v3859, %v3860
      %v3862 = vrot.slane %v3742, 5
      %v3863 = vrot.slane %v3862, 4
      %v3864 = vrot.slane %v3743, 5
      %v3865 = vsel %vm1732, %v3863, %v3864
      %v3866 = vrot.slane %v3864, 4
      %v3867 = vrot.slane %v3744, 5
      %v3868 = vsel %vm1732, %v3866, %v3867
      %v3869 = vrot.slane %v3745, 5
      %v3870 = vrot.slane %v3869, 4
      %v3871 = vrot.slane %v3746, 5
      %v3872 = vsel %vm1732, %v3870, %v3871
      %v3873 = vrot.slane %v3871, 4
      %v3874 = vrot.slane %v3747, 5
      %v3875 = vsel %vm1732, %v3873, %v3874
      %v3876 = vrot.slane %v3748, 5
      %v3877 = vrot.slane %v3876, 4
      %v3878 = vrot.slane %v3749, 5
      %v3879 = vsel %vm1732, %v3877, %v3878
      %v3880 = vrot.slane %v3878, 4
      %v3881 = vrot.slane %v3750, 5
      %v3882 = vsel %vm1732, %v3880, %v3881
      %v3883 = vrot.slane %v3751, 5
      %v3884 = vrot.slane %v3883, 4
      %v3885 = vrot.slane %v3752, 5
      %v3886 = vsel %vm1732, %v3884, %v3885
      %v3887 = vrot.slane %v3885, 4
      %v3888 = vrot.slane %v3753, 5
      %v3889 = vsel %vm1732, %v3887, %v3888
      %v3890 = vrot.slane %v3754, 5
      %v3891 = vrot.slane %v3890, 4
      %v3892 = vrot.slane %v3755, 5
      %v3893 = vsel %vm1732, %v3891, %v3892
      %v3894 = vrot.slane %v3892, 4
      %v3895 = vrot.slane %v3756, 5
      %v3896 = vsel %vm1732, %v3894, %v3895
      %v3897 = vrot.slane %v3757, 5
      %v3898 = vrot.slane %v3897, 4
      %v3899 = vrot.slane %v3758, 5
      %v3900 = vsel %vm1732, %v3898, %v3899
      %v3901 = vrot.slane %v3899, 4
      %v3902 = vrot.slane %v3759, 5
      %v3903 = vsel %vm1732, %v3901, %v3902
      %v3904 = vrot.slane %v3760, 5
      %v3905 = vrot.slane %v3904, 4
      %v3906 = vrot.slane %v3761, 5
      %v3907 = vsel %vm1732, %v3905, %v3906
      %v3908 = vrot.slane %v3906, 4
      %v3909 = vrot.slane %v3762, 5
      %v3910 = vsel %vm1732, %v3908, %v3909
      %v3911 = vrot.slane %v3763, 5
      %v3912 = vrot.slane %v3911, 4
      %v3913 = vrot.slane %v3764, 5
      %v3914 = vsel %vm1732, %v3912, %v3913
      %v3915 = vrot.slane %v3913, 4
      %v3916 = vrot.slane %v3765, 5
      %v3917 = vsel %vm1732, %v3915, %v3916
      %v3918 = vrot.slane %v3766, 5
      %v3919 = vrot.slane %v3918, 4
      %v3920 = vrot.slane %v3767, 5
      %v3921 = vsel %vm1732, %v3919, %v3920
      %v3922 = vrot.slane %v3920, 4
      %v3923 = vrot.slane %v3768, 5
      %v3924 = vsel %vm1732, %v3922, %v3923
      %v3925 = vrot.slane %v3769, 5
      %v3926 = vrot.slane %v3925, 4
      %v3927 = vrot.slane %v3770, 5
      %v3928 = vsel %vm1732, %v3926, %v3927
      %v3929 = vrot.slane %v3927, 4
      %v3930 = vrot.slane %v3771, 5
      %v3931 = vsel %vm1732, %v3929, %v3930
      %v3932 = vunpack.c.l.b16 %v3823
      %v3933 = vunpack.c.l.b16 %v3826
      %v3934 = vunpack.c.l.b16 %v3830
      %v3935 = vunpack.c.l.b16 %v3833
      %v3936 = vunpack.c.l.b16 %v3837
      %v3937 = vunpack.c.l.b16 %v3840
      %v3938 = vunpack.c.l.b16 %v3844
      %v3939 = vunpack.c.l.b16 %v3847
      %v3940 = vunpack.c.l.b16 %v3851
      %v3941 = vunpack.c.l.b16 %v3854
      %v3942 = vunpack.c.l.b16 %v3858
      %v3943 = vunpack.c.l.b16 %v3861
      %v3944 = vunpack.c.l.b16 %v3865
      %v3945 = vunpack.c.l.b16 %v3868
      %v3946 = vunpack.c.l.b16 %v3872
      %v3947 = vunpack.c.l.b16 %v3875
      %v3948 = vunpack.c.l.b16 %v3879
      %v3949 = vunpack.c.l.b16 %v3882
      %v3950 = vunpack.c.l.b16 %v3886
      %v3951 = vunpack.c.l.b16 %v3889
      %v3952 = vunpack.c.l.b16 %v3893
      %v3953 = vunpack.c.l.b16 %v3896
      %v3954 = vunpack.c.l.b16 %v3900
      %v3955 = vunpack.c.l.b16 %v3903
      %v3956 = vunpack.c.l.b16 %v3907
      %v3957 = vunpack.c.l.b16 %v3910
      %v3958 = vunpack.c.l.b16 %v3914
      %v3959 = vunpack.c.l.b16 %v3917
      %v3960 = vunpack.c.l.b16 %v3921
      %v3961 = vunpack.c.l.b16 %v3924
      %v3962 = vunpack.c.l.b16 %v3928
      %v3963 = vunpack.c.l.b16 %v3931
      %v3964 = vpack.c.b16 %v3933, %v3932
      %v3965 = vpack.c.b16 %v3935, %v3934
      %v3966 = vpack.c.b16 %v3937, %v3936
      %v3967 = vpack.c.b16 %v3939, %v3938
      %v3968 = vpack.c.b16 %v3941, %v3940
      %v3969 = vpack.c.b16 %v3943, %v3942
      %v3970 = vpack.c.b16 %v3945, %v3944
      %v3971 = vpack.c.b16 %v3947, %v3946
      %v3972 = vpack.c.b16 %v3949, %v3948
      %v3973 = vpack.c.b16 %v3951, %v3950
      %v3974 = vpack.c.b16 %v3953, %v3952
      %v3975 = vpack.c.b16 %v3955, %v3954
      %v3976 = vpack.c.b16 %v3957, %v3956
      %v3977 = vpack.c.b16 %v3959, %v3958
      %v3978 = vpack.c.b16 %v3961, %v3960
      %v3979 = vpack.c.b16 %v3963, %v3962
      %3980 = vrot.lane.b32.xlu0 %v3964, 64
      %v3981 = vpop.permute.xlu0 %3980
      %3982 = vrot.lane.b32.xlu0 %v3965, 64
      %v3983 = vpop.permute.xlu0 %3982
      %3984 = vrot.lane.b32.xlu0 %v3966, 64
      %v3985 = vpop.permute.xlu0 %3984
      %3986 = vrot.lane.b32.xlu0 %v3967, 64
      %v3987 = vpop.permute.xlu0 %3986
      %3988 = vrot.lane.b32.xlu0 %v3968, 64
      %v3989 = vpop.permute.xlu0 %3988
      %3990 = vrot.lane.b32.xlu0 %v3969, 64
      %v3991 = vpop.permute.xlu0 %3990
      %3992 = vrot.lane.b32.xlu0 %v3970, 64
      %v3993 = vpop.permute.xlu0 %3992
      %3994 = vrot.lane.b32.xlu0 %v3971, 64
      %v3995 = vpop.permute.xlu0 %3994
      %3996 = vrot.lane.b32.xlu0 %v3972, 64
      %v3997 = vpop.permute.xlu0 %3996
      %3998 = vrot.lane.b32.xlu0 %v3973, 64
      %v3999 = vpop.permute.xlu0 %3998
      %4000 = vrot.lane.b32.xlu0 %v3974, 64
      %v4001 = vpop.permute.xlu0 %4000
      %4002 = vrot.lane.b32.xlu0 %v3975, 64
      %v4003 = vpop.permute.xlu0 %4002
      %4004 = vrot.lane.b32.xlu0 %v3976, 64
      %v4005 = vpop.permute.xlu0 %4004
      %4006 = vrot.lane.b32.xlu0 %v3977, 64
      %v4007 = vpop.permute.xlu0 %4006
      %4008 = vrot.lane.b32.xlu0 %v3978, 64
      %v4009 = vpop.permute.xlu0 %4008
      %4010 = vrot.lane.b32.xlu0 %v3979, 64
      %v4011 = vpop.permute.xlu0 %4010
      %vm4028 = vcmask 589312
      %4029 = vst.msk [vmem:[#allocation4] sm:$0xff] %vm4028, %v3981
      %4030 = vst.msk [vmem:[#allocation4 + $0x8] sm:$0xff] %vm4028, %v3983
      %4031 = vst.msk [vmem:[#allocation4 + $0x10] sm:$0xff] %vm4028, %v3985
      %4032 = vst.msk [vmem:[#allocation4 + $0x18] sm:$0xff] %vm4028, %v3987
      %4033 = vst.msk [vmem:[#allocation4 + $0x20] sm:$0xff] %vm4028, %v3989
      %4034 = vst.msk [vmem:[#allocation4 + $0x28] sm:$0xff] %vm4028, %v3991
      %4035 = vst.msk [vmem:[#allocation4 + $0x30] sm:$0xff] %vm4028, %v3993
      %4036 = vst.msk [vmem:[#allocation4 + $0x38] sm:$0xff] %vm4028, %v3995
      %4037 = vst.msk [vmem:[#allocation4 + $0x40] sm:$0xff] %vm4028, %v3997
      %4038 = vst.msk [vmem:[#allocation4 + $0x48] sm:$0xff] %vm4028, %v3999
      %4039 = vst.msk [vmem:[#allocation4 + $0x50] sm:$0xff] %vm4028, %v4001
      %4040 = vst.msk [vmem:[#allocation4 + $0x58] sm:$0xff] %vm4028, %v4003
      %4041 = vst.msk [vmem:[#allocation4 + $0x60] sm:$0xff] %vm4028, %v4005
      %4042 = vst.msk [vmem:[#allocation4 + $0x68] sm:$0xff] %vm4028, %v4007
      %4043 = vst.msk [vmem:[#allocation4 + $0x70] sm:$0xff] %vm4028, %v4009
      %4044 = vst.msk [vmem:[#allocation4 + $0x78] sm:$0xff] %vm4028, %v4011
      %v4045 = vld [vmem:[#allocation4] sm:$0xff]
      %v4046 = vld [vmem:[#allocation4 + $0x8] sm:$0xff]
      %v4047 = vld [vmem:[#allocation4 + $0x10] sm:$0xff]
      %v4048 = vld [vmem:[#allocation4 + $0x18] sm:$0xff]
      %v4049 = vld [vmem:[#allocation4 + $0x20] sm:$0xff]
      %v4050 = vld [vmem:[#allocation4 + $0x28] sm:$0xff]
      %v4051 = vld [vmem:[#allocation4 + $0x30] sm:$0xff]
      %v4052 = vld [vmem:[#allocation4 + $0x38] sm:$0xff]
      %v4053 = vld [vmem:[#allocation4 + $0x40] sm:$0xff]
      %v4054 = vld [vmem:[#allocation4 + $0x48] sm:$0xff]
      %v4055 = vld [vmem:[#allocation4 + $0x50] sm:$0xff]
      %v4056 = vld [vmem:[#allocation4 + $0x58] sm:$0xff]
      %v4057 = vld [vmem:[#allocation4 + $0x60] sm:$0xff]
      %v4058 = vld [vmem:[#allocation4 + $0x68] sm:$0xff]
      %v4059 = vld [vmem:[#allocation4 + $0x70] sm:$0xff]
      %v4060 = vld [vmem:[#allocation4 + $0x78] sm:$0xff]
      %v4061 = vld [vmem:[%s1] sm:$0xf]
      %v4062 = vld [vmem:[%s1 + $0x4] sm:$0xf]
      %v4063 = vld [vmem:[%s1 + $0x8] sm:$0xf]
      %v4064 = vld [vmem:[%s1 + $0xc] sm:$0xf]
      %v4065 = vld [vmem:[%s1 + $0x10] sm:$0xf]
      %v4066 = vld [vmem:[%s1 + $0x14] sm:$0xf]
      %v4067 = vld [vmem:[%s1 + $0x18] sm:$0xf]
      %v4068 = vld [vmem:[%s1 + $0x1c] sm:$0xf]
      %v4069 = vld [vmem:[%s1 + $0x20] sm:$0xf]
      %v4079 = vunpack.c.l.b16 %v4061
      %v4080 = vunpack.c.l.b16 %v4062
      %v4081 = vunpack.c.l.b16 %v4063
      %v4082 = vunpack.c.l.b16 %v4064
      %v4083 = vunpack.c.l.b16 %v4065
      %v4084 = vunpack.c.l.b16 %v4066
      %v4085 = vunpack.c.l.b16 %v4067
      %v4086 = vunpack.c.l.b16 %v4068
      %v4087 = vunpack.c.l.b16 %v4069
      %v4088 = vpack.c.b16 %v4080, %v4079
      %v4089 = vpack.c.b16 %v4082, %v4081
      %v4090 = vpack.c.b16 %v4084, %v4083
      %v4091 = vpack.c.b16 %v4086, %v4085
      %v4092 = vpack.c.b16 %v4087, %v4087
      %vm4097 = vcmask 588800
      %v4099 = vsel %vm4097, %v4045, 0
      %v4102 = vsel %vm4097, %v4046, 0
      %v4105 = vsel %vm4097, %v4047, 0
      %v4108 = vsel %vm4097, %v4048, 0
      %v4111 = vsel %vm4097, %v4049, 0
      %v4114 = vsel %vm4097, %v4050, 0
      %v4117 = vsel %vm4097, %v4051, 0
      %v4120 = vsel %vm4097, %v4052, 0
      %v4123 = vsel %vm4097, %v4053, 0
      %v4126 = vsel %vm4097, %v4054, 0
      %v4129 = vsel %vm4097, %v4055, 0
      %v4132 = vsel %vm4097, %v4056, 0
      %v4135 = vsel %vm4097, %v4057, 0
      %v4138 = vsel %vm4097, %v4058, 0
      %v4141 = vsel %vm4097, %v4059, 0
      %v4144 = vsel %vm4097, %v4060, 0
      %vm4146 = vcmask 1043456
      %v4148 = vsel %vm4146, %v4092, 0
      %4150 = vmatprep.subr.bf16.mxu0 0
      %4151 = vmatpush1.bf16.msra.mxu0 %v4088
      %4152 = vmatprep.subr.bf16.mxu0 0
      %4153 = vmatpush1.bf16.msra.mxu0 %v4089
      %4154 = vmatprep.subr.bf16.mxu0 0
      %4155 = vmatpush1.bf16.msra.mxu0 %v4090
      %4156 = vmatprep.subr.bf16.mxu0 0
      %4157 = vmatpush1.bf16.msra.mxu0 %v4091
      %4158 = vmatprep.subr.bf16.mxu0 0
      %4159 = vmatpush1.bf16.msra.mxu0 %v4148
      %4160 = vmatprep.subr.bf16.mxu0 0
      %4161 = vmatpush1.bf16.msra.mxu0 0
      %4162 = vmatprep.subr.bf16.mxu0 0
      %4163 = vmatpush1.bf16.msra.mxu0 0
      %4164 = vmatprep.subr.bf16.mxu0 0
      %4165 = vmatpush1.bf16.msra.mxu0 0
      %4166 = vmatprep.subr.bf16.mxu0 0
      %4167 = vmatpush1.bf16.msra.mxu0 0
      %4168 = vmatprep.subr.bf16.mxu0 0
      %4169 = vmatpush1.bf16.msra.mxu0 0
      %4170 = vmatprep.subr.bf16.mxu0 0
      %4171 = vmatpush1.bf16.msra.mxu0 0
      %4172 = vmatprep.subr.bf16.mxu0 0
      %4173 = vmatpush1.bf16.msra.mxu0 0
      %4174 = vmatprep.subr.bf16.mxu0 0
      %4175 = vmatpush1.bf16.msra.mxu0 0
      %4176 = vmatprep.subr.bf16.mxu0 0
      %4177 = vmatpush1.bf16.msra.mxu0 0
      %4178 = vmatprep.subr.bf16.mxu0 0
      %4179 = vmatpush1.bf16.msra.mxu0 0
      %4180 = vmatprep.subr.bf16.mxu0 0
      %4181 = vmatpush1.bf16.msra.mxu0 0
      %4182 = vmatprep.mubr.bf16.mxu0 0
      %4183 = vmatmul.mubr.bf16.gmra.mrb[0].mxu0 %v4099
      %v4184 = vpop.f32.mrb[0].mxu0
      %v4185 = vadd.f32 0.0, %v4184
      %v4186 = vpop.f32.mrb[0].mxu0
      %v4187 = vpop.f32.mrb[0].mxu0
      %v4188 = vadd.f32 0.0, %v4187
      %v4189 = vpop.f32.mrb[0].mxu0
      %4190 = vmatprep.mubr.bf16.mxu0 0
      %4191 = vmatmul.mubr.bf16.gmra.mrb[0].mxu0 %v4102
      %v4192 = vpop.f32.mrb[0].mxu0
      %v4193 = vadd.f32 0.0, %v4192
      %v4194 = vpop.f32.mrb[0].mxu0
      %v4195 = vpop.f32.mrb[0].mxu0
      %v4196 = vadd.f32 0.0, %v4195
      %v4197 = vpop.f32.mrb[0].mxu0
      %4198 = vmatprep.mubr.bf16.mxu0 0
      %4199 = vmatmul.mubr.bf16.gmra.mrb[0].mxu0 %v4105
      %v4200 = vpop.f32.mrb[0].mxu0
      %v4201 = vadd.f32 0.0, %v4200
      %v4202 = vpop.f32.mrb[0].mxu0
      %v4203 = vpop.f32.mrb[0].mxu0
      %v4204 = vadd.f32 0.0, %v4203
      %v4205 = vpop.f32.mrb[0].mxu0
      %4206 = vmatprep.mubr.bf16.mxu0 0
      %4207 = vmatmul.mubr.bf16.gmra.mrb[0].mxu0 %v4108
      %v4208 = vpop.f32.mrb[0].mxu0
      %v4209 = vadd.f32 0.0, %v4208
      %v4210 = vpop.f32.mrb[0].mxu0
      %v4211 = vpop.f32.mrb[0].mxu0
      %v4212 = vadd.f32 0.0, %v4211
      %v4213 = vpop.f32.mrb[0].mxu0
      %4214 = vmatprep.mubr.bf16.mxu0 0
      %4215 = vmatmul.mubr.bf16.gmra.mrb[0].mxu0 %v4111
      %v4216 = vpop.f32.mrb[0].mxu0
      %v4217 = vadd.f32 0.0, %v4216
      %v4218 = vpop.f32.mrb[0].mxu0
      %v4219 = vpop.f32.mrb[0].mxu0
      %v4220 = vadd.f32 0.0, %v4219
      %v4221 = vpop.f32.mrb[0].mxu0
      %4222 = vmatprep.mubr.bf16.mxu0 0
      %4223 = vmatmul.mubr.bf16.gmra.mrb[0].mxu0 %v4114
      %v4224 = vpop.f32.mrb[0].mxu0
      %v4225 = vadd.f32 0.0, %v4224
      %v4226 = vpop.f32.mrb[0].mxu0
      %v4227 = vpop.f32.mrb[0].mxu0
      %v4228 = vadd.f32 0.0, %v4227
      %v4229 = vpop.f32.mrb[0].mxu0
      %4230 = vmatprep.mubr.bf16.mxu0 0
      %4231 = vmatmul.mubr.bf16.gmra.mrb[0].mxu0 %v4117
      %v4232 = vpop.f32.mrb[0].mxu0
      %v4233 = vadd.f32 0.0, %v4232
      %v4234 = vpop.f32.mrb[0].mxu0
      %v4235 = vpop.f32.mrb[0].mxu0
      %v4236 = vadd.f32 0.0, %v4235
      %v4237 = vpop.f32.mrb[0].mxu0
      %4238 = vmatprep.mubr.bf16.mxu0 0
      %4239 = vmatmul.mubr.bf16.gmra.mrb[0].mxu0 %v4120
      %v4240 = vpop.f32.mrb[0].mxu0
      %v4241 = vadd.f32 0.0, %v4240
      %v4242 = vpop.f32.mrb[0].mxu0
      %v4243 = vpop.f32.mrb[0].mxu0
      %v4244 = vadd.f32 0.0, %v4243
      %v4245 = vpop.f32.mrb[0].mxu0
      %4246 = vmatprep.mubr.bf16.mxu0 0
      %4247 = vmatmul.mubr.bf16.gmra.mrb[0].mxu0 %v4123
      %v4248 = vpop.f32.mrb[0].mxu0
      %v4249 = vadd.f32 0.0, %v4248
      %v4250 = vpop.f32.mrb[0].mxu0
      %v4251 = vpop.f32.mrb[0].mxu0
      %v4252 = vadd.f32 0.0, %v4251
      %v4253 = vpop.f32.mrb[0].mxu0
      %4254 = vmatprep.mubr.bf16.mxu0 0
      %4255 = vmatmul.mubr.bf16.gmra.mrb[0].mxu0 %v4126
      %v4256 = vpop.f32.mrb[0].mxu0
      %v4257 = vadd.f32 0.0, %v4256
      %v4258 = vpop.f32.mrb[0].mxu0
      %v4259 = vpop.f32.mrb[0].mxu0
      %v4260 = vadd.f32 0.0, %v4259
      %v4261 = vpop.f32.mrb[0].mxu0
      %4262 = vmatprep.mubr.bf16.mxu0 0
      %4263 = vmatmul.mubr.bf16.gmra.mrb[0].mxu0 %v4129
      %v4264 = vpop.f32.mrb[0].mxu0
      %v4265 = vadd.f32 0.0, %v4264
      %v4266 = vpop.f32.mrb[0].mxu0
      %v4267 = vpop.f32.mrb[0].mxu0
      %v4268 = vadd.f32 0.0, %v4267
      %v4269 = vpop.f32.mrb[0].mxu0
      %4270 = vmatprep.mubr.bf16.mxu0 0
      %4271 = vmatmul.mubr.bf16.gmra.mrb[0].mxu0 %v4132
      %v4272 = vpop.f32.mrb[0].mxu0
      %v4273 = vadd.f32 0.0, %v4272
      %v4274 = vpop.f32.mrb[0].mxu0
      %v4275 = vpop.f32.mrb[0].mxu0
      %v4276 = vadd.f32 0.0, %v4275
      %v4277 = vpop.f32.mrb[0].mxu0
      %4278 = vmatprep.mubr.bf16.mxu0 0
      %4279 = vmatmul.mubr.bf16.gmra.mrb[0].mxu0 %v4135
      %v4280 = vpop.f32.mrb[0].mxu0
      %v4281 = vadd.f32 0.0, %v4280
      %v4282 = vpop.f32.mrb[0].mxu0
      %v4283 = vpop.f32.mrb[0].mxu0
      %v4284 = vadd.f32 0.0, %v4283
      %v4285 = vpop.f32.mrb[0].mxu0
      %4286 = vmatprep.mubr.bf16.mxu0 0
      %4287 = vmatmul.mubr.bf16.gmra.mrb[0].mxu0 %v4138
      %v4288 = vpop.f32.mrb[0].mxu0
      %v4289 = vadd.f32 0.0, %v4288
      %v4290 = vpop.f32.mrb[0].mxu0
      %v4291 = vpop.f32.mrb[0].mxu0
      %v4292 = vadd.f32 0.0, %v4291
      %v4293 = vpop.f32.mrb[0].mxu0
      %4294 = vmatprep.mubr.bf16.mxu0 0
      %4295 = vmatmul.mubr.bf16.gmra.mrb[0].mxu0 %v4141
      %v4296 = vpop.f32.mrb[0].mxu0
      %v4297 = vadd.f32 0.0, %v4296
      %v4298 = vpop.f32.mrb[0].mxu0
      %v4299 = vpop.f32.mrb[0].mxu0
      %v4300 = vadd.f32 0.0, %v4299
      %v4301 = vpop.f32.mrb[0].mxu0
      %4302 = vmatprep.mubr.bf16.mxu0 0
      %4303 = vmatmul.mubr.bf16.gmra.mrb[0].mxu0 %v4144
      %v4304 = vpop.f32.mrb[0].mxu0
      %v4305 = vadd.f32 0.0, %v4304
      %v4306 = vpop.f32.mrb[0].mxu0
      %v4307 = vpop.f32.mrb[0].mxu0
      %v4308 = vadd.f32 0.0, %v4307
      %v4309 = vpop.f32.mrb[0].mxu0
      %4310 = vdwg.mxu0
      %v4311 = vld [vmem:[%s2] sm:$0x1]
      %v4313 = vlaneseq
      %v4314 = vshrl.u32 %v4313, 7
      %v4315 = vsub.s32 0, %v4314
      %v4316 = vrot.slane %v4311, %v4315
      %v4318 = vmul.f32 %v4185, %v4316
      %v4319 = vmul.f32 %v4188, %v4316
      %v4320 = vmul.f32 %v4193, %v4316
      %v4321 = vmul.f32 %v4196, %v4316
      %v4322 = vmul.f32 %v4201, %v4316
      %v4323 = vmul.f32 %v4204, %v4316
      %v4324 = vmul.f32 %v4209, %v4316
      %v4325 = vmul.f32 %v4212, %v4316
      %v4326 = vmul.f32 %v4217, %v4316
      %v4327 = vmul.f32 %v4220, %v4316
      %v4328 = vmul.f32 %v4225, %v4316
      %v4329 = vmul.f32 %v4228, %v4316
      %v4330 = vmul.f32 %v4233, %v4316
      %v4331 = vmul.f32 %v4236, %v4316
      %v4332 = vmul.f32 %v4241, %v4316
      %v4333 = vmul.f32 %v4244, %v4316
      %v4334 = vmul.f32 %v4249, %v4316
      %v4335 = vmul.f32 %v4252, %v4316
      %v4336 = vmul.f32 %v4257, %v4316
      %v4337 = vmul.f32 %v4260, %v4316
      %v4338 = vmul.f32 %v4265, %v4316
      %v4339 = vmul.f32 %v4268, %v4316
      %v4340 = vmul.f32 %v4273, %v4316
      %v4341 = vmul.f32 %v4276, %v4316
      %v4342 = vmul.f32 %v4281, %v4316
      %v4343 = vmul.f32 %v4284, %v4316
      %v4344 = vmul.f32 %v4289, %v4316
      %v4345 = vmul.f32 %v4292, %v4316
      %v4346 = vmul.f32 %v4297, %v4316
      %v4347 = vmul.f32 %v4300, %v4316
      %v4348 = vmul.f32 %v4305, %v4316
      %v4349 = vmul.f32 %v4308, %v4316
      %v4350 = vld [vmem:[%s3] sm:$0x1]
      %v4352 = vlaneseq
      %v4353 = vshrl.u32 %v4352, 7
      %v4354 = vsub.s32 0, %v4353
      %v4355 = vrot.slane %v4350, %v4354
      %v4357 = vadd.f32 %v4318, %v4355
      %v4358 = vadd.f32 %v4319, %v4355
      %v4359 = vadd.f32 %v4320, %v4355
      %v4360 = vadd.f32 %v4321, %v4355
      %v4361 = vadd.f32 %v4322, %v4355
      %v4362 = vadd.f32 %v4323, %v4355
      %v4363 = vadd.f32 %v4324, %v4355
      %v4364 = vadd.f32 %v4325, %v4355
      %v4365 = vadd.f32 %v4326, %v4355
      %v4366 = vadd.f32 %v4327, %v4355
      %v4367 = vadd.f32 %v4328, %v4355
      %v4368 = vadd.f32 %v4329, %v4355
      %v4369 = vadd.f32 %v4330, %v4355
      %v4370 = vadd.f32 %v4331, %v4355
      %v4371 = vadd.f32 %v4332, %v4355
      %v4372 = vadd.f32 %v4333, %v4355
      %v4373 = vadd.f32 %v4334, %v4355
      %v4374 = vadd.f32 %v4335, %v4355
      %v4375 = vadd.f32 %v4336, %v4355
      %v4376 = vadd.f32 %v4337, %v4355
      %v4377 = vadd.f32 %v4338, %v4355
      %v4378 = vadd.f32 %v4339, %v4355
      %v4379 = vadd.f32 %v4340, %v4355
      %v4380 = vadd.f32 %v4341, %v4355
      %v4381 = vadd.f32 %v4342, %v4355
      %v4382 = vadd.f32 %v4343, %v4355
      %v4383 = vadd.f32 %v4344, %v4355
      %v4384 = vadd.f32 %v4345, %v4355
      %v4385 = vadd.f32 %v4346, %v4355
      %v4386 = vadd.f32 %v4347, %v4355
      %v4387 = vadd.f32 %v4348, %v4355
      %v4388 = vadd.f32 %v4349, %v4355
      %v4389 = vmax.f32 %v4357, 0.0
      %v4390 = vmax.f32 %v4358, 0.0
      %v4391 = vmax.f32 %v4359, 0.0
      %v4392 = vmax.f32 %v4360, 0.0
      %v4393 = vmax.f32 %v4361, 0.0
      %v4394 = vmax.f32 %v4362, 0.0
      %v4395 = vmax.f32 %v4363, 0.0
      %v4396 = vmax.f32 %v4364, 0.0
      %v4397 = vmax.f32 %v4365, 0.0
      %v4398 = vmax.f32 %v4366, 0.0
      %v4399 = vmax.f32 %v4367, 0.0
      %v4400 = vmax.f32 %v4368, 0.0
      %v4401 = vmax.f32 %v4369, 0.0
      %v4402 = vmax.f32 %v4370, 0.0
      %v4403 = vmax.f32 %v4371, 0.0
      %v4404 = vmax.f32 %v4372, 0.0
      %v4405 = vmax.f32 %v4373, 0.0
      %v4406 = vmax.f32 %v4374, 0.0
      %v4407 = vmax.f32 %v4375, 0.0
      %v4408 = vmax.f32 %v4376, 0.0
      %v4409 = vmax.f32 %v4377, 0.0
      %v4410 = vmax.f32 %v4378, 0.0
      %v4411 = vmax.f32 %v4379, 0.0
      %v4412 = vmax.f32 %v4380, 0.0
      %v4413 = vmax.f32 %v4381, 0.0
      %v4414 = vmax.f32 %v4382, 0.0
      %v4415 = vmax.f32 %v4383, 0.0
      %v4416 = vmax.f32 %v4384, 0.0
      %v4417 = vmax.f32 %v4385, 0.0
      %v4418 = vmax.f32 %v4386, 0.0
      %v4419 = vmax.f32 %v4387, 0.0
      %v4420 = vmax.f32 %v4388, 0.0
      %v4421 = vpack.c.bf16 %v4390, %v4389
      %v4422 = vpack.c.bf16 %v4392, %v4391
      %v4423 = vpack.c.bf16 %v4394, %v4393
      %v4424 = vpack.c.bf16 %v4396, %v4395
      %v4425 = vpack.c.bf16 %v4398, %v4397
      %v4426 = vpack.c.bf16 %v4400, %v4399
      %v4427 = vpack.c.bf16 %v4402, %v4401
      %v4428 = vpack.c.bf16 %v4404, %v4403
      %v4429 = vpack.c.bf16 %v4406, %v4405
      %v4430 = vpack.c.bf16 %v4408, %v4407
      %v4431 = vpack.c.bf16 %v4410, %v4409
      %v4432 = vpack.c.bf16 %v4412, %v4411
      %v4433 = vpack.c.bf16 %v4414, %v4413
      %v4434 = vpack.c.bf16 %v4416, %v4415
      %v4435 = vpack.c.bf16 %v4418, %v4417
      %v4436 = vpack.c.bf16 %v4420, %v4419
      %v4453 = vunpack.c.l.b16 %v4421
      %v4454 = vunpack.c.h.b16 %v4421
      %v4455 = vunpack.c.l.b16 %v4422
      %v4456 = vunpack.c.h.b16 %v4422
      %v4457 = vunpack.c.l.b16 %v4423
      %v4458 = vunpack.c.h.b16 %v4423
      %v4459 = vunpack.c.l.b16 %v4424
      %v4460 = vunpack.c.h.b16 %v4424
      %v4461 = vunpack.c.l.b16 %v4425
      %v4462 = vunpack.c.h.b16 %v4425
      %v4463 = vunpack.c.l.b16 %v4426
      %v4464 = vunpack.c.h.b16 %v4426
      %v4465 = vunpack.c.l.b16 %v4427
      %v4466 = vunpack.c.h.b16 %v4427
      %v4467 = vunpack.c.l.b16 %v4428
      %v4468 = vunpack.c.h.b16 %v4428
      %v4469 = vunpack.c.l.b16 %v4429
      %v4470 = vunpack.c.h.b16 %v4429
      %v4471 = vunpack.c.l.b16 %v4430
      %v4472 = vunpack.c.h.b16 %v4430
      %v4473 = vunpack.c.l.b16 %v4431
      %v4474 = vunpack.c.h.b16 %v4431
      %v4475 = vunpack.c.l.b16 %v4432
      %v4476 = vunpack.c.h.b16 %v4432
      %v4477 = vunpack.c.l.b16 %v4433
      %v4478 = vunpack.c.h.b16 %v4433
      %v4479 = vunpack.c.l.b16 %v4434
      %v4480 = vunpack.c.h.b16 %v4434
      %v4481 = vunpack.c.l.b16 %v4435
      %v4482 = vunpack.c.h.b16 %v4435
      %v4483 = vunpack.c.l.b16 %v4436
      %v4484 = vunpack.c.h.b16 %v4436
      %v4485 = vpack.c.b16 %v4453, %v4453
      %v4486 = vpack.c.b16 %v4454, %v4454
      %v4487 = vpack.c.b16 %v4455, %v4455
      %v4488 = vpack.c.b16 %v4456, %v4456
      %v4489 = vpack.c.b16 %v4457, %v4457
      %v4490 = vpack.c.b16 %v4458, %v4458
      %v4491 = vpack.c.b16 %v4459, %v4459
      %v4492 = vpack.c.b16 %v4460, %v4460
      %v4493 = vpack.c.b16 %v4461, %v4461
      %v4494 = vpack.c.b16 %v4462, %v4462
      %v4495 = vpack.c.b16 %v4463, %v4463
      %v4496 = vpack.c.b16 %v4464, %v4464
      %v4497 = vpack.c.b16 %v4465, %v4465
      %v4498 = vpack.c.b16 %v4466, %v4466
      %v4499 = vpack.c.b16 %v4467, %v4467
      %v4500 = vpack.c.b16 %v4468, %v4468
      %v4501 = vpack.c.b16 %v4469, %v4469
      %v4502 = vpack.c.b16 %v4470, %v4470
      %v4503 = vpack.c.b16 %v4471, %v4471
      %v4504 = vpack.c.b16 %v4472, %v4472
      %v4505 = vpack.c.b16 %v4473, %v4473
      %v4506 = vpack.c.b16 %v4474, %v4474
      %v4507 = vpack.c.b16 %v4475, %v4475
      %v4508 = vpack.c.b16 %v4476, %v4476
      %v4509 = vpack.c.b16 %v4477, %v4477
      %v4510 = vpack.c.b16 %v4478, %v4478
      %v4511 = vpack.c.b16 %v4479, %v4479
      %v4512 = vpack.c.b16 %v4480, %v4480
      %v4513 = vpack.c.b16 %v4481, %v4481
      %v4514 = vpack.c.b16 %v4482, %v4482
      %v4515 = vpack.c.b16 %v4483, %v4483
      %v4516 = vpack.c.b16 %v4484, %v4484
      %v4518 = vshrl.u32 %v4485, 16
      %v4520 = vrot.slane %v4518, 7
      %v4521 = vshll.u32 %v4485, 16
      %v4523 = vor.u32 %v4520, %v4521
      %v4524 = vrot.slane %v4520, 4
      %v4526 = vshrl.u32 %v4486, 16
      %v4528 = vrot.slane %v4526, 7
      %v4529 = vshll.u32 %v4486, 16
      %v4531 = vor.u32 %v4528, %v4529
      %v4532 = vsel %vm506, %v4524, %v4531
      %v4533 = vrot.slane %v4528, 4
      %v4535 = vshrl.u32 %v4487, 16
      %v4537 = vrot.slane %v4535, 7
      %v4538 = vshll.u32 %v4487, 16
      %v4540 = vor.u32 %v4537, %v4538
      %v4541 = vrot.slane %v4537, 4
      %v4543 = vshrl.u32 %v4488, 16
      %v4545 = vrot.slane %v4543, 7
      %v4546 = vshll.u32 %v4488, 16
      %v4548 = vor.u32 %v4545, %v4546
      %v4549 = vsel %vm506, %v4541, %v4548
      %v4550 = vrot.slane %v4545, 4
      %v4552 = vshrl.u32 %v4489, 16
      %v4554 = vrot.slane %v4552, 7
      %v4555 = vshll.u32 %v4489, 16
      %v4557 = vor.u32 %v4554, %v4555
      %v4558 = vrot.slane %v4554, 4
      %v4560 = vshrl.u32 %v4490, 16
      %v4562 = vrot.slane %v4560, 7
      %v4563 = vshll.u32 %v4490, 16
      %v4565 = vor.u32 %v4562, %v4563
      %v4566 = vsel %vm506, %v4558, %v4565
      %v4567 = vrot.slane %v4562, 4
      %v4569 = vshrl.u32 %v4491, 16
      %v4571 = vrot.slane %v4569, 7
      %v4572 = vshll.u32 %v4491, 16
      %v4574 = vor.u32 %v4571, %v4572
      %v4575 = vrot.slane %v4571, 4
      %v4577 = vshrl.u32 %v4492, 16
      %v4579 = vrot.slane %v4577, 7
      %v4580 = vshll.u32 %v4492, 16
      %v4582 = vor.u32 %v4579, %v4580
      %v4583 = vsel %vm506, %v4575, %v4582
      %v4584 = vrot.slane %v4579, 4
      %v4586 = vshrl.u32 %v4493, 16
      %v4588 = vrot.slane %v4586, 7
      %v4589 = vshll.u32 %v4493, 16
      %v4591 = vor.u32 %v4588, %v4589
      %v4592 = vrot.slane %v4588, 4
      %v4594 = vshrl.u32 %v4494, 16
      %v4596 = vrot.slane %v4594, 7
      %v4597 = vshll.u32 %v4494, 16
      %v4599 = vor.u32 %v4596, %v4597
      %v4600 = vsel %vm506, %v4592, %v4599
      %v4601 = vrot.slane %v4596, 4
      %v4603 = vshrl.u32 %v4495, 16
      %v4605 = vrot.slane %v4603, 7
      %v4606 = vshll.u32 %v4495, 16
      %v4608 = vor.u32 %v4605, %v4606
      %v4609 = vrot.slane %v4605, 4
      %v4611 = vshrl.u32 %v4496, 16
      %v4613 = vrot.slane %v4611, 7
      %v4614 = vshll.u32 %v4496, 16
      %v4616 = vor.u32 %v4613, %v4614
      %v4617 = vsel %vm506, %v4609, %v4616
      %v4618 = vrot.slane %v4613, 4
      %v4620 = vshrl.u32 %v4497, 16
      %v4622 = vrot.slane %v4620, 7
      %v4623 = vshll.u32 %v4497, 16
      %v4625 = vor.u32 %v4622, %v4623
      %v4626 = vrot.slane %v4622, 4
      %v4628 = vshrl.u32 %v4498, 16
      %v4630 = vrot.slane %v4628, 7
      %v4631 = vshll.u32 %v4498, 16
      %v4633 = vor.u32 %v4630, %v4631
      %v4634 = vsel %vm506, %v4626, %v4633
      %v4635 = vrot.slane %v4630, 4
      %v4637 = vshrl.u32 %v4499, 16
      %v4639 = vrot.slane %v4637, 7
      %v4640 = vshll.u32 %v4499, 16
      %v4642 = vor.u32 %v4639, %v4640
      %v4643 = vrot.slane %v4639, 4
      %v4645 = vshrl.u32 %v4500, 16
      %v4647 = vrot.slane %v4645, 7
      %v4648 = vshll.u32 %v4500, 16
      %v4650 = vor.u32 %v4647, %v4648
      %v4651 = vsel %vm506, %v4643, %v4650
      %v4652 = vrot.slane %v4647, 4
      %v4654 = vshrl.u32 %v4501, 16
      %v4656 = vrot.slane %v4654, 7
      %v4657 = vshll.u32 %v4501, 16
      %v4659 = vor.u32 %v4656, %v4657
      %v4660 = vrot.slane %v4656, 4
      %v4662 = vshrl.u32 %v4502, 16
      %v4664 = vrot.slane %v4662, 7
      %v4665 = vshll.u32 %v4502, 16
      %v4667 = vor.u32 %v4664, %v4665
      %v4668 = vsel %vm506, %v4660, %v4667
      %v4669 = vrot.slane %v4664, 4
      %v4671 = vshrl.u32 %v4503, 16
      %v4673 = vrot.slane %v4671, 7
      %v4674 = vshll.u32 %v4503, 16
      %v4676 = vor.u32 %v4673, %v4674
      %v4677 = vrot.slane %v4673, 4
      %v4679 = vshrl.u32 %v4504, 16
      %v4681 = vrot.slane %v4679, 7
      %v4682 = vshll.u32 %v4504, 16
      %v4684 = vor.u32 %v4681, %v4682
      %v4685 = vsel %vm506, %v4677, %v4684
      %v4686 = vrot.slane %v4681, 4
      %v4688 = vshrl.u32 %v4505, 16
      %v4690 = vrot.slane %v4688, 7
      %v4691 = vshll.u32 %v4505, 16
      %v4693 = vor.u32 %v4690, %v4691
      %v4694 = vrot.slane %v4690, 4
      %v4696 = vshrl.u32 %v4506, 16
      %v4698 = vrot.slane %v4696, 7
      %v4699 = vshll.u32 %v4506, 16
      %v4701 = vor.u32 %v4698, %v4699
      %v4702 = vsel %vm506, %v4694, %v4701
      %v4703 = vrot.slane %v4698, 4
      %v4705 = vshrl.u32 %v4507, 16
      %v4707 = vrot.slane %v4705, 7
      %v4708 = vshll.u32 %v4507, 16
      %v4710 = vor.u32 %v4707, %v4708
      %v4711 = vrot.slane %v4707, 4
      %v4713 = vshrl.u32 %v4508, 16
      %v4715 = vrot.slane %v4713, 7
      %v4716 = vshll.u32 %v4508, 16
      %v4718 = vor.u32 %v4715, %v4716
      %v4719 = vsel %vm506, %v4711, %v4718
      %v4720 = vrot.slane %v4715, 4
      %v4722 = vshrl.u32 %v4509, 16
      %v4724 = vrot.slane %v4722, 7
      %v4725 = vshll.u32 %v4509, 16
      %v4727 = vor.u32 %v4724, %v4725
      %v4728 = vrot.slane %v4724, 4
      %v4730 = vshrl.u32 %v4510, 16
      %v4732 = vrot.slane %v4730, 7
      %v4733 = vshll.u32 %v4510, 16
      %v4735 = vor.u32 %v4732, %v4733
      %v4736 = vsel %vm506, %v4728, %v4735
      %v4737 = vrot.slane %v4732, 4
      %v4739 = vshrl.u32 %v4511, 16
      %v4741 = vrot.slane %v4739, 7
      %v4742 = vshll.u32 %v4511, 16
      %v4744 = vor.u32 %v4741, %v4742
      %v4745 = vrot.slane %v4741, 4
      %v4747 = vshrl.u32 %v4512, 16
      %v4749 = vrot.slane %v4747, 7
      %v4750 = vshll.u32 %v4512, 16
      %v4752 = vor.u32 %v4749, %v4750
      %v4753 = vsel %vm506, %v4745, %v4752
      %v4754 = vrot.slane %v4749, 4
      %v4756 = vshrl.u32 %v4513, 16
      %v4758 = vrot.slane %v4756, 7
      %v4759 = vshll.u32 %v4513, 16
      %v4761 = vor.u32 %v4758, %v4759
      %v4762 = vrot.slane %v4758, 4
      %v4764 = vshrl.u32 %v4514, 16
      %v4766 = vrot.slane %v4764, 7
      %v4767 = vshll.u32 %v4514, 16
      %v4769 = vor.u32 %v4766, %v4767
      %v4770 = vsel %vm506, %v4762, %v4769
      %v4771 = vrot.slane %v4766, 4
      %v4773 = vshrl.u32 %v4515, 16
      %v4775 = vrot.slane %v4773, 7
      %v4776 = vshll.u32 %v4515, 16
      %v4778 = vor.u32 %v4775, %v4776
      %v4779 = vrot.slane %v4775, 4
      %v4781 = vshrl.u32 %v4516, 16
      %v4783 = vrot.slane %v4781, 7
      %v4784 = vshll.u32 %v4516, 16
      %v4786 = vor.u32 %v4783, %v4784
      %v4787 = vsel %vm506, %v4779, %v4786
      %v4788 = vrot.slane %v4783, 4
      %vm4837 = vcmask 125952
      %vm4838 = vmand %vm4837, %vm314
      %v4839 = vld [vmem:[%s373] sm:$0xf]
      %v4840 = vsel %vm4838, %v4523, %v4839
      %4841 = vst [vmem:[%s373] sm:$0xf] %v4840
      %4842 = vst.msk [vmem:[%s373 + $0x4] sm:$0xf] %vm364, %v4532
      %v4843 = vld [vmem:[%s373 + $0x8] sm:$0x1]
      %v4844 = vsel %vm375, %v4533, %v4843
      %4845 = vst [vmem:[%s373 + $0x8] sm:$0x1] %v4844
      %v4846 = vld [vmem:[%s373 + $0xc] sm:$0xf]
      %v4847 = vsel %vm4838, %v4540, %v4846
      %4848 = vst [vmem:[%s373 + $0xc] sm:$0xf] %v4847
      %4849 = vst.msk [vmem:[%s373 + $0x10] sm:$0xf] %vm364, %v4549
      %v4850 = vld [vmem:[%s373 + $0x14] sm:$0x1]
      %v4851 = vsel %vm375, %v4550, %v4850
      %4852 = vst [vmem:[%s373 + $0x14] sm:$0x1] %v4851
      %v4853 = vld [vmem:[%s373 + $0x18] sm:$0xf]
      %v4854 = vsel %vm4838, %v4557, %v4853
      %4855 = vst [vmem:[%s373 + $0x18] sm:$0xf] %v4854
      %4856 = vst.msk [vmem:[%s373 + $0x1c] sm:$0xf] %vm364, %v4566
      %v4857 = vld [vmem:[%s373 + $0x20] sm:$0x1]
      %v4858 = vsel %vm375, %v4567, %v4857
      %4859 = vst [vmem:[%s373 + $0x20] sm:$0x1] %v4858
      %v4860 = vld [vmem:[%s373 + $0x24] sm:$0xf]
      %v4861 = vsel %vm4838, %v4574, %v4860
      %4862 = vst [vmem:[%s373 + $0x24] sm:$0xf] %v4861
      %4863 = vst.msk [vmem:[%s373 + $0x28] sm:$0xf] %vm364, %v4583
      %v4864 = vld [vmem:[%s373 + $0x2c] sm:$0x1]
      %v4865 = vsel %vm375, %v4584, %v4864
      %4866 = vst [vmem:[%s373 + $0x2c] sm:$0x1] %v4865
      %v4867 = vld [vmem:[%s373 + $0x30] sm:$0xf]
      %v4868 = vsel %vm4838, %v4591, %v4867
      %4869 = vst [vmem:[%s373 + $0x30] sm:$0xf] %v4868
      %4870 = vst.msk [vmem:[%s373 + $0x34] sm:$0xf] %vm364, %v4600
      %v4871 = vld [vmem:[%s373 + $0x38] sm:$0x1]
      %v4872 = vsel %vm375, %v4601, %v4871
      %4873 = vst [vmem:[%s373 + $0x38] sm:$0x1] %v4872
      %v4874 = vld [vmem:[%s373 + $0x3c] sm:$0xf]
      %v4875 = vsel %vm4838, %v4608, %v4874
      %4876 = vst [vmem:[%s373 + $0x3c] sm:$0xf] %v4875
      %4877 = vst.msk [vmem:[%s373 + $0x40] sm:$0xf] %vm364, %v4617
      %v4878 = vld [vmem:[%s373 + $0x44] sm:$0x1]
      %v4879 = vsel %vm375, %v4618, %v4878
      %4880 = vst [vmem:[%s373 + $0x44] sm:$0x1] %v4879
      %v4881 = vld [vmem:[%s373 + $0x48] sm:$0xf]
      %v4882 = vsel %vm4838, %v4625, %v4881
      %4883 = vst [vmem:[%s373 + $0x48] sm:$0xf] %v4882
      %4884 = vst.msk [vmem:[%s373 + $0x4c] sm:$0xf] %vm364, %v4634
      %v4885 = vld [vmem:[%s373 + $0x50] sm:$0x1]
      %v4886 = vsel %vm375, %v4635, %v4885
      %4887 = vst [vmem:[%s373 + $0x50] sm:$0x1] %v4886
      %v4888 = vld [vmem:[%s373 + $0x54] sm:$0xf]
      %v4889 = vsel %vm4838, %v4642, %v4888
      %4890 = vst [vmem:[%s373 + $0x54] sm:$0xf] %v4889
      %4891 = vst.msk [vmem:[%s373 + $0x58] sm:$0xf] %vm364, %v4651
      %v4892 = vld [vmem:[%s373 + $0x5c] sm:$0x1]
      %v4893 = vsel %vm375, %v4652, %v4892
      %4894 = vst [vmem:[%s373 + $0x5c] sm:$0x1] %v4893
      %v4895 = vld [vmem:[%s373 + $0x60] sm:$0xf]
      %v4896 = vsel %vm4838, %v4659, %v4895
      %4897 = vst [vmem:[%s373 + $0x60] sm:$0xf] %v4896
      %4898 = vst.msk [vmem:[%s373 + $0x64] sm:$0xf] %vm364, %v4668
      %v4899 = vld [vmem:[%s373 + $0x68] sm:$0x1]
      %v4900 = vsel %vm375, %v4669, %v4899
      %4901 = vst [vmem:[%s373 + $0x68] sm:$0x1] %v4900
      %v4902 = vld [vmem:[%s373 + $0x6c] sm:$0xf]
      %v4903 = vsel %vm4838, %v4676, %v4902
      %4904 = vst [vmem:[%s373 + $0x6c] sm:$0xf] %v4903
      %4905 = vst.msk [vmem:[%s373 + $0x70] sm:$0xf] %vm364, %v4685
      %v4906 = vld [vmem:[%s373 + $0x74] sm:$0x1]
      %v4907 = vsel %vm375, %v4686, %v4906
      %4908 = vst [vmem:[%s373 + $0x74] sm:$0x1] %v4907
      %v4909 = vld [vmem:[%s373 + $0x78] sm:$0xf]
      %v4910 = vsel %vm4838, %v4693, %v4909
      %4911 = vst [vmem:[%s373 + $0x78] sm:$0xf] %v4910
      %4912 = vst.msk [vmem:[%s373 + $0x7c] sm:$0xf] %vm364, %v4702
      %v4913 = vld [vmem:[%s373 + $0x80] sm:$0x1]
      %v4914 = vsel %vm375, %v4703, %v4913
      %4915 = vst [vmem:[%s373 + $0x80] sm:$0x1] %v4914
      %v4916 = vld [vmem:[%s373 + $0x84] sm:$0xf]
      %v4917 = vsel %vm4838, %v4710, %v4916
      %4918 = vst [vmem:[%s373 + $0x84] sm:$0xf] %v4917
      %4919 = vst.msk [vmem:[%s373 + $0x88] sm:$0xf] %vm364, %v4719
      %v4920 = vld [vmem:[%s373 + $0x8c] sm:$0x1]
      %v4921 = vsel %vm375, %v4720, %v4920
      %4922 = vst [vmem:[%s373 + $0x8c] sm:$0x1] %v4921
      %v4923 = vld [vmem:[%s373 + $0x90] sm:$0xf]
      %v4924 = vsel %vm4838, %v4727, %v4923
      %4925 = vst [vmem:[%s373 + $0x90] sm:$0xf] %v4924
      %4926 = vst.msk [vmem:[%s373 + $0x94] sm:$0xf] %vm364, %v4736
      %v4927 = vld [vmem:[%s373 + $0x98] sm:$0x1]
      %v4928 = vsel %vm375, %v4737, %v4927
      %4929 = vst [vmem:[%s373 + $0x98] sm:$0x1] %v4928
      %v4930 = vld [vmem:[%s373 + $0x9c] sm:$0xf]
      %v4931 = vsel %vm4838, %v4744, %v4930
      %4932 = vst [vmem:[%s373 + $0x9c] sm:$0xf] %v4931
      %4933 = vst.msk [vmem:[%s373 + $0xa0] sm:$0xf] %vm364, %v4753
      %v4934 = vld [vmem:[%s373 + $0xa4] sm:$0x1]
      %v4935 = vsel %vm375, %v4754, %v4934
      %4936 = vst [vmem:[%s373 + $0xa4] sm:$0x1] %v4935
      %v4937 = vld [vmem:[%s373 + $0xa8] sm:$0xf]
      %v4938 = vsel %vm4838, %v4761, %v4937
      %4939 = vst [vmem:[%s373 + $0xa8] sm:$0xf] %v4938
      %4940 = vst.msk [vmem:[%s373 + $0xac] sm:$0xf] %vm364, %v4770
      %v4941 = vld [vmem:[%s373 + $0xb0] sm:$0x1]
      %v4942 = vsel %vm375, %v4771, %v4941
      %4943 = vst [vmem:[%s373 + $0xb0] sm:$0x1] %v4942
      %v4944 = vld [vmem:[%s373 + $0xb4] sm:$0xf]
      %v4945 = vsel %vm4838, %v4778, %v4944
      %4946 = vst [vmem:[%s373 + $0xb4] sm:$0xf] %v4945
      %4947 = vst.msk [vmem:[%s373 + $0xb8] sm:$0xf] %vm364, %v4787
      %v4948 = vld [vmem:[%s373 + $0xbc] sm:$0x1]
      %v4949 = vsel %vm375, %v4788, %v4948
      %4950 = vst [vmem:[%s373 + $0xbc] sm:$0x1] %v4949
      %v4951 = vld [vmem:[%s5] sm:$0x1]
      %v4952 = vld [vmem:[#allocation3] sm:$0xf]
      %v4953 = vld [vmem:[#allocation3 + $0x4] sm:$0xf]
      %v4954 = vld [vmem:[#allocation3 + $0xc] sm:$0xf]
      %v4955 = vld [vmem:[#allocation3 + $0x10] sm:$0xf]
      %v4956 = vld [vmem:[#allocation3 + $0x18] sm:$0xf]
      %v4957 = vld [vmem:[#allocation3 + $0x1c] sm:$0xf]
      %v4958 = vld [vmem:[#allocation3 + $0x24] sm:$0xf]
      %v4959 = vld [vmem:[#allocation3 + $0x28] sm:$0xf]
      %v4960 = vld [vmem:[#allocation3 + $0x30] sm:$0xf]
      %v4961 = vld [vmem:[#allocation3 + $0x34] sm:$0xf]
      %v4962 = vld [vmem:[#allocation3 + $0x3c] sm:$0xf]
      %v4963 = vld [vmem:[#allocation3 + $0x40] sm:$0xf]
      %v4964 = vld [vmem:[#allocation3 + $0x48] sm:$0xf]
      %v4965 = vld [vmem:[#allocation3 + $0x4c] sm:$0xf]
      %v4966 = vld [vmem:[#allocation3 + $0x54] sm:$0xf]
      %v4967 = vld [vmem:[#allocation3 + $0x58] sm:$0xf]
      %v4968 = vld [vmem:[#allocation3 + $0x60] sm:$0xf]
      %v4969 = vld [vmem:[#allocation3 + $0x64] sm:$0xf]
      %v4970 = vld [vmem:[#allocation3 + $0x6c] sm:$0xf]
      %v4971 = vld [vmem:[#allocation3 + $0x70] sm:$0xf]
      %v4972 = vld [vmem:[#allocation3 + $0x78] sm:$0xf]
      %v4973 = vld [vmem:[#allocation3 + $0x7c] sm:$0xf]
      %v4974 = vld [vmem:[#allocation3 + $0x84] sm:$0xf]
      %v4975 = vld [vmem:[#allocation3 + $0x88] sm:$0xf]
      %v4976 = vld [vmem:[#allocation3 + $0x90] sm:$0xf]
      %v4977 = vld [vmem:[#allocation3 + $0x94] sm:$0xf]
      %v4978 = vld [vmem:[#allocation3 + $0x9c] sm:$0xf]
      %v4979 = vld [vmem:[#allocation3 + $0xa0] sm:$0xf]
      %v4980 = vld [vmem:[#allocation3 + $0xa8] sm:$0xf]
      %v4981 = vld [vmem:[#allocation3 + $0xac] sm:$0xf]
      %v4982 = vld [vmem:[#allocation3 + $0xb4] sm:$0xf]
      %v4983 = vld [vmem:[#allocation3 + $0xb8] sm:$0xf]
      %v5016 = vunpack.c.l.b16 %v4952
      %v5017 = vunpack.c.l.b16 %v4953
      %v5018 = vunpack.c.l.b16 %v4954
      %v5019 = vunpack.c.l.b16 %v4955
      %v5020 = vunpack.c.l.b16 %v4956
      %v5021 = vunpack.c.l.b16 %v4957
      %v5022 = vunpack.c.l.b16 %v4958
      %v5023 = vunpack.c.l.b16 %v4959
      %v5024 = vunpack.c.l.b16 %v4960
      %v5025 = vunpack.c.l.b16 %v4961
      %v5026 = vunpack.c.l.b16 %v4962
      %v5027 = vunpack.c.l.b16 %v4963
      %v5028 = vunpack.c.l.b16 %v4964
      %v5029 = vunpack.c.l.b16 %v4965
      %v5030 = vunpack.c.l.b16 %v4966
      %v5031 = vunpack.c.l.b16 %v4967
      %v5032 = vunpack.c.l.b16 %v4968
      %v5033 = vunpack.c.l.b16 %v4969
      %v5034 = vunpack.c.l.b16 %v4970
      %v5035 = vunpack.c.l.b16 %v4971
      %v5036 = vunpack.c.l.b16 %v4972
      %v5037 = vunpack.c.l.b16 %v4973
      %v5038 = vunpack.c.l.b16 %v4974
      %v5039 = vunpack.c.l.b16 %v4975
      %v5040 = vunpack.c.l.b16 %v4976
      %v5041 = vunpack.c.l.b16 %v4977
      %v5042 = vunpack.c.l.b16 %v4978
      %v5043 = vunpack.c.l.b16 %v4979
      %v5044 = vunpack.c.l.b16 %v4980
      %v5045 = vunpack.c.l.b16 %v4981
      %v5046 = vunpack.c.l.b16 %v4982
      %v5047 = vunpack.c.l.b16 %v4983
      %v5048 = vpack.c.b16 %v5017, %v5016
      %v5049 = vpack.c.b16 %v5019, %v5018
      %v5050 = vpack.c.b16 %v5021, %v5020
      %v5051 = vpack.c.b16 %v5023, %v5022
      %v5052 = vpack.c.b16 %v5025, %v5024
      %v5053 = vpack.c.b16 %v5027, %v5026
      %v5054 = vpack.c.b16 %v5029, %v5028
      %v5055 = vpack.c.b16 %v5031, %v5030
      %v5056 = vpack.c.b16 %v5033, %v5032
      %v5057 = vpack.c.b16 %v5035, %v5034
      %v5058 = vpack.c.b16 %v5037, %v5036
      %v5059 = vpack.c.b16 %v5039, %v5038
      %v5060 = vpack.c.b16 %v5041, %v5040
      %v5061 = vpack.c.b16 %v5043, %v5042
      %v5062 = vpack.c.b16 %v5045, %v5044
      %v5063 = vpack.c.b16 %v5047, %v5046
      %vm5080 = vcmask 130048
      %5081 = vst.msk [vmem:[#allocation5] sm:$0xff] %vm5080, %v5048
      %5082 = vst.msk [vmem:[#allocation5 + $0x8] sm:$0xff] %vm5080, %v5049
      %5083 = vst.msk [vmem:[#allocation5 + $0x10] sm:$0xff] %vm5080, %v5050
      %5084 = vst.msk [vmem:[#allocation5 + $0x18] sm:$0xff] %vm5080, %v5051
      %5085 = vst.msk [vmem:[#allocation5 + $0x20] sm:$0xff] %vm5080, %v5052
      %5086 = vst.msk [vmem:[#allocation5 + $0x28] sm:$0xff] %vm5080, %v5053
      %5087 = vst.msk [vmem:[#allocation5 + $0x30] sm:$0xff] %vm5080, %v5054
      %5088 = vst.msk [vmem:[#allocation5 + $0x38] sm:$0xff] %vm5080, %v5055
      %5089 = vst.msk [vmem:[#allocation5 + $0x40] sm:$0xff] %vm5080, %v5056
      %5090 = vst.msk [vmem:[#allocation5 + $0x48] sm:$0xff] %vm5080, %v5057
      %5091 = vst.msk [vmem:[#allocation5 + $0x50] sm:$0xff] %vm5080, %v5058
      %5092 = vst.msk [vmem:[#allocation5 + $0x58] sm:$0xff] %vm5080, %v5059
      %5093 = vst.msk [vmem:[#allocation5 + $0x60] sm:$0xff] %vm5080, %v5060
      %5094 = vst.msk [vmem:[#allocation5 + $0x68] sm:$0xff] %vm5080, %v5061
      %5095 = vst.msk [vmem:[#allocation5 + $0x70] sm:$0xff] %vm5080, %v5062
      %5096 = vst.msk [vmem:[#allocation5 + $0x78] sm:$0xff] %vm5080, %v5063
      %v5097 = vld [vmem:[#allocation3] sm:$0xf]
      %v5098 = vld [vmem:[#allocation3 + $0x4] sm:$0xf]
      %v5099 = vld [vmem:[#allocation3 + $0x8] sm:$0x1]
      %v5100 = vld [vmem:[#allocation3 + $0xc] sm:$0xf]
      %v5101 = vld [vmem:[#allocation3 + $0x10] sm:$0xf]
      %v5102 = vld [vmem:[#allocation3 + $0x14] sm:$0x1]
      %v5103 = vld [vmem:[#allocation3 + $0x18] sm:$0xf]
      %v5104 = vld [vmem:[#allocation3 + $0x1c] sm:$0xf]
      %v5105 = vld [vmem:[#allocation3 + $0x20] sm:$0x1]
      %v5106 = vld [vmem:[#allocation3 + $0x24] sm:$0xf]
      %v5107 = vld [vmem:[#allocation3 + $0x28] sm:$0xf]
      %v5108 = vld [vmem:[#allocation3 + $0x2c] sm:$0x1]
      %v5109 = vld [vmem:[#allocation3 + $0x30] sm:$0xf]
      %v5110 = vld [vmem:[#allocation3 + $0x34] sm:$0xf]
      %v5111 = vld [vmem:[#allocation3 + $0x38] sm:$0x1]
      %v5112 = vld [vmem:[#allocation3 + $0x3c] sm:$0xf]
      %v5113 = vld [vmem:[#allocation3 + $0x40] sm:$0xf]
      %v5114 = vld [vmem:[#allocation3 + $0x44] sm:$0x1]
      %v5115 = vld [vmem:[#allocation3 + $0x48] sm:$0xf]
      %v5116 = vld [vmem:[#allocation3 + $0x4c] sm:$0xf]
      %v5117 = vld [vmem:[#allocation3 + $0x50] sm:$0x1]
      %v5118 = vld [vmem:[#allocation3 + $0x54] sm:$0xf]
      %v5119 = vld [vmem:[#allocation3 + $0x58] sm:$0xf]
      %v5120 = vld [vmem:[#allocation3 + $0x5c] sm:$0x1]
      %v5121 = vld [vmem:[#allocation3 + $0x60] sm:$0xf]
      %v5122 = vld [vmem:[#allocation3 + $0x64] sm:$0xf]
      %v5123 = vld [vmem:[#allocation3 + $0x68] sm:$0x1]
      %v5124 = vld [vmem:[#allocation3 + $0x6c] sm:$0xf]
      %v5125 = vld [vmem:[#allocation3 + $0x70] sm:$0xf]
      %v5126 = vld [vmem:[#allocation3 + $0x74] sm:$0x1]
      %v5127 = vld [vmem:[#allocation3 + $0x78] sm:$0xf]
      %v5128 = vld [vmem:[#allocation3 + $0x7c] sm:$0xf]
      %v5129 = vld [vmem:[#allocation3 + $0x80] sm:$0x1]
      %v5130 = vld [vmem:[#allocation3 + $0x84] sm:$0xf]
      %v5131 = vld [vmem:[#allocation3 + $0x88] sm:$0xf]
      %v5132 = vld [vmem:[#allocation3 + $0x8c] sm:$0x1]
      %v5133 = vld [vmem:[#allocation3 + $0x90] sm:$0xf]
      %v5134 = vld [vmem:[#allocation3 + $0x94] sm:$0xf]
      %v5135 = vld [vmem:[#allocation3 + $0x98] sm:$0x1]
      %v5136 = vld [vmem:[#allocation3 + $0x9c] sm:$0xf]
      %v5137 = vld [vmem:[#allocation3 + $0xa0] sm:$0xf]
      %v5138 = vld [vmem:[#allocation3 + $0xa4] sm:$0x1]
      %v5139 = vld [vmem:[#allocation3 + $0xa8] sm:$0xf]
      %v5140 = vld [vmem:[#allocation3 + $0xac] sm:$0xf]
      %v5141 = vld [vmem:[#allocation3 + $0xb0] sm:$0x1]
      %v5142 = vld [vmem:[#allocation3 + $0xb4] sm:$0xf]
      %v5143 = vld [vmem:[#allocation3 + $0xb8] sm:$0xf]
      %v5144 = vld [vmem:[#allocation3 + $0xbc] sm:$0x1]
      %v5146 = vshrl.u32 %v5097, 16
      %v5148 = vrot.slane %v5146, 4
      %v5149 = vshll.u32 %v5097, 16
      %v5151 = vrot.slane %v5149, 5
      %v5152 = vor.u32 %v5148, %v5151
      %v5153 = vrot.slane %v5152, 4
      %v5155 = vshll.u32 %v5098, 16
      %v5157 = vrot.slane %v5155, 5
      %v5158 = vsel %vm1136, %v5153, %v5157
      %v5159 = vshrl.u32 %v5098, 16
      %v5161 = vrot.slane %v5159, 4
      %v5162 = vor.u32 %v5161, %v5157
      %v5163 = vrot.slane %v5162, 4
      %v5165 = vshll.u32 %v5099, 16
      %v5167 = vrot.slane %v5165, 5
      %v5168 = vsel %vm1136, %v5163, %v5167
      %v5170 = vshrl.u32 %v5100, 16
      %v5172 = vrot.slane %v5170, 4
      %v5173 = vshll.u32 %v5100, 16
      %v5175 = vrot.slane %v5173, 5
      %v5176 = vor.u32 %v5172, %v5175
      %v5177 = vrot.slane %v5176, 4
      %v5179 = vshll.u32 %v5101, 16
      %v5181 = vrot.slane %v5179, 5
      %v5182 = vsel %vm1136, %v5177, %v5181
      %v5183 = vshrl.u32 %v5101, 16
      %v5185 = vrot.slane %v5183, 4
      %v5186 = vor.u32 %v5185, %v5181
      %v5187 = vrot.slane %v5186, 4
      %v5189 = vshll.u32 %v5102, 16
      %v5191 = vrot.slane %v5189, 5
      %v5192 = vsel %vm1136, %v5187, %v5191
      %v5194 = vshrl.u32 %v5103, 16
      %v5196 = vrot.slane %v5194, 4
      %v5197 = vshll.u32 %v5103, 16
      %v5199 = vrot.slane %v5197, 5
      %v5200 = vor.u32 %v5196, %v5199
      %v5201 = vrot.slane %v5200, 4
      %v5203 = vshll.u32 %v5104, 16
      %v5205 = vrot.slane %v5203, 5
      %v5206 = vsel %vm1136, %v5201, %v5205
      %v5207 = vshrl.u32 %v5104, 16
      %v5209 = vrot.slane %v5207, 4
      %v5210 = vor.u32 %v5209, %v5205
      %v5211 = vrot.slane %v5210, 4
      %v5213 = vshll.u32 %v5105, 16
      %v5215 = vrot.slane %v5213, 5
      %v5216 = vsel %vm1136, %v5211, %v5215
      %v5218 = vshrl.u32 %v5106, 16
      %v5220 = vrot.slane %v5218, 4
      %v5221 = vshll.u32 %v5106, 16
      %v5223 = vrot.slane %v5221, 5
      %v5224 = vor.u32 %v5220, %v5223
      %v5225 = vrot.slane %v5224, 4
      %v5227 = vshll.u32 %v5107, 16
      %v5229 = vrot.slane %v5227, 5
      %v5230 = vsel %vm1136, %v5225, %v5229
      %v5231 = vshrl.u32 %v5107, 16
      %v5233 = vrot.slane %v5231, 4
      %v5234 = vor.u32 %v5233, %v5229
      %v5235 = vrot.slane %v5234, 4
      %v5237 = vshll.u32 %v5108, 16
      %v5239 = vrot.slane %v5237, 5
      %v5240 = vsel %vm1136, %v5235, %v5239
      %v5242 = vshrl.u32 %v5109, 16
      %v5244 = vrot.slane %v5242, 4
      %v5245 = vshll.u32 %v5109, 16
      %v5247 = vrot.slane %v5245, 5
      %v5248 = vor.u32 %v5244, %v5247
      %v5249 = vrot.slane %v5248, 4
      %v5251 = vshll.u32 %v5110, 16
      %v5253 = vrot.slane %v5251, 5
      %v5254 = vsel %vm1136, %v5249, %v5253
      %v5255 = vshrl.u32 %v5110, 16
      %v5257 = vrot.slane %v5255, 4
      %v5258 = vor.u32 %v5257, %v5253
      %v5259 = vrot.slane %v5258, 4
      %v5261 = vshll.u32 %v5111, 16
      %v5263 = vrot.slane %v5261, 5
      %v5264 = vsel %vm1136, %v5259, %v5263
      %v5266 = vshrl.u32 %v5112, 16
      %v5268 = vrot.slane %v5266, 4
      %v5269 = vshll.u32 %v5112, 16
      %v5271 = vrot.slane %v5269, 5
      %v5272 = vor.u32 %v5268, %v5271
      %v5273 = vrot.slane %v5272, 4
      %v5275 = vshll.u32 %v5113, 16
      %v5277 = vrot.slane %v5275, 5
      %v5278 = vsel %vm1136, %v5273, %v5277
      %v5279 = vshrl.u32 %v5113, 16
      %v5281 = vrot.slane %v5279, 4
      %v5282 = vor.u32 %v5281, %v5277
      %v5283 = vrot.slane %v5282, 4
      %v5285 = vshll.u32 %v5114, 16
      %v5287 = vrot.slane %v5285, 5
      %v5288 = vsel %vm1136, %v5283, %v5287
      %v5290 = vshrl.u32 %v5115, 16
      %v5292 = vrot.slane %v5290, 4
      %v5293 = vshll.u32 %v5115, 16
      %v5295 = vrot.slane %v5293, 5
      %v5296 = vor.u32 %v5292, %v5295
      %v5297 = vrot.slane %v5296, 4
      %v5299 = vshll.u32 %v5116, 16
      %v5301 = vrot.slane %v5299, 5
      %v5302 = vsel %vm1136, %v5297, %v5301
      %v5303 = vshrl.u32 %v5116, 16
      %v5305 = vrot.slane %v5303, 4
      %v5306 = vor.u32 %v5305, %v5301
      %v5307 = vrot.slane %v5306, 4
      %v5309 = vshll.u32 %v5117, 16
      %v5311 = vrot.slane %v5309, 5
      %v5312 = vsel %vm1136, %v5307, %v5311
      %v5314 = vshrl.u32 %v5118, 16
      %v5316 = vrot.slane %v5314, 4
      %v5317 = vshll.u32 %v5118, 16
      %v5319 = vrot.slane %v5317, 5
      %v5320 = vor.u32 %v5316, %v5319
      %v5321 = vrot.slane %v5320, 4
      %v5323 = vshll.u32 %v5119, 16
      %v5325 = vrot.slane %v5323, 5
      %v5326 = vsel %vm1136, %v5321, %v5325
      %v5327 = vshrl.u32 %v5119, 16
      %v5329 = vrot.slane %v5327, 4
      %v5330 = vor.u32 %v5329, %v5325
      %v5331 = vrot.slane %v5330, 4
      %v5333 = vshll.u32 %v5120, 16
      %v5335 = vrot.slane %v5333, 5
      %v5336 = vsel %vm1136, %v5331, %v5335
      %v5338 = vshrl.u32 %v5121, 16
      %v5340 = vrot.slane %v5338, 4
      %v5341 = vshll.u32 %v5121, 16
      %v5343 = vrot.slane %v5341, 5
      %v5344 = vor.u32 %v5340, %v5343
      %v5345 = vrot.slane %v5344, 4
      %v5347 = vshll.u32 %v5122, 16
      %v5349 = vrot.slane %v5347, 5
      %v5350 = vsel %vm1136, %v5345, %v5349
      %v5351 = vshrl.u32 %v5122, 16
      %v5353 = vrot.slane %v5351, 4
      %v5354 = vor.u32 %v5353, %v5349
      %v5355 = vrot.slane %v5354, 4
      %v5357 = vshll.u32 %v5123, 16
      %v5359 = vrot.slane %v5357, 5
      %v5360 = vsel %vm1136, %v5355, %v5359
      %v5362 = vshrl.u32 %v5124, 16
      %v5364 = vrot.slane %v5362, 4
      %v5365 = vshll.u32 %v5124, 16
      %v5367 = vrot.slane %v5365, 5
      %v5368 = vor.u32 %v5364, %v5367
      %v5369 = vrot.slane %v5368, 4
      %v5371 = vshll.u32 %v5125, 16
      %v5373 = vrot.slane %v5371, 5
      %v5374 = vsel %vm1136, %v5369, %v5373
      %v5375 = vshrl.u32 %v5125, 16
      %v5377 = vrot.slane %v5375, 4
      %v5378 = vor.u32 %v5377, %v5373
      %v5379 = vrot.slane %v5378, 4
      %v5381 = vshll.u32 %v5126, 16
      %v5383 = vrot.slane %v5381, 5
      %v5384 = vsel %vm1136, %v5379, %v5383
      %v5386 = vshrl.u32 %v5127, 16
      %v5388 = vrot.slane %v5386, 4
      %v5389 = vshll.u32 %v5127, 16
      %v5391 = vrot.slane %v5389, 5
      %v5392 = vor.u32 %v5388, %v5391
      %v5393 = vrot.slane %v5392, 4
      %v5395 = vshll.u32 %v5128, 16
      %v5397 = vrot.slane %v5395, 5
      %v5398 = vsel %vm1136, %v5393, %v5397
      %v5399 = vshrl.u32 %v5128, 16
      %v5401 = vrot.slane %v5399, 4
      %v5402 = vor.u32 %v5401, %v5397
      %v5403 = vrot.slane %v5402, 4
      %v5405 = vshll.u32 %v5129, 16
      %v5407 = vrot.slane %v5405, 5
      %v5408 = vsel %vm1136, %v5403, %v5407
      %v5410 = vshrl.u32 %v5130, 16
      %v5412 = vrot.slane %v5410, 4
      %v5413 = vshll.u32 %v5130, 16
      %v5415 = vrot.slane %v5413, 5
      %v5416 = vor.u32 %v5412, %v5415
      %v5417 = vrot.slane %v5416, 4
      %v5419 = vshll.u32 %v5131, 16
      %v5421 = vrot.slane %v5419, 5
      %v5422 = vsel %vm1136, %v5417, %v5421
      %v5423 = vshrl.u32 %v5131, 16
      %v5425 = vrot.slane %v5423, 4
      %v5426 = vor.u32 %v5425, %v5421
      %v5427 = vrot.slane %v5426, 4
      %v5429 = vshll.u32 %v5132, 16
      %v5431 = vrot.slane %v5429, 5
      %v5432 = vsel %vm1136, %v5427, %v5431
      %v5434 = vshrl.u32 %v5133, 16
      %v5436 = vrot.slane %v5434, 4
      %v5437 = vshll.u32 %v5133, 16
      %v5439 = vrot.slane %v5437, 5
      %v5440 = vor.u32 %v5436, %v5439
      %v5441 = vrot.slane %v5440, 4
      %v5443 = vshll.u32 %v5134, 16
      %v5445 = vrot.slane %v5443, 5
      %v5446 = vsel %vm1136, %v5441, %v5445
      %v5447 = vshrl.u32 %v5134, 16
      %v5449 = vrot.slane %v5447, 4
      %v5450 = vor.u32 %v5449, %v5445
      %v5451 = vrot.slane %v5450, 4
      %v5453 = vshll.u32 %v5135, 16
      %v5455 = vrot.slane %v5453, 5
      %v5456 = vsel %vm1136, %v5451, %v5455
      %v5458 = vshrl.u32 %v5136, 16
      %v5460 = vrot.slane %v5458, 4
      %v5461 = vshll.u32 %v5136, 16
      %v5463 = vrot.slane %v5461, 5
      %v5464 = vor.u32 %v5460, %v5463
      %v5465 = vrot.slane %v5464, 4
      %v5467 = vshll.u32 %v5137, 16
      %v5469 = vrot.slane %v5467, 5
      %v5470 = vsel %vm1136, %v5465, %v5469
      %v5471 = vshrl.u32 %v5137, 16
      %v5473 = vrot.slane %v5471, 4
      %v5474 = vor.u32 %v5473, %v5469
      %v5475 = vrot.slane %v5474, 4
      %v5477 = vshll.u32 %v5138, 16
      %v5479 = vrot.slane %v5477, 5
      %v5480 = vsel %vm1136, %v5475, %v5479
      %v5482 = vshrl.u32 %v5139, 16
      %v5484 = vrot.slane %v5482, 4
      %v5485 = vshll.u32 %v5139, 16
      %v5487 = vrot.slane %v5485, 5
      %v5488 = vor.u32 %v5484, %v5487
      %v5489 = vrot.slane %v5488, 4
      %v5491 = vshll.u32 %v5140, 16
      %v5493 = vrot.slane %v5491, 5
      %v5494 = vsel %vm1136, %v5489, %v5493
      %v5495 = vshrl.u32 %v5140, 16
      %v5497 = vrot.slane %v5495, 4
      %v5498 = vor.u32 %v5497, %v5493
      %v5499 = vrot.slane %v5498, 4
      %v5501 = vshll.u32 %v5141, 16
      %v5503 = vrot.slane %v5501, 5
      %v5504 = vsel %vm1136, %v5499, %v5503
      %v5506 = vshrl.u32 %v5142, 16
      %v5508 = vrot.slane %v5506, 4
      %v5509 = vshll.u32 %v5142, 16
      %v5511 = vrot.slane %v5509, 5
      %v5512 = vor.u32 %v5508, %v5511
      %v5513 = vrot.slane %v5512, 4
      %v5515 = vshll.u32 %v5143, 16
      %v5517 = vrot.slane %v5515, 5
      %v5518 = vsel %vm1136, %v5513, %v5517
      %v5519 = vshrl.u32 %v5143, 16
      %v5521 = vrot.slane %v5519, 4
      %v5522 = vor.u32 %v5521, %v5517
      %v5523 = vrot.slane %v5522, 4
      %v5525 = vshll.u32 %v5144, 16
      %v5527 = vrot.slane %v5525, 5
      %v5528 = vsel %vm1136, %v5523, %v5527
      %v5529 = vunpack.c.l.b16 %v5158
      %v5530 = vunpack.c.l.b16 %v5168
      %v5531 = vunpack.c.l.b16 %v5182
      %v5532 = vunpack.c.l.b16 %v5192
      %v5533 = vunpack.c.l.b16 %v5206
      %v5534 = vunpack.c.l.b16 %v5216
      %v5535 = vunpack.c.l.b16 %v5230
      %v5536 = vunpack.c.l.b16 %v5240
      %v5537 = vunpack.c.l.b16 %v5254
      %v5538 = vunpack.c.l.b16 %v5264
      %v5539 = vunpack.c.l.b16 %v5278
      %v5540 = vunpack.c.l.b16 %v5288
      %v5541 = vunpack.c.l.b16 %v5302
      %v5542 = vunpack.c.l.b16 %v5312
      %v5543 = vunpack.c.l.b16 %v5326
      %v5544 = vunpack.c.l.b16 %v5336
      %v5545 = vunpack.c.l.b16 %v5350
      %v5546 = vunpack.c.l.b16 %v5360
      %v5547 = vunpack.c.l.b16 %v5374
      %v5548 = vunpack.c.l.b16 %v5384
      %v5549 = vunpack.c.l.b16 %v5398
      %v5550 = vunpack.c.l.b16 %v5408
      %v5551 = vunpack.c.l.b16 %v5422
      %v5552 = vunpack.c.l.b16 %v5432
      %v5553 = vunpack.c.l.b16 %v5446
      %v5554 = vunpack.c.l.b16 %v5456
      %v5555 = vunpack.c.l.b16 %v5470
      %v5556 = vunpack.c.l.b16 %v5480
      %v5557 = vunpack.c.l.b16 %v5494
      %v5558 = vunpack.c.l.b16 %v5504
      %v5559 = vunpack.c.l.b16 %v5518
      %v5560 = vunpack.c.l.b16 %v5528
      %v5561 = vpack.c.b16 %v5530, %v5529
      %v5562 = vpack.c.b16 %v5532, %v5531
      %v5563 = vpack.c.b16 %v5534, %v5533
      %v5564 = vpack.c.b16 %v5536, %v5535
      %v5565 = vpack.c.b16 %v5538, %v5537
      %v5566 = vpack.c.b16 %v5540, %v5539
      %v5567 = vpack.c.b16 %v5542, %v5541
      %v5568 = vpack.c.b16 %v5544, %v5543
      %v5569 = vpack.c.b16 %v5546, %v5545
      %v5570 = vpack.c.b16 %v5548, %v5547
      %v5571 = vpack.c.b16 %v5550, %v5549
      %v5572 = vpack.c.b16 %v5552, %v5551
      %v5573 = vpack.c.b16 %v5554, %v5553
      %v5574 = vpack.c.b16 %v5556, %v5555
      %v5575 = vpack.c.b16 %v5558, %v5557
      %v5576 = vpack.c.b16 %v5560, %v5559
      %5577 = vrot.lane.b32.xlu0 %v5561, 16
      %v5578 = vpop.permute.xlu0 %5577
      %5579 = vrot.lane.b32.xlu0 %v5562, 16
      %v5580 = vpop.permute.xlu0 %5579
      %5581 = vrot.lane.b32.xlu0 %v5563, 16
      %v5582 = vpop.permute.xlu0 %5581
      %5583 = vrot.lane.b32.xlu0 %v5564, 16
      %v5584 = vpop.permute.xlu0 %5583
      %5585 = vrot.lane.b32.xlu0 %v5565, 16
      %v5586 = vpop.permute.xlu0 %5585
      %5587 = vrot.lane.b32.xlu0 %v5566, 16
      %v5588 = vpop.permute.xlu0 %5587
      %5589 = vrot.lane.b32.xlu0 %v5567, 16
      %v5590 = vpop.permute.xlu0 %5589
      %5591 = vrot.lane.b32.xlu0 %v5568, 16
      %v5592 = vpop.permute.xlu0 %5591
      %5593 = vrot.lane.b32.xlu0 %v5569, 16
      %v5594 = vpop.permute.xlu0 %5593
      %5595 = vrot.lane.b32.xlu0 %v5570, 16
      %v5596 = vpop.permute.xlu0 %5595
      %5597 = vrot.lane.b32.xlu0 %v5571, 16
      %v5598 = vpop.permute.xlu0 %5597
      %5599 = vrot.lane.b32.xlu0 %v5572, 16
      %v5600 = vpop.permute.xlu0 %5599
      %5601 = vrot.lane.b32.xlu0 %v5573, 16
      %v5602 = vpop.permute.xlu0 %5601
      %5603 = vrot.lane.b32.xlu0 %v5574, 16
      %v5604 = vpop.permute.xlu0 %5603
      %5605 = vrot.lane.b32.xlu0 %v5575, 16
      %v5606 = vpop.permute.xlu0 %5605
      %5607 = vrot.lane.b32.xlu0 %v5576, 16
      %v5608 = vpop.permute.xlu0 %5607
      %vm5625 = vcmask 261248
      %5626 = vst.msk [vmem:[#allocation5] sm:$0xff] %vm5625, %v5578
      %5627 = vst.msk [vmem:[#allocation5 + $0x8] sm:$0xff] %vm5625, %v5580
      %5628 = vst.msk [vmem:[#allocation5 + $0x10] sm:$0xff] %vm5625, %v5582
      %5629 = vst.msk [vmem:[#allocation5 + $0x18] sm:$0xff] %vm5625, %v5584
      %5630 = vst.msk [vmem:[#allocation5 + $0x20] sm:$0xff] %vm5625, %v5586
      %5631 = vst.msk [vmem:[#allocation5 + $0x28] sm:$0xff] %vm5625, %v5588
      %5632 = vst.msk [vmem:[#allocation5 + $0x30] sm:$0xff] %vm5625, %v5590
      %5633 = vst.msk [vmem:[#allocation5 + $0x38] sm:$0xff] %vm5625, %v5592
      %5634 = vst.msk [vmem:[#allocation5 + $0x40] sm:$0xff] %vm5625, %v5594
      %5635 = vst.msk [vmem:[#allocation5 + $0x48] sm:$0xff] %vm5625, %v5596
      %5636 = vst.msk [vmem:[#allocation5 + $0x50] sm:$0xff] %vm5625, %v5598
      %5637 = vst.msk [vmem:[#allocation5 + $0x58] sm:$0xff] %vm5625, %v5600
      %5638 = vst.msk [vmem:[#allocation5 + $0x60] sm:$0xff] %vm5625, %v5602
      %5639 = vst.msk [vmem:[#allocation5 + $0x68] sm:$0xff] %vm5625, %v5604
      %5640 = vst.msk [vmem:[#allocation5 + $0x70] sm:$0xff] %vm5625, %v5606
      %5641 = vst.msk [vmem:[#allocation5 + $0x78] sm:$0xff] %vm5625, %v5608
      %v5642 = vld [vmem:[%s373] sm:$0xf]
      %v5643 = vld [vmem:[%s373 + $0x4] sm:$0xf]
      %v5644 = vld [vmem:[%s373 + $0xc] sm:$0xf]
      %v5645 = vld [vmem:[%s373 + $0x10] sm:$0xf]
      %v5646 = vld [vmem:[%s373 + $0x18] sm:$0xf]
      %v5647 = vld [vmem:[%s373 + $0x1c] sm:$0xf]
      %v5648 = vld [vmem:[%s373 + $0x24] sm:$0xf]
      %v5649 = vld [vmem:[%s373 + $0x28] sm:$0xf]
      %v5650 = vld [vmem:[%s373 + $0x30] sm:$0xf]
      %v5651 = vld [vmem:[%s373 + $0x34] sm:$0xf]
      %v5652 = vld [vmem:[%s373 + $0x3c] sm:$0xf]
      %v5653 = vld [vmem:[%s373 + $0x40] sm:$0xf]
      %v5654 = vld [vmem:[%s373 + $0x48] sm:$0xf]
      %v5655 = vld [vmem:[%s373 + $0x4c] sm:$0xf]
      %v5656 = vld [vmem:[%s373 + $0x54] sm:$0xf]
      %v5657 = vld [vmem:[%s373 + $0x58] sm:$0xf]
      %v5658 = vld [vmem:[%s373 + $0x60] sm:$0xf]
      %v5659 = vld [vmem:[%s373 + $0x64] sm:$0xf]
      %v5660 = vld [vmem:[%s373 + $0x6c] sm:$0xf]
      %v5661 = vld [vmem:[%s373 + $0x70] sm:$0xf]
      %v5662 = vld [vmem:[%s373 + $0x78] sm:$0xf]
      %v5663 = vld [vmem:[%s373 + $0x7c] sm:$0xf]
      %v5664 = vld [vmem:[%s373 + $0x84] sm:$0xf]
      %v5665 = vld [vmem:[%s373 + $0x88] sm:$0xf]
      %v5666 = vld [vmem:[%s373 + $0x90] sm:$0xf]
      %v5667 = vld [vmem:[%s373 + $0x94] sm:$0xf]
      %v5668 = vld [vmem:[%s373 + $0x9c] sm:$0xf]
      %v5669 = vld [vmem:[%s373 + $0xa0] sm:$0xf]
      %v5670 = vld [vmem:[%s373 + $0xa8] sm:$0xf]
      %v5671 = vld [vmem:[%s373 + $0xac] sm:$0xf]
      %v5672 = vld [vmem:[%s373 + $0xb4] sm:$0xf]
      %v5673 = vld [vmem:[%s373 + $0xb8] sm:$0xf]
      %v5706 = vunpack.c.l.b16 %v5642
      %v5707 = vunpack.c.l.b16 %v5643
      %v5708 = vunpack.c.l.b16 %v5644
      %v5709 = vunpack.c.l.b16 %v5645
      %v5710 = vunpack.c.l.b16 %v5646
      %v5711 = vunpack.c.l.b16 %v5647
      %v5712 = vunpack.c.l.b16 %v5648
      %v5713 = vunpack.c.l.b16 %v5649
      %v5714 = vunpack.c.l.b16 %v5650
      %v5715 = vunpack.c.l.b16 %v5651
      %v5716 = vunpack.c.l.b16 %v5652
      %v5717 = vunpack.c.l.b16 %v5653
      %v5718 = vunpack.c.l.b16 %v5654
      %v5719 = vunpack.c.l.b16 %v5655
      %v5720 = vunpack.c.l.b16 %v5656
      %v5721 = vunpack.c.l.b16 %v5657
      %v5722 = vunpack.c.l.b16 %v5658
      %v5723 = vunpack.c.l.b16 %v5659
      %v5724 = vunpack.c.l.b16 %v5660
      %v5725 = vunpack.c.l.b16 %v5661
      %v5726 = vunpack.c.l.b16 %v5662
      %v5727 = vunpack.c.l.b16 %v5663
      %v5728 = vunpack.c.l.b16 %v5664
      %v5729 = vunpack.c.l.b16 %v5665
      %v5730 = vunpack.c.l.b16 %v5666
      %v5731 = vunpack.c.l.b16 %v5667
      %v5732 = vunpack.c.l.b16 %v5668
      %v5733 = vunpack.c.l.b16 %v5669
      %v5734 = vunpack.c.l.b16 %v5670
      %v5735 = vunpack.c.l.b16 %v5671
      %v5736 = vunpack.c.l.b16 %v5672
      %v5737 = vunpack.c.l.b16 %v5673
      %v5738 = vpack.c.b16 %v5707, %v5706
      %v5739 = vpack.c.b16 %v5709, %v5708
      %v5740 = vpack.c.b16 %v5711, %v5710
      %v5741 = vpack.c.b16 %v5713, %v5712
      %v5742 = vpack.c.b16 %v5715, %v5714
      %v5743 = vpack.c.b16 %v5717, %v5716
      %v5744 = vpack.c.b16 %v5719, %v5718
      %v5745 = vpack.c.b16 %v5721, %v5720
      %v5746 = vpack.c.b16 %v5723, %v5722
      %v5747 = vpack.c.b16 %v5725, %v5724
      %v5748 = vpack.c.b16 %v5727, %v5726
      %v5749 = vpack.c.b16 %v5729, %v5728
      %v5750 = vpack.c.b16 %v5731, %v5730
      %v5751 = vpack.c.b16 %v5733, %v5732
      %v5752 = vpack.c.b16 %v5735, %v5734
      %v5753 = vpack.c.b16 %v5737, %v5736
      %5754 = vrot.lane.b32.xlu0 %v5738, 32
      %v5755 = vpop.permute.xlu0 %5754
      %5756 = vrot.lane.b32.xlu0 %v5739, 32
      %v5757 = vpop.permute.xlu0 %5756
      %5758 = vrot.lane.b32.xlu0 %v5740, 32
      %v5759 = vpop.permute.xlu0 %5758
      %5760 = vrot.lane.b32.xlu0 %v5741, 32
      %v5761 = vpop.permute.xlu0 %5760
      %5762 = vrot.lane.b32.xlu0 %v5742, 32
      %v5763 = vpop.permute.xlu0 %5762
      %5764 = vrot.lane.b32.xlu0 %v5743, 32
      %v5765 = vpop.permute.xlu0 %5764
      %5766 = vrot.lane.b32.xlu0 %v5744, 32
      %v5767 = vpop.permute.xlu0 %5766
      %5768 = vrot.lane.b32.xlu0 %v5745, 32
      %v5769 = vpop.permute.xlu0 %5768
      %5770 = vrot.lane.b32.xlu0 %v5746, 32
      %v5771 = vpop.permute.xlu0 %5770
      %5772 = vrot.lane.b32.xlu0 %v5747, 32
      %v5773 = vpop.permute.xlu0 %5772
      %5774 = vrot.lane.b32.xlu0 %v5748, 32
      %v5775 = vpop.permute.xlu0 %5774
      %5776 = vrot.lane.b32.xlu0 %v5749, 32
      %v5777 = vpop.permute.xlu0 %5776
      %5778 = vrot.lane.b32.xlu0 %v5750, 32
      %v5779 = vpop.permute.xlu0 %5778
      %5780 = vrot.lane.b32.xlu0 %v5751, 32
      %v5781 = vpop.permute.xlu0 %5780
      %5782 = vrot.lane.b32.xlu0 %v5752, 32
      %v5783 = vpop.permute.xlu0 %5782
      %5784 = vrot.lane.b32.xlu0 %v5753, 32
      %v5785 = vpop.permute.xlu0 %5784
      %vm5802 = vcmask 392448
      %5803 = vst.msk [vmem:[#allocation5] sm:$0xff] %vm5802, %v5755
      %5804 = vst.msk [vmem:[#allocation5 + $0x8] sm:$0xff] %vm5802, %v5757
      %5805 = vst.msk [vmem:[#allocation5 + $0x10] sm:$0xff] %vm5802, %v5759
      %5806 = vst.msk [vmem:[#allocation5 + $0x18] sm:$0xff] %vm5802, %v5761
      %5807 = vst.msk [vmem:[#allocation5 + $0x20] sm:$0xff] %vm5802, %v5763
      %5808 = vst.msk [vmem:[#allocation5 + $0x28] sm:$0xff] %vm5802, %v5765
      %5809 = vst.msk [vmem:[#allocation5 + $0x30] sm:$0xff] %vm5802, %v5767
      %5810 = vst.msk [vmem:[#allocation5 + $0x38] sm:$0xff] %vm5802, %v5769
      %5811 = vst.msk [vmem:[#allocation5 + $0x40] sm:$0xff] %vm5802, %v5771
      %5812 = vst.msk [vmem:[#allocation5 + $0x48] sm:$0xff] %vm5802, %v5773
      %5813 = vst.msk [vmem:[#allocation5 + $0x50] sm:$0xff] %vm5802, %v5775
      %5814 = vst.msk [vmem:[#allocation5 + $0x58] sm:$0xff] %vm5802, %v5777
      %5815 = vst.msk [vmem:[#allocation5 + $0x60] sm:$0xff] %vm5802, %v5779
      %5816 = vst.msk [vmem:[#allocation5 + $0x68] sm:$0xff] %vm5802, %v5781
      %5817 = vst.msk [vmem:[#allocation5 + $0x70] sm:$0xff] %vm5802, %v5783
      %5818 = vst.msk [vmem:[#allocation5 + $0x78] sm:$0xff] %vm5802, %v5785
      %v5819 = vld [vmem:[%s373] sm:$0xf]
      %v5820 = vld [vmem:[%s373 + $0x4] sm:$0xf]
      %v5821 = vld [vmem:[%s373 + $0x8] sm:$0x1]
      %v5822 = vld [vmem:[%s373 + $0xc] sm:$0xf]
      %v5823 = vld [vmem:[%s373 + $0x10] sm:$0xf]
      %v5824 = vld [vmem:[%s373 + $0x14] sm:$0x1]
      %v5825 = vld [vmem:[%s373 + $0x18] sm:$0xf]
      %v5826 = vld [vmem:[%s373 + $0x1c] sm:$0xf]
      %v5827 = vld [vmem:[%s373 + $0x20] sm:$0x1]
      %v5828 = vld [vmem:[%s373 + $0x24] sm:$0xf]
      %v5829 = vld [vmem:[%s373 + $0x28] sm:$0xf]
      %v5830 = vld [vmem:[%s373 + $0x2c] sm:$0x1]
      %v5831 = vld [vmem:[%s373 + $0x30] sm:$0xf]
      %v5832 = vld [vmem:[%s373 + $0x34] sm:$0xf]
      %v5833 = vld [vmem:[%s373 + $0x38] sm:$0x1]
      %v5834 = vld [vmem:[%s373 + $0x3c] sm:$0xf]
      %v5835 = vld [vmem:[%s373 + $0x40] sm:$0xf]
      %v5836 = vld [vmem:[%s373 + $0x44] sm:$0x1]
      %v5837 = vld [vmem:[%s373 + $0x48] sm:$0xf]
      %v5838 = vld [vmem:[%s373 + $0x4c] sm:$0xf]
      %v5839 = vld [vmem:[%s373 + $0x50] sm:$0x1]
      %v5840 = vld [vmem:[%s373 + $0x54] sm:$0xf]
      %v5841 = vld [vmem:[%s373 + $0x58] sm:$0xf]
      %v5842 = vld [vmem:[%s373 + $0x5c] sm:$0x1]
      %v5843 = vld [vmem:[%s373 + $0x60] sm:$0xf]
      %v5844 = vld [vmem:[%s373 + $0x64] sm:$0xf]
      %v5845 = vld [vmem:[%s373 + $0x68] sm:$0x1]
      %v5846 = vld [vmem:[%s373 + $0x6c] sm:$0xf]
      %v5847 = vld [vmem:[%s373 + $0x70] sm:$0xf]
      %v5848 = vld [vmem:[%s373 + $0x74] sm:$0x1]
      %v5849 = vld [vmem:[%s373 + $0x78] sm:$0xf]
      %v5850 = vld [vmem:[%s373 + $0x7c] sm:$0xf]
      %v5851 = vld [vmem:[%s373 + $0x80] sm:$0x1]
      %v5852 = vld [vmem:[%s373 + $0x84] sm:$0xf]
      %v5853 = vld [vmem:[%s373 + $0x88] sm:$0xf]
      %v5854 = vld [vmem:[%s373 + $0x8c] sm:$0x1]
      %v5855 = vld [vmem:[%s373 + $0x90] sm:$0xf]
      %v5856 = vld [vmem:[%s373 + $0x94] sm:$0xf]
      %v5857 = vld [vmem:[%s373 + $0x98] sm:$0x1]
      %v5858 = vld [vmem:[%s373 + $0x9c] sm:$0xf]
      %v5859 = vld [vmem:[%s373 + $0xa0] sm:$0xf]
      %v5860 = vld [vmem:[%s373 + $0xa4] sm:$0x1]
      %v5861 = vld [vmem:[%s373 + $0xa8] sm:$0xf]
      %v5862 = vld [vmem:[%s373 + $0xac] sm:$0xf]
      %v5863 = vld [vmem:[%s373 + $0xb0] sm:$0x1]
      %v5864 = vld [vmem:[%s373 + $0xb4] sm:$0xf]
      %v5865 = vld [vmem:[%s373 + $0xb8] sm:$0xf]
      %v5866 = vld [vmem:[%s373 + $0xbc] sm:$0x1]
      %v5868 = vshrl.u32 %v5819, 16
      %v5870 = vrot.slane %v5868, 4
      %v5871 = vshll.u32 %v5819, 16
      %v5873 = vrot.slane %v5871, 5
      %v5874 = vor.u32 %v5870, %v5873
      %v5875 = vrot.slane %v5874, 4
      %v5877 = vshll.u32 %v5820, 16
      %v5879 = vrot.slane %v5877, 5
      %v5880 = vsel %vm1136, %v5875, %v5879
      %v5881 = vshrl.u32 %v5820, 16
      %v5883 = vrot.slane %v5881, 4
      %v5884 = vor.u32 %v5883, %v5879
      %v5885 = vrot.slane %v5884, 4
      %v5887 = vshll.u32 %v5821, 16
      %v5889 = vrot.slane %v5887, 5
      %v5890 = vsel %vm1136, %v5885, %v5889
      %v5892 = vshrl.u32 %v5822, 16
      %v5894 = vrot.slane %v5892, 4
      %v5895 = vshll.u32 %v5822, 16
      %v5897 = vrot.slane %v5895, 5
      %v5898 = vor.u32 %v5894, %v5897
      %v5899 = vrot.slane %v5898, 4
      %v5901 = vshll.u32 %v5823, 16
      %v5903 = vrot.slane %v5901, 5
      %v5904 = vsel %vm1136, %v5899, %v5903
      %v5905 = vshrl.u32 %v5823, 16
      %v5907 = vrot.slane %v5905, 4
      %v5908 = vor.u32 %v5907, %v5903
      %v5909 = vrot.slane %v5908, 4
      %v5911 = vshll.u32 %v5824, 16
      %v5913 = vrot.slane %v5911, 5
      %v5914 = vsel %vm1136, %v5909, %v5913
      %v5916 = vshrl.u32 %v5825, 16
      %v5918 = vrot.slane %v5916, 4
      %v5919 = vshll.u32 %v5825, 16
      %v5921 = vrot.slane %v5919, 5
      %v5922 = vor.u32 %v5918, %v5921
      %v5923 = vrot.slane %v5922, 4
      %v5925 = vshll.u32 %v5826, 16
      %v5927 = vrot.slane %v5925, 5
      %v5928 = vsel %vm1136, %v5923, %v5927
      %v5929 = vshrl.u32 %v5826, 16
      %v5931 = vrot.slane %v5929, 4
      %v5932 = vor.u32 %v5931, %v5927
      %v5933 = vrot.slane %v5932, 4
      %v5935 = vshll.u32 %v5827, 16
      %v5937 = vrot.slane %v5935, 5
      %v5938 = vsel %vm1136, %v5933, %v5937
      %v5940 = vshrl.u32 %v5828, 16
      %v5942 = vrot.slane %v5940, 4
      %v5943 = vshll.u32 %v5828, 16
      %v5945 = vrot.slane %v5943, 5
      %v5946 = vor.u32 %v5942, %v5945
      %v5947 = vrot.slane %v5946, 4
      %v5949 = vshll.u32 %v5829, 16
      %v5951 = vrot.slane %v5949, 5
      %v5952 = vsel %vm1136, %v5947, %v5951
      %v5953 = vshrl.u32 %v5829, 16
      %v5955 = vrot.slane %v5953, 4
      %v5956 = vor.u32 %v5955, %v5951
      %v5957 = vrot.slane %v5956, 4
      %v5959 = vshll.u32 %v5830, 16
      %v5961 = vrot.slane %v5959, 5
      %v5962 = vsel %vm1136, %v5957, %v5961
      %v5964 = vshrl.u32 %v5831, 16
      %v5966 = vrot.slane %v5964, 4
      %v5967 = vshll.u32 %v5831, 16
      %v5969 = vrot.slane %v5967, 5
      %v5970 = vor.u32 %v5966, %v5969
      %v5971 = vrot.slane %v5970, 4
      %v5973 = vshll.u32 %v5832, 16
      %v5975 = vrot.slane %v5973, 5
      %v5976 = vsel %vm1136, %v5971, %v5975
      %v5977 = vshrl.u32 %v5832, 16
      %v5979 = vrot.slane %v5977, 4
      %v5980 = vor.u32 %v5979, %v5975
      %v5981 = vrot.slane %v5980, 4
      %v5983 = vshll.u32 %v5833, 16
      %v5985 = vrot.slane %v5983, 5
      %v5986 = vsel %vm1136, %v5981, %v5985
      %v5988 = vshrl.u32 %v5834, 16
      %v5990 = vrot.slane %v5988, 4
      %v5991 = vshll.u32 %v5834, 16
      %v5993 = vrot.slane %v5991, 5
      %v5994 = vor.u32 %v5990, %v5993
      %v5995 = vrot.slane %v5994, 4
      %v5997 = vshll.u32 %v5835, 16
      %v5999 = vrot.slane %v5997, 5
      %v6000 = vsel %vm1136, %v5995, %v5999
      %v6001 = vshrl.u32 %v5835, 16
      %v6003 = vrot.slane %v6001, 4
      %v6004 = vor.u32 %v6003, %v5999
      %v6005 = vrot.slane %v6004, 4
      %v6007 = vshll.u32 %v5836, 16
      %v6009 = vrot.slane %v6007, 5
      %v6010 = vsel %vm1136, %v6005, %v6009
      %v6012 = vshrl.u32 %v5837, 16
      %v6014 = vrot.slane %v6012, 4
      %v6015 = vshll.u32 %v5837, 16
      %v6017 = vrot.slane %v6015, 5
      %v6018 = vor.u32 %v6014, %v6017
      %v6019 = vrot.slane %v6018, 4
      %v6021 = vshll.u32 %v5838, 16
      %v6023 = vrot.slane %v6021, 5
      %v6024 = vsel %vm1136, %v6019, %v6023
      %v6025 = vshrl.u32 %v5838, 16
      %v6027 = vrot.slane %v6025, 4
      %v6028 = vor.u32 %v6027, %v6023
      %v6029 = vrot.slane %v6028, 4
      %v6031 = vshll.u32 %v5839, 16
      %v6033 = vrot.slane %v6031, 5
      %v6034 = vsel %vm1136, %v6029, %v6033
      %v6036 = vshrl.u32 %v5840, 16
      %v6038 = vrot.slane %v6036, 4
      %v6039 = vshll.u32 %v5840, 16
      %v6041 = vrot.slane %v6039, 5
      %v6042 = vor.u32 %v6038, %v6041
      %v6043 = vrot.slane %v6042, 4
      %v6045 = vshll.u32 %v5841, 16
      %v6047 = vrot.slane %v6045, 5
      %v6048 = vsel %vm1136, %v6043, %v6047
      %v6049 = vshrl.u32 %v5841, 16
      %v6051 = vrot.slane %v6049, 4
      %v6052 = vor.u32 %v6051, %v6047
      %v6053 = vrot.slane %v6052, 4
      %v6055 = vshll.u32 %v5842, 16
      %v6057 = vrot.slane %v6055, 5
      %v6058 = vsel %vm1136, %v6053, %v6057
      %v6060 = vshrl.u32 %v5843, 16
      %v6062 = vrot.slane %v6060, 4
      %v6063 = vshll.u32 %v5843, 16
      %v6065 = vrot.slane %v6063, 5
      %v6066 = vor.u32 %v6062, %v6065
      %v6067 = vrot.slane %v6066, 4
      %v6069 = vshll.u32 %v5844, 16
      %v6071 = vrot.slane %v6069, 5
      %v6072 = vsel %vm1136, %v6067, %v6071
      %v6073 = vshrl.u32 %v5844, 16
      %v6075 = vrot.slane %v6073, 4
      %v6076 = vor.u32 %v6075, %v6071
      %v6077 = vrot.slane %v6076, 4
      %v6079 = vshll.u32 %v5845, 16
      %v6081 = vrot.slane %v6079, 5
      %v6082 = vsel %vm1136, %v6077, %v6081
      %v6084 = vshrl.u32 %v5846, 16
      %v6086 = vrot.slane %v6084, 4
      %v6087 = vshll.u32 %v5846, 16
      %v6089 = vrot.slane %v6087, 5
      %v6090 = vor.u32 %v6086, %v6089
      %v6091 = vrot.slane %v6090, 4
      %v6093 = vshll.u32 %v5847, 16
      %v6095 = vrot.slane %v6093, 5
      %v6096 = vsel %vm1136, %v6091, %v6095
      %v6097 = vshrl.u32 %v5847, 16
      %v6099 = vrot.slane %v6097, 4
      %v6100 = vor.u32 %v6099, %v6095
      %v6101 = vrot.slane %v6100, 4
      %v6103 = vshll.u32 %v5848, 16
      %v6105 = vrot.slane %v6103, 5
      %v6106 = vsel %vm1136, %v6101, %v6105
      %v6108 = vshrl.u32 %v5849, 16
      %v6110 = vrot.slane %v6108, 4
      %v6111 = vshll.u32 %v5849, 16
      %v6113 = vrot.slane %v6111, 5
      %v6114 = vor.u32 %v6110, %v6113
      %v6115 = vrot.slane %v6114, 4
      %v6117 = vshll.u32 %v5850, 16
      %v6119 = vrot.slane %v6117, 5
      %v6120 = vsel %vm1136, %v6115, %v6119
      %v6121 = vshrl.u32 %v5850, 16
      %v6123 = vrot.slane %v6121, 4
      %v6124 = vor.u32 %v6123, %v6119
      %v6125 = vrot.slane %v6124, 4
      %v6127 = vshll.u32 %v5851, 16
      %v6129 = vrot.slane %v6127, 5
      %v6130 = vsel %vm1136, %v6125, %v6129
      %v6132 = vshrl.u32 %v5852, 16
      %v6134 = vrot.slane %v6132, 4
      %v6135 = vshll.u32 %v5852, 16
      %v6137 = vrot.slane %v6135, 5
      %v6138 = vor.u32 %v6134, %v6137
      %v6139 = vrot.slane %v6138, 4
      %v6141 = vshll.u32 %v5853, 16
      %v6143 = vrot.slane %v6141, 5
      %v6144 = vsel %vm1136, %v6139, %v6143
      %v6145 = vshrl.u32 %v5853, 16
      %v6147 = vrot.slane %v6145, 4
      %v6148 = vor.u32 %v6147, %v6143
      %v6149 = vrot.slane %v6148, 4
      %v6151 = vshll.u32 %v5854, 16
      %v6153 = vrot.slane %v6151, 5
      %v6154 = vsel %vm1136, %v6149, %v6153
      %v6156 = vshrl.u32 %v5855, 16
      %v6158 = vrot.slane %v6156, 4
      %v6159 = vshll.u32 %v5855, 16
      %v6161 = vrot.slane %v6159, 5
      %v6162 = vor.u32 %v6158, %v6161
      %v6163 = vrot.slane %v6162, 4
      %v6165 = vshll.u32 %v5856, 16
      %v6167 = vrot.slane %v6165, 5
      %v6168 = vsel %vm1136, %v6163, %v6167
      %v6169 = vshrl.u32 %v5856, 16
      %v6171 = vrot.slane %v6169, 4
      %v6172 = vor.u32 %v6171, %v6167
      %v6173 = vrot.slane %v6172, 4
      %v6175 = vshll.u32 %v5857, 16
      %v6177 = vrot.slane %v6175, 5
      %v6178 = vsel %vm1136, %v6173, %v6177
      %v6180 = vshrl.u32 %v5858, 16
      %v6182 = vrot.slane %v6180, 4
      %v6183 = vshll.u32 %v5858, 16
      %v6185 = vrot.slane %v6183, 5
      %v6186 = vor.u32 %v6182, %v6185
      %v6187 = vrot.slane %v6186, 4
      %v6189 = vshll.u32 %v5859, 16
      %v6191 = vrot.slane %v6189, 5
      %v6192 = vsel %vm1136, %v6187, %v6191
      %v6193 = vshrl.u32 %v5859, 16
      %v6195 = vrot.slane %v6193, 4
      %v6196 = vor.u32 %v6195, %v6191
      %v6197 = vrot.slane %v6196, 4
      %v6199 = vshll.u32 %v5860, 16
      %v6201 = vrot.slane %v6199, 5
      %v6202 = vsel %vm1136, %v6197, %v6201
      %v6204 = vshrl.u32 %v5861, 16
      %v6206 = vrot.slane %v6204, 4
      %v6207 = vshll.u32 %v5861, 16
      %v6209 = vrot.slane %v6207, 5
      %v6210 = vor.u32 %v6206, %v6209
      %v6211 = vrot.slane %v6210, 4
      %v6213 = vshll.u32 %v5862, 16
      %v6215 = vrot.slane %v6213, 5
      %v6216 = vsel %vm1136, %v6211, %v6215
      %v6217 = vshrl.u32 %v5862, 16
      %v6219 = vrot.slane %v6217, 4
      %v6220 = vor.u32 %v6219, %v6215
      %v6221 = vrot.slane %v6220, 4
      %v6223 = vshll.u32 %v5863, 16
      %v6225 = vrot.slane %v6223, 5
      %v6226 = vsel %vm1136, %v6221, %v6225
      %v6228 = vshrl.u32 %v5864, 16
      %v6230 = vrot.slane %v6228, 4
      %v6231 = vshll.u32 %v5864, 16
      %v6233 = vrot.slane %v6231, 5
      %v6234 = vor.u32 %v6230, %v6233
      %v6235 = vrot.slane %v6234, 4
      %v6237 = vshll.u32 %v5865, 16
      %v6239 = vrot.slane %v6237, 5
      %v6240 = vsel %vm1136, %v6235, %v6239
      %v6241 = vshrl.u32 %v5865, 16
      %v6243 = vrot.slane %v6241, 4
      %v6244 = vor.u32 %v6243, %v6239
      %v6245 = vrot.slane %v6244, 4
      %v6247 = vshll.u32 %v5866, 16
      %v6249 = vrot.slane %v6247, 5
      %v6250 = vsel %vm1136, %v6245, %v6249
      %v6251 = vunpack.c.l.b16 %v5880
      %v6252 = vunpack.c.l.b16 %v5890
      %v6253 = vunpack.c.l.b16 %v5904
      %v6254 = vunpack.c.l.b16 %v5914
      %v6255 = vunpack.c.l.b16 %v5928
      %v6256 = vunpack.c.l.b16 %v5938
      %v6257 = vunpack.c.l.b16 %v5952
      %v6258 = vunpack.c.l.b16 %v5962
      %v6259 = vunpack.c.l.b16 %v5976
      %v6260 = vunpack.c.l.b16 %v5986
      %v6261 = vunpack.c.l.b16 %v6000
      %v6262 = vunpack.c.l.b16 %v6010
      %v6263 = vunpack.c.l.b16 %v6024
      %v6264 = vunpack.c.l.b16 %v6034
      %v6265 = vunpack.c.l.b16 %v6048
      %v6266 = vunpack.c.l.b16 %v6058
      %v6267 = vunpack.c.l.b16 %v6072
      %v6268 = vunpack.c.l.b16 %v6082
      %v6269 = vunpack.c.l.b16 %v6096
      %v6270 = vunpack.c.l.b16 %v6106
      %v6271 = vunpack.c.l.b16 %v6120
      %v6272 = vunpack.c.l.b16 %v6130
      %v6273 = vunpack.c.l.b16 %v6144
      %v6274 = vunpack.c.l.b16 %v6154
      %v6275 = vunpack.c.l.b16 %v6168
      %v6276 = vunpack.c.l.b16 %v6178
      %v6277 = vunpack.c.l.b16 %v6192
      %v6278 = vunpack.c.l.b16 %v6202
      %v6279 = vunpack.c.l.b16 %v6216
      %v6280 = vunpack.c.l.b16 %v6226
      %v6281 = vunpack.c.l.b16 %v6240
      %v6282 = vunpack.c.l.b16 %v6250
      %v6283 = vpack.c.b16 %v6252, %v6251
      %v6284 = vpack.c.b16 %v6254, %v6253
      %v6285 = vpack.c.b16 %v6256, %v6255
      %v6286 = vpack.c.b16 %v6258, %v6257
      %v6287 = vpack.c.b16 %v6260, %v6259
      %v6288 = vpack.c.b16 %v6262, %v6261
      %v6289 = vpack.c.b16 %v6264, %v6263
      %v6290 = vpack.c.b16 %v6266, %v6265
      %v6291 = vpack.c.b16 %v6268, %v6267
      %v6292 = vpack.c.b16 %v6270, %v6269
      %v6293 = vpack.c.b16 %v6272, %v6271
      %v6294 = vpack.c.b16 %v6274, %v6273
      %v6295 = vpack.c.b16 %v6276, %v6275
      %v6296 = vpack.c.b16 %v6278, %v6277
      %v6297 = vpack.c.b16 %v6280, %v6279
      %v6298 = vpack.c.b16 %v6282, %v6281
      %6299 = vrot.lane.b32.xlu0 %v6283, 48
      %v6300 = vpop.permute.xlu0 %6299
      %6301 = vrot.lane.b32.xlu0 %v6284, 48
      %v6302 = vpop.permute.xlu0 %6301
      %6303 = vrot.lane.b32.xlu0 %v6285, 48
      %v6304 = vpop.permute.xlu0 %6303
      %6305 = vrot.lane.b32.xlu0 %v6286, 48
      %v6306 = vpop.permute.xlu0 %6305
      %6307 = vrot.lane.b32.xlu0 %v6287, 48
      %v6308 = vpop.permute.xlu0 %6307
      %6309 = vrot.lane.b32.xlu0 %v6288, 48
      %v6310 = vpop.permute.xlu0 %6309
      %6311 = vrot.lane.b32.xlu0 %v6289, 48
      %v6312 = vpop.permute.xlu0 %6311
      %6313 = vrot.lane.b32.xlu0 %v6290, 48
      %v6314 = vpop.permute.xlu0 %6313
      %6315 = vrot.lane.b32.xlu0 %v6291, 48
      %v6316 = vpop.permute.xlu0 %6315
      %6317 = vrot.lane.b32.xlu0 %v6292, 48
      %v6318 = vpop.permute.xlu0 %6317
      %6319 = vrot.lane.b32.xlu0 %v6293, 48
      %v6320 = vpop.permute.xlu0 %6319
      %6321 = vrot.lane.b32.xlu0 %v6294, 48
      %v6322 = vpop.permute.xlu0 %6321
      %6323 = vrot.lane.b32.xlu0 %v6295, 48
      %v6324 = vpop.permute.xlu0 %6323
      %6325 = vrot.lane.b32.xlu0 %v6296, 48
      %v6326 = vpop.permute.xlu0 %6325
      %6327 = vrot.lane.b32.xlu0 %v6297, 48
      %v6328 = vpop.permute.xlu0 %6327
      %6329 = vrot.lane.b32.xlu0 %v6298, 48
      %v6330 = vpop.permute.xlu0 %6329
      %vm6347 = vcmask 523648
      %6348 = vst.msk [vmem:[#allocation5] sm:$0xff] %vm6347, %v6300
      %6349 = vst.msk [vmem:[#allocation5 + $0x8] sm:$0xff] %vm6347, %v6302
      %6350 = vst.msk [vmem:[#allocation5 + $0x10] sm:$0xff] %vm6347, %v6304
      %6351 = vst.msk [vmem:[#allocation5 + $0x18] sm:$0xff] %vm6347, %v6306
      %6352 = vst.msk [vmem:[#allocation5 + $0x20] sm:$0xff] %vm6347, %v6308
      %6353 = vst.msk [vmem:[#allocation5 + $0x28] sm:$0xff] %vm6347, %v6310
      %6354 = vst.msk [vmem:[#allocation5 + $0x30] sm:$0xff] %vm6347, %v6312
      %6355 = vst.msk [vmem:[#allocation5 + $0x38] sm:$0xff] %vm6347, %v6314
      %6356 = vst.msk [vmem:[#allocation5 + $0x40] sm:$0xff] %vm6347, %v6316
      %6357 = vst.msk [vmem:[#allocation5 + $0x48] sm:$0xff] %vm6347, %v6318
      %6358 = vst.msk [vmem:[#allocation5 + $0x50] sm:$0xff] %vm6347, %v6320
      %6359 = vst.msk [vmem:[#allocation5 + $0x58] sm:$0xff] %vm6347, %v6322
      %6360 = vst.msk [vmem:[#allocation5 + $0x60] sm:$0xff] %vm6347, %v6324
      %6361 = vst.msk [vmem:[#allocation5 + $0x68] sm:$0xff] %vm6347, %v6326
      %6362 = vst.msk [vmem:[#allocation5 + $0x70] sm:$0xff] %vm6347, %v6328
      %6363 = vst.msk [vmem:[#allocation5 + $0x78] sm:$0xff] %vm6347, %v6330
      %v6364 = vld [vmem:[#allocation5] sm:$0xff]
      %v6365 = vld [vmem:[#allocation5 + $0x8] sm:$0xff]
      %v6366 = vld [vmem:[#allocation5 + $0x10] sm:$0xff]
      %v6367 = vld [vmem:[#allocation5 + $0x18] sm:$0xff]
      %v6368 = vld [vmem:[#allocation5 + $0x20] sm:$0xff]
      %v6369 = vld [vmem:[#allocation5 + $0x28] sm:$0xff]
      %v6370 = vld [vmem:[#allocation5 + $0x30] sm:$0xff]
      %v6371 = vld [vmem:[#allocation5 + $0x38] sm:$0xff]
      %v6372 = vld [vmem:[#allocation5 + $0x40] sm:$0xff]
      %v6373 = vld [vmem:[#allocation5 + $0x48] sm:$0xff]
      %v6374 = vld [vmem:[#allocation5 + $0x50] sm:$0xff]
      %v6375 = vld [vmem:[#allocation5 + $0x58] sm:$0xff]
      %v6376 = vld [vmem:[#allocation5 + $0x60] sm:$0xff]
      %v6377 = vld [vmem:[#allocation5 + $0x68] sm:$0xff]
      %v6378 = vld [vmem:[#allocation5 + $0x70] sm:$0xff]
      %v6379 = vld [vmem:[#allocation5 + $0x78] sm:$0xff]
      %v6380 = vld [vmem:[%s4] sm:$0xf]
      %v6381 = vld [vmem:[%s4 + $0x4] sm:$0xf]
      %v6382 = vld [vmem:[%s4 + $0x8] sm:$0xf]
      %v6383 = vld [vmem:[%s4 + $0xc] sm:$0xf]
      %v6384 = vld [vmem:[%s4 + $0x10] sm:$0xf]
      %v6385 = vld [vmem:[%s4 + $0x14] sm:$0xf]
      %v6386 = vld [vmem:[%s4 + $0x18] sm:$0xf]
      %v6387 = vld [vmem:[%s4 + $0x1c] sm:$0xf]
      %v6389 = vlaneseq
      %v6390 = vshrl.u32 %v6389, 7
      %v6391 = vsub.s32 0, %v6390
      %v6392 = vrot.slane %v4951, %v6391
      %v6402 = vunpack.c.l.b16 %v6380
      %v6403 = vunpack.c.l.b16 %v6381
      %v6404 = vunpack.c.l.b16 %v6382
      %v6405 = vunpack.c.l.b16 %v6383
      %v6406 = vunpack.c.l.b16 %v6384
      %v6407 = vunpack.c.l.b16 %v6385
      %v6408 = vunpack.c.l.b16 %v6386
      %v6409 = vunpack.c.l.b16 %v6387
      %v6410 = vpack.c.b16 %v6403, %v6402
      %v6411 = vpack.c.b16 %v6405, %v6404
      %v6412 = vpack.c.b16 %v6407, %v6406
      %v6413 = vpack.c.b16 %v6409, %v6408
      %vm6418 = vcmask 523264
      %v6420 = vsel %vm6418, %v6364, 0
      %v6423 = vsel %vm6418, %v6365, 0
      %v6426 = vsel %vm6418, %v6366, 0
      %v6429 = vsel %vm6418, %v6367, 0
      %v6432 = vsel %vm6418, %v6368, 0
      %v6435 = vsel %vm6418, %v6369, 0
      %v6438 = vsel %vm6418, %v6370, 0
      %v6441 = vsel %vm6418, %v6371, 0
      %v6444 = vsel %vm6418, %v6372, 0
      %v6447 = vsel %vm6418, %v6373, 0
      %v6450 = vsel %vm6418, %v6374, 0
      %v6453 = vsel %vm6418, %v6375, 0
      %v6456 = vsel %vm6418, %v6376, 0
      %v6459 = vsel %vm6418, %v6377, 0
      %v6462 = vsel %vm6418, %v6378, 0
      %v6465 = vsel %vm6418, %v6379, 0
      %6467 = vmatprep.subr.bf16.mxu0 0
      %6468 = vmatpush1.bf16.msra.mxu0 %v6410
      %6469 = vmatprep.subr.bf16.mxu0 0
      %6470 = vmatpush1.bf16.msra.mxu0 %v6411
      %6471 = vmatprep.subr.bf16.mxu0 0
      %6472 = vmatpush1.bf16.msra.mxu0 %v6412
      %6473 = vmatprep.subr.bf16.mxu0 0
      %6474 = vmatpush1.bf16.msra.mxu0 %v6413
      %6475 = vmatprep.subr.bf16.mxu0 0
      %6476 = vmatpush1.bf16.msra.mxu0 0
      %6477 = vmatprep.subr.bf16.mxu0 0
      %6478 = vmatpush1.bf16.msra.mxu0 0
      %6479 = vmatprep.subr.bf16.mxu0 0
      %6480 = vmatpush1.bf16.msra.mxu0 0
      %6481 = vmatprep.subr.bf16.mxu0 0
      %6482 = vmatpush1.bf16.msra.mxu0 0
      %6483 = vmatprep.subr.bf16.mxu0 0
      %6484 = vmatpush1.bf16.msra.mxu0 0
      %6485 = vmatprep.subr.bf16.mxu0 0
      %6486 = vmatpush1.bf16.msra.mxu0 0
      %6487 = vmatprep.subr.bf16.mxu0 0
      %6488 = vmatpush1.bf16.msra.mxu0 0
      %6489 = vmatprep.subr.bf16.mxu0 0
      %6490 = vmatpush1.bf16.msra.mxu0 0
      %6491 = vmatprep.subr.bf16.mxu0 0
      %6492 = vmatpush1.bf16.msra.mxu0 0
      %6493 = vmatprep.subr.bf16.mxu0 0
      %6494 = vmatpush1.bf16.msra.mxu0 0
      %6495 = vmatprep.subr.bf16.mxu0 0
      %6496 = vmatpush1.bf16.msra.mxu0 0
      %6497 = vmatprep.subr.bf16.mxu0 0
      %6498 = vmatpush1.bf16.msra.mxu0 0
      %6499 = vmatprep.mubr.bf16.mxu0 0
      %6500 = vmatmul.mubr.bf16.gmra.mrb[0].mxu0 %v6420
      %v6501 = vpop.f32.mrb[0].mxu0
      %v6502 = vadd.f32 %v6392, %v6501
      %v6503 = vpop.f32.mrb[0].mxu0
      %v6504 = vpop.f32.mrb[0].mxu0
      %v6505 = vadd.f32 %v6392, %v6504
      %v6506 = vpop.f32.mrb[0].mxu0
      %6507 = vmatprep.mubr.bf16.mxu0 0
      %6508 = vmatmul.mubr.bf16.gmra.mrb[0].mxu0 %v6423
      %v6509 = vpop.f32.mrb[0].mxu0
      %v6510 = vadd.f32 %v6392, %v6509
      %v6511 = vpop.f32.mrb[0].mxu0
      %v6512 = vpop.f32.mrb[0].mxu0
      %v6513 = vadd.f32 %v6392, %v6512
      %v6514 = vpop.f32.mrb[0].mxu0
      %6515 = vmatprep.mubr.bf16.mxu0 0
      %6516 = vmatmul.mubr.bf16.gmra.mrb[0].mxu0 %v6426
      %v6517 = vpop.f32.mrb[0].mxu0
      %v6518 = vadd.f32 %v6392, %v6517
      %v6519 = vpop.f32.mrb[0].mxu0
      %v6520 = vpop.f32.mrb[0].mxu0
      %v6521 = vadd.f32 %v6392, %v6520
      %v6522 = vpop.f32.mrb[0].mxu0
      %6523 = vmatprep.mubr.bf16.mxu0 0
      %6524 = vmatmul.mubr.bf16.gmra.mrb[0].mxu0 %v6429
      %v6525 = vpop.f32.mrb[0].mxu0
      %v6526 = vadd.f32 %v6392, %v6525
      %v6527 = vpop.f32.mrb[0].mxu0
      %v6528 = vpop.f32.mrb[0].mxu0
      %v6529 = vadd.f32 %v6392, %v6528
      %v6530 = vpop.f32.mrb[0].mxu0
      %6531 = vmatprep.mubr.bf16.mxu0 0
      %6532 = vmatmul.mubr.bf16.gmra.mrb[0].mxu0 %v6432
      %v6533 = vpop.f32.mrb[0].mxu0
      %v6534 = vadd.f32 %v6392, %v6533
      %v6535 = vpop.f32.mrb[0].mxu0
      %v6536 = vpop.f32.mrb[0].mxu0
      %v6537 = vadd.f32 %v6392, %v6536
      %v6538 = vpop.f32.mrb[0].mxu0
      %6539 = vmatprep.mubr.bf16.mxu0 0
      %6540 = vmatmul.mubr.bf16.gmra.mrb[0].mxu0 %v6435
      %v6541 = vpop.f32.mrb[0].mxu0
      %v6542 = vadd.f32 %v6392, %v6541
      %v6543 = vpop.f32.mrb[0].mxu0
      %v6544 = vpop.f32.mrb[0].mxu0
      %v6545 = vadd.f32 %v6392, %v6544
      %v6546 = vpop.f32.mrb[0].mxu0
      %6547 = vmatprep.mubr.bf16.mxu0 0
      %6548 = vmatmul.mubr.bf16.gmra.mrb[0].mxu0 %v6438
      %v6549 = vpop.f32.mrb[0].mxu0
      %v6550 = vadd.f32 %v6392, %v6549
      %v6551 = vpop.f32.mrb[0].mxu0
      %v6552 = vpop.f32.mrb[0].mxu0
      %v6553 = vadd.f32 %v6392, %v6552
      %v6554 = vpop.f32.mrb[0].mxu0
      %6555 = vmatprep.mubr.bf16.mxu0 0
      %6556 = vmatmul.mubr.bf16.gmra.mrb[0].mxu0 %v6441
      %v6557 = vpop.f32.mrb[0].mxu0
      %v6558 = vadd.f32 %v6392, %v6557
      %v6559 = vpop.f32.mrb[0].mxu0
      %v6560 = vpop.f32.mrb[0].mxu0
      %v6561 = vadd.f32 %v6392, %v6560
      %v6562 = vpop.f32.mrb[0].mxu0
      %6563 = vmatprep.mubr.bf16.mxu0 0
      %6564 = vmatmul.mubr.bf16.gmra.mrb[0].mxu0 %v6444
      %v6565 = vpop.f32.mrb[0].mxu0
      %v6566 = vadd.f32 %v6392, %v6565
      %v6567 = vpop.f32.mrb[0].mxu0
      %v6568 = vpop.f32.mrb[0].mxu0
      %v6569 = vadd.f32 %v6392, %v6568
      %v6570 = vpop.f32.mrb[0].mxu0
      %6571 = vmatprep.mubr.bf16.mxu0 0
      %6572 = vmatmul.mubr.bf16.gmra.mrb[0].mxu0 %v6447
      %v6573 = vpop.f32.mrb[0].mxu0
      %v6574 = vadd.f32 %v6392, %v6573
      %v6575 = vpop.f32.mrb[0].mxu0
      %v6576 = vpop.f32.mrb[0].mxu0
      %v6577 = vadd.f32 %v6392, %v6576
      %v6578 = vpop.f32.mrb[0].mxu0
      %6579 = vmatprep.mubr.bf16.mxu0 0
      %6580 = vmatmul.mubr.bf16.gmra.mrb[0].mxu0 %v6450
      %v6581 = vpop.f32.mrb[0].mxu0
      %v6582 = vadd.f32 %v6392, %v6581
      %v6583 = vpop.f32.mrb[0].mxu0
      %v6584 = vpop.f32.mrb[0].mxu0
      %v6585 = vadd.f32 %v6392, %v6584
      %v6586 = vpop.f32.mrb[0].mxu0
      %6587 = vmatprep.mubr.bf16.mxu0 0
      %6588 = vmatmul.mubr.bf16.gmra.mrb[0].mxu0 %v6453
      %v6589 = vpop.f32.mrb[0].mxu0
      %v6590 = vadd.f32 %v6392, %v6589
      %v6591 = vpop.f32.mrb[0].mxu0
      %v6592 = vpop.f32.mrb[0].mxu0
      %v6593 = vadd.f32 %v6392, %v6592
      %v6594 = vpop.f32.mrb[0].mxu0
      %6595 = vmatprep.mubr.bf16.mxu0 0
      %6596 = vmatmul.mubr.bf16.gmra.mrb[0].mxu0 %v6456
      %v6597 = vpop.f32.mrb[0].mxu0
      %v6598 = vadd.f32 %v6392, %v6597
      %v6599 = vpop.f32.mrb[0].mxu0
      %v6600 = vpop.f32.mrb[0].mxu0
      %v6601 = vadd.f32 %v6392, %v6600
      %v6602 = vpop.f32.mrb[0].mxu0
      %6603 = vmatprep.mubr.bf16.mxu0 0
      %6604 = vmatmul.mubr.bf16.gmra.mrb[0].mxu0 %v6459
      %v6605 = vpop.f32.mrb[0].mxu0
      %v6606 = vadd.f32 %v6392, %v6605
      %v6607 = vpop.f32.mrb[0].mxu0
      %v6608 = vpop.f32.mrb[0].mxu0
      %v6609 = vadd.f32 %v6392, %v6608
      %v6610 = vpop.f32.mrb[0].mxu0
      %6611 = vmatprep.mubr.bf16.mxu0 0
      %6612 = vmatmul.mubr.bf16.gmra.mrb[0].mxu0 %v6462
      %v6613 = vpop.f32.mrb[0].mxu0
      %v6614 = vadd.f32 %v6392, %v6613
      %v6615 = vpop.f32.mrb[0].mxu0
      %v6616 = vpop.f32.mrb[0].mxu0
      %v6617 = vadd.f32 %v6392, %v6616
      %v6618 = vpop.f32.mrb[0].mxu0
      %6619 = vmatprep.mubr.bf16.mxu0 0
      %6620 = vmatmul.mubr.bf16.gmra.mrb[0].mxu0 %v6465
      %v6621 = vpop.f32.mrb[0].mxu0
      %v6622 = vadd.f32 %v6392, %v6621
      %v6623 = vpop.f32.mrb[0].mxu0
      %v6624 = vpop.f32.mrb[0].mxu0
      %v6625 = vadd.f32 %v6392, %v6624
      %v6626 = vpop.f32.mrb[0].mxu0
      %6627 = vdwg.mxu0
      %v6628 = vmax.f32 %v6502, 0.0
      %v6629 = vmax.f32 %v6505, 0.0
      %v6630 = vmax.f32 %v6510, 0.0
      %v6631 = vmax.f32 %v6513, 0.0
      %v6632 = vmax.f32 %v6518, 0.0
      %v6633 = vmax.f32 %v6521, 0.0
      %v6634 = vmax.f32 %v6526, 0.0
      %v6635 = vmax.f32 %v6529, 0.0
      %v6636 = vmax.f32 %v6534, 0.0
      %v6637 = vmax.f32 %v6537, 0.0
      %v6638 = vmax.f32 %v6542, 0.0
      %v6639 = vmax.f32 %v6545, 0.0
      %v6640 = vmax.f32 %v6550, 0.0
      %v6641 = vmax.f32 %v6553, 0.0
      %v6642 = vmax.f32 %v6558, 0.0
      %v6643 = vmax.f32 %v6561, 0.0
      %v6644 = vmax.f32 %v6566, 0.0
      %v6645 = vmax.f32 %v6569, 0.0
      %v6646 = vmax.f32 %v6574, 0.0
      %v6647 = vmax.f32 %v6577, 0.0
      %v6648 = vmax.f32 %v6582, 0.0
      %v6649 = vmax.f32 %v6585, 0.0
      %v6650 = vmax.f32 %v6590, 0.0
      %v6651 = vmax.f32 %v6593, 0.0
      %v6652 = vmax.f32 %v6598, 0.0
      %v6653 = vmax.f32 %v6601, 0.0
      %v6654 = vmax.f32 %v6606, 0.0
      %v6655 = vmax.f32 %v6609, 0.0
      %v6656 = vmax.f32 %v6614, 0.0
      %v6657 = vmax.f32 %v6617, 0.0
      %v6658 = vmax.f32 %v6622, 0.0
      %v6659 = vmax.f32 %v6625, 0.0
      %v6660 = vpack.c.bf16 %v6629, %v6628
      %v6661 = vpack.c.bf16 %v6631, %v6630
      %v6662 = vpack.c.bf16 %v6633, %v6632
      %v6663 = vpack.c.bf16 %v6635, %v6634
      %v6664 = vpack.c.bf16 %v6637, %v6636
      %v6665 = vpack.c.bf16 %v6639, %v6638
      %v6666 = vpack.c.bf16 %v6641, %v6640
      %v6667 = vpack.c.bf16 %v6643, %v6642
      %v6668 = vpack.c.bf16 %v6645, %v6644
      %v6669 = vpack.c.bf16 %v6647, %v6646
      %v6670 = vpack.c.bf16 %v6649, %v6648
      %v6671 = vpack.c.bf16 %v6651, %v6650
      %v6672 = vpack.c.bf16 %v6653, %v6652
      %v6673 = vpack.c.bf16 %v6655, %v6654
      %v6674 = vpack.c.bf16 %v6657, %v6656
      %v6675 = vpack.c.bf16 %v6659, %v6658
      %v6692 = vunpack.c.l.b16 %v6660
      %v6693 = vunpack.c.h.b16 %v6660
      %v6694 = vunpack.c.l.b16 %v6661
      %v6695 = vunpack.c.h.b16 %v6661
      %v6696 = vunpack.c.l.b16 %v6662
      %v6697 = vunpack.c.h.b16 %v6662
      %v6698 = vunpack.c.l.b16 %v6663
      %v6699 = vunpack.c.h.b16 %v6663
      %v6700 = vunpack.c.l.b16 %v6664
      %v6701 = vunpack.c.h.b16 %v6664
      %v6702 = vunpack.c.l.b16 %v6665
      %v6703 = vunpack.c.h.b16 %v6665
      %v6704 = vunpack.c.l.b16 %v6666
      %v6705 = vunpack.c.h.b16 %v6666
      %v6706 = vunpack.c.l.b16 %v6667
      %v6707 = vunpack.c.h.b16 %v6667
      %v6708 = vunpack.c.l.b16 %v6668
      %v6709 = vunpack.c.h.b16 %v6668
      %v6710 = vunpack.c.l.b16 %v6669
      %v6711 = vunpack.c.h.b16 %v6669
      %v6712 = vunpack.c.l.b16 %v6670
      %v6713 = vunpack.c.h.b16 %v6670
      %v6714 = vunpack.c.l.b16 %v6671
      %v6715 = vunpack.c.h.b16 %v6671
      %v6716 = vunpack.c.l.b16 %v6672
      %v6717 = vunpack.c.h.b16 %v6672
      %v6718 = vunpack.c.l.b16 %v6673
      %v6719 = vunpack.c.h.b16 %v6673
      %v6720 = vunpack.c.l.b16 %v6674
      %v6721 = vunpack.c.h.b16 %v6674
      %v6722 = vunpack.c.l.b16 %v6675
      %v6723 = vunpack.c.h.b16 %v6675
      %v6724 = vpack.c.b16 %v6692, %v6692
      %v6725 = vpack.c.b16 %v6693, %v6693
      %v6726 = vpack.c.b16 %v6694, %v6694
      %v6727 = vpack.c.b16 %v6695, %v6695
      %v6728 = vpack.c.b16 %v6696, %v6696
      %v6729 = vpack.c.b16 %v6697, %v6697
      %v6730 = vpack.c.b16 %v6698, %v6698
      %v6731 = vpack.c.b16 %v6699, %v6699
      %v6732 = vpack.c.b16 %v6700, %v6700
      %v6733 = vpack.c.b16 %v6701, %v6701
      %v6734 = vpack.c.b16 %v6702, %v6702
      %v6735 = vpack.c.b16 %v6703, %v6703
      %v6736 = vpack.c.b16 %v6704, %v6704
      %v6737 = vpack.c.b16 %v6705, %v6705
      %v6738 = vpack.c.b16 %v6706, %v6706
      %v6739 = vpack.c.b16 %v6707, %v6707
      %v6740 = vpack.c.b16 %v6708, %v6708
      %v6741 = vpack.c.b16 %v6709, %v6709
      %v6742 = vpack.c.b16 %v6710, %v6710
      %v6743 = vpack.c.b16 %v6711, %v6711
      %v6744 = vpack.c.b16 %v6712, %v6712
      %v6745 = vpack.c.b16 %v6713, %v6713
      %v6746 = vpack.c.b16 %v6714, %v6714
      %v6747 = vpack.c.b16 %v6715, %v6715
      %v6748 = vpack.c.b16 %v6716, %v6716
      %v6749 = vpack.c.b16 %v6717, %v6717
      %v6750 = vpack.c.b16 %v6718, %v6718
      %v6751 = vpack.c.b16 %v6719, %v6719
      %v6752 = vpack.c.b16 %v6720, %v6720
      %v6753 = vpack.c.b16 %v6721, %v6721
      %v6754 = vpack.c.b16 %v6722, %v6722
      %v6755 = vpack.c.b16 %v6723, %v6723
      %6788 = vst.msk [vmem:[%s251] sm:$0xf] %vm253, %v6724
      %6789 = vst.msk [vmem:[%s251 + $0x4] sm:$0xf] %vm253, %v6725
      %6790 = vst.msk [vmem:[%s251 + $0x8] sm:$0xf] %vm253, %v6726
      %6791 = vst.msk [vmem:[%s251 + $0xc] sm:$0xf] %vm253, %v6727
      %6792 = vst.msk [vmem:[%s251 + $0x10] sm:$0xf] %vm253, %v6728
      %6793 = vst.msk [vmem:[%s251 + $0x14] sm:$0xf] %vm253, %v6729
      %6794 = vst.msk [vmem:[%s251 + $0x18] sm:$0xf] %vm253, %v6730
      %6795 = vst.msk [vmem:[%s251 + $0x1c] sm:$0xf] %vm253, %v6731
      %6796 = vst.msk [vmem:[%s251 + $0x20] sm:$0xf] %vm253, %v6732
      %6797 = vst.msk [vmem:[%s251 + $0x24] sm:$0xf] %vm253, %v6733
      %6798 = vst.msk [vmem:[%s251 + $0x28] sm:$0xf] %vm253, %v6734
      %6799 = vst.msk [vmem:[%s251 + $0x2c] sm:$0xf] %vm253, %v6735
      %6800 = vst.msk [vmem:[%s251 + $0x30] sm:$0xf] %vm253, %v6736
      %6801 = vst.msk [vmem:[%s251 + $0x34] sm:$0xf] %vm253, %v6737
      %6802 = vst.msk [vmem:[%s251 + $0x38] sm:$0xf] %vm253, %v6738
      %6803 = vst.msk [vmem:[%s251 + $0x3c] sm:$0xf] %vm253, %v6739
      %6804 = vst.msk [vmem:[%s251 + $0x40] sm:$0xf] %vm253, %v6740
      %6805 = vst.msk [vmem:[%s251 + $0x44] sm:$0xf] %vm253, %v6741
      %6806 = vst.msk [vmem:[%s251 + $0x48] sm:$0xf] %vm253, %v6742
      %6807 = vst.msk [vmem:[%s251 + $0x4c] sm:$0xf] %vm253, %v6743
      %6808 = vst.msk [vmem:[%s251 + $0x50] sm:$0xf] %vm253, %v6744
      %6809 = vst.msk [vmem:[%s251 + $0x54] sm:$0xf] %vm253, %v6745
      %6810 = vst.msk [vmem:[%s251 + $0x58] sm:$0xf] %vm253, %v6746
      %6811 = vst.msk [vmem:[%s251 + $0x5c] sm:$0xf] %vm253, %v6747
      %6812 = vst.msk [vmem:[%s251 + $0x60] sm:$0xf] %vm253, %v6748
      %6813 = vst.msk [vmem:[%s251 + $0x64] sm:$0xf] %vm253, %v6749
      %6814 = vst.msk [vmem:[%s251 + $0x68] sm:$0xf] %vm253, %v6750
      %6815 = vst.msk [vmem:[%s251 + $0x6c] sm:$0xf] %vm253, %v6751
      %6816 = vst.msk [vmem:[%s251 + $0x70] sm:$0xf] %vm253, %v6752
      %6817 = vst.msk [vmem:[%s251 + $0x74] sm:$0xf] %vm253, %v6753
      %6818 = vst.msk [vmem:[%s251 + $0x78] sm:$0xf] %vm253, %v6754
      %6819 = vst.msk [vmem:[%s251 + $0x7c] sm:$0xf] %vm253, %v6755
      %v6820 = vld [vmem:[#allocation3] sm:$0xf]
      %v6821 = vld [vmem:[#allocation3 + $0x4] sm:$0xf]
      %v6822 = vld [vmem:[#allocation3 + $0x8] sm:$0x1]
      %v6823 = vld [vmem:[#allocation3 + $0xc] sm:$0xf]
      %v6824 = vld [vmem:[#allocation3 + $0x10] sm:$0xf]
      %v6825 = vld [vmem:[#allocation3 + $0x14] sm:$0x1]
      %v6826 = vld [vmem:[#allocation3 + $0x18] sm:$0xf]
      %v6827 = vld [vmem:[#allocation3 + $0x1c] sm:$0xf]
      %v6828 = vld [vmem:[#allocation3 + $0x20] sm:$0x1]
      %v6829 = vld [vmem:[#allocation3 + $0x24] sm:$0xf]
      %v6830 = vld [vmem:[#allocation3 + $0x28] sm:$0xf]
      %v6831 = vld [vmem:[#allocation3 + $0x2c] sm:$0x1]
      %v6832 = vld [vmem:[#allocation3 + $0x30] sm:$0xf]
      %v6833 = vld [vmem:[#allocation3 + $0x34] sm:$0xf]
      %v6834 = vld [vmem:[#allocation3 + $0x38] sm:$0x1]
      %v6835 = vld [vmem:[#allocation3 + $0x3c] sm:$0xf]
      %v6836 = vld [vmem:[#allocation3 + $0x40] sm:$0xf]
      %v6837 = vld [vmem:[#allocation3 + $0x44] sm:$0x1]
      %v6838 = vld [vmem:[#allocation3 + $0x48] sm:$0xf]
      %v6839 = vld [vmem:[#allocation3 + $0x4c] sm:$0xf]
      %v6840 = vld [vmem:[#allocation3 + $0x50] sm:$0x1]
      %v6841 = vld [vmem:[#allocation3 + $0x54] sm:$0xf]
      %v6842 = vld [vmem:[#allocation3 + $0x58] sm:$0xf]
      %v6843 = vld [vmem:[#allocation3 + $0x5c] sm:$0x1]
      %v6844 = vld [vmem:[#allocation3 + $0x60] sm:$0xf]
      %v6845 = vld [vmem:[#allocation3 + $0x64] sm:$0xf]
      %v6846 = vld [vmem:[#allocation3 + $0x68] sm:$0x1]
      %v6847 = vld [vmem:[#allocation3 + $0x6c] sm:$0xf]
      %v6848 = vld [vmem:[#allocation3 + $0x70] sm:$0xf]
      %v6849 = vld [vmem:[#allocation3 + $0x74] sm:$0x1]
      %v6850 = vld [vmem:[#allocation3 + $0x78] sm:$0xf]
      %v6851 = vld [vmem:[#allocation3 + $0x7c] sm:$0xf]
      %v6852 = vld [vmem:[#allocation3 + $0x80] sm:$0x1]
      %v6853 = vld [vmem:[#allocation3 + $0x84] sm:$0xf]
      %v6854 = vld [vmem:[#allocation3 + $0x88] sm:$0xf]
      %v6855 = vld [vmem:[#allocation3 + $0x8c] sm:$0x1]
      %v6856 = vld [vmem:[#allocation3 + $0x90] sm:$0xf]
      %v6857 = vld [vmem:[#allocation3 + $0x94] sm:$0xf]
      %v6858 = vld [vmem:[#allocation3 + $0x98] sm:$0x1]
      %v6859 = vld [vmem:[#allocation3 + $0x9c] sm:$0xf]
      %v6860 = vld [vmem:[#allocation3 + $0xa0] sm:$0xf]
      %v6861 = vld [vmem:[#allocation3 + $0xa4] sm:$0x1]
      %v6862 = vld [vmem:[#allocation3 + $0xa8] sm:$0xf]
      %v6863 = vld [vmem:[#allocation3 + $0xac] sm:$0xf]
      %v6864 = vld [vmem:[#allocation3 + $0xb0] sm:$0x1]
      %v6865 = vld [vmem:[#allocation3 + $0xb4] sm:$0xf]
      %v6866 = vld [vmem:[#allocation3 + $0xb8] sm:$0xf]
      %v6867 = vld [vmem:[#allocation3 + $0xbc] sm:$0x1]
      %v6869 = vshrl.u32 %v6820, 16
      %v6871 = vrot.slane %v6869, 4
      %v6872 = vshll.u32 %v6820, 16
      %v6874 = vrot.slane %v6872, 5
      %v6875 = vor.u32 %v6871, %v6874
      %v6876 = vrot.slane %v6875, 4
      %v6878 = vshll.u32 %v6821, 16
      %v6880 = vrot.slane %v6878, 5
      %v6881 = vsel %vm1136, %v6876, %v6880
      %v6882 = vshrl.u32 %v6821, 16
      %v6884 = vrot.slane %v6882, 4
      %v6885 = vor.u32 %v6884, %v6880
      %v6886 = vrot.slane %v6885, 4
      %v6888 = vshll.u32 %v6822, 16
      %v6890 = vrot.slane %v6888, 5
      %v6891 = vsel %vm1136, %v6886, %v6890
      %v6893 = vshrl.u32 %v6823, 16
      %v6895 = vrot.slane %v6893, 4
      %v6896 = vshll.u32 %v6823, 16
      %v6898 = vrot.slane %v6896, 5
      %v6899 = vor.u32 %v6895, %v6898
      %v6900 = vrot.slane %v6899, 4
      %v6902 = vshll.u32 %v6824, 16
      %v6904 = vrot.slane %v6902, 5
      %v6905 = vsel %vm1136, %v6900, %v6904
      %v6906 = vshrl.u32 %v6824, 16
      %v6908 = vrot.slane %v6906, 4
      %v6909 = vor.u32 %v6908, %v6904
      %v6910 = vrot.slane %v6909, 4
      %v6912 = vshll.u32 %v6825, 16
      %v6914 = vrot.slane %v6912, 5
      %v6915 = vsel %vm1136, %v6910, %v6914
      %v6917 = vshrl.u32 %v6826, 16
      %v6919 = vrot.slane %v6917, 4
      %v6920 = vshll.u32 %v6826, 16
      %v6922 = vrot.slane %v6920, 5
      %v6923 = vor.u32 %v6919, %v6922
      %v6924 = vrot.slane %v6923, 4
      %v6926 = vshll.u32 %v6827, 16
      %v6928 = vrot.slane %v6926, 5
      %v6929 = vsel %vm1136, %v6924, %v6928
      %v6930 = vshrl.u32 %v6827, 16
      %v6932 = vrot.slane %v6930, 4
      %v6933 = vor.u32 %v6932, %v6928
      %v6934 = vrot.slane %v6933, 4
      %v6936 = vshll.u32 %v6828, 16
      %v6938 = vrot.slane %v6936, 5
      %v6939 = vsel %vm1136, %v6934, %v6938
      %v6941 = vshrl.u32 %v6829, 16
      %v6943 = vrot.slane %v6941, 4
      %v6944 = vshll.u32 %v6829, 16
      %v6946 = vrot.slane %v6944, 5
      %v6947 = vor.u32 %v6943, %v6946
      %v6948 = vrot.slane %v6947, 4
      %v6950 = vshll.u32 %v6830, 16
      %v6952 = vrot.slane %v6950, 5
      %v6953 = vsel %vm1136, %v6948, %v6952
      %v6954 = vshrl.u32 %v6830, 16
      %v6956 = vrot.slane %v6954, 4
      %v6957 = vor.u32 %v6956, %v6952
      %v6958 = vrot.slane %v6957, 4
      %v6960 = vshll.u32 %v6831, 16
      %v6962 = vrot.slane %v6960, 5
      %v6963 = vsel %vm1136, %v6958, %v6962
      %v6965 = vshrl.u32 %v6832, 16
      %v6967 = vrot.slane %v6965, 4
      %v6968 = vshll.u32 %v6832, 16
      %v6970 = vrot.slane %v6968, 5
      %v6971 = vor.u32 %v6967, %v6970
      %v6972 = vrot.slane %v6971, 4
      %v6974 = vshll.u32 %v6833, 16
      %v6976 = vrot.slane %v6974, 5
      %v6977 = vsel %vm1136, %v6972, %v6976
      %v6978 = vshrl.u32 %v6833, 16
      %v6980 = vrot.slane %v6978, 4
      %v6981 = vor.u32 %v6980, %v6976
      %v6982 = vrot.slane %v6981, 4
      %v6984 = vshll.u32 %v6834, 16
      %v6986 = vrot.slane %v6984, 5
      %v6987 = vsel %vm1136, %v6982, %v6986
      %v6989 = vshrl.u32 %v6835, 16
      %v6991 = vrot.slane %v6989, 4
      %v6992 = vshll.u32 %v6835, 16
      %v6994 = vrot.slane %v6992, 5
      %v6995 = vor.u32 %v6991, %v6994
      %v6996 = vrot.slane %v6995, 4
      %v6998 = vshll.u32 %v6836, 16
      %v7000 = vrot.slane %v6998, 5
      %v7001 = vsel %vm1136, %v6996, %v7000
      %v7002 = vshrl.u32 %v6836, 16
      %v7004 = vrot.slane %v7002, 4
      %v7005 = vor.u32 %v7004, %v7000
      %v7006 = vrot.slane %v7005, 4
      %v7008 = vshll.u32 %v6837, 16
      %v7010 = vrot.slane %v7008, 5
      %v7011 = vsel %vm1136, %v7006, %v7010
      %v7013 = vshrl.u32 %v6838, 16
      %v7015 = vrot.slane %v7013, 4
      %v7016 = vshll.u32 %v6838, 16
      %v7018 = vrot.slane %v7016, 5
      %v7019 = vor.u32 %v7015, %v7018
      %v7020 = vrot.slane %v7019, 4
      %v7022 = vshll.u32 %v6839, 16
      %v7024 = vrot.slane %v7022, 5
      %v7025 = vsel %vm1136, %v7020, %v7024
      %v7026 = vshrl.u32 %v6839, 16
      %v7028 = vrot.slane %v7026, 4
      %v7029 = vor.u32 %v7028, %v7024
      %v7030 = vrot.slane %v7029, 4
      %v7032 = vshll.u32 %v6840, 16
      %v7034 = vrot.slane %v7032, 5
      %v7035 = vsel %vm1136, %v7030, %v7034
      %v7037 = vshrl.u32 %v6841, 16
      %v7039 = vrot.slane %v7037, 4
      %v7040 = vshll.u32 %v6841, 16
      %v7042 = vrot.slane %v7040, 5
      %v7043 = vor.u32 %v7039, %v7042
      %v7044 = vrot.slane %v7043, 4
      %v7046 = vshll.u32 %v6842, 16
      %v7048 = vrot.slane %v7046, 5
      %v7049 = vsel %vm1136, %v7044, %v7048
      %v7050 = vshrl.u32 %v6842, 16
      %v7052 = vrot.slane %v7050, 4
      %v7053 = vor.u32 %v7052, %v7048
      %v7054 = vrot.slane %v7053, 4
      %v7056 = vshll.u32 %v6843, 16
      %v7058 = vrot.slane %v7056, 5
      %v7059 = vsel %vm1136, %v7054, %v7058
      %v7061 = vshrl.u32 %v6844, 16
      %v7063 = vrot.slane %v7061, 4
      %v7064 = vshll.u32 %v6844, 16
      %v7066 = vrot.slane %v7064, 5
      %v7067 = vor.u32 %v7063, %v7066
      %v7068 = vrot.slane %v7067, 4
      %v7070 = vshll.u32 %v6845, 16
      %v7072 = vrot.slane %v7070, 5
      %v7073 = vsel %vm1136, %v7068, %v7072
      %v7074 = vshrl.u32 %v6845, 16
      %v7076 = vrot.slane %v7074, 4
      %v7077 = vor.u32 %v7076, %v7072
      %v7078 = vrot.slane %v7077, 4
      %v7080 = vshll.u32 %v6846, 16
      %v7082 = vrot.slane %v7080, 5
      %v7083 = vsel %vm1136, %v7078, %v7082
      %v7085 = vshrl.u32 %v6847, 16
      %v7087 = vrot.slane %v7085, 4
      %v7088 = vshll.u32 %v6847, 16
      %v7090 = vrot.slane %v7088, 5
      %v7091 = vor.u32 %v7087, %v7090
      %v7092 = vrot.slane %v7091, 4
      %v7094 = vshll.u32 %v6848, 16
      %v7096 = vrot.slane %v7094, 5
      %v7097 = vsel %vm1136, %v7092, %v7096
      %v7098 = vshrl.u32 %v6848, 16
      %v7100 = vrot.slane %v7098, 4
      %v7101 = vor.u32 %v7100, %v7096
      %v7102 = vrot.slane %v7101, 4
      %v7104 = vshll.u32 %v6849, 16
      %v7106 = vrot.slane %v7104, 5
      %v7107 = vsel %vm1136, %v7102, %v7106
      %v7109 = vshrl.u32 %v6850, 16
      %v7111 = vrot.slane %v7109, 4
      %v7112 = vshll.u32 %v6850, 16
      %v7114 = vrot.slane %v7112, 5
      %v7115 = vor.u32 %v7111, %v7114
      %v7116 = vrot.slane %v7115, 4
      %v7118 = vshll.u32 %v6851, 16
      %v7120 = vrot.slane %v7118, 5
      %v7121 = vsel %vm1136, %v7116, %v7120
      %v7122 = vshrl.u32 %v6851, 16
      %v7124 = vrot.slane %v7122, 4
      %v7125 = vor.u32 %v7124, %v7120
      %v7126 = vrot.slane %v7125, 4
      %v7128 = vshll.u32 %v6852, 16
      %v7130 = vrot.slane %v7128, 5
      %v7131 = vsel %vm1136, %v7126, %v7130
      %v7133 = vshrl.u32 %v6853, 16
      %v7135 = vrot.slane %v7133, 4
      %v7136 = vshll.u32 %v6853, 16
      %v7138 = vrot.slane %v7136, 5
      %v7139 = vor.u32 %v7135, %v7138
      %v7140 = vrot.slane %v7139, 4
      %v7142 = vshll.u32 %v6854, 16
      %v7144 = vrot.slane %v7142, 5
      %v7145 = vsel %vm1136, %v7140, %v7144
      %v7146 = vshrl.u32 %v6854, 16
      %v7148 = vrot.slane %v7146, 4
      %v7149 = vor.u32 %v7148, %v7144
      %v7150 = vrot.slane %v7149, 4
      %v7152 = vshll.u32 %v6855, 16
      %v7154 = vrot.slane %v7152, 5
      %v7155 = vsel %vm1136, %v7150, %v7154
      %v7157 = vshrl.u32 %v6856, 16
      %v7159 = vrot.slane %v7157, 4
      %v7160 = vshll.u32 %v6856, 16
      %v7162 = vrot.slane %v7160, 5
      %v7163 = vor.u32 %v7159, %v7162
      %v7164 = vrot.slane %v7163, 4
      %v7166 = vshll.u32 %v6857, 16
      %v7168 = vrot.slane %v7166, 5
      %v7169 = vsel %vm1136, %v7164, %v7168
      %v7170 = vshrl.u32 %v6857, 16
      %v7172 = vrot.slane %v7170, 4
      %v7173 = vor.u32 %v7172, %v7168
      %v7174 = vrot.slane %v7173, 4
      %v7176 = vshll.u32 %v6858, 16
      %v7178 = vrot.slane %v7176, 5
      %v7179 = vsel %vm1136, %v7174, %v7178
      %v7181 = vshrl.u32 %v6859, 16
      %v7183 = vrot.slane %v7181, 4
      %v7184 = vshll.u32 %v6859, 16
      %v7186 = vrot.slane %v7184, 5
      %v7187 = vor.u32 %v7183, %v7186
      %v7188 = vrot.slane %v7187, 4
      %v7190 = vshll.u32 %v6860, 16
      %v7192 = vrot.slane %v7190, 5
      %v7193 = vsel %vm1136, %v7188, %v7192
      %v7194 = vshrl.u32 %v6860, 16
      %v7196 = vrot.slane %v7194, 4
      %v7197 = vor.u32 %v7196, %v7192
      %v7198 = vrot.slane %v7197, 4
      %v7200 = vshll.u32 %v6861, 16
      %v7202 = vrot.slane %v7200, 5
      %v7203 = vsel %vm1136, %v7198, %v7202
      %v7205 = vshrl.u32 %v6862, 16
      %v7207 = vrot.slane %v7205, 4
      %v7208 = vshll.u32 %v6862, 16
      %v7210 = vrot.slane %v7208, 5
      %v7211 = vor.u32 %v7207, %v7210
      %v7212 = vrot.slane %v7211, 4
      %v7214 = vshll.u32 %v6863, 16
      %v7216 = vrot.slane %v7214, 5
      %v7217 = vsel %vm1136, %v7212, %v7216
      %v7218 = vshrl.u32 %v6863, 16
      %v7220 = vrot.slane %v7218, 4
      %v7221 = vor.u32 %v7220, %v7216
      %v7222 = vrot.slane %v7221, 4
      %v7224 = vshll.u32 %v6864, 16
      %v7226 = vrot.slane %v7224, 5
      %v7227 = vsel %vm1136, %v7222, %v7226
      %v7229 = vshrl.u32 %v6865, 16
      %v7231 = vrot.slane %v7229, 4
      %v7232 = vshll.u32 %v6865, 16
      %v7234 = vrot.slane %v7232, 5
      %v7235 = vor.u32 %v7231, %v7234
      %v7236 = vrot.slane %v7235, 4
      %v7238 = vshll.u32 %v6866, 16
      %v7240 = vrot.slane %v7238, 5
      %v7241 = vsel %vm1136, %v7236, %v7240
      %v7242 = vshrl.u32 %v6866, 16
      %v7244 = vrot.slane %v7242, 4
      %v7245 = vor.u32 %v7244, %v7240
      %v7246 = vrot.slane %v7245, 4
      %v7248 = vshll.u32 %v6867, 16
      %v7250 = vrot.slane %v7248, 5
      %v7251 = vsel %vm1136, %v7246, %v7250
      %v7252 = vunpack.c.l.b16 %v6881
      %v7253 = vunpack.c.l.b16 %v6891
      %v7254 = vunpack.c.l.b16 %v6905
      %v7255 = vunpack.c.l.b16 %v6915
      %v7256 = vunpack.c.l.b16 %v6929
      %v7257 = vunpack.c.l.b16 %v6939
      %v7258 = vunpack.c.l.b16 %v6953
      %v7259 = vunpack.c.l.b16 %v6963
      %v7260 = vunpack.c.l.b16 %v6977
      %v7261 = vunpack.c.l.b16 %v6987
      %v7262 = vunpack.c.l.b16 %v7001
      %v7263 = vunpack.c.l.b16 %v7011
      %v7264 = vunpack.c.l.b16 %v7025
      %v7265 = vunpack.c.l.b16 %v7035
      %v7266 = vunpack.c.l.b16 %v7049
      %v7267 = vunpack.c.l.b16 %v7059
      %v7268 = vunpack.c.l.b16 %v7073
      %v7269 = vunpack.c.l.b16 %v7083
      %v7270 = vunpack.c.l.b16 %v7097
      %v7271 = vunpack.c.l.b16 %v7107
      %v7272 = vunpack.c.l.b16 %v7121
      %v7273 = vunpack.c.l.b16 %v7131
      %v7274 = vunpack.c.l.b16 %v7145
      %v7275 = vunpack.c.l.b16 %v7155
      %v7276 = vunpack.c.l.b16 %v7169
      %v7277 = vunpack.c.l.b16 %v7179
      %v7278 = vunpack.c.l.b16 %v7193
      %v7279 = vunpack.c.l.b16 %v7203
      %v7280 = vunpack.c.l.b16 %v7217
      %v7281 = vunpack.c.l.b16 %v7227
      %v7282 = vunpack.c.l.b16 %v7241
      %v7283 = vunpack.c.l.b16 %v7251
      %v7284 = vpack.c.b16 %v7253, %v7252
      %v7285 = vpack.c.b16 %v7255, %v7254
      %v7286 = vpack.c.b16 %v7257, %v7256
      %v7287 = vpack.c.b16 %v7259, %v7258
      %v7288 = vpack.c.b16 %v7261, %v7260
      %v7289 = vpack.c.b16 %v7263, %v7262
      %v7290 = vpack.c.b16 %v7265, %v7264
      %v7291 = vpack.c.b16 %v7267, %v7266
      %v7292 = vpack.c.b16 %v7269, %v7268
      %v7293 = vpack.c.b16 %v7271, %v7270
      %v7294 = vpack.c.b16 %v7273, %v7272
      %v7295 = vpack.c.b16 %v7275, %v7274
      %v7296 = vpack.c.b16 %v7277, %v7276
      %v7297 = vpack.c.b16 %v7279, %v7278
      %v7298 = vpack.c.b16 %v7281, %v7280
      %v7299 = vpack.c.b16 %v7283, %v7282
      %7316 = vst.msk [vmem:[#allocation5] sm:$0xff] %vm5080, %v7284
      %7317 = vst.msk [vmem:[#allocation5 + $0x8] sm:$0xff] %vm5080, %v7285
      %7318 = vst.msk [vmem:[#allocation5 + $0x10] sm:$0xff] %vm5080, %v7286
      %7319 = vst.msk [vmem:[#allocation5 + $0x18] sm:$0xff] %vm5080, %v7287
      %7320 = vst.msk [vmem:[#allocation5 + $0x20] sm:$0xff] %vm5080, %v7288
      %7321 = vst.msk [vmem:[#allocation5 + $0x28] sm:$0xff] %vm5080, %v7289
      %7322 = vst.msk [vmem:[#allocation5 + $0x30] sm:$0xff] %vm5080, %v7290
      %7323 = vst.msk [vmem:[#allocation5 + $0x38] sm:$0xff] %vm5080, %v7291
      %7324 = vst.msk [vmem:[#allocation5 + $0x40] sm:$0xff] %vm5080, %v7292
      %7325 = vst.msk [vmem:[#allocation5 + $0x48] sm:$0xff] %vm5080, %v7293
      %7326 = vst.msk [vmem:[#allocation5 + $0x50] sm:$0xff] %vm5080, %v7294
      %7327 = vst.msk [vmem:[#allocation5 + $0x58] sm:$0xff] %vm5080, %v7295
      %7328 = vst.msk [vmem:[#allocation5 + $0x60] sm:$0xff] %vm5080, %v7296
      %7329 = vst.msk [vmem:[#allocation5 + $0x68] sm:$0xff] %vm5080, %v7297
      %7330 = vst.msk [vmem:[#allocation5 + $0x70] sm:$0xff] %vm5080, %v7298
      %7331 = vst.msk [vmem:[#allocation5 + $0x78] sm:$0xff] %vm5080, %v7299
      %v7332 = vld [vmem:[#allocation3] sm:$0xe]
      %v7333 = vld [vmem:[#allocation3 + $0x4] sm:$0xf]
      %v7334 = vld [vmem:[#allocation3 + $0x8] sm:$0x1]
      %v7335 = vld [vmem:[#allocation3 + $0xc] sm:$0xe]
      %v7336 = vld [vmem:[#allocation3 + $0x10] sm:$0xf]
      %v7337 = vld [vmem:[#allocation3 + $0x14] sm:$0x1]
      %v7338 = vld [vmem:[#allocation3 + $0x18] sm:$0xe]
      %v7339 = vld [vmem:[#allocation3 + $0x1c] sm:$0xf]
      %v7340 = vld [vmem:[#allocation3 + $0x20] sm:$0x1]
      %v7341 = vld [vmem:[#allocation3 + $0x24] sm:$0xe]
      %v7342 = vld [vmem:[#allocation3 + $0x28] sm:$0xf]
      %v7343 = vld [vmem:[#allocation3 + $0x2c] sm:$0x1]
      %v7344 = vld [vmem:[#allocation3 + $0x30] sm:$0xe]
      %v7345 = vld [vmem:[#allocation3 + $0x34] sm:$0xf]
      %v7346 = vld [vmem:[#allocation3 + $0x38] sm:$0x1]
      %v7347 = vld [vmem:[#allocation3 + $0x3c] sm:$0xe]
      %v7348 = vld [vmem:[#allocation3 + $0x40] sm:$0xf]
      %v7349 = vld [vmem:[#allocation3 + $0x44] sm:$0x1]
      %v7350 = vld [vmem:[#allocation3 + $0x48] sm:$0xe]
      %v7351 = vld [vmem:[#allocation3 + $0x4c] sm:$0xf]
      %v7352 = vld [vmem:[#allocation3 + $0x50] sm:$0x1]
      %v7353 = vld [vmem:[#allocation3 + $0x54] sm:$0xe]
      %v7354 = vld [vmem:[#allocation3 + $0x58] sm:$0xf]
      %v7355 = vld [vmem:[#allocation3 + $0x5c] sm:$0x1]
      %v7356 = vld [vmem:[#allocation3 + $0x60] sm:$0xe]
      %v7357 = vld [vmem:[#allocation3 + $0x64] sm:$0xf]
      %v7358 = vld [vmem:[#allocation3 + $0x68] sm:$0x1]
      %v7359 = vld [vmem:[#allocation3 + $0x6c] sm:$0xe]
      %v7360 = vld [vmem:[#allocation3 + $0x70] sm:$0xf]
      %v7361 = vld [vmem:[#allocation3 + $0x74] sm:$0x1]
      %v7362 = vld [vmem:[#allocation3 + $0x78] sm:$0xe]
      %v7363 = vld [vmem:[#allocation3 + $0x7c] sm:$0xf]
      %v7364 = vld [vmem:[#allocation3 + $0x80] sm:$0x1]
      %v7365 = vld [vmem:[#allocation3 + $0x84] sm:$0xe]
      %v7366 = vld [vmem:[#allocation3 + $0x88] sm:$0xf]
      %v7367 = vld [vmem:[#allocation3 + $0x8c] sm:$0x1]
      %v7368 = vld [vmem:[#allocation3 + $0x90] sm:$0xe]
      %v7369 = vld [vmem:[#allocation3 + $0x94] sm:$0xf]
      %v7370 = vld [vmem:[#allocation3 + $0x98] sm:$0x1]
      %v7371 = vld [vmem:[#allocation3 + $0x9c] sm:$0xe]
      %v7372 = vld [vmem:[#allocation3 + $0xa0] sm:$0xf]
      %v7373 = vld [vmem:[#allocation3 + $0xa4] sm:$0x1]
      %v7374 = vld [vmem:[#allocation3 + $0xa8] sm:$0xe]
      %v7375 = vld [vmem:[#allocation3 + $0xac] sm:$0xf]
      %v7376 = vld [vmem:[#allocation3 + $0xb0] sm:$0x1]
      %v7377 = vld [vmem:[#allocation3 + $0xb4] sm:$0xe]
      %v7378 = vld [vmem:[#allocation3 + $0xb8] sm:$0xf]
      %v7379 = vld [vmem:[#allocation3 + $0xbc] sm:$0x1]
      %v7428 = vrot.slane %v7332, 5
      %v7429 = vrot.slane %v7428, 4
      %v7430 = vrot.slane %v7333, 5
      %v7431 = vsel %vm1732, %v7429, %v7430
      %v7432 = vrot.slane %v7430, 4
      %v7433 = vrot.slane %v7334, 5
      %v7434 = vsel %vm1732, %v7432, %v7433
      %v7435 = vrot.slane %v7335, 5
      %v7436 = vrot.slane %v7435, 4
      %v7437 = vrot.slane %v7336, 5
      %v7438 = vsel %vm1732, %v7436, %v7437
      %v7439 = vrot.slane %v7437, 4
      %v7440 = vrot.slane %v7337, 5
      %v7441 = vsel %vm1732, %v7439, %v7440
      %v7442 = vrot.slane %v7338, 5
      %v7443 = vrot.slane %v7442, 4
      %v7444 = vrot.slane %v7339, 5
      %v7445 = vsel %vm1732, %v7443, %v7444
      %v7446 = vrot.slane %v7444, 4
      %v7447 = vrot.slane %v7340, 5
      %v7448 = vsel %vm1732, %v7446, %v7447
      %v7449 = vrot.slane %v7341, 5
      %v7450 = vrot.slane %v7449, 4
      %v7451 = vrot.slane %v7342, 5
      %v7452 = vsel %vm1732, %v7450, %v7451
      %v7453 = vrot.slane %v7451, 4
      %v7454 = vrot.slane %v7343, 5
      %v7455 = vsel %vm1732, %v7453, %v7454
      %v7456 = vrot.slane %v7344, 5
      %v7457 = vrot.slane %v7456, 4
      %v7458 = vrot.slane %v7345, 5
      %v7459 = vsel %vm1732, %v7457, %v7458
      %v7460 = vrot.slane %v7458, 4
      %v7461 = vrot.slane %v7346, 5
      %v7462 = vsel %vm1732, %v7460, %v7461
      %v7463 = vrot.slane %v7347, 5
      %v7464 = vrot.slane %v7463, 4
      %v7465 = vrot.slane %v7348, 5
      %v7466 = vsel %vm1732, %v7464, %v7465
      %v7467 = vrot.slane %v7465, 4
      %v7468 = vrot.slane %v7349, 5
      %v7469 = vsel %vm1732, %v7467, %v7468
      %v7470 = vrot.slane %v7350, 5
      %v7471 = vrot.slane %v7470, 4
      %v7472 = vrot.slane %v7351, 5
      %v7473 = vsel %vm1732, %v7471, %v7472
      %v7474 = vrot.slane %v7472, 4
      %v7475 = vrot.slane %v7352, 5
      %v7476 = vsel %vm1732, %v7474, %v7475
      %v7477 = vrot.slane %v7353, 5
      %v7478 = vrot.slane %v7477, 4
      %v7479 = vrot.slane %v7354, 5
      %v7480 = vsel %vm1732, %v7478, %v7479
      %v7481 = vrot.slane %v7479, 4
      %v7482 = vrot.slane %v7355, 5
      %v7483 = vsel %vm1732, %v7481, %v7482
      %v7484 = vrot.slane %v7356, 5
      %v7485 = vrot.slane %v7484, 4
      %v7486 = vrot.slane %v7357, 5
      %v7487 = vsel %vm1732, %v7485, %v7486
      %v7488 = vrot.slane %v7486, 4
      %v7489 = vrot.slane %v7358, 5
      %v7490 = vsel %vm1732, %v7488, %v7489
      %v7491 = vrot.slane %v7359, 5
      %v7492 = vrot.slane %v7491, 4
      %v7493 = vrot.slane %v7360, 5
      %v7494 = vsel %vm1732, %v7492, %v7493
      %v7495 = vrot.slane %v7493, 4
      %v7496 = vrot.slane %v7361, 5
      %v7497 = vsel %vm1732, %v7495, %v7496
      %v7498 = vrot.slane %v7362, 5
      %v7499 = vrot.slane %v7498, 4
      %v7500 = vrot.slane %v7363, 5
      %v7501 = vsel %vm1732, %v7499, %v7500
      %v7502 = vrot.slane %v7500, 4
      %v7503 = vrot.slane %v7364, 5
      %v7504 = vsel %vm1732, %v7502, %v7503
      %v7505 = vrot.slane %v7365, 5
      %v7506 = vrot.slane %v7505, 4
      %v7507 = vrot.slane %v7366, 5
      %v7508 = vsel %vm1732, %v7506, %v7507
      %v7509 = vrot.slane %v7507, 4
      %v7510 = vrot.slane %v7367, 5
      %v7511 = vsel %vm1732, %v7509, %v7510
      %v7512 = vrot.slane %v7368, 5
      %v7513 = vrot.slane %v7512, 4
      %v7514 = vrot.slane %v7369, 5
      %v7515 = vsel %vm1732, %v7513, %v7514
      %v7516 = vrot.slane %v7514, 4
      %v7517 = vrot.slane %v7370, 5
      %v7518 = vsel %vm1732, %v7516, %v7517
      %v7519 = vrot.slane %v7371, 5
      %v7520 = vrot.slane %v7519, 4
      %v7521 = vrot.slane %v7372, 5
      %v7522 = vsel %vm1732, %v7520, %v7521
      %v7523 = vrot.slane %v7521, 4
      %v7524 = vrot.slane %v7373, 5
      %v7525 = vsel %vm1732, %v7523, %v7524
      %v7526 = vrot.slane %v7374, 5
      %v7527 = vrot.slane %v7526, 4
      %v7528 = vrot.slane %v7375, 5
      %v7529 = vsel %vm1732, %v7527, %v7528
      %v7530 = vrot.slane %v7528, 4
      %v7531 = vrot.slane %v7376, 5
      %v7532 = vsel %vm1732, %v7530, %v7531
      %v7533 = vrot.slane %v7377, 5
      %v7534 = vrot.slane %v7533, 4
      %v7535 = vrot.slane %v7378, 5
      %v7536 = vsel %vm1732, %v7534, %v7535
      %v7537 = vrot.slane %v7535, 4
      %v7538 = vrot.slane %v7379, 5
      %v7539 = vsel %vm1732, %v7537, %v7538
      %v7540 = vunpack.c.l.b16 %v7431
      %v7541 = vunpack.c.l.b16 %v7434
      %v7542 = vunpack.c.l.b16 %v7438
      %v7543 = vunpack.c.l.b16 %v7441
      %v7544 = vunpack.c.l.b16 %v7445
      %v7545 = vunpack.c.l.b16 %v7448
      %v7546 = vunpack.c.l.b16 %v7452
      %v7547 = vunpack.c.l.b16 %v7455
      %v7548 = vunpack.c.l.b16 %v7459
      %v7549 = vunpack.c.l.b16 %v7462
      %v7550 = vunpack.c.l.b16 %v7466
      %v7551 = vunpack.c.l.b16 %v7469
      %v7552 = vunpack.c.l.b16 %v7473
      %v7553 = vunpack.c.l.b16 %v7476
      %v7554 = vunpack.c.l.b16 %v7480
      %v7555 = vunpack.c.l.b16 %v7483
      %v7556 = vunpack.c.l.b16 %v7487
      %v7557 = vunpack.c.l.b16 %v7490
      %v7558 = vunpack.c.l.b16 %v7494
      %v7559 = vunpack.c.l.b16 %v7497
      %v7560 = vunpack.c.l.b16 %v7501
      %v7561 = vunpack.c.l.b16 %v7504
      %v7562 = vunpack.c.l.b16 %v7508
      %v7563 = vunpack.c.l.b16 %v7511
      %v7564 = vunpack.c.l.b16 %v7515
      %v7565 = vunpack.c.l.b16 %v7518
      %v7566 = vunpack.c.l.b16 %v7522
      %v7567 = vunpack.c.l.b16 %v7525
      %v7568 = vunpack.c.l.b16 %v7529
      %v7569 = vunpack.c.l.b16 %v7532
      %v7570 = vunpack.c.l.b16 %v7536
      %v7571 = vunpack.c.l.b16 %v7539
      %v7572 = vpack.c.b16 %v7541, %v7540
      %v7573 = vpack.c.b16 %v7543, %v7542
      %v7574 = vpack.c.b16 %v7545, %v7544
      %v7575 = vpack.c.b16 %v7547, %v7546
      %v7576 = vpack.c.b16 %v7549, %v7548
      %v7577 = vpack.c.b16 %v7551, %v7550
      %v7578 = vpack.c.b16 %v7553, %v7552
      %v7579 = vpack.c.b16 %v7555, %v7554
      %v7580 = vpack.c.b16 %v7557, %v7556
      %v7581 = vpack.c.b16 %v7559, %v7558
      %v7582 = vpack.c.b16 %v7561, %v7560
      %v7583 = vpack.c.b16 %v7563, %v7562
      %v7584 = vpack.c.b16 %v7565, %v7564
      %v7585 = vpack.c.b16 %v7567, %v7566
      %v7586 = vpack.c.b16 %v7569, %v7568
      %v7587 = vpack.c.b16 %v7571, %v7570
      %7588 = vrot.lane.b32.xlu0 %v7572, 16
      %v7589 = vpop.permute.xlu0 %7588
      %7590 = vrot.lane.b32.xlu0 %v7573, 16
      %v7591 = vpop.permute.xlu0 %7590
      %7592 = vrot.lane.b32.xlu0 %v7574, 16
      %v7593 = vpop.permute.xlu0 %7592
      %7594 = vrot.lane.b32.xlu0 %v7575, 16
      %v7595 = vpop.permute.xlu0 %7594
      %7596 = vrot.lane.b32.xlu0 %v7576, 16
      %v7597 = vpop.permute.xlu0 %7596
      %7598 = vrot.lane.b32.xlu0 %v7577, 16
      %v7599 = vpop.permute.xlu0 %7598
      %7600 = vrot.lane.b32.xlu0 %v7578, 16
      %v7601 = vpop.permute.xlu0 %7600
      %7602 = vrot.lane.b32.xlu0 %v7579, 16
      %v7603 = vpop.permute.xlu0 %7602
      %7604 = vrot.lane.b32.xlu0 %v7580, 16
      %v7605 = vpop.permute.xlu0 %7604
      %7606 = vrot.lane.b32.xlu0 %v7581, 16
      %v7607 = vpop.permute.xlu0 %7606
      %7608 = vrot.lane.b32.xlu0 %v7582, 16
      %v7609 = vpop.permute.xlu0 %7608
      %7610 = vrot.lane.b32.xlu0 %v7583, 16
      %v7611 = vpop.permute.xlu0 %7610
      %7612 = vrot.lane.b32.xlu0 %v7584, 16
      %v7613 = vpop.permute.xlu0 %7612
      %7614 = vrot.lane.b32.xlu0 %v7585, 16
      %v7615 = vpop.permute.xlu0 %7614
      %7616 = vrot.lane.b32.xlu0 %v7586, 16
      %v7617 = vpop.permute.xlu0 %7616
      %7618 = vrot.lane.b32.xlu0 %v7587, 16
      %v7619 = vpop.permute.xlu0 %7618
      %7636 = vst.msk [vmem:[#allocation5] sm:$0xff] %vm5625, %v7589
      %7637 = vst.msk [vmem:[#allocation5 + $0x8] sm:$0xff] %vm5625, %v7591
      %7638 = vst.msk [vmem:[#allocation5 + $0x10] sm:$0xff] %vm5625, %v7593
      %7639 = vst.msk [vmem:[#allocation5 + $0x18] sm:$0xff] %vm5625, %v7595
      %7640 = vst.msk [vmem:[#allocation5 + $0x20] sm:$0xff] %vm5625, %v7597
      %7641 = vst.msk [vmem:[#allocation5 + $0x28] sm:$0xff] %vm5625, %v7599
      %7642 = vst.msk [vmem:[#allocation5 + $0x30] sm:$0xff] %vm5625, %v7601
      %7643 = vst.msk [vmem:[#allocation5 + $0x38] sm:$0xff] %vm5625, %v7603
      %7644 = vst.msk [vmem:[#allocation5 + $0x40] sm:$0xff] %vm5625, %v7605
      %7645 = vst.msk [vmem:[#allocation5 + $0x48] sm:$0xff] %vm5625, %v7607
      %7646 = vst.msk [vmem:[#allocation5 + $0x50] sm:$0xff] %vm5625, %v7609
      %7647 = vst.msk [vmem:[#allocation5 + $0x58] sm:$0xff] %vm5625, %v7611
      %7648 = vst.msk [vmem:[#allocation5 + $0x60] sm:$0xff] %vm5625, %v7613
      %7649 = vst.msk [vmem:[#allocation5 + $0x68] sm:$0xff] %vm5625, %v7615
      %7650 = vst.msk [vmem:[#allocation5 + $0x70] sm:$0xff] %vm5625, %v7617
      %7651 = vst.msk [vmem:[#allocation5 + $0x78] sm:$0xff] %vm5625, %v7619
      %v7652 = vld [vmem:[%s373] sm:$0xf]
      %v7653 = vld [vmem:[%s373 + $0x4] sm:$0xf]
      %v7654 = vld [vmem:[%s373 + $0x8] sm:$0x1]
      %v7655 = vld [vmem:[%s373 + $0xc] sm:$0xf]
      %v7656 = vld [vmem:[%s373 + $0x10] sm:$0xf]
      %v7657 = vld [vmem:[%s373 + $0x14] sm:$0x1]
      %v7658 = vld [vmem:[%s373 + $0x18] sm:$0xf]
      %v7659 = vld [vmem:[%s373 + $0x1c] sm:$0xf]
      %v7660 = vld [vmem:[%s373 + $0x20] sm:$0x1]
      %v7661 = vld [vmem:[%s373 + $0x24] sm:$0xf]
      %v7662 = vld [vmem:[%s373 + $0x28] sm:$0xf]
      %v7663 = vld [vmem:[%s373 + $0x2c] sm:$0x1]
      %v7664 = vld [vmem:[%s373 + $0x30] sm:$0xf]
      %v7665 = vld [vmem:[%s373 + $0x34] sm:$0xf]
      %v7666 = vld [vmem:[%s373 + $0x38] sm:$0x1]
      %v7667 = vld [vmem:[%s373 + $0x3c] sm:$0xf]
      %v7668 = vld [vmem:[%s373 + $0x40] sm:$0xf]
      %v7669 = vld [vmem:[%s373 + $0x44] sm:$0x1]
      %v7670 = vld [vmem:[%s373 + $0x48] sm:$0xf]
      %v7671 = vld [vmem:[%s373 + $0x4c] sm:$0xf]
      %v7672 = vld [vmem:[%s373 + $0x50] sm:$0x1]
      %v7673 = vld [vmem:[%s373 + $0x54] sm:$0xf]
      %v7674 = vld [vmem:[%s373 + $0x58] sm:$0xf]
      %v7675 = vld [vmem:[%s373 + $0x5c] sm:$0x1]
      %v7676 = vld [vmem:[%s373 + $0x60] sm:$0xf]
      %v7677 = vld [vmem:[%s373 + $0x64] sm:$0xf]
      %v7678 = vld [vmem:[%s373 + $0x68] sm:$0x1]
      %v7679 = vld [vmem:[%s373 + $0x6c] sm:$0xf]
      %v7680 = vld [vmem:[%s373 + $0x70] sm:$0xf]
      %v7681 = vld [vmem:[%s373 + $0x74] sm:$0x1]
      %v7682 = vld [vmem:[%s373 + $0x78] sm:$0xf]
      %v7683 = vld [vmem:[%s373 + $0x7c] sm:$0xf]
      %v7684 = vld [vmem:[%s373 + $0x80] sm:$0x1]
      %v7685 = vld [vmem:[%s373 + $0x84] sm:$0xf]
      %v7686 = vld [vmem:[%s373 + $0x88] sm:$0xf]
      %v7687 = vld [vmem:[%s373 + $0x8c] sm:$0x1]
      %v7688 = vld [vmem:[%s373 + $0x90] sm:$0xf]
      %v7689 = vld [vmem:[%s373 + $0x94] sm:$0xf]
      %v7690 = vld [vmem:[%s373 + $0x98] sm:$0x1]
      %v7691 = vld [vmem:[%s373 + $0x9c] sm:$0xf]
      %v7692 = vld [vmem:[%s373 + $0xa0] sm:$0xf]
      %v7693 = vld [vmem:[%s373 + $0xa4] sm:$0x1]
      %v7694 = vld [vmem:[%s373 + $0xa8] sm:$0xf]
      %v7695 = vld [vmem:[%s373 + $0xac] sm:$0xf]
      %v7696 = vld [vmem:[%s373 + $0xb0] sm:$0x1]
      %v7697 = vld [vmem:[%s373 + $0xb4] sm:$0xf]
      %v7698 = vld [vmem:[%s373 + $0xb8] sm:$0xf]
      %v7699 = vld [vmem:[%s373 + $0xbc] sm:$0x1]
      %v7701 = vshrl.u32 %v7652, 16
      %v7703 = vrot.slane %v7701, 4
      %v7704 = vshll.u32 %v7652, 16
      %v7706 = vrot.slane %v7704, 5
      %v7707 = vor.u32 %v7703, %v7706
      %v7708 = vrot.slane %v7707, 4
      %v7710 = vshll.u32 %v7653, 16
      %v7712 = vrot.slane %v7710, 5
      %v7713 = vsel %vm1136, %v7708, %v7712
      %v7714 = vshrl.u32 %v7653, 16
      %v7716 = vrot.slane %v7714, 4
      %v7717 = vor.u32 %v7716, %v7712
      %v7718 = vrot.slane %v7717, 4
      %v7720 = vshll.u32 %v7654, 16
      %v7722 = vrot.slane %v7720, 5
      %v7723 = vsel %vm1136, %v7718, %v7722
      %v7725 = vshrl.u32 %v7655, 16
      %v7727 = vrot.slane %v7725, 4
      %v7728 = vshll.u32 %v7655, 16
      %v7730 = vrot.slane %v7728, 5
      %v7731 = vor.u32 %v7727, %v7730
      %v7732 = vrot.slane %v7731, 4
      %v7734 = vshll.u32 %v7656, 16
      %v7736 = vrot.slane %v7734, 5
      %v7737 = vsel %vm1136, %v7732, %v7736
      %v7738 = vshrl.u32 %v7656, 16
      %v7740 = vrot.slane %v7738, 4
      %v7741 = vor.u32 %v7740, %v7736
      %v7742 = vrot.slane %v7741, 4
      %v7744 = vshll.u32 %v7657, 16
      %v7746 = vrot.slane %v7744, 5
      %v7747 = vsel %vm1136, %v7742, %v7746
      %v7749 = vshrl.u32 %v7658, 16
      %v7751 = vrot.slane %v7749, 4
      %v7752 = vshll.u32 %v7658, 16
      %v7754 = vrot.slane %v7752, 5
      %v7755 = vor.u32 %v7751, %v7754
      %v7756 = vrot.slane %v7755, 4
      %v7758 = vshll.u32 %v7659, 16
      %v7760 = vrot.slane %v7758, 5
      %v7761 = vsel %vm1136, %v7756, %v7760
      %v7762 = vshrl.u32 %v7659, 16
      %v7764 = vrot.slane %v7762, 4
      %v7765 = vor.u32 %v7764, %v7760
      %v7766 = vrot.slane %v7765, 4
      %v7768 = vshll.u32 %v7660, 16
      %v7770 = vrot.slane %v7768, 5
      %v7771 = vsel %vm1136, %v7766, %v7770
      %v7773 = vshrl.u32 %v7661, 16
      %v7775 = vrot.slane %v7773, 4
      %v7776 = vshll.u32 %v7661, 16
      %v7778 = vrot.slane %v7776, 5
      %v7779 = vor.u32 %v7775, %v7778
      %v7780 = vrot.slane %v7779, 4
      %v7782 = vshll.u32 %v7662, 16
      %v7784 = vrot.slane %v7782, 5
      %v7785 = vsel %vm1136, %v7780, %v7784
      %v7786 = vshrl.u32 %v7662, 16
      %v7788 = vrot.slane %v7786, 4
      %v7789 = vor.u32 %v7788, %v7784
      %v7790 = vrot.slane %v7789, 4
      %v7792 = vshll.u32 %v7663, 16
      %v7794 = vrot.slane %v7792, 5
      %v7795 = vsel %vm1136, %v7790, %v7794
      %v7797 = vshrl.u32 %v7664, 16
      %v7799 = vrot.slane %v7797, 4
      %v7800 = vshll.u32 %v7664, 16
      %v7802 = vrot.slane %v7800, 5
      %v7803 = vor.u32 %v7799, %v7802
      %v7804 = vrot.slane %v7803, 4
      %v7806 = vshll.u32 %v7665, 16
      %v7808 = vrot.slane %v7806, 5
      %v7809 = vsel %vm1136, %v7804, %v7808
      %v7810 = vshrl.u32 %v7665, 16
      %v7812 = vrot.slane %v7810, 4
      %v7813 = vor.u32 %v7812, %v7808
      %v7814 = vrot.slane %v7813, 4
      %v7816 = vshll.u32 %v7666, 16
      %v7818 = vrot.slane %v7816, 5
      %v7819 = vsel %vm1136, %v7814, %v7818
      %v7821 = vshrl.u32 %v7667, 16
      %v7823 = vrot.slane %v7821, 4
      %v7824 = vshll.u32 %v7667, 16
      %v7826 = vrot.slane %v7824, 5
      %v7827 = vor.u32 %v7823, %v7826
      %v7828 = vrot.slane %v7827, 4
      %v7830 = vshll.u32 %v7668, 16
      %v7832 = vrot.slane %v7830, 5
      %v7833 = vsel %vm1136, %v7828, %v7832
      %v7834 = vshrl.u32 %v7668, 16
      %v7836 = vrot.slane %v7834, 4
      %v7837 = vor.u32 %v7836, %v7832
      %v7838 = vrot.slane %v7837, 4
      %v7840 = vshll.u32 %v7669, 16
      %v7842 = vrot.slane %v7840, 5
      %v7843 = vsel %vm1136, %v7838, %v7842
      %v7845 = vshrl.u32 %v7670, 16
      %v7847 = vrot.slane %v7845, 4
      %v7848 = vshll.u32 %v7670, 16
      %v7850 = vrot.slane %v7848, 5
      %v7851 = vor.u32 %v7847, %v7850
      %v7852 = vrot.slane %v7851, 4
      %v7854 = vshll.u32 %v7671, 16
      %v7856 = vrot.slane %v7854, 5
      %v7857 = vsel %vm1136, %v7852, %v7856
      %v7858 = vshrl.u32 %v7671, 16
      %v7860 = vrot.slane %v7858, 4
      %v7861 = vor.u32 %v7860, %v7856
      %v7862 = vrot.slane %v7861, 4
      %v7864 = vshll.u32 %v7672, 16
      %v7866 = vrot.slane %v7864, 5
      %v7867 = vsel %vm1136, %v7862, %v7866
      %v7869 = vshrl.u32 %v7673, 16
      %v7871 = vrot.slane %v7869, 4
      %v7872 = vshll.u32 %v7673, 16
      %v7874 = vrot.slane %v7872, 5
      %v7875 = vor.u32 %v7871, %v7874
      %v7876 = vrot.slane %v7875, 4
      %v7878 = vshll.u32 %v7674, 16
      %v7880 = vrot.slane %v7878, 5
      %v7881 = vsel %vm1136, %v7876, %v7880
      %v7882 = vshrl.u32 %v7674, 16
      %v7884 = vrot.slane %v7882, 4
      %v7885 = vor.u32 %v7884, %v7880
      %v7886 = vrot.slane %v7885, 4
      %v7888 = vshll.u32 %v7675, 16
      %v7890 = vrot.slane %v7888, 5
      %v7891 = vsel %vm1136, %v7886, %v7890
      %v7893 = vshrl.u32 %v7676, 16
      %v7895 = vrot.slane %v7893, 4
      %v7896 = vshll.u32 %v7676, 16
      %v7898 = vrot.slane %v7896, 5
      %v7899 = vor.u32 %v7895, %v7898
      %v7900 = vrot.slane %v7899, 4
      %v7902 = vshll.u32 %v7677, 16
      %v7904 = vrot.slane %v7902, 5
      %v7905 = vsel %vm1136, %v7900, %v7904
      %v7906 = vshrl.u32 %v7677, 16
      %v7908 = vrot.slane %v7906, 4
      %v7909 = vor.u32 %v7908, %v7904
      %v7910 = vrot.slane %v7909, 4
      %v7912 = vshll.u32 %v7678, 16
      %v7914 = vrot.slane %v7912, 5
      %v7915 = vsel %vm1136, %v7910, %v7914
      %v7917 = vshrl.u32 %v7679, 16
      %v7919 = vrot.slane %v7917, 4
      %v7920 = vshll.u32 %v7679, 16
      %v7922 = vrot.slane %v7920, 5
      %v7923 = vor.u32 %v7919, %v7922
      %v7924 = vrot.slane %v7923, 4
      %v7926 = vshll.u32 %v7680, 16
      %v7928 = vrot.slane %v7926, 5
      %v7929 = vsel %vm1136, %v7924, %v7928
      %v7930 = vshrl.u32 %v7680, 16
      %v7932 = vrot.slane %v7930, 4
      %v7933 = vor.u32 %v7932, %v7928
      %v7934 = vrot.slane %v7933, 4
      %v7936 = vshll.u32 %v7681, 16
      %v7938 = vrot.slane %v7936, 5
      %v7939 = vsel %vm1136, %v7934, %v7938
      %v7941 = vshrl.u32 %v7682, 16
      %v7943 = vrot.slane %v7941, 4
      %v7944 = vshll.u32 %v7682, 16
      %v7946 = vrot.slane %v7944, 5
      %v7947 = vor.u32 %v7943, %v7946
      %v7948 = vrot.slane %v7947, 4
      %v7950 = vshll.u32 %v7683, 16
      %v7952 = vrot.slane %v7950, 5
      %v7953 = vsel %vm1136, %v7948, %v7952
      %v7954 = vshrl.u32 %v7683, 16
      %v7956 = vrot.slane %v7954, 4
      %v7957 = vor.u32 %v7956, %v7952
      %v7958 = vrot.slane %v7957, 4
      %v7960 = vshll.u32 %v7684, 16
      %v7962 = vrot.slane %v7960, 5
      %v7963 = vsel %vm1136, %v7958, %v7962
      %v7965 = vshrl.u32 %v7685, 16
      %v7967 = vrot.slane %v7965, 4
      %v7968 = vshll.u32 %v7685, 16
      %v7970 = vrot.slane %v7968, 5
      %v7971 = vor.u32 %v7967, %v7970
      %v7972 = vrot.slane %v7971, 4
      %v7974 = vshll.u32 %v7686, 16
      %v7976 = vrot.slane %v7974, 5
      %v7977 = vsel %vm1136, %v7972, %v7976
      %v7978 = vshrl.u32 %v7686, 16
      %v7980 = vrot.slane %v7978, 4
      %v7981 = vor.u32 %v7980, %v7976
      %v7982 = vrot.slane %v7981, 4
      %v7984 = vshll.u32 %v7687, 16
      %v7986 = vrot.slane %v7984, 5
      %v7987 = vsel %vm1136, %v7982, %v7986
      %v7989 = vshrl.u32 %v7688, 16
      %v7991 = vrot.slane %v7989, 4
      %v7992 = vshll.u32 %v7688, 16
      %v7994 = vrot.slane %v7992, 5
      %v7995 = vor.u32 %v7991, %v7994
      %v7996 = vrot.slane %v7995, 4
      %v7998 = vshll.u32 %v7689, 16
      %v8000 = vrot.slane %v7998, 5
      %v8001 = vsel %vm1136, %v7996, %v8000
      %v8002 = vshrl.u32 %v7689, 16
      %v8004 = vrot.slane %v8002, 4
      %v8005 = vor.u32 %v8004, %v8000
      %v8006 = vrot.slane %v8005, 4
      %v8008 = vshll.u32 %v7690, 16
      %v8010 = vrot.slane %v8008, 5
      %v8011 = vsel %vm1136, %v8006, %v8010
      %v8013 = vshrl.u32 %v7691, 16
      %v8015 = vrot.slane %v8013, 4
      %v8016 = vshll.u32 %v7691, 16
      %v8018 = vrot.slane %v8016, 5
      %v8019 = vor.u32 %v8015, %v8018
      %v8020 = vrot.slane %v8019, 4
      %v8022 = vshll.u32 %v7692, 16
      %v8024 = vrot.slane %v8022, 5
      %v8025 = vsel %vm1136, %v8020, %v8024
      %v8026 = vshrl.u32 %v7692, 16
      %v8028 = vrot.slane %v8026, 4
      %v8029 = vor.u32 %v8028, %v8024
      %v8030 = vrot.slane %v8029, 4
      %v8032 = vshll.u32 %v7693, 16
      %v8034 = vrot.slane %v8032, 5
      %v8035 = vsel %vm1136, %v8030, %v8034
      %v8037 = vshrl.u32 %v7694, 16
      %v8039 = vrot.slane %v8037, 4
      %v8040 = vshll.u32 %v7694, 16
      %v8042 = vrot.slane %v8040, 5
      %v8043 = vor.u32 %v8039, %v8042
      %v8044 = vrot.slane %v8043, 4
      %v8046 = vshll.u32 %v7695, 16
      %v8048 = vrot.slane %v8046, 5
      %v8049 = vsel %vm1136, %v8044, %v8048
      %v8050 = vshrl.u32 %v7695, 16
      %v8052 = vrot.slane %v8050, 4
      %v8053 = vor.u32 %v8052, %v8048
      %v8054 = vrot.slane %v8053, 4
      %v8056 = vshll.u32 %v7696, 16
      %v8058 = vrot.slane %v8056, 5
      %v8059 = vsel %vm1136, %v8054, %v8058
      %v8061 = vshrl.u32 %v7697, 16
      %v8063 = vrot.slane %v8061, 4
      %v8064 = vshll.u32 %v7697, 16
      %v8066 = vrot.slane %v8064, 5
      %v8067 = vor.u32 %v8063, %v8066
      %v8068 = vrot.slane %v8067, 4
      %v8070 = vshll.u32 %v7698, 16
      %v8072 = vrot.slane %v8070, 5
      %v8073 = vsel %vm1136, %v8068, %v8072
      %v8074 = vshrl.u32 %v7698, 16
      %v8076 = vrot.slane %v8074, 4
      %v8077 = vor.u32 %v8076, %v8072
      %v8078 = vrot.slane %v8077, 4
      %v8080 = vshll.u32 %v7699, 16
      %v8082 = vrot.slane %v8080, 5
      %v8083 = vsel %vm1136, %v8078, %v8082
      %v8084 = vunpack.c.l.b16 %v7713
      %v8085 = vunpack.c.l.b16 %v7723
      %v8086 = vunpack.c.l.b16 %v7737
      %v8087 = vunpack.c.l.b16 %v7747
      %v8088 = vunpack.c.l.b16 %v7761
      %v8089 = vunpack.c.l.b16 %v7771
      %v8090 = vunpack.c.l.b16 %v7785
      %v8091 = vunpack.c.l.b16 %v7795
      %v8092 = vunpack.c.l.b16 %v7809
      %v8093 = vunpack.c.l.b16 %v7819
      %v8094 = vunpack.c.l.b16 %v7833
      %v8095 = vunpack.c.l.b16 %v7843
      %v8096 = vunpack.c.l.b16 %v7857
      %v8097 = vunpack.c.l.b16 %v7867
      %v8098 = vunpack.c.l.b16 %v7881
      %v8099 = vunpack.c.l.b16 %v7891
      %v8100 = vunpack.c.l.b16 %v7905
      %v8101 = vunpack.c.l.b16 %v7915
      %v8102 = vunpack.c.l.b16 %v7929
      %v8103 = vunpack.c.l.b16 %v7939
      %v8104 = vunpack.c.l.b16 %v7953
      %v8105 = vunpack.c.l.b16 %v7963
      %v8106 = vunpack.c.l.b16 %v7977
      %v8107 = vunpack.c.l.b16 %v7987
      %v8108 = vunpack.c.l.b16 %v8001
      %v8109 = vunpack.c.l.b16 %v8011
      %v8110 = vunpack.c.l.b16 %v8025
      %v8111 = vunpack.c.l.b16 %v8035
      %v8112 = vunpack.c.l.b16 %v8049
      %v8113 = vunpack.c.l.b16 %v8059
      %v8114 = vunpack.c.l.b16 %v8073
      %v8115 = vunpack.c.l.b16 %v8083
      %v8116 = vpack.c.b16 %v8085, %v8084
      %v8117 = vpack.c.b16 %v8087, %v8086
      %v8118 = vpack.c.b16 %v8089, %v8088
      %v8119 = vpack.c.b16 %v8091, %v8090
      %v8120 = vpack.c.b16 %v8093, %v8092
      %v8121 = vpack.c.b16 %v8095, %v8094
      %v8122 = vpack.c.b16 %v8097, %v8096
      %v8123 = vpack.c.b16 %v8099, %v8098
      %v8124 = vpack.c.b16 %v8101, %v8100
      %v8125 = vpack.c.b16 %v8103, %v8102
      %v8126 = vpack.c.b16 %v8105, %v8104
      %v8127 = vpack.c.b16 %v8107, %v8106
      %v8128 = vpack.c.b16 %v8109, %v8108
      %v8129 = vpack.c.b16 %v8111, %v8110
      %v8130 = vpack.c.b16 %v8113, %v8112
      %v8131 = vpack.c.b16 %v8115, %v8114
      %8132 = vrot.lane.b32.xlu0 %v8116, 32
      %v8133 = vpop.permute.xlu0 %8132
      %8134 = vrot.lane.b32.xlu0 %v8117, 32
      %v8135 = vpop.permute.xlu0 %8134
      %8136 = vrot.lane.b32.xlu0 %v8118, 32
      %v8137 = vpop.permute.xlu0 %8136
      %8138 = vrot.lane.b32.xlu0 %v8119, 32
      %v8139 = vpop.permute.xlu0 %8138
      %8140 = vrot.lane.b32.xlu0 %v8120, 32
      %v8141 = vpop.permute.xlu0 %8140
      %8142 = vrot.lane.b32.xlu0 %v8121, 32
      %v8143 = vpop.permute.xlu0 %8142
      %8144 = vrot.lane.b32.xlu0 %v8122, 32
      %v8145 = vpop.permute.xlu0 %8144
      %8146 = vrot.lane.b32.xlu0 %v8123, 32
      %v8147 = vpop.permute.xlu0 %8146
      %8148 = vrot.lane.b32.xlu0 %v8124, 32
      %v8149 = vpop.permute.xlu0 %8148
      %8150 = vrot.lane.b32.xlu0 %v8125, 32
      %v8151 = vpop.permute.xlu0 %8150
      %8152 = vrot.lane.b32.xlu0 %v8126, 32
      %v8153 = vpop.permute.xlu0 %8152
      %8154 = vrot.lane.b32.xlu0 %v8127, 32
      %v8155 = vpop.permute.xlu0 %8154
      %8156 = vrot.lane.b32.xlu0 %v8128, 32
      %v8157 = vpop.permute.xlu0 %8156
      %8158 = vrot.lane.b32.xlu0 %v8129, 32
      %v8159 = vpop.permute.xlu0 %8158
      %8160 = vrot.lane.b32.xlu0 %v8130, 32
      %v8161 = vpop.permute.xlu0 %8160
      %8162 = vrot.lane.b32.xlu0 %v8131, 32
      %v8163 = vpop.permute.xlu0 %8162
      %8180 = vst.msk [vmem:[#allocation5] sm:$0xff] %vm5802, %v8133
      %8181 = vst.msk [vmem:[#allocation5 + $0x8] sm:$0xff] %vm5802, %v8135
      %8182 = vst.msk [vmem:[#allocation5 + $0x10] sm:$0xff] %vm5802, %v8137
      %8183 = vst.msk [vmem:[#allocation5 + $0x18] sm:$0xff] %vm5802, %v8139
      %8184 = vst.msk [vmem:[#allocation5 + $0x20] sm:$0xff] %vm5802, %v8141
      %8185 = vst.msk [vmem:[#allocation5 + $0x28] sm:$0xff] %vm5802, %v8143
      %8186 = vst.msk [vmem:[#allocation5 + $0x30] sm:$0xff] %vm5802, %v8145
      %8187 = vst.msk [vmem:[#allocation5 + $0x38] sm:$0xff] %vm5802, %v8147
      %8188 = vst.msk [vmem:[#allocation5 + $0x40] sm:$0xff] %vm5802, %v8149
      %8189 = vst.msk [vmem:[#allocation5 + $0x48] sm:$0xff] %vm5802, %v8151
      %8190 = vst.msk [vmem:[#allocation5 + $0x50] sm:$0xff] %vm5802, %v8153
      %8191 = vst.msk [vmem:[#allocation5 + $0x58] sm:$0xff] %vm5802, %v8155
      %8192 = vst.msk [vmem:[#allocation5 + $0x60] sm:$0xff] %vm5802, %v8157
      %8193 = vst.msk [vmem:[#allocation5 + $0x68] sm:$0xff] %vm5802, %v8159
      %8194 = vst.msk [vmem:[#allocation5 + $0x70] sm:$0xff] %vm5802, %v8161
      %8195 = vst.msk [vmem:[#allocation5 + $0x78] sm:$0xff] %vm5802, %v8163
      %v8196 = vld [vmem:[%s373] sm:$0xe]
      %v8197 = vld [vmem:[%s373 + $0x4] sm:$0xf]
      %v8198 = vld [vmem:[%s373 + $0x8] sm:$0x1]
      %v8199 = vld [vmem:[%s373 + $0xc] sm:$0xe]
      %v8200 = vld [vmem:[%s373 + $0x10] sm:$0xf]
      %v8201 = vld [vmem:[%s373 + $0x14] sm:$0x1]
      %v8202 = vld [vmem:[%s373 + $0x18] sm:$0xe]
      %v8203 = vld [vmem:[%s373 + $0x1c] sm:$0xf]
      %v8204 = vld [vmem:[%s373 + $0x20] sm:$0x1]
      %v8205 = vld [vmem:[%s373 + $0x24] sm:$0xe]
      %v8206 = vld [vmem:[%s373 + $0x28] sm:$0xf]
      %v8207 = vld [vmem:[%s373 + $0x2c] sm:$0x1]
      %v8208 = vld [vmem:[%s373 + $0x30] sm:$0xe]
      %v8209 = vld [vmem:[%s373 + $0x34] sm:$0xf]
      %v8210 = vld [vmem:[%s373 + $0x38] sm:$0x1]
      %v8211 = vld [vmem:[%s373 + $0x3c] sm:$0xe]
      %v8212 = vld [vmem:[%s373 + $0x40] sm:$0xf]
      %v8213 = vld [vmem:[%s373 + $0x44] sm:$0x1]
      %v8214 = vld [vmem:[%s373 + $0x48] sm:$0xe]
      %v8215 = vld [vmem:[%s373 + $0x4c] sm:$0xf]
      %v8216 = vld [vmem:[%s373 + $0x50] sm:$0x1]
      %v8217 = vld [vmem:[%s373 + $0x54] sm:$0xe]
      %v8218 = vld [vmem:[%s373 + $0x58] sm:$0xf]
      %v8219 = vld [vmem:[%s373 + $0x5c] sm:$0x1]
      %v8220 = vld [vmem:[%s373 + $0x60] sm:$0xe]
      %v8221 = vld [vmem:[%s373 + $0x64] sm:$0xf]
      %v8222 = vld [vmem:[%s373 + $0x68] sm:$0x1]
      %v8223 = vld [vmem:[%s373 + $0x6c] sm:$0xe]
      %v8224 = vld [vmem:[%s373 + $0x70] sm:$0xf]
      %v8225 = vld [vmem:[%s373 + $0x74] sm:$0x1]
      %v8226 = vld [vmem:[%s373 + $0x78] sm:$0xe]
      %v8227 = vld [vmem:[%s373 + $0x7c] sm:$0xf]
      %v8228 = vld [vmem:[%s373 + $0x80] sm:$0x1]
      %v8229 = vld [vmem:[%s373 + $0x84] sm:$0xe]
      %v8230 = vld [vmem:[%s373 + $0x88] sm:$0xf]
      %v8231 = vld [vmem:[%s373 + $0x8c] sm:$0x1]
      %v8232 = vld [vmem:[%s373 + $0x90] sm:$0xe]
      %v8233 = vld [vmem:[%s373 + $0x94] sm:$0xf]
      %v8234 = vld [vmem:[%s373 + $0x98] sm:$0x1]
      %v8235 = vld [vmem:[%s373 + $0x9c] sm:$0xe]
      %v8236 = vld [vmem:[%s373 + $0xa0] sm:$0xf]
      %v8237 = vld [vmem:[%s373 + $0xa4] sm:$0x1]
      %v8238 = vld [vmem:[%s373 + $0xa8] sm:$0xe]
      %v8239 = vld [vmem:[%s373 + $0xac] sm:$0xf]
      %v8240 = vld [vmem:[%s373 + $0xb0] sm:$0x1]
      %v8241 = vld [vmem:[%s373 + $0xb4] sm:$0xe]
      %v8242 = vld [vmem:[%s373 + $0xb8] sm:$0xf]
      %v8243 = vld [vmem:[%s373 + $0xbc] sm:$0x1]
      %v8292 = vrot.slane %v8196, 5
      %v8293 = vrot.slane %v8292, 4
      %v8294 = vrot.slane %v8197, 5
      %v8295 = vsel %vm1732, %v8293, %v8294
      %v8296 = vrot.slane %v8294, 4
      %v8297 = vrot.slane %v8198, 5
      %v8298 = vsel %vm1732, %v8296, %v8297
      %v8299 = vrot.slane %v8199, 5
      %v8300 = vrot.slane %v8299, 4
      %v8301 = vrot.slane %v8200, 5
      %v8302 = vsel %vm1732, %v8300, %v8301
      %v8303 = vrot.slane %v8301, 4
      %v8304 = vrot.slane %v8201, 5
      %v8305 = vsel %vm1732, %v8303, %v8304
      %v8306 = vrot.slane %v8202, 5
      %v8307 = vrot.slane %v8306, 4
      %v8308 = vrot.slane %v8203, 5
      %v8309 = vsel %vm1732, %v8307, %v8308
      %v8310 = vrot.slane %v8308, 4
      %v8311 = vrot.slane %v8204, 5
      %v8312 = vsel %vm1732, %v8310, %v8311
      %v8313 = vrot.slane %v8205, 5
      %v8314 = vrot.slane %v8313, 4
      %v8315 = vrot.slane %v8206, 5
      %v8316 = vsel %vm1732, %v8314, %v8315
      %v8317 = vrot.slane %v8315, 4
      %v8318 = vrot.slane %v8207, 5
      %v8319 = vsel %vm1732, %v8317, %v8318
      %v8320 = vrot.slane %v8208, 5
      %v8321 = vrot.slane %v8320, 4
      %v8322 = vrot.slane %v8209, 5
      %v8323 = vsel %vm1732, %v8321, %v8322
      %v8324 = vrot.slane %v8322, 4
      %v8325 = vrot.slane %v8210, 5
      %v8326 = vsel %vm1732, %v8324, %v8325
      %v8327 = vrot.slane %v8211, 5
      %v8328 = vrot.slane %v8327, 4
      %v8329 = vrot.slane %v8212, 5
      %v8330 = vsel %vm1732, %v8328, %v8329
      %v8331 = vrot.slane %v8329, 4
      %v8332 = vrot.slane %v8213, 5
      %v8333 = vsel %vm1732, %v8331, %v8332
      %v8334 = vrot.slane %v8214, 5
      %v8335 = vrot.slane %v8334, 4
      %v8336 = vrot.slane %v8215, 5
      %v8337 = vsel %vm1732, %v8335, %v8336
      %v8338 = vrot.slane %v8336, 4
      %v8339 = vrot.slane %v8216, 5
      %v8340 = vsel %vm1732, %v8338, %v8339
      %v8341 = vrot.slane %v8217, 5
      %v8342 = vrot.slane %v8341, 4
      %v8343 = vrot.slane %v8218, 5
      %v8344 = vsel %vm1732, %v8342, %v8343
      %v8345 = vrot.slane %v8343, 4
      %v8346 = vrot.slane %v8219, 5
      %v8347 = vsel %vm1732, %v8345, %v8346
      %v8348 = vrot.slane %v8220, 5
      %v8349 = vrot.slane %v8348, 4
      %v8350 = vrot.slane %v8221, 5
      %v8351 = vsel %vm1732, %v8349, %v8350
      %v8352 = vrot.slane %v8350, 4
      %v8353 = vrot.slane %v8222, 5
      %v8354 = vsel %vm1732, %v8352, %v8353
      %v8355 = vrot.slane %v8223, 5
      %v8356 = vrot.slane %v8355, 4
      %v8357 = vrot.slane %v8224, 5
      %v8358 = vsel %vm1732, %v8356, %v8357
      %v8359 = vrot.slane %v8357, 4
      %v8360 = vrot.slane %v8225, 5
      %v8361 = vsel %vm1732, %v8359, %v8360
      %v8362 = vrot.slane %v8226, 5
      %v8363 = vrot.slane %v8362, 4
      %v8364 = vrot.slane %v8227, 5
      %v8365 = vsel %vm1732, %v8363, %v8364
      %v8366 = vrot.slane %v8364, 4
      %v8367 = vrot.slane %v8228, 5
      %v8368 = vsel %vm1732, %v8366, %v8367
      %v8369 = vrot.slane %v8229, 5
      %v8370 = vrot.slane %v8369, 4
      %v8371 = vrot.slane %v8230, 5
      %v8372 = vsel %vm1732, %v8370, %v8371
      %v8373 = vrot.slane %v8371, 4
      %v8374 = vrot.slane %v8231, 5
      %v8375 = vsel %vm1732, %v8373, %v8374
      %v8376 = vrot.slane %v8232, 5
      %v8377 = vrot.slane %v8376, 4
      %v8378 = vrot.slane %v8233, 5
      %v8379 = vsel %vm1732, %v8377, %v8378
      %v8380 = vrot.slane %v8378, 4
      %v8381 = vrot.slane %v8234, 5
      %v8382 = vsel %vm1732, %v8380, %v8381
      %v8383 = vrot.slane %v8235, 5
      %v8384 = vrot.slane %v8383, 4
      %v8385 = vrot.slane %v8236, 5
      %v8386 = vsel %vm1732, %v8384, %v8385
      %v8387 = vrot.slane %v8385, 4
      %v8388 = vrot.slane %v8237, 5
      %v8389 = vsel %vm1732, %v8387, %v8388
      %v8390 = vrot.slane %v8238, 5
      %v8391 = vrot.slane %v8390, 4
      %v8392 = vrot.slane %v8239, 5
      %v8393 = vsel %vm1732, %v8391, %v8392
      %v8394 = vrot.slane %v8392, 4
      %v8395 = vrot.slane %v8240, 5
      %v8396 = vsel %vm1732, %v8394, %v8395
      %v8397 = vrot.slane %v8241, 5
      %v8398 = vrot.slane %v8397, 4
      %v8399 = vrot.slane %v8242, 5
      %v8400 = vsel %vm1732, %v8398, %v8399
      %v8401 = vrot.slane %v8399, 4
      %v8402 = vrot.slane %v8243, 5
      %v8403 = vsel %vm1732, %v8401, %v8402
      %v8404 = vunpack.c.l.b16 %v8295
      %v8405 = vunpack.c.l.b16 %v8298
      %v8406 = vunpack.c.l.b16 %v8302
      %v8407 = vunpack.c.l.b16 %v8305
      %v8408 = vunpack.c.l.b16 %v8309
      %v8409 = vunpack.c.l.b16 %v8312
      %v8410 = vunpack.c.l.b16 %v8316
      %v8411 = vunpack.c.l.b16 %v8319
      %v8412 = vunpack.c.l.b16 %v8323
      %v8413 = vunpack.c.l.b16 %v8326
      %v8414 = vunpack.c.l.b16 %v8330
      %v8415 = vunpack.c.l.b16 %v8333
      %v8416 = vunpack.c.l.b16 %v8337
      %v8417 = vunpack.c.l.b16 %v8340
      %v8418 = vunpack.c.l.b16 %v8344
      %v8419 = vunpack.c.l.b16 %v8347
      %v8420 = vunpack.c.l.b16 %v8351
      %v8421 = vunpack.c.l.b16 %v8354
      %v8422 = vunpack.c.l.b16 %v8358
      %v8423 = vunpack.c.l.b16 %v8361
      %v8424 = vunpack.c.l.b16 %v8365
      %v8425 = vunpack.c.l.b16 %v8368
      %v8426 = vunpack.c.l.b16 %v8372
      %v8427 = vunpack.c.l.b16 %v8375
      %v8428 = vunpack.c.l.b16 %v8379
      %v8429 = vunpack.c.l.b16 %v8382
      %v8430 = vunpack.c.l.b16 %v8386
      %v8431 = vunpack.c.l.b16 %v8389
      %v8432 = vunpack.c.l.b16 %v8393
      %v8433 = vunpack.c.l.b16 %v8396
      %v8434 = vunpack.c.l.b16 %v8400
      %v8435 = vunpack.c.l.b16 %v8403
      %v8436 = vpack.c.b16 %v8405, %v8404
      %v8437 = vpack.c.b16 %v8407, %v8406
      %v8438 = vpack.c.b16 %v8409, %v8408
      %v8439 = vpack.c.b16 %v8411, %v8410
      %v8440 = vpack.c.b16 %v8413, %v8412
      %v8441 = vpack.c.b16 %v8415, %v8414
      %v8442 = vpack.c.b16 %v8417, %v8416
      %v8443 = vpack.c.b16 %v8419, %v8418
      %v8444 = vpack.c.b16 %v8421, %v8420
      %v8445 = vpack.c.b16 %v8423, %v8422
      %v8446 = vpack.c.b16 %v8425, %v8424
      %v8447 = vpack.c.b16 %v8427, %v8426
      %v8448 = vpack.c.b16 %v8429, %v8428
      %v8449 = vpack.c.b16 %v8431, %v8430
      %v8450 = vpack.c.b16 %v8433, %v8432
      %v8451 = vpack.c.b16 %v8435, %v8434
      %8452 = vrot.lane.b32.xlu0 %v8436, 48
      %v8453 = vpop.permute.xlu0 %8452
      %8454 = vrot.lane.b32.xlu0 %v8437, 48
      %v8455 = vpop.permute.xlu0 %8454
      %8456 = vrot.lane.b32.xlu0 %v8438, 48
      %v8457 = vpop.permute.xlu0 %8456
      %8458 = vrot.lane.b32.xlu0 %v8439, 48
      %v8459 = vpop.permute.xlu0 %8458
      %8460 = vrot.lane.b32.xlu0 %v8440, 48
      %v8461 = vpop.permute.xlu0 %8460
      %8462 = vrot.lane.b32.xlu0 %v8441, 48
      %v8463 = vpop.permute.xlu0 %8462
      %8464 = vrot.lane.b32.xlu0 %v8442, 48
      %v8465 = vpop.permute.xlu0 %8464
      %8466 = vrot.lane.b32.xlu0 %v8443, 48
      %v8467 = vpop.permute.xlu0 %8466
      %8468 = vrot.lane.b32.xlu0 %v8444, 48
      %v8469 = vpop.permute.xlu0 %8468
      %8470 = vrot.lane.b32.xlu0 %v8445, 48
      %v8471 = vpop.permute.xlu0 %8470
      %8472 = vrot.lane.b32.xlu0 %v8446, 48
      %v8473 = vpop.permute.xlu0 %8472
      %8474 = vrot.lane.b32.xlu0 %v8447, 48
      %v8475 = vpop.permute.xlu0 %8474
      %8476 = vrot.lane.b32.xlu0 %v8448, 48
      %v8477 = vpop.permute.xlu0 %8476
      %8478 = vrot.lane.b32.xlu0 %v8449, 48
      %v8479 = vpop.permute.xlu0 %8478
      %8480 = vrot.lane.b32.xlu0 %v8450, 48
      %v8481 = vpop.permute.xlu0 %8480
      %8482 = vrot.lane.b32.xlu0 %v8451, 48
      %v8483 = vpop.permute.xlu0 %8482
      %8500 = vst.msk [vmem:[#allocation5] sm:$0xff] %vm6347, %v8453
      %8501 = vst.msk [vmem:[#allocation5 + $0x8] sm:$0xff] %vm6347, %v8455
      %8502 = vst.msk [vmem:[#allocation5 + $0x10] sm:$0xff] %vm6347, %v8457
      %8503 = vst.msk [vmem:[#allocation5 + $0x18] sm:$0xff] %vm6347, %v8459
      %8504 = vst.msk [vmem:[#allocation5 + $0x20] sm:$0xff] %vm6347, %v8461
      %8505 = vst.msk [vmem:[#allocation5 + $0x28] sm:$0xff] %vm6347, %v8463
      %8506 = vst.msk [vmem:[#allocation5 + $0x30] sm:$0xff] %vm6347, %v8465
      %8507 = vst.msk [vmem:[#allocation5 + $0x38] sm:$0xff] %vm6347, %v8467
      %8508 = vst.msk [vmem:[#allocation5 + $0x40] sm:$0xff] %vm6347, %v8469
      %8509 = vst.msk [vmem:[#allocation5 + $0x48] sm:$0xff] %vm6347, %v8471
      %8510 = vst.msk [vmem:[#allocation5 + $0x50] sm:$0xff] %vm6347, %v8473
      %8511 = vst.msk [vmem:[#allocation5 + $0x58] sm:$0xff] %vm6347, %v8475
      %8512 = vst.msk [vmem:[#allocation5 + $0x60] sm:$0xff] %vm6347, %v8477
      %8513 = vst.msk [vmem:[#allocation5 + $0x68] sm:$0xff] %vm6347, %v8479
      %8514 = vst.msk [vmem:[#allocation5 + $0x70] sm:$0xff] %vm6347, %v8481
      %8515 = vst.msk [vmem:[#allocation5 + $0x78] sm:$0xff] %vm6347, %v8483
      %v8516 = vld [vmem:[#allocation5] sm:$0xff]
      %v8517 = vld [vmem:[#allocation5 + $0x8] sm:$0xff]
      %v8518 = vld [vmem:[#allocation5 + $0x10] sm:$0xff]
      %v8519 = vld [vmem:[#allocation5 + $0x18] sm:$0xff]
      %v8520 = vld [vmem:[#allocation5 + $0x20] sm:$0xff]
      %v8521 = vld [vmem:[#allocation5 + $0x28] sm:$0xff]
      %v8522 = vld [vmem:[#allocation5 + $0x30] sm:$0xff]
      %v8523 = vld [vmem:[#allocation5 + $0x38] sm:$0xff]
      %v8524 = vld [vmem:[#allocation5 + $0x40] sm:$0xff]
      %v8525 = vld [vmem:[#allocation5 + $0x48] sm:$0xff]
      %v8526 = vld [vmem:[#allocation5 + $0x50] sm:$0xff]
      %v8527 = vld [vmem:[#allocation5 + $0x58] sm:$0xff]
      %v8528 = vld [vmem:[#allocation5 + $0x60] sm:$0xff]
      %v8529 = vld [vmem:[#allocation5 + $0x68] sm:$0xff]
      %v8530 = vld [vmem:[#allocation5 + $0x70] sm:$0xff]
      %v8531 = vld [vmem:[#allocation5 + $0x78] sm:$0xff]
      %s8532 = scalar_lea.vmem %s4, 32
      %v8533 = vld [vmem:[%s8532] sm:$0xf]
      %v8534 = vld [vmem:[%s8532 + $0x4] sm:$0xf]
      %v8535 = vld [vmem:[%s8532 + $0x8] sm:$0xf]
      %v8536 = vld [vmem:[%s8532 + $0xc] sm:$0xf]
      %v8537 = vld [vmem:[%s8532 + $0x10] sm:$0xf]
      %v8538 = vld [vmem:[%s8532 + $0x14] sm:$0xf]
      %v8539 = vld [vmem:[%s8532 + $0x18] sm:$0xf]
      %v8540 = vld [vmem:[%s8532 + $0x1c] sm:$0xf]
      %v8549 = vunpack.c.l.b16 %v8533
      %v8550 = vunpack.c.l.b16 %v8534
      %v8551 = vunpack.c.l.b16 %v8535
      %v8552 = vunpack.c.l.b16 %v8536
      %v8553 = vunpack.c.l.b16 %v8537
      %v8554 = vunpack.c.l.b16 %v8538
      %v8555 = vunpack.c.l.b16 %v8539
      %v8556 = vunpack.c.l.b16 %v8540
      %v8557 = vpack.c.b16 %v8550, %v8549
      %v8558 = vpack.c.b16 %v8552, %v8551
      %v8559 = vpack.c.b16 %v8554, %v8553
      %v8560 = vpack.c.b16 %v8556, %v8555
      %v8566 = vsel %vm6418, %v8516, 0
      %v8569 = vsel %vm6418, %v8517, 0
      %v8572 = vsel %vm6418, %v8518, 0
      %v8575 = vsel %vm6418, %v8519, 0
      %v8578 = vsel %vm6418, %v8520, 0
      %v8581 = vsel %vm6418, %v8521, 0
      %v8584 = vsel %vm6418, %v8522, 0
      %v8587 = vsel %vm6418, %v8523, 0
      %v8590 = vsel %vm6418, %v8524, 0
      %v8593 = vsel %vm6418, %v8525, 0
      %v8596 = vsel %vm6418, %v8526, 0
      %v8599 = vsel %vm6418, %v8527, 0
      %v8602 = vsel %vm6418, %v8528, 0
      %v8605 = vsel %vm6418, %v8529, 0
      %v8608 = vsel %vm6418, %v8530, 0
      %v8611 = vsel %vm6418, %v8531, 0
      %8613 = vmatprep.subr.bf16.mxu0 0
      %8614 = vmatpush1.bf16.msra.mxu0 %v8557
      %8615 = vmatprep.subr.bf16.mxu0 0
      %8616 = vmatpush1.bf16.msra.mxu0 %v8558
      %8617 = vmatprep.subr.bf16.mxu0 0
      %8618 = vmatpush1.bf16.msra.mxu0 %v8559
      %8619 = vmatprep.subr.bf16.mxu0 0
      %8620 = vmatpush1.bf16.msra.mxu0 %v8560
      %8621 = vmatprep.subr.bf16.mxu0 0
      %8622 = vmatpush1.bf16.msra.mxu0 0
      %8623 = vmatprep.subr.bf16.mxu0 0
      %8624 = vmatpush1.bf16.msra.mxu0 0
      %8625 = vmatprep.subr.bf16.mxu0 0
      %8626 = vmatpush1.bf16.msra.mxu0 0
      %8627 = vmatprep.subr.bf16.mxu0 0
      %8628 = vmatpush1.bf16.msra.mxu0 0
      %8629 = vmatprep.subr.bf16.mxu0 0
      %8630 = vmatpush1.bf16.msra.mxu0 0
      %8631 = vmatprep.subr.bf16.mxu0 0
      %8632 = vmatpush1.bf16.msra.mxu0 0
      %8633 = vmatprep.subr.bf16.mxu0 0
      %8634 = vmatpush1.bf16.msra.mxu0 0
      %8635 = vmatprep.subr.bf16.mxu0 0
      %8636 = vmatpush1.bf16.msra.mxu0 0
      %8637 = vmatprep.subr.bf16.mxu0 0
      %8638 = vmatpush1.bf16.msra.mxu0 0
      %8639 = vmatprep.subr.bf16.mxu0 0
      %8640 = vmatpush1.bf16.msra.mxu0 0
      %8641 = vmatprep.subr.bf16.mxu0 0
      %8642 = vmatpush1.bf16.msra.mxu0 0
      %8643 = vmatprep.subr.bf16.mxu0 0
      %8644 = vmatpush1.bf16.msra.mxu0 0
      %8645 = vmatprep.mubr.bf16.mxu0 0
      %8646 = vmatmul.mubr.bf16.gmra.mrb[0].mxu0 %v8566
      %v8647 = vpop.f32.mrb[0].mxu0
      %v8648 = vadd.f32 %v6392, %v8647
      %v8649 = vpop.f32.mrb[0].mxu0
      %v8650 = vpop.f32.mrb[0].mxu0
      %v8651 = vadd.f32 %v6392, %v8650
      %v8652 = vpop.f32.mrb[0].mxu0
      %8653 = vmatprep.mubr.bf16.mxu0 0
      %8654 = vmatmul.mubr.bf16.gmra.mrb[0].mxu0 %v8569
      %v8655 = vpop.f32.mrb[0].mxu0
      %v8656 = vadd.f32 %v6392, %v8655
      %v8657 = vpop.f32.mrb[0].mxu0
      %v8658 = vpop.f32.mrb[0].mxu0
      %v8659 = vadd.f32 %v6392, %v8658
      %v8660 = vpop.f32.mrb[0].mxu0
      %8661 = vmatprep.mubr.bf16.mxu0 0
      %8662 = vmatmul.mubr.bf16.gmra.mrb[0].mxu0 %v8572
      %v8663 = vpop.f32.mrb[0].mxu0
      %v8664 = vadd.f32 %v6392, %v8663
      %v8665 = vpop.f32.mrb[0].mxu0
      %v8666 = vpop.f32.mrb[0].mxu0
      %v8667 = vadd.f32 %v6392, %v8666
      %v8668 = vpop.f32.mrb[0].mxu0
      %8669 = vmatprep.mubr.bf16.mxu0 0
      %8670 = vmatmul.mubr.bf16.gmra.mrb[0].mxu0 %v8575
      %v8671 = vpop.f32.mrb[0].mxu0
      %v8672 = vadd.f32 %v6392, %v8671
      %v8673 = vpop.f32.mrb[0].mxu0
      %v8674 = vpop.f32.mrb[0].mxu0
      %v8675 = vadd.f32 %v6392, %v8674
      %v8676 = vpop.f32.mrb[0].mxu0
      %8677 = vmatprep.mubr.bf16.mxu0 0
      %8678 = vmatmul.mubr.bf16.gmra.mrb[0].mxu0 %v8578
      %v8679 = vpop.f32.mrb[0].mxu0
      %v8680 = vadd.f32 %v6392, %v8679
      %v8681 = vpop.f32.mrb[0].mxu0
      %v8682 = vpop.f32.mrb[0].mxu0
      %v8683 = vadd.f32 %v6392, %v8682
      %v8684 = vpop.f32.mrb[0].mxu0
      %8685 = vmatprep.mubr.bf16.mxu0 0
      %8686 = vmatmul.mubr.bf16.gmra.mrb[0].mxu0 %v8581
      %v8687 = vpop.f32.mrb[0].mxu0
      %v8688 = vadd.f32 %v6392, %v8687
      %v8689 = vpop.f32.mrb[0].mxu0
      %v8690 = vpop.f32.mrb[0].mxu0
      %v8691 = vadd.f32 %v6392, %v8690
      %v8692 = vpop.f32.mrb[0].mxu0
      %8693 = vmatprep.mubr.bf16.mxu0 0
      %8694 = vmatmul.mubr.bf16.gmra.mrb[0].mxu0 %v8584
      %v8695 = vpop.f32.mrb[0].mxu0
      %v8696 = vadd.f32 %v6392, %v8695
      %v8697 = vpop.f32.mrb[0].mxu0
      %v8698 = vpop.f32.mrb[0].mxu0
      %v8699 = vadd.f32 %v6392, %v8698
      %v8700 = vpop.f32.mrb[0].mxu0
      %8701 = vmatprep.mubr.bf16.mxu0 0
      %8702 = vmatmul.mubr.bf16.gmra.mrb[0].mxu0 %v8587
      %v8703 = vpop.f32.mrb[0].mxu0
      %v8704 = vadd.f32 %v6392, %v8703
      %v8705 = vpop.f32.mrb[0].mxu0
      %v8706 = vpop.f32.mrb[0].mxu0
      %v8707 = vadd.f32 %v6392, %v8706
      %v8708 = vpop.f32.mrb[0].mxu0
      %8709 = vmatprep.mubr.bf16.mxu0 0
      %8710 = vmatmul.mubr.bf16.gmra.mrb[0].mxu0 %v8590
      %v8711 = vpop.f32.mrb[0].mxu0
      %v8712 = vadd.f32 %v6392, %v8711
      %v8713 = vpop.f32.mrb[0].mxu0
      %v8714 = vpop.f32.mrb[0].mxu0
      %v8715 = vadd.f32 %v6392, %v8714
      %v8716 = vpop.f32.mrb[0].mxu0
      %8717 = vmatprep.mubr.bf16.mxu0 0
      %8718 = vmatmul.mubr.bf16.gmra.mrb[0].mxu0 %v8593
      %v8719 = vpop.f32.mrb[0].mxu0
      %v8720 = vadd.f32 %v6392, %v8719
      %v8721 = vpop.f32.mrb[0].mxu0
      %v8722 = vpop.f32.mrb[0].mxu0
      %v8723 = vadd.f32 %v6392, %v8722
      %v8724 = vpop.f32.mrb[0].mxu0
      %8725 = vmatprep.mubr.bf16.mxu0 0
      %8726 = vmatmul.mubr.bf16.gmra.mrb[0].mxu0 %v8596
      %v8727 = vpop.f32.mrb[0].mxu0
      %v8728 = vadd.f32 %v6392, %v8727
      %v8729 = vpop.f32.mrb[0].mxu0
      %v8730 = vpop.f32.mrb[0].mxu0
      %v8731 = vadd.f32 %v6392, %v8730
      %v8732 = vpop.f32.mrb[0].mxu0
      %8733 = vmatprep.mubr.bf16.mxu0 0
      %8734 = vmatmul.mubr.bf16.gmra.mrb[0].mxu0 %v8599
      %v8735 = vpop.f32.mrb[0].mxu0
      %v8736 = vadd.f32 %v6392, %v8735
      %v8737 = vpop.f32.mrb[0].mxu0
      %v8738 = vpop.f32.mrb[0].mxu0
      %v8739 = vadd.f32 %v6392, %v8738
      %v8740 = vpop.f32.mrb[0].mxu0
      %8741 = vmatprep.mubr.bf16.mxu0 0
      %8742 = vmatmul.mubr.bf16.gmra.mrb[0].mxu0 %v8602
      %v8743 = vpop.f32.mrb[0].mxu0
      %v8744 = vadd.f32 %v6392, %v8743
      %v8745 = vpop.f32.mrb[0].mxu0
      %v8746 = vpop.f32.mrb[0].mxu0
      %v8747 = vadd.f32 %v6392, %v8746
      %v8748 = vpop.f32.mrb[0].mxu0
      %8749 = vmatprep.mubr.bf16.mxu0 0
      %8750 = vmatmul.mubr.bf16.gmra.mrb[0].mxu0 %v8605
      %v8751 = vpop.f32.mrb[0].mxu0
      %v8752 = vadd.f32 %v6392, %v8751
      %v8753 = vpop.f32.mrb[0].mxu0
      %v8754 = vpop.f32.mrb[0].mxu0
      %v8755 = vadd.f32 %v6392, %v8754
      %v8756 = vpop.f32.mrb[0].mxu0
      %8757 = vmatprep.mubr.bf16.mxu0 0
      %8758 = vmatmul.mubr.bf16.gmra.mrb[0].mxu0 %v8608
      %v8759 = vpop.f32.mrb[0].mxu0
      %v8760 = vadd.f32 %v6392, %v8759
      %v8761 = vpop.f32.mrb[0].mxu0
      %v8762 = vpop.f32.mrb[0].mxu0
      %v8763 = vadd.f32 %v6392, %v8762
      %v8764 = vpop.f32.mrb[0].mxu0
      %8765 = vmatprep.mubr.bf16.mxu0 0
      %8766 = vmatmul.mubr.bf16.gmra.mrb[0].mxu0 %v8611
      %v8767 = vpop.f32.mrb[0].mxu0
      %v8768 = vadd.f32 %v6392, %v8767
      %v8769 = vpop.f32.mrb[0].mxu0
      %v8770 = vpop.f32.mrb[0].mxu0
      %v8771 = vadd.f32 %v6392, %v8770
      %v8772 = vpop.f32.mrb[0].mxu0
      %8773 = vdwg.mxu0
      %v8774 = vmax.f32 %v8648, 0.0
      %v8775 = vmax.f32 %v8651, 0.0
      %v8776 = vmax.f32 %v8656, 0.0
      %v8777 = vmax.f32 %v8659, 0.0
      %v8778 = vmax.f32 %v8664, 0.0
      %v8779 = vmax.f32 %v8667, 0.0
      %v8780 = vmax.f32 %v8672, 0.0
      %v8781 = vmax.f32 %v8675, 0.0
      %v8782 = vmax.f32 %v8680, 0.0
      %v8783 = vmax.f32 %v8683, 0.0
      %v8784 = vmax.f32 %v8688, 0.0
      %v8785 = vmax.f32 %v8691, 0.0
      %v8786 = vmax.f32 %v8696, 0.0
      %v8787 = vmax.f32 %v8699, 0.0
      %v8788 = vmax.f32 %v8704, 0.0
      %v8789 = vmax.f32 %v8707, 0.0
      %v8790 = vmax.f32 %v8712, 0.0
      %v8791 = vmax.f32 %v8715, 0.0
      %v8792 = vmax.f32 %v8720, 0.0
      %v8793 = vmax.f32 %v8723, 0.0
      %v8794 = vmax.f32 %v8728, 0.0
      %v8795 = vmax.f32 %v8731, 0.0
      %v8796 = vmax.f32 %v8736, 0.0
      %v8797 = vmax.f32 %v8739, 0.0
      %v8798 = vmax.f32 %v8744, 0.0
      %v8799 = vmax.f32 %v8747, 0.0
      %v8800 = vmax.f32 %v8752, 0.0
      %v8801 = vmax.f32 %v8755, 0.0
      %v8802 = vmax.f32 %v8760, 0.0
      %v8803 = vmax.f32 %v8763, 0.0
      %v8804 = vmax.f32 %v8768, 0.0
      %v8805 = vmax.f32 %v8771, 0.0
      %v8806 = vpack.c.bf16 %v8775, %v8774
      %v8807 = vpack.c.bf16 %v8777, %v8776
      %v8808 = vpack.c.bf16 %v8779, %v8778
      %v8809 = vpack.c.bf16 %v8781, %v8780
      %v8810 = vpack.c.bf16 %v8783, %v8782
      %v8811 = vpack.c.bf16 %v8785, %v8784
      %v8812 = vpack.c.bf16 %v8787, %v8786
      %v8813 = vpack.c.bf16 %v8789, %v8788
      %v8814 = vpack.c.bf16 %v8791, %v8790
      %v8815 = vpack.c.bf16 %v8793, %v8792
      %v8816 = vpack.c.bf16 %v8795, %v8794
      %v8817 = vpack.c.bf16 %v8797, %v8796
      %v8818 = vpack.c.bf16 %v8799, %v8798
      %v8819 = vpack.c.bf16 %v8801, %v8800
      %v8820 = vpack.c.bf16 %v8803, %v8802
      %v8821 = vpack.c.bf16 %v8805, %v8804
      %v8838 = vunpack.c.l.b16 %v8806
      %v8839 = vunpack.c.h.b16 %v8806
      %v8840 = vunpack.c.l.b16 %v8807
      %v8841 = vunpack.c.h.b16 %v8807
      %v8842 = vunpack.c.l.b16 %v8808
      %v8843 = vunpack.c.h.b16 %v8808
      %v8844 = vunpack.c.l.b16 %v8809
      %v8845 = vunpack.c.h.b16 %v8809
      %v8846 = vunpack.c.l.b16 %v8810
      %v8847 = vunpack.c.h.b16 %v8810
      %v8848 = vunpack.c.l.b16 %v8811
      %v8849 = vunpack.c.h.b16 %v8811
      %v8850 = vunpack.c.l.b16 %v8812
      %v8851 = vunpack.c.h.b16 %v8812
      %v8852 = vunpack.c.l.b16 %v8813
      %v8853 = vunpack.c.h.b16 %v8813
      %v8854 = vunpack.c.l.b16 %v8814
      %v8855 = vunpack.c.h.b16 %v8814
      %v8856 = vunpack.c.l.b16 %v8815
      %v8857 = vunpack.c.h.b16 %v8815
      %v8858 = vunpack.c.l.b16 %v8816
      %v8859 = vunpack.c.h.b16 %v8816
      %v8860 = vunpack.c.l.b16 %v8817
      %v8861 = vunpack.c.h.b16 %v8817
      %v8862 = vunpack.c.l.b16 %v8818
      %v8863 = vunpack.c.h.b16 %v8818
      %v8864 = vunpack.c.l.b16 %v8819
      %v8865 = vunpack.c.h.b16 %v8819
      %v8866 = vunpack.c.l.b16 %v8820
      %v8867 = vunpack.c.h.b16 %v8820
      %v8868 = vunpack.c.l.b16 %v8821
      %v8869 = vunpack.c.h.b16 %v8821
      %v8870 = vpack.c.b16 %v8838, %v8838
      %v8871 = vpack.c.b16 %v8839, %v8839
      %v8872 = vpack.c.b16 %v8840, %v8840
      %v8873 = vpack.c.b16 %v8841, %v8841
      %v8874 = vpack.c.b16 %v8842, %v8842
      %v8875 = vpack.c.b16 %v8843, %v8843
      %v8876 = vpack.c.b16 %v8844, %v8844
      %v8877 = vpack.c.b16 %v8845, %v8845
      %v8878 = vpack.c.b16 %v8846, %v8846
      %v8879 = vpack.c.b16 %v8847, %v8847
      %v8880 = vpack.c.b16 %v8848, %v8848
      %v8881 = vpack.c.b16 %v8849, %v8849
      %v8882 = vpack.c.b16 %v8850, %v8850
      %v8883 = vpack.c.b16 %v8851, %v8851
      %v8884 = vpack.c.b16 %v8852, %v8852
      %v8885 = vpack.c.b16 %v8853, %v8853
      %v8886 = vpack.c.b16 %v8854, %v8854
      %v8887 = vpack.c.b16 %v8855, %v8855
      %v8888 = vpack.c.b16 %v8856, %v8856
      %v8889 = vpack.c.b16 %v8857, %v8857
      %v8890 = vpack.c.b16 %v8858, %v8858
      %v8891 = vpack.c.b16 %v8859, %v8859
      %v8892 = vpack.c.b16 %v8860, %v8860
      %v8893 = vpack.c.b16 %v8861, %v8861
      %v8894 = vpack.c.b16 %v8862, %v8862
      %v8895 = vpack.c.b16 %v8863, %v8863
      %v8896 = vpack.c.b16 %v8864, %v8864
      %v8897 = vpack.c.b16 %v8865, %v8865
      %v8898 = vpack.c.b16 %v8866, %v8866
      %v8899 = vpack.c.b16 %v8867, %v8867
      %v8900 = vpack.c.b16 %v8868, %v8868
      %v8901 = vpack.c.b16 %v8869, %v8869
      %s8934 = scalar_lea.vmem %s251, 128
      %8935 = vst.msk [vmem:[%s8934] sm:$0xf] %vm253, %v8870
      %8936 = vst.msk [vmem:[%s8934 + $0x4] sm:$0xf] %vm253, %v8871
      %8937 = vst.msk [vmem:[%s8934 + $0x8] sm:$0xf] %vm253, %v8872
      %8938 = vst.msk [vmem:[%s8934 + $0xc] sm:$0xf] %vm253, %v8873
      %8939 = vst.msk [vmem:[%s8934 + $0x10] sm:$0xf] %vm253, %v8874
      %8940 = vst.msk [vmem:[%s8934 + $0x14] sm:$0xf] %vm253, %v8875
      %8941 = vst.msk [vmem:[%s8934 + $0x18] sm:$0xf] %vm253, %v8876
      %8942 = vst.msk [vmem:[%s8934 + $0x1c] sm:$0xf] %vm253, %v8877
      %8943 = vst.msk [vmem:[%s8934 + $0x20] sm:$0xf] %vm253, %v8878
      %8944 = vst.msk [vmem:[%s8934 + $0x24] sm:$0xf] %vm253, %v8879
      %8945 = vst.msk [vmem:[%s8934 + $0x28] sm:$0xf] %vm253, %v8880
      %8946 = vst.msk [vmem:[%s8934 + $0x2c] sm:$0xf] %vm253, %v8881
      %8947 = vst.msk [vmem:[%s8934 + $0x30] sm:$0xf] %vm253, %v8882
      %8948 = vst.msk [vmem:[%s8934 + $0x34] sm:$0xf] %vm253, %v8883
      %8949 = vst.msk [vmem:[%s8934 + $0x38] sm:$0xf] %vm253, %v8884
      %8950 = vst.msk [vmem:[%s8934 + $0x3c] sm:$0xf] %vm253, %v8885
      %8951 = vst.msk [vmem:[%s8934 + $0x40] sm:$0xf] %vm253, %v8886
      %8952 = vst.msk [vmem:[%s8934 + $0x44] sm:$0xf] %vm253, %v8887
      %8953 = vst.msk [vmem:[%s8934 + $0x48] sm:$0xf] %vm253, %v8888
      %8954 = vst.msk [vmem:[%s8934 + $0x4c] sm:$0xf] %vm253, %v8889
      %8955 = vst.msk [vmem:[%s8934 + $0x50] sm:$0xf] %vm253, %v8890
      %8956 = vst.msk [vmem:[%s8934 + $0x54] sm:$0xf] %vm253, %v8891
      %8957 = vst.msk [vmem:[%s8934 + $0x58] sm:$0xf] %vm253, %v8892
      %8958 = vst.msk [vmem:[%s8934 + $0x5c] sm:$0xf] %vm253, %v8893
      %8959 = vst.msk [vmem:[%s8934 + $0x60] sm:$0xf] %vm253, %v8894
      %8960 = vst.msk [vmem:[%s8934 + $0x64] sm:$0xf] %vm253, %v8895
      %8961 = vst.msk [vmem:[%s8934 + $0x68] sm:$0xf] %vm253, %v8896
      %8962 = vst.msk [vmem:[%s8934 + $0x6c] sm:$0xf] %vm253, %v8897
      %8963 = vst.msk [vmem:[%s8934 + $0x70] sm:$0xf] %vm253, %v8898
      %8964 = vst.msk [vmem:[%s8934 + $0x74] sm:$0xf] %vm253, %v8899
      %8965 = vst.msk [vmem:[%s8934 + $0x78] sm:$0xf] %vm253, %v8900
      %8966 = vst.msk [vmem:[%s8934 + $0x7c] sm:$0xf] %vm253, %v8901
      %v8967 = vld [vmem:[%s373] sm:$0xf]
      %v8968 = vld [vmem:[%s373 + $0x4] sm:$0xf]
      %v8969 = vld [vmem:[%s373 + $0xc] sm:$0xf]
      %v8970 = vld [vmem:[%s373 + $0x10] sm:$0xf]
      %v8971 = vld [vmem:[%s373 + $0x18] sm:$0xf]
      %v8972 = vld [vmem:[%s373 + $0x1c] sm:$0xf]
      %v8973 = vld [vmem:[%s373 + $0x24] sm:$0xf]
      %v8974 = vld [vmem:[%s373 + $0x28] sm:$0xf]
      %v8975 = vld [vmem:[%s373 + $0x30] sm:$0xf]
      %v8976 = vld [vmem:[%s373 + $0x34] sm:$0xf]
      %v8977 = vld [vmem:[%s373 + $0x3c] sm:$0xf]
      %v8978 = vld [vmem:[%s373 + $0x40] sm:$0xf]
      %v8979 = vld [vmem:[%s373 + $0x48] sm:$0xf]
      %v8980 = vld [vmem:[%s373 + $0x4c] sm:$0xf]
      %v8981 = vld [vmem:[%s373 + $0x54] sm:$0xf]
      %v8982 = vld [vmem:[%s373 + $0x58] sm:$0xf]
      %v8983 = vld [vmem:[%s373 + $0x60] sm:$0xf]
      %v8984 = vld [vmem:[%s373 + $0x64] sm:$0xf]
      %v8985 = vld [vmem:[%s373 + $0x6c] sm:$0xf]
      %v8986 = vld [vmem:[%s373 + $0x70] sm:$0xf]
      %v8987 = vld [vmem:[%s373 + $0x78] sm:$0xf]
      %v8988 = vld [vmem:[%s373 + $0x7c] sm:$0xf]
      %v8989 = vld [vmem:[%s373 + $0x84] sm:$0xf]
      %v8990 = vld [vmem:[%s373 + $0x88] sm:$0xf]
      %v8991 = vld [vmem:[%s373 + $0x90] sm:$0xf]
      %v8992 = vld [vmem:[%s373 + $0x94] sm:$0xf]
      %v8993 = vld [vmem:[%s373 + $0x9c] sm:$0xf]
      %v8994 = vld [vmem:[%s373 + $0xa0] sm:$0xf]
      %v8995 = vld [vmem:[%s373 + $0xa8] sm:$0xf]
      %v8996 = vld [vmem:[%s373 + $0xac] sm:$0xf]
      %v8997 = vld [vmem:[%s373 + $0xb4] sm:$0xf]
      %v8998 = vld [vmem:[%s373 + $0xb8] sm:$0xf]
      %v9031 = vunpack.c.l.b16 %v8967
      %v9032 = vunpack.c.l.b16 %v8968
      %v9033 = vunpack.c.l.b16 %v8969
      %v9034 = vunpack.c.l.b16 %v8970
      %v9035 = vunpack.c.l.b16 %v8971
      %v9036 = vunpack.c.l.b16 %v8972
      %v9037 = vunpack.c.l.b16 %v8973
      %v9038 = vunpack.c.l.b16 %v8974
      %v9039 = vunpack.c.l.b16 %v8975
      %v9040 = vunpack.c.l.b16 %v8976
      %v9041 = vunpack.c.l.b16 %v8977
      %v9042 = vunpack.c.l.b16 %v8978
      %v9043 = vunpack.c.l.b16 %v8979
      %v9044 = vunpack.c.l.b16 %v8980
      %v9045 = vunpack.c.l.b16 %v8981
      %v9046 = vunpack.c.l.b16 %v8982
      %v9047 = vunpack.c.l.b16 %v8983
      %v9048 = vunpack.c.l.b16 %v8984
      %v9049 = vunpack.c.l.b16 %v8985
      %v9050 = vunpack.c.l.b16 %v8986
      %v9051 = vunpack.c.l.b16 %v8987
      %v9052 = vunpack.c.l.b16 %v8988
      %v9053 = vunpack.c.l.b16 %v8989
      %v9054 = vunpack.c.l.b16 %v8990
      %v9055 = vunpack.c.l.b16 %v8991
      %v9056 = vunpack.c.l.b16 %v8992
      %v9057 = vunpack.c.l.b16 %v8993
      %v9058 = vunpack.c.l.b16 %v8994
      %v9059 = vunpack.c.l.b16 %v8995
      %v9060 = vunpack.c.l.b16 %v8996
      %v9061 = vunpack.c.l.b16 %v8997
      %v9062 = vunpack.c.l.b16 %v8998
      %v9063 = vpack.c.b16 %v9032, %v9031
      %v9064 = vpack.c.b16 %v9034, %v9033
      %v9065 = vpack.c.b16 %v9036, %v9035
      %v9066 = vpack.c.b16 %v9038, %v9037
      %v9067 = vpack.c.b16 %v9040, %v9039
      %v9068 = vpack.c.b16 %v9042, %v9041
      %v9069 = vpack.c.b16 %v9044, %v9043
      %v9070 = vpack.c.b16 %v9046, %v9045
      %v9071 = vpack.c.b16 %v9048, %v9047
      %v9072 = vpack.c.b16 %v9050, %v9049
      %v9073 = vpack.c.b16 %v9052, %v9051
      %v9074 = vpack.c.b16 %v9054, %v9053
      %v9075 = vpack.c.b16 %v9056, %v9055
      %v9076 = vpack.c.b16 %v9058, %v9057
      %v9077 = vpack.c.b16 %v9060, %v9059
      %v9078 = vpack.c.b16 %v9062, %v9061
      %9095 = vst.msk [vmem:[#allocation5] sm:$0xff] %vm5080, %v9063
      %9096 = vst.msk [vmem:[#allocation5 + $0x8] sm:$0xff] %vm5080, %v9064
      %9097 = vst.msk [vmem:[#allocation5 + $0x10] sm:$0xff] %vm5080, %v9065
      %9098 = vst.msk [vmem:[#allocation5 + $0x18] sm:$0xff] %vm5080, %v9066
      %9099 = vst.msk [vmem:[#allocation5 + $0x20] sm:$0xff] %vm5080, %v9067
      %9100 = vst.msk [vmem:[#allocation5 + $0x28] sm:$0xff] %vm5080, %v9068
      %9101 = vst.msk [vmem:[#allocation5 + $0x30] sm:$0xff] %vm5080, %v9069
      %9102 = vst.msk [vmem:[#allocation5 + $0x38] sm:$0xff] %vm5080, %v9070
      %9103 = vst.msk [vmem:[#allocation5 + $0x40] sm:$0xff] %vm5080, %v9071
      %9104 = vst.msk [vmem:[#allocation5 + $0x48] sm:$0xff] %vm5080, %v9072
      %9105 = vst.msk [vmem:[#allocation5 + $0x50] sm:$0xff] %vm5080, %v9073
      %9106 = vst.msk [vmem:[#allocation5 + $0x58] sm:$0xff] %vm5080, %v9074
      %9107 = vst.msk [vmem:[#allocation5 + $0x60] sm:$0xff] %vm5080, %v9075
      %9108 = vst.msk [vmem:[#allocation5 + $0x68] sm:$0xff] %vm5080, %v9076
      %9109 = vst.msk [vmem:[#allocation5 + $0x70] sm:$0xff] %vm5080, %v9077
      %9110 = vst.msk [vmem:[#allocation5 + $0x78] sm:$0xff] %vm5080, %v9078
      %v9111 = vld [vmem:[%s373] sm:$0xf]
      %v9112 = vld [vmem:[%s373 + $0x4] sm:$0xf]
      %v9113 = vld [vmem:[%s373 + $0x8] sm:$0x1]
      %v9114 = vld [vmem:[%s373 + $0xc] sm:$0xf]
      %v9115 = vld [vmem:[%s373 + $0x10] sm:$0xf]
      %v9116 = vld [vmem:[%s373 + $0x14] sm:$0x1]
      %v9117 = vld [vmem:[%s373 + $0x18] sm:$0xf]
      %v9118 = vld [vmem:[%s373 + $0x1c] sm:$0xf]
      %v9119 = vld [vmem:[%s373 + $0x20] sm:$0x1]
      %v9120 = vld [vmem:[%s373 + $0x24] sm:$0xf]
      %v9121 = vld [vmem:[%s373 + $0x28] sm:$0xf]
      %v9122 = vld [vmem:[%s373 + $0x2c] sm:$0x1]
      %v9123 = vld [vmem:[%s373 + $0x30] sm:$0xf]
      %v9124 = vld [vmem:[%s373 + $0x34] sm:$0xf]
      %v9125 = vld [vmem:[%s373 + $0x38] sm:$0x1]
      %v9126 = vld [vmem:[%s373 + $0x3c] sm:$0xf]
      %v9127 = vld [vmem:[%s373 + $0x40] sm:$0xf]
      %v9128 = vld [vmem:[%s373 + $0x44] sm:$0x1]
      %v9129 = vld [vmem:[%s373 + $0x48] sm:$0xf]
      %v9130 = vld [vmem:[%s373 + $0x4c] sm:$0xf]
      %v9131 = vld [vmem:[%s373 + $0x50] sm:$0x1]
      %v9132 = vld [vmem:[%s373 + $0x54] sm:$0xf]
      %v9133 = vld [vmem:[%s373 + $0x58] sm:$0xf]
      %v9134 = vld [vmem:[%s373 + $0x5c] sm:$0x1]
      %v9135 = vld [vmem:[%s373 + $0x60] sm:$0xf]
      %v9136 = vld [vmem:[%s373 + $0x64] sm:$0xf]
      %v9137 = vld [vmem:[%s373 + $0x68] sm:$0x1]
      %v9138 = vld [vmem:[%s373 + $0x6c] sm:$0xf]
      %v9139 = vld [vmem:[%s373 + $0x70] sm:$0xf]
      %v9140 = vld [vmem:[%s373 + $0x74] sm:$0x1]
      %v9141 = vld [vmem:[%s373 + $0x78] sm:$0xf]
      %v9142 = vld [vmem:[%s373 + $0x7c] sm:$0xf]
      %v9143 = vld [vmem:[%s373 + $0x80] sm:$0x1]
      %v9144 = vld [vmem:[%s373 + $0x84] sm:$0xf]
      %v9145 = vld [vmem:[%s373 + $0x88] sm:$0xf]
      %v9146 = vld [vmem:[%s373 + $0x8c] sm:$0x1]
      %v9147 = vld [vmem:[%s373 + $0x90] sm:$0xf]
      %v9148 = vld [vmem:[%s373 + $0x94] sm:$0xf]
      %v9149 = vld [vmem:[%s373 + $0x98] sm:$0x1]
      %v9150 = vld [vmem:[%s373 + $0x9c] sm:$0xf]
      %v9151 = vld [vmem:[%s373 + $0xa0] sm:$0xf]
      %v9152 = vld [vmem:[%s373 + $0xa4] sm:$0x1]
      %v9153 = vld [vmem:[%s373 + $0xa8] sm:$0xf]
      %v9154 = vld [vmem:[%s373 + $0xac] sm:$0xf]
      %v9155 = vld [vmem:[%s373 + $0xb0] sm:$0x1]
      %v9156 = vld [vmem:[%s373 + $0xb4] sm:$0xf]
      %v9157 = vld [vmem:[%s373 + $0xb8] sm:$0xf]
      %v9158 = vld [vmem:[%s373 + $0xbc] sm:$0x1]
      %v9160 = vshrl.u32 %v9111, 16
      %v9162 = vrot.slane %v9160, 4
      %v9163 = vshll.u32 %v9111, 16
      %v9165 = vrot.slane %v9163, 5
      %v9166 = vor.u32 %v9162, %v9165
      %v9167 = vrot.slane %v9166, 4
      %v9169 = vshll.u32 %v9112, 16
      %v9171 = vrot.slane %v9169, 5
      %v9172 = vsel %vm1136, %v9167, %v9171
      %v9173 = vshrl.u32 %v9112, 16
      %v9175 = vrot.slane %v9173, 4
      %v9176 = vor.u32 %v9175, %v9171
      %v9177 = vrot.slane %v9176, 4
      %v9179 = vshll.u32 %v9113, 16
      %v9181 = vrot.slane %v9179, 5
      %v9182 = vsel %vm1136, %v9177, %v9181
      %v9184 = vshrl.u32 %v9114, 16
      %v9186 = vrot.slane %v9184, 4
      %v9187 = vshll.u32 %v9114, 16
      %v9189 = vrot.slane %v9187, 5
      %v9190 = vor.u32 %v9186, %v9189
      %v9191 = vrot.slane %v9190, 4
      %v9193 = vshll.u32 %v9115, 16
      %v9195 = vrot.slane %v9193, 5
      %v9196 = vsel %vm1136, %v9191, %v9195
      %v9197 = vshrl.u32 %v9115, 16
      %v9199 = vrot.slane %v9197, 4
      %v9200 = vor.u32 %v9199, %v9195
      %v9201 = vrot.slane %v9200, 4
      %v9203 = vshll.u32 %v9116, 16
      %v9205 = vrot.slane %v9203, 5
      %v9206 = vsel %vm1136, %v9201, %v9205
      %v9208 = vshrl.u32 %v9117, 16
      %v9210 = vrot.slane %v9208, 4
      %v9211 = vshll.u32 %v9117, 16
      %v9213 = vrot.slane %v9211, 5
      %v9214 = vor.u32 %v9210, %v9213
      %v9215 = vrot.slane %v9214, 4
      %v9217 = vshll.u32 %v9118, 16
      %v9219 = vrot.slane %v9217, 5
      %v9220 = vsel %vm1136, %v9215, %v9219
      %v9221 = vshrl.u32 %v9118, 16
      %v9223 = vrot.slane %v9221, 4
      %v9224 = vor.u32 %v9223, %v9219
      %v9225 = vrot.slane %v9224, 4
      %v9227 = vshll.u32 %v9119, 16
      %v9229 = vrot.slane %v9227, 5
      %v9230 = vsel %vm1136, %v9225, %v9229
      %v9232 = vshrl.u32 %v9120, 16
      %v9234 = vrot.slane %v9232, 4
      %v9235 = vshll.u32 %v9120, 16
      %v9237 = vrot.slane %v9235, 5
      %v9238 = vor.u32 %v9234, %v9237
      %v9239 = vrot.slane %v9238, 4
      %v9241 = vshll.u32 %v9121, 16
      %v9243 = vrot.slane %v9241, 5
      %v9244 = vsel %vm1136, %v9239, %v9243
      %v9245 = vshrl.u32 %v9121, 16
      %v9247 = vrot.slane %v9245, 4
      %v9248 = vor.u32 %v9247, %v9243
      %v9249 = vrot.slane %v9248, 4
      %v9251 = vshll.u32 %v9122, 16
      %v9253 = vrot.slane %v9251, 5
      %v9254 = vsel %vm1136, %v9249, %v9253
      %v9256 = vshrl.u32 %v9123, 16
      %v9258 = vrot.slane %v9256, 4
      %v9259 = vshll.u32 %v9123, 16
      %v9261 = vrot.slane %v9259, 5
      %v9262 = vor.u32 %v9258, %v9261
      %v9263 = vrot.slane %v9262, 4
      %v9265 = vshll.u32 %v9124, 16
      %v9267 = vrot.slane %v9265, 5
      %v9268 = vsel %vm1136, %v9263, %v9267
      %v9269 = vshrl.u32 %v9124, 16
      %v9271 = vrot.slane %v9269, 4
      %v9272 = vor.u32 %v9271, %v9267
      %v9273 = vrot.slane %v9272, 4
      %v9275 = vshll.u32 %v9125, 16
      %v9277 = vrot.slane %v9275, 5
      %v9278 = vsel %vm1136, %v9273, %v9277
      %v9280 = vshrl.u32 %v9126, 16
      %v9282 = vrot.slane %v9280, 4
      %v9283 = vshll.u32 %v9126, 16
      %v9285 = vrot.slane %v9283, 5
      %v9286 = vor.u32 %v9282, %v9285
      %v9287 = vrot.slane %v9286, 4
      %v9289 = vshll.u32 %v9127, 16
      %v9291 = vrot.slane %v9289, 5
      %v9292 = vsel %vm1136, %v9287, %v9291
      %v9293 = vshrl.u32 %v9127, 16
      %v9295 = vrot.slane %v9293, 4
      %v9296 = vor.u32 %v9295, %v9291
      %v9297 = vrot.slane %v9296, 4
      %v9299 = vshll.u32 %v9128, 16
      %v9301 = vrot.slane %v9299, 5
      %v9302 = vsel %vm1136, %v9297, %v9301
      %v9304 = vshrl.u32 %v9129, 16
      %v9306 = vrot.slane %v9304, 4
      %v9307 = vshll.u32 %v9129, 16
      %v9309 = vrot.slane %v9307, 5
      %v9310 = vor.u32 %v9306, %v9309
      %v9311 = vrot.slane %v9310, 4
      %v9313 = vshll.u32 %v9130, 16
      %v9315 = vrot.slane %v9313, 5
      %v9316 = vsel %vm1136, %v9311, %v9315
      %v9317 = vshrl.u32 %v9130, 16
      %v9319 = vrot.slane %v9317, 4
      %v9320 = vor.u32 %v9319, %v9315
      %v9321 = vrot.slane %v9320, 4
      %v9323 = vshll.u32 %v9131, 16
      %v9325 = vrot.slane %v9323, 5
      %v9326 = vsel %vm1136, %v9321, %v9325
      %v9328 = vshrl.u32 %v9132, 16
      %v9330 = vrot.slane %v9328, 4
      %v9331 = vshll.u32 %v9132, 16
      %v9333 = vrot.slane %v9331, 5
      %v9334 = vor.u32 %v9330, %v9333
      %v9335 = vrot.slane %v9334, 4
      %v9337 = vshll.u32 %v9133, 16
      %v9339 = vrot.slane %v9337, 5
      %v9340 = vsel %vm1136, %v9335, %v9339
      %v9341 = vshrl.u32 %v9133, 16
      %v9343 = vrot.slane %v9341, 4
      %v9344 = vor.u32 %v9343, %v9339
      %v9345 = vrot.slane %v9344, 4
      %v9347 = vshll.u32 %v9134, 16
      %v9349 = vrot.slane %v9347, 5
      %v9350 = vsel %vm1136, %v9345, %v9349
      %v9352 = vshrl.u32 %v9135, 16
      %v9354 = vrot.slane %v9352, 4
      %v9355 = vshll.u32 %v9135, 16
      %v9357 = vrot.slane %v9355, 5
      %v9358 = vor.u32 %v9354, %v9357
      %v9359 = vrot.slane %v9358, 4
      %v9361 = vshll.u32 %v9136, 16
      %v9363 = vrot.slane %v9361, 5
      %v9364 = vsel %vm1136, %v9359, %v9363
      %v9365 = vshrl.u32 %v9136, 16
      %v9367 = vrot.slane %v9365, 4
      %v9368 = vor.u32 %v9367, %v9363
      %v9369 = vrot.slane %v9368, 4
      %v9371 = vshll.u32 %v9137, 16
      %v9373 = vrot.slane %v9371, 5
      %v9374 = vsel %vm1136, %v9369, %v9373
      %v9376 = vshrl.u32 %v9138, 16
      %v9378 = vrot.slane %v9376, 4
      %v9379 = vshll.u32 %v9138, 16
      %v9381 = vrot.slane %v9379, 5
      %v9382 = vor.u32 %v9378, %v9381
      %v9383 = vrot.slane %v9382, 4
      %v9385 = vshll.u32 %v9139, 16
      %v9387 = vrot.slane %v9385, 5
      %v9388 = vsel %vm1136, %v9383, %v9387
      %v9389 = vshrl.u32 %v9139, 16
      %v9391 = vrot.slane %v9389, 4
      %v9392 = vor.u32 %v9391, %v9387
      %v9393 = vrot.slane %v9392, 4
      %v9395 = vshll.u32 %v9140, 16
      %v9397 = vrot.slane %v9395, 5
      %v9398 = vsel %vm1136, %v9393, %v9397
      %v9400 = vshrl.u32 %v9141, 16
      %v9402 = vrot.slane %v9400, 4
      %v9403 = vshll.u32 %v9141, 16
      %v9405 = vrot.slane %v9403, 5
      %v9406 = vor.u32 %v9402, %v9405
      %v9407 = vrot.slane %v9406, 4
      %v9409 = vshll.u32 %v9142, 16
      %v9411 = vrot.slane %v9409, 5
      %v9412 = vsel %vm1136, %v9407, %v9411
      %v9413 = vshrl.u32 %v9142, 16
      %v9415 = vrot.slane %v9413, 4
      %v9416 = vor.u32 %v9415, %v9411
      %v9417 = vrot.slane %v9416, 4
      %v9419 = vshll.u32 %v9143, 16
      %v9421 = vrot.slane %v9419, 5
      %v9422 = vsel %vm1136, %v9417, %v9421
      %v9424 = vshrl.u32 %v9144, 16
      %v9426 = vrot.slane %v9424, 4
      %v9427 = vshll.u32 %v9144, 16
      %v9429 = vrot.slane %v9427, 5
      %v9430 = vor.u32 %v9426, %v9429
      %v9431 = vrot.slane %v9430, 4
      %v9433 = vshll.u32 %v9145, 16
      %v9435 = vrot.slane %v9433, 5
      %v9436 = vsel %vm1136, %v9431, %v9435
      %v9437 = vshrl.u32 %v9145, 16
      %v9439 = vrot.slane %v9437, 4
      %v9440 = vor.u32 %v9439, %v9435
      %v9441 = vrot.slane %v9440, 4
      %v9443 = vshll.u32 %v9146, 16
      %v9445 = vrot.slane %v9443, 5
      %v9446 = vsel %vm1136, %v9441, %v9445
      %v9448 = vshrl.u32 %v9147, 16
      %v9450 = vrot.slane %v9448, 4
      %v9451 = vshll.u32 %v9147, 16
      %v9453 = vrot.slane %v9451, 5
      %v9454 = vor.u32 %v9450, %v9453
      %v9455 = vrot.slane %v9454, 4
      %v9457 = vshll.u32 %v9148, 16
      %v9459 = vrot.slane %v9457, 5
      %v9460 = vsel %vm1136, %v9455, %v9459
      %v9461 = vshrl.u32 %v9148, 16
      %v9463 = vrot.slane %v9461, 4
      %v9464 = vor.u32 %v9463, %v9459
      %v9465 = vrot.slane %v9464, 4
      %v9467 = vshll.u32 %v9149, 16
      %v9469 = vrot.slane %v9467, 5
      %v9470 = vsel %vm1136, %v9465, %v9469
      %v9472 = vshrl.u32 %v9150, 16
      %v9474 = vrot.slane %v9472, 4
      %v9475 = vshll.u32 %v9150, 16
      %v9477 = vrot.slane %v9475, 5
      %v9478 = vor.u32 %v9474, %v9477
      %v9479 = vrot.slane %v9478, 4
      %v9481 = vshll.u32 %v9151, 16
      %v9483 = vrot.slane %v9481, 5
      %v9484 = vsel %vm1136, %v9479, %v9483
      %v9485 = vshrl.u32 %v9151, 16
      %v9487 = vrot.slane %v9485, 4
      %v9488 = vor.u32 %v9487, %v9483
      %v9489 = vrot.slane %v9488, 4
      %v9491 = vshll.u32 %v9152, 16
      %v9493 = vrot.slane %v9491, 5
      %v9494 = vsel %vm1136, %v9489, %v9493
      %v9496 = vshrl.u32 %v9153, 16
      %v9498 = vrot.slane %v9496, 4
      %v9499 = vshll.u32 %v9153, 16
      %v9501 = vrot.slane %v9499, 5
      %v9502 = vor.u32 %v9498, %v9501
      %v9503 = vrot.slane %v9502, 4
      %v9505 = vshll.u32 %v9154, 16
      %v9507 = vrot.slane %v9505, 5
      %v9508 = vsel %vm1136, %v9503, %v9507
      %v9509 = vshrl.u32 %v9154, 16
      %v9511 = vrot.slane %v9509, 4
      %v9512 = vor.u32 %v9511, %v9507
      %v9513 = vrot.slane %v9512, 4
      %v9515 = vshll.u32 %v9155, 16
      %v9517 = vrot.slane %v9515, 5
      %v9518 = vsel %vm1136, %v9513, %v9517
      %v9520 = vshrl.u32 %v9156, 16
      %v9522 = vrot.slane %v9520, 4
      %v9523 = vshll.u32 %v9156, 16
      %v9525 = vrot.slane %v9523, 5
      %v9526 = vor.u32 %v9522, %v9525
      %v9527 = vrot.slane %v9526, 4
      %v9529 = vshll.u32 %v9157, 16
      %v9531 = vrot.slane %v9529, 5
      %v9532 = vsel %vm1136, %v9527, %v9531
      %v9533 = vshrl.u32 %v9157, 16
      %v9535 = vrot.slane %v9533, 4
      %v9536 = vor.u32 %v9535, %v9531
      %v9537 = vrot.slane %v9536, 4
      %v9539 = vshll.u32 %v9158, 16
      %v9541 = vrot.slane %v9539, 5
      %v9542 = vsel %vm1136, %v9537, %v9541
      %v9543 = vunpack.c.l.b16 %v9172
      %v9544 = vunpack.c.l.b16 %v9182
      %v9545 = vunpack.c.l.b16 %v9196
      %v9546 = vunpack.c.l.b16 %v9206
      %v9547 = vunpack.c.l.b16 %v9220
      %v9548 = vunpack.c.l.b16 %v9230
      %v9549 = vunpack.c.l.b16 %v9244
      %v9550 = vunpack.c.l.b16 %v9254
      %v9551 = vunpack.c.l.b16 %v9268
      %v9552 = vunpack.c.l.b16 %v9278
      %v9553 = vunpack.c.l.b16 %v9292
      %v9554 = vunpack.c.l.b16 %v9302
      %v9555 = vunpack.c.l.b16 %v9316
      %v9556 = vunpack.c.l.b16 %v9326
      %v9557 = vunpack.c.l.b16 %v9340
      %v9558 = vunpack.c.l.b16 %v9350
      %v9559 = vunpack.c.l.b16 %v9364
      %v9560 = vunpack.c.l.b16 %v9374
      %v9561 = vunpack.c.l.b16 %v9388
      %v9562 = vunpack.c.l.b16 %v9398
      %v9563 = vunpack.c.l.b16 %v9412
      %v9564 = vunpack.c.l.b16 %v9422
      %v9565 = vunpack.c.l.b16 %v9436
      %v9566 = vunpack.c.l.b16 %v9446
      %v9567 = vunpack.c.l.b16 %v9460
      %v9568 = vunpack.c.l.b16 %v9470
      %v9569 = vunpack.c.l.b16 %v9484
      %v9570 = vunpack.c.l.b16 %v9494
      %v9571 = vunpack.c.l.b16 %v9508
      %v9572 = vunpack.c.l.b16 %v9518
      %v9573 = vunpack.c.l.b16 %v9532
      %v9574 = vunpack.c.l.b16 %v9542
      %v9575 = vpack.c.b16 %v9544, %v9543
      %v9576 = vpack.c.b16 %v9546, %v9545
      %v9577 = vpack.c.b16 %v9548, %v9547
      %v9578 = vpack.c.b16 %v9550, %v9549
      %v9579 = vpack.c.b16 %v9552, %v9551
      %v9580 = vpack.c.b16 %v9554, %v9553
      %v9581 = vpack.c.b16 %v9556, %v9555
      %v9582 = vpack.c.b16 %v9558, %v9557
      %v9583 = vpack.c.b16 %v9560, %v9559
      %v9584 = vpack.c.b16 %v9562, %v9561
      %v9585 = vpack.c.b16 %v9564, %v9563
      %v9586 = vpack.c.b16 %v9566, %v9565
      %v9587 = vpack.c.b16 %v9568, %v9567
      %v9588 = vpack.c.b16 %v9570, %v9569
      %v9589 = vpack.c.b16 %v9572, %v9571
      %v9590 = vpack.c.b16 %v9574, %v9573
      %9591 = vrot.lane.b32.xlu0 %v9575, 16
      %v9592 = vpop.permute.xlu0 %9591
      %9593 = vrot.lane.b32.xlu0 %v9576, 16
      %v9594 = vpop.permute.xlu0 %9593
      %9595 = vrot.lane.b32.xlu0 %v9577, 16
      %v9596 = vpop.permute.xlu0 %9595
      %9597 = vrot.lane.b32.xlu0 %v9578, 16
      %v9598 = vpop.permute.xlu0 %9597
      %9599 = vrot.lane.b32.xlu0 %v9579, 16
      %v9600 = vpop.permute.xlu0 %9599
      %9601 = vrot.lane.b32.xlu0 %v9580, 16
      %v9602 = vpop.permute.xlu0 %9601
      %9603 = vrot.lane.b32.xlu0 %v9581, 16
      %v9604 = vpop.permute.xlu0 %9603
      %9605 = vrot.lane.b32.xlu0 %v9582, 16
      %v9606 = vpop.permute.xlu0 %9605
      %9607 = vrot.lane.b32.xlu0 %v9583, 16
      %v9608 = vpop.permute.xlu0 %9607
      %9609 = vrot.lane.b32.xlu0 %v9584, 16
      %v9610 = vpop.permute.xlu0 %9609
      %9611 = vrot.lane.b32.xlu0 %v9585, 16
      %v9612 = vpop.permute.xlu0 %9611
      %9613 = vrot.lane.b32.xlu0 %v9586, 16
      %v9614 = vpop.permute.xlu0 %9613
      %9615 = vrot.lane.b32.xlu0 %v9587, 16
      %v9616 = vpop.permute.xlu0 %9615
      %9617 = vrot.lane.b32.xlu0 %v9588, 16
      %v9618 = vpop.permute.xlu0 %9617
      %9619 = vrot.lane.b32.xlu0 %v9589, 16
      %v9620 = vpop.permute.xlu0 %9619
      %9621 = vrot.lane.b32.xlu0 %v9590, 16
      %v9622 = vpop.permute.xlu0 %9621
      %9639 = vst.msk [vmem:[#allocation5] sm:$0xff] %vm5625, %v9592
      %9640 = vst.msk [vmem:[#allocation5 + $0x8] sm:$0xff] %vm5625, %v9594
      %9641 = vst.msk [vmem:[#allocation5 + $0x10] sm:$0xff] %vm5625, %v9596
      %9642 = vst.msk [vmem:[#allocation5 + $0x18] sm:$0xff] %vm5625, %v9598
      %9643 = vst.msk [vmem:[#allocation5 + $0x20] sm:$0xff] %vm5625, %v9600
      %9644 = vst.msk [vmem:[#allocation5 + $0x28] sm:$0xff] %vm5625, %v9602
      %9645 = vst.msk [vmem:[#allocation5 + $0x30] sm:$0xff] %vm5625, %v9604
      %9646 = vst.msk [vmem:[#allocation5 + $0x38] sm:$0xff] %vm5625, %v9606
      %9647 = vst.msk [vmem:[#allocation5 + $0x40] sm:$0xff] %vm5625, %v9608
      %9648 = vst.msk [vmem:[#allocation5 + $0x48] sm:$0xff] %vm5625, %v9610
      %9649 = vst.msk [vmem:[#allocation5 + $0x50] sm:$0xff] %vm5625, %v9612
      %9650 = vst.msk [vmem:[#allocation5 + $0x58] sm:$0xff] %vm5625, %v9614
      %9651 = vst.msk [vmem:[#allocation5 + $0x60] sm:$0xff] %vm5625, %v9616
      %9652 = vst.msk [vmem:[#allocation5 + $0x68] sm:$0xff] %vm5625, %v9618
      %9653 = vst.msk [vmem:[#allocation5 + $0x70] sm:$0xff] %vm5625, %v9620
      %9654 = vst.msk [vmem:[#allocation5 + $0x78] sm:$0xff] %vm5625, %v9622
      %s9655 = scalar_lea.vmem [#allocation3], 24
      %v9656 = vld [vmem:[%s9655] sm:$0xf]
      %v9657 = vld [vmem:[%s9655 + $0x4] sm:$0xf]
      %v9658 = vld [vmem:[%s9655 + $0xc] sm:$0xf]
      %v9659 = vld [vmem:[%s9655 + $0x10] sm:$0xf]
      %v9660 = vld [vmem:[%s9655 + $0x18] sm:$0xf]
      %v9661 = vld [vmem:[%s9655 + $0x1c] sm:$0xf]
      %v9662 = vld [vmem:[%s9655 + $0x24] sm:$0xf]
      %v9663 = vld [vmem:[%s9655 + $0x28] sm:$0xf]
      %v9664 = vld [vmem:[%s9655 + $0x30] sm:$0xf]
      %v9665 = vld [vmem:[%s9655 + $0x34] sm:$0xf]
      %v9666 = vld [vmem:[%s9655 + $0x3c] sm:$0xf]
      %v9667 = vld [vmem:[%s9655 + $0x40] sm:$0xf]
      %v9668 = vld [vmem:[%s9655 + $0x48] sm:$0xf]
      %v9669 = vld [vmem:[%s9655 + $0x4c] sm:$0xf]
      %v9670 = vld [vmem:[%s9655 + $0x54] sm:$0xf]
      %v9671 = vld [vmem:[%s9655 + $0x58] sm:$0xf]
      %v9672 = vld [vmem:[%s9655 + $0x60] sm:$0xf]
      %v9673 = vld [vmem:[%s9655 + $0x64] sm:$0xf]
      %v9674 = vld [vmem:[%s9655 + $0x6c] sm:$0xf]
      %v9675 = vld [vmem:[%s9655 + $0x70] sm:$0xf]
      %v9676 = vld [vmem:[%s9655 + $0x78] sm:$0xf]
      %v9677 = vld [vmem:[%s9655 + $0x7c] sm:$0xf]
      %v9678 = vld [vmem:[%s9655 + $0x84] sm:$0xf]
      %v9679 = vld [vmem:[%s9655 + $0x88] sm:$0xf]
      %v9680 = vld [vmem:[%s9655 + $0x90] sm:$0xf]
      %v9681 = vld [vmem:[%s9655 + $0x94] sm:$0xf]
      %v9682 = vld [vmem:[%s9655 + $0x9c] sm:$0xf]
      %v9683 = vld [vmem:[%s9655 + $0xa0] sm:$0xf]
      %v9684 = vld [vmem:[%s9655 + $0xa8] sm:$0xf]
      %v9685 = vld [vmem:[%s9655 + $0xac] sm:$0xf]
      %v9686 = vld [vmem:[%s9655 + $0xb4] sm:$0xf]
      %v9687 = vld [vmem:[%s9655 + $0xb8] sm:$0xf]
      %v9720 = vunpack.c.l.b16 %v9656
      %v9721 = vunpack.c.l.b16 %v9657
      %v9722 = vunpack.c.l.b16 %v9658
      %v9723 = vunpack.c.l.b16 %v9659
      %v9724 = vunpack.c.l.b16 %v9660
      %v9725 = vunpack.c.l.b16 %v9661
      %v9726 = vunpack.c.l.b16 %v9662
      %v9727 = vunpack.c.l.b16 %v9663
      %v9728 = vunpack.c.l.b16 %v9664
      %v9729 = vunpack.c.l.b16 %v9665
      %v9730 = vunpack.c.l.b16 %v9666
      %v9731 = vunpack.c.l.b16 %v9667
      %v9732 = vunpack.c.l.b16 %v9668
      %v9733 = vunpack.c.l.b16 %v9669
      %v9734 = vunpack.c.l.b16 %v9670
      %v9735 = vunpack.c.l.b16 %v9671
      %v9736 = vunpack.c.l.b16 %v9672
      %v9737 = vunpack.c.l.b16 %v9673
      %v9738 = vunpack.c.l.b16 %v9674
      %v9739 = vunpack.c.l.b16 %v9675
      %v9740 = vunpack.c.l.b16 %v9676
      %v9741 = vunpack.c.l.b16 %v9677
      %v9742 = vunpack.c.l.b16 %v9678
      %v9743 = vunpack.c.l.b16 %v9679
      %v9744 = vunpack.c.l.b16 %v9680
      %v9745 = vunpack.c.l.b16 %v9681
      %v9746 = vunpack.c.l.b16 %v9682
      %v9747 = vunpack.c.l.b16 %v9683
      %v9748 = vunpack.c.l.b16 %v9684
      %v9749 = vunpack.c.l.b16 %v9685
      %v9750 = vunpack.c.l.b16 %v9686
      %v9751 = vunpack.c.l.b16 %v9687
      %v9752 = vpack.c.b16 %v9721, %v9720
      %v9753 = vpack.c.b16 %v9723, %v9722
      %v9754 = vpack.c.b16 %v9725, %v9724
      %v9755 = vpack.c.b16 %v9727, %v9726
      %v9756 = vpack.c.b16 %v9729, %v9728
      %v9757 = vpack.c.b16 %v9731, %v9730
      %v9758 = vpack.c.b16 %v9733, %v9732
      %v9759 = vpack.c.b16 %v9735, %v9734
      %v9760 = vpack.c.b16 %v9737, %v9736
      %v9761 = vpack.c.b16 %v9739, %v9738
      %v9762 = vpack.c.b16 %v9741, %v9740
      %v9763 = vpack.c.b16 %v9743, %v9742
      %v9764 = vpack.c.b16 %v9745, %v9744
      %v9765 = vpack.c.b16 %v9747, %v9746
      %v9766 = vpack.c.b16 %v9749, %v9748
      %v9767 = vpack.c.b16 %v9751, %v9750
      %9768 = vrot.lane.b32.xlu0 %v9752, 32
      %v9769 = vpop.permute.xlu0 %9768
      %9770 = vrot.lane.b32.xlu0 %v9753, 32
      %v9771 = vpop.permute.xlu0 %9770
      %9772 = vrot.lane.b32.xlu0 %v9754, 32
      %v9773 = vpop.permute.xlu0 %9772
      %9774 = vrot.lane.b32.xlu0 %v9755, 32
      %v9775 = vpop.permute.xlu0 %9774
      %9776 = vrot.lane.b32.xlu0 %v9756, 32
      %v9777 = vpop.permute.xlu0 %9776
      %9778 = vrot.lane.b32.xlu0 %v9757, 32
      %v9779 = vpop.permute.xlu0 %9778
      %9780 = vrot.lane.b32.xlu0 %v9758, 32
      %v9781 = vpop.permute.xlu0 %9780
      %9782 = vrot.lane.b32.xlu0 %v9759, 32
      %v9783 = vpop.permute.xlu0 %9782
      %9784 = vrot.lane.b32.xlu0 %v9760, 32
      %v9785 = vpop.permute.xlu0 %9784
      %9786 = vrot.lane.b32.xlu0 %v9761, 32
      %v9787 = vpop.permute.xlu0 %9786
      %9788 = vrot.lane.b32.xlu0 %v9762, 32
      %v9789 = vpop.permute.xlu0 %9788
      %9790 = vrot.lane.b32.xlu0 %v9763, 32
      %v9791 = vpop.permute.xlu0 %9790
      %9792 = vrot.lane.b32.xlu0 %v9764, 32
      %v9793 = vpop.permute.xlu0 %9792
      %9794 = vrot.lane.b32.xlu0 %v9765, 32
      %v9795 = vpop.permute.xlu0 %9794
      %9796 = vrot.lane.b32.xlu0 %v9766, 32
      %v9797 = vpop.permute.xlu0 %9796
      %9798 = vrot.lane.b32.xlu0 %v9767, 32
      %v9799 = vpop.permute.xlu0 %9798
      %9816 = vst.msk [vmem:[#allocation5] sm:$0xff] %vm5802, %v9769
      %9817 = vst.msk [vmem:[#allocation5 + $0x8] sm:$0xff] %vm5802, %v9771
      %9818 = vst.msk [vmem:[#allocation5 + $0x10] sm:$0xff] %vm5802, %v9773
      %9819 = vst.msk [vmem:[#allocation5 + $0x18] sm:$0xff] %vm5802, %v9775
      %9820 = vst.msk [vmem:[#allocation5 + $0x20] sm:$0xff] %vm5802, %v9777
      %9821 = vst.msk [vmem:[#allocation5 + $0x28] sm:$0xff] %vm5802, %v9779
      %9822 = vst.msk [vmem:[#allocation5 + $0x30] sm:$0xff] %vm5802, %v9781
      %9823 = vst.msk [vmem:[#allocation5 + $0x38] sm:$0xff] %vm5802, %v9783
      %9824 = vst.msk [vmem:[#allocation5 + $0x40] sm:$0xff] %vm5802, %v9785
      %9825 = vst.msk [vmem:[#allocation5 + $0x48] sm:$0xff] %vm5802, %v9787
      %9826 = vst.msk [vmem:[#allocation5 + $0x50] sm:$0xff] %vm5802, %v9789
      %9827 = vst.msk [vmem:[#allocation5 + $0x58] sm:$0xff] %vm5802, %v9791
      %9828 = vst.msk [vmem:[#allocation5 + $0x60] sm:$0xff] %vm5802, %v9793
      %9829 = vst.msk [vmem:[#allocation5 + $0x68] sm:$0xff] %vm5802, %v9795
      %9830 = vst.msk [vmem:[#allocation5 + $0x70] sm:$0xff] %vm5802, %v9797
      %9831 = vst.msk [vmem:[#allocation5 + $0x78] sm:$0xff] %vm5802, %v9799
      %v9832 = vld [vmem:[%s9655] sm:$0xf]
      %v9833 = vld [vmem:[%s9655 + $0x4] sm:$0xf]
      %v9834 = vld [vmem:[%s9655 + $0x8] sm:$0x1]
      %v9835 = vld [vmem:[%s9655 + $0xc] sm:$0xf]
      %v9836 = vld [vmem:[%s9655 + $0x10] sm:$0xf]
      %v9837 = vld [vmem:[%s9655 + $0x14] sm:$0x1]
      %v9838 = vld [vmem:[%s9655 + $0x18] sm:$0xf]
      %v9839 = vld [vmem:[%s9655 + $0x1c] sm:$0xf]
      %v9840 = vld [vmem:[%s9655 + $0x20] sm:$0x1]
      %v9841 = vld [vmem:[%s9655 + $0x24] sm:$0xf]
      %v9842 = vld [vmem:[%s9655 + $0x28] sm:$0xf]
      %v9843 = vld [vmem:[%s9655 + $0x2c] sm:$0x1]
      %v9844 = vld [vmem:[%s9655 + $0x30] sm:$0xf]
      %v9845 = vld [vmem:[%s9655 + $0x34] sm:$0xf]
      %v9846 = vld [vmem:[%s9655 + $0x38] sm:$0x1]
      %v9847 = vld [vmem:[%s9655 + $0x3c] sm:$0xf]
      %v9848 = vld [vmem:[%s9655 + $0x40] sm:$0xf]
      %v9849 = vld [vmem:[%s9655 + $0x44] sm:$0x1]
      %v9850 = vld [vmem:[%s9655 + $0x48] sm:$0xf]
      %v9851 = vld [vmem:[%s9655 + $0x4c] sm:$0xf]
      %v9852 = vld [vmem:[%s9655 + $0x50] sm:$0x1]
      %v9853 = vld [vmem:[%s9655 + $0x54] sm:$0xf]
      %v9854 = vld [vmem:[%s9655 + $0x58] sm:$0xf]
      %v9855 = vld [vmem:[%s9655 + $0x5c] sm:$0x1]
      %v9856 = vld [vmem:[%s9655 + $0x60] sm:$0xf]
      %v9857 = vld [vmem:[%s9655 + $0x64] sm:$0xf]
      %v9858 = vld [vmem:[%s9655 + $0x68] sm:$0x1]
      %v9859 = vld [vmem:[%s9655 + $0x6c] sm:$0xf]
      %v9860 = vld [vmem:[%s9655 + $0x70] sm:$0xf]
      %v9861 = vld [vmem:[%s9655 + $0x74] sm:$0x1]
      %v9862 = vld [vmem:[%s9655 + $0x78] sm:$0xf]
      %v9863 = vld [vmem:[%s9655 + $0x7c] sm:$0xf]
      %v9864 = vld [vmem:[%s9655 + $0x80] sm:$0x1]
      %v9865 = vld [vmem:[%s9655 + $0x84] sm:$0xf]
      %v9866 = vld [vmem:[%s9655 + $0x88] sm:$0xf]
      %v9867 = vld [vmem:[%s9655 + $0x8c] sm:$0x1]
      %v9868 = vld [vmem:[%s9655 + $0x90] sm:$0xf]
      %v9869 = vld [vmem:[%s9655 + $0x94] sm:$0xf]
      %v9870 = vld [vmem:[%s9655 + $0x98] sm:$0x1]
      %v9871 = vld [vmem:[%s9655 + $0x9c] sm:$0xf]
      %v9872 = vld [vmem:[%s9655 + $0xa0] sm:$0xf]
      %v9873 = vld [vmem:[%s9655 + $0xa4] sm:$0x1]
      %v9874 = vld [vmem:[%s9655 + $0xa8] sm:$0xf]
      %v9875 = vld [vmem:[%s9655 + $0xac] sm:$0xf]
      %v9876 = vld [vmem:[%s9655 + $0xb0] sm:$0x1]
      %v9877 = vld [vmem:[%s9655 + $0xb4] sm:$0xf]
      %v9878 = vld [vmem:[%s9655 + $0xb8] sm:$0xf]
      %v9879 = vld [vmem:[%s9655 + $0xbc] sm:$0x1]
      %v9881 = vshrl.u32 %v9832, 16
      %v9883 = vrot.slane %v9881, 4
      %v9884 = vshll.u32 %v9832, 16
      %v9886 = vrot.slane %v9884, 5
      %v9887 = vor.u32 %v9883, %v9886
      %v9888 = vrot.slane %v9887, 4
      %v9890 = vshll.u32 %v9833, 16
      %v9892 = vrot.slane %v9890, 5
      %v9893 = vsel %vm1136, %v9888, %v9892
      %v9894 = vshrl.u32 %v9833, 16
      %v9896 = vrot.slane %v9894, 4
      %v9897 = vor.u32 %v9896, %v9892
      %v9898 = vrot.slane %v9897, 4
      %v9900 = vshll.u32 %v9834, 16
      %v9902 = vrot.slane %v9900, 5
      %v9903 = vsel %vm1136, %v9898, %v9902
      %v9905 = vshrl.u32 %v9835, 16
      %v9907 = vrot.slane %v9905, 4
      %v9908 = vshll.u32 %v9835, 16
      %v9910 = vrot.slane %v9908, 5
      %v9911 = vor.u32 %v9907, %v9910
      %v9912 = vrot.slane %v9911, 4
      %v9914 = vshll.u32 %v9836, 16
      %v9916 = vrot.slane %v9914, 5
      %v9917 = vsel %vm1136, %v9912, %v9916
      %v9918 = vshrl.u32 %v9836, 16
      %v9920 = vrot.slane %v9918, 4
      %v9921 = vor.u32 %v9920, %v9916
      %v9922 = vrot.slane %v9921, 4
      %v9924 = vshll.u32 %v9837, 16
      %v9926 = vrot.slane %v9924, 5
      %v9927 = vsel %vm1136, %v9922, %v9926
      %v9929 = vshrl.u32 %v9838, 16
      %v9931 = vrot.slane %v9929, 4
      %v9932 = vshll.u32 %v9838, 16
      %v9934 = vrot.slane %v9932, 5
      %v9935 = vor.u32 %v9931, %v9934
      %v9936 = vrot.slane %v9935, 4
      %v9938 = vshll.u32 %v9839, 16
      %v9940 = vrot.slane %v9938, 5
      %v9941 = vsel %vm1136, %v9936, %v9940
      %v9942 = vshrl.u32 %v9839, 16
      %v9944 = vrot.slane %v9942, 4
      %v9945 = vor.u32 %v9944, %v9940
      %v9946 = vrot.slane %v9945, 4
      %v9948 = vshll.u32 %v9840, 16
      %v9950 = vrot.slane %v9948, 5
      %v9951 = vsel %vm1136, %v9946, %v9950
      %v9953 = vshrl.u32 %v9841, 16
      %v9955 = vrot.slane %v9953, 4
      %v9956 = vshll.u32 %v9841, 16
      %v9958 = vrot.slane %v9956, 5
      %v9959 = vor.u32 %v9955, %v9958
      %v9960 = vrot.slane %v9959, 4
      %v9962 = vshll.u32 %v9842, 16
      %v9964 = vrot.slane %v9962, 5
      %v9965 = vsel %vm1136, %v9960, %v9964
      %v9966 = vshrl.u32 %v9842, 16
      %v9968 = vrot.slane %v9966, 4
      %v9969 = vor.u32 %v9968, %v9964
      %v9970 = vrot.slane %v9969, 4
      %v9972 = vshll.u32 %v9843, 16
      %v9974 = vrot.slane %v9972, 5
      %v9975 = vsel %vm1136, %v9970, %v9974
      %v9977 = vshrl.u32 %v9844, 16
      %v9979 = vrot.slane %v9977, 4
      %v9980 = vshll.u32 %v9844, 16
      %v9982 = vrot.slane %v9980, 5
      %v9983 = vor.u32 %v9979, %v9982
      %v9984 = vrot.slane %v9983, 4
      %v9986 = vshll.u32 %v9845, 16
      %v9988 = vrot.slane %v9986, 5
      %v9989 = vsel %vm1136, %v9984, %v9988
      %v9990 = vshrl.u32 %v9845, 16
      %v9992 = vrot.slane %v9990, 4
      %v9993 = vor.u32 %v9992, %v9988
      %v9994 = vrot.slane %v9993, 4
      %v9996 = vshll.u32 %v9846, 16
      %v9998 = vrot.slane %v9996, 5
      %v9999 = vsel %vm1136, %v9994, %v9998
      %v10001 = vshrl.u32 %v9847, 16
      %v10003 = vrot.slane %v10001, 4
      %v10004 = vshll.u32 %v9847, 16
      %v10006 = vrot.slane %v10004, 5
      %v10007 = vor.u32 %v10003, %v10006
      %v10008 = vrot.slane %v10007, 4
      %v10010 = vshll.u32 %v9848, 16
      %v10012 = vrot.slane %v10010, 5
      %v10013 = vsel %vm1136, %v10008, %v10012
      %v10014 = vshrl.u32 %v9848, 16
      %v10016 = vrot.slane %v10014, 4
      %v10017 = vor.u32 %v10016, %v10012
      %v10018 = vrot.slane %v10017, 4
      %v10020 = vshll.u32 %v9849, 16
      %v10022 = vrot.slane %v10020, 5
      %v10023 = vsel %vm1136, %v10018, %v10022
      %v10025 = vshrl.u32 %v9850, 16
      %v10027 = vrot.slane %v10025, 4
      %v10028 = vshll.u32 %v9850, 16
      %v10030 = vrot.slane %v10028, 5
      %v10031 = vor.u32 %v10027, %v10030
      %v10032 = vrot.slane %v10031, 4
      %v10034 = vshll.u32 %v9851, 16
      %v10036 = vrot.slane %v10034, 5
      %v10037 = vsel %vm1136, %v10032, %v10036
      %v10038 = vshrl.u32 %v9851, 16
      %v10040 = vrot.slane %v10038, 4
      %v10041 = vor.u32 %v10040, %v10036
      %v10042 = vrot.slane %v10041, 4
      %v10044 = vshll.u32 %v9852, 16
      %v10046 = vrot.slane %v10044, 5
      %v10047 = vsel %vm1136, %v10042, %v10046
      %v10049 = vshrl.u32 %v9853, 16
      %v10051 = vrot.slane %v10049, 4
      %v10052 = vshll.u32 %v9853, 16
      %v10054 = vrot.slane %v10052, 5
      %v10055 = vor.u32 %v10051, %v10054
      %v10056 = vrot.slane %v10055, 4
      %v10058 = vshll.u32 %v9854, 16
      %v10060 = vrot.slane %v10058, 5
      %v10061 = vsel %vm1136, %v10056, %v10060
      %v10062 = vshrl.u32 %v9854, 16
      %v10064 = vrot.slane %v10062, 4
      %v10065 = vor.u32 %v10064, %v10060
      %v10066 = vrot.slane %v10065, 4
      %v10068 = vshll.u32 %v9855, 16
      %v10070 = vrot.slane %v10068, 5
      %v10071 = vsel %vm1136, %v10066, %v10070
      %v10073 = vshrl.u32 %v9856, 16
      %v10075 = vrot.slane %v10073, 4
      %v10076 = vshll.u32 %v9856, 16
      %v10078 = vrot.slane %v10076, 5
      %v10079 = vor.u32 %v10075, %v10078
      %v10080 = vrot.slane %v10079, 4
      %v10082 = vshll.u32 %v9857, 16
      %v10084 = vrot.slane %v10082, 5
      %v10085 = vsel %vm1136, %v10080, %v10084
      %v10086 = vshrl.u32 %v9857, 16
      %v10088 = vrot.slane %v10086, 4
      %v10089 = vor.u32 %v10088, %v10084
      %v10090 = vrot.slane %v10089, 4
      %v10092 = vshll.u32 %v9858, 16
      %v10094 = vrot.slane %v10092, 5
      %v10095 = vsel %vm1136, %v10090, %v10094
      %v10097 = vshrl.u32 %v9859, 16
      %v10099 = vrot.slane %v10097, 4
      %v10100 = vshll.u32 %v9859, 16
      %v10102 = vrot.slane %v10100, 5
      %v10103 = vor.u32 %v10099, %v10102
      %v10104 = vrot.slane %v10103, 4
      %v10106 = vshll.u32 %v9860, 16
      %v10108 = vrot.slane %v10106, 5
      %v10109 = vsel %vm1136, %v10104, %v10108
      %v10110 = vshrl.u32 %v9860, 16
      %v10112 = vrot.slane %v10110, 4
      %v10113 = vor.u32 %v10112, %v10108
      %v10114 = vrot.slane %v10113, 4
      %v10116 = vshll.u32 %v9861, 16
      %v10118 = vrot.slane %v10116, 5
      %v10119 = vsel %vm1136, %v10114, %v10118
      %v10121 = vshrl.u32 %v9862, 16
      %v10123 = vrot.slane %v10121, 4
      %v10124 = vshll.u32 %v9862, 16
      %v10126 = vrot.slane %v10124, 5
      %v10127 = vor.u32 %v10123, %v10126
      %v10128 = vrot.slane %v10127, 4
      %v10130 = vshll.u32 %v9863, 16
      %v10132 = vrot.slane %v10130, 5
      %v10133 = vsel %vm1136, %v10128, %v10132
      %v10134 = vshrl.u32 %v9863, 16
      %v10136 = vrot.slane %v10134, 4
      %v10137 = vor.u32 %v10136, %v10132
      %v10138 = vrot.slane %v10137, 4
      %v10140 = vshll.u32 %v9864, 16
      %v10142 = vrot.slane %v10140, 5
      %v10143 = vsel %vm1136, %v10138, %v10142
      %v10145 = vshrl.u32 %v9865, 16
      %v10147 = vrot.slane %v10145, 4
      %v10148 = vshll.u32 %v9865, 16
      %v10150 = vrot.slane %v10148, 5
      %v10151 = vor.u32 %v10147, %v10150
      %v10152 = vrot.slane %v10151, 4
      %v10154 = vshll.u32 %v9866, 16
      %v10156 = vrot.slane %v10154, 5
      %v10157 = vsel %vm1136, %v10152, %v10156
      %v10158 = vshrl.u32 %v9866, 16
      %v10160 = vrot.slane %v10158, 4
      %v10161 = vor.u32 %v10160, %v10156
      %v10162 = vrot.slane %v10161, 4
      %v10164 = vshll.u32 %v9867, 16
      %v10166 = vrot.slane %v10164, 5
      %v10167 = vsel %vm1136, %v10162, %v10166
      %v10169 = vshrl.u32 %v9868, 16
      %v10171 = vrot.slane %v10169, 4
      %v10172 = vshll.u32 %v9868, 16
      %v10174 = vrot.slane %v10172, 5
      %v10175 = vor.u32 %v10171, %v10174
      %v10176 = vrot.slane %v10175, 4
      %v10178 = vshll.u32 %v9869, 16
      %v10180 = vrot.slane %v10178, 5
      %v10181 = vsel %vm1136, %v10176, %v10180
      %v10182 = vshrl.u32 %v9869, 16
      %v10184 = vrot.slane %v10182, 4
      %v10185 = vor.u32 %v10184, %v10180
      %v10186 = vrot.slane %v10185, 4
      %v10188 = vshll.u32 %v9870, 16
      %v10190 = vrot.slane %v10188, 5
      %v10191 = vsel %vm1136, %v10186, %v10190
      %v10193 = vshrl.u32 %v9871, 16
      %v10195 = vrot.slane %v10193, 4
      %v10196 = vshll.u32 %v9871, 16
      %v10198 = vrot.slane %v10196, 5
      %v10199 = vor.u32 %v10195, %v10198
      %v10200 = vrot.slane %v10199, 4
      %v10202 = vshll.u32 %v9872, 16
      %v10204 = vrot.slane %v10202, 5
      %v10205 = vsel %vm1136, %v10200, %v10204
      %v10206 = vshrl.u32 %v9872, 16
      %v10208 = vrot.slane %v10206, 4
      %v10209 = vor.u32 %v10208, %v10204
      %v10210 = vrot.slane %v10209, 4
      %v10212 = vshll.u32 %v9873, 16
      %v10214 = vrot.slane %v10212, 5
      %v10215 = vsel %vm1136, %v10210, %v10214
      %v10217 = vshrl.u32 %v9874, 16
      %v10219 = vrot.slane %v10217, 4
      %v10220 = vshll.u32 %v9874, 16
      %v10222 = vrot.slane %v10220, 5
      %v10223 = vor.u32 %v10219, %v10222
      %v10224 = vrot.slane %v10223, 4
      %v10226 = vshll.u32 %v9875, 16
      %v10228 = vrot.slane %v10226, 5
      %v10229 = vsel %vm1136, %v10224, %v10228
      %v10230 = vshrl.u32 %v9875, 16
      %v10232 = vrot.slane %v10230, 4
      %v10233 = vor.u32 %v10232, %v10228
      %v10234 = vrot.slane %v10233, 4
      %v10236 = vshll.u32 %v9876, 16
      %v10238 = vrot.slane %v10236, 5
      %v10239 = vsel %vm1136, %v10234, %v10238
      %v10241 = vshrl.u32 %v9877, 16
      %v10243 = vrot.slane %v10241, 4
      %v10244 = vshll.u32 %v9877, 16
      %v10246 = vrot.slane %v10244, 5
      %v10247 = vor.u32 %v10243, %v10246
      %v10248 = vrot.slane %v10247, 4
      %v10250 = vshll.u32 %v9878, 16
      %v10252 = vrot.slane %v10250, 5
      %v10253 = vsel %vm1136, %v10248, %v10252
      %v10254 = vshrl.u32 %v9878, 16
      %v10256 = vrot.slane %v10254, 4
      %v10257 = vor.u32 %v10256, %v10252
      %v10258 = vrot.slane %v10257, 4
      %v10260 = vshll.u32 %v9879, 16
      %v10262 = vrot.slane %v10260, 5
      %v10263 = vsel %vm1136, %v10258, %v10262
      %v10264 = vunpack.c.l.b16 %v9893
      %v10265 = vunpack.c.l.b16 %v9903
      %v10266 = vunpack.c.l.b16 %v9917
      %v10267 = vunpack.c.l.b16 %v9927
      %v10268 = vunpack.c.l.b16 %v9941
      %v10269 = vunpack.c.l.b16 %v9951
      %v10270 = vunpack.c.l.b16 %v9965
      %v10271 = vunpack.c.l.b16 %v9975
      %v10272 = vunpack.c.l.b16 %v9989
      %v10273 = vunpack.c.l.b16 %v9999
      %v10274 = vunpack.c.l.b16 %v10013
      %v10275 = vunpack.c.l.b16 %v10023
      %v10276 = vunpack.c.l.b16 %v10037
      %v10277 = vunpack.c.l.b16 %v10047
      %v10278 = vunpack.c.l.b16 %v10061
      %v10279 = vunpack.c.l.b16 %v10071
      %v10280 = vunpack.c.l.b16 %v10085
      %v10281 = vunpack.c.l.b16 %v10095
      %v10282 = vunpack.c.l.b16 %v10109
      %v10283 = vunpack.c.l.b16 %v10119
      %v10284 = vunpack.c.l.b16 %v10133
      %v10285 = vunpack.c.l.b16 %v10143
      %v10286 = vunpack.c.l.b16 %v10157
      %v10287 = vunpack.c.l.b16 %v10167
      %v10288 = vunpack.c.l.b16 %v10181
      %v10289 = vunpack.c.l.b16 %v10191
      %v10290 = vunpack.c.l.b16 %v10205
      %v10291 = vunpack.c.l.b16 %v10215
      %v10292 = vunpack.c.l.b16 %v10229
      %v10293 = vunpack.c.l.b16 %v10239
      %v10294 = vunpack.c.l.b16 %v10253
      %v10295 = vunpack.c.l.b16 %v10263
      %v10296 = vpack.c.b16 %v10265, %v10264
      %v10297 = vpack.c.b16 %v10267, %v10266
      %v10298 = vpack.c.b16 %v10269, %v10268
      %v10299 = vpack.c.b16 %v10271, %v10270
      %v10300 = vpack.c.b16 %v10273, %v10272
      %v10301 = vpack.c.b16 %v10275, %v10274
      %v10302 = vpack.c.b16 %v10277, %v10276
      %v10303 = vpack.c.b16 %v10279, %v10278
      %v10304 = vpack.c.b16 %v10281, %v10280
      %v10305 = vpack.c.b16 %v10283, %v10282
      %v10306 = vpack.c.b16 %v10285, %v10284
      %v10307 = vpack.c.b16 %v10287, %v10286
      %v10308 = vpack.c.b16 %v10289, %v10288
      %v10309 = vpack.c.b16 %v10291, %v10290
      %v10310 = vpack.c.b16 %v10293, %v10292
      %v10311 = vpack.c.b16 %v10295, %v10294
      %10312 = vrot.lane.b32.xlu0 %v10296, 48
      %v10313 = vpop.permute.xlu0 %10312
      %10314 = vrot.lane.b32.xlu0 %v10297, 48
      %v10315 = vpop.permute.xlu0 %10314
      %10316 = vrot.lane.b32.xlu0 %v10298, 48
      %v10317 = vpop.permute.xlu0 %10316
      %10318 = vrot.lane.b32.xlu0 %v10299, 48
      %v10319 = vpop.permute.xlu0 %10318
      %10320 = vrot.lane.b32.xlu0 %v10300, 48
      %v10321 = vpop.permute.xlu0 %10320
      %10322 = vrot.lane.b32.xlu0 %v10301, 48
      %v10323 = vpop.permute.xlu0 %10322
      %10324 = vrot.lane.b32.xlu0 %v10302, 48
      %v10325 = vpop.permute.xlu0 %10324
      %10326 = vrot.lane.b32.xlu0 %v10303, 48
      %v10327 = vpop.permute.xlu0 %10326
      %10328 = vrot.lane.b32.xlu0 %v10304, 48
      %v10329 = vpop.permute.xlu0 %10328
      %10330 = vrot.lane.b32.xlu0 %v10305, 48
      %v10331 = vpop.permute.xlu0 %10330
      %10332 = vrot.lane.b32.xlu0 %v10306, 48
      %v10333 = vpop.permute.xlu0 %10332
      %10334 = vrot.lane.b32.xlu0 %v10307, 48
      %v10335 = vpop.permute.xlu0 %10334
      %10336 = vrot.lane.b32.xlu0 %v10308, 48
      %v10337 = vpop.permute.xlu0 %10336
      %10338 = vrot.lane.b32.xlu0 %v10309, 48
      %v10339 = vpop.permute.xlu0 %10338
      %10340 = vrot.lane.b32.xlu0 %v10310, 48
      %v10341 = vpop.permute.xlu0 %10340
      %10342 = vrot.lane.b32.xlu0 %v10311, 48
      %v10343 = vpop.permute.xlu0 %10342
      %10360 = vst.msk [vmem:[#allocation5] sm:$0xff] %vm6347, %v10313
      %10361 = vst.msk [vmem:[#allocation5 + $0x8] sm:$0xff] %vm6347, %v10315
      %10362 = vst.msk [vmem:[#allocation5 + $0x10] sm:$0xff] %vm6347, %v10317
      %10363 = vst.msk [vmem:[#allocation5 + $0x18] sm:$0xff] %vm6347, %v10319
      %10364 = vst.msk [vmem:[#allocation5 + $0x20] sm:$0xff] %vm6347, %v10321
      %10365 = vst.msk [vmem:[#allocation5 + $0x28] sm:$0xff] %vm6347, %v10323
      %10366 = vst.msk [vmem:[#allocation5 + $0x30] sm:$0xff] %vm6347, %v10325
      %10367 = vst.msk [vmem:[#allocation5 + $0x38] sm:$0xff] %vm6347, %v10327
      %10368 = vst.msk [vmem:[#allocation5 + $0x40] sm:$0xff] %vm6347, %v10329
      %10369 = vst.msk [vmem:[#allocation5 + $0x48] sm:$0xff] %vm6347, %v10331
      %10370 = vst.msk [vmem:[#allocation5 + $0x50] sm:$0xff] %vm6347, %v10333
      %10371 = vst.msk [vmem:[#allocation5 + $0x58] sm:$0xff] %vm6347, %v10335
      %10372 = vst.msk [vmem:[#allocation5 + $0x60] sm:$0xff] %vm6347, %v10337
      %10373 = vst.msk [vmem:[#allocation5 + $0x68] sm:$0xff] %vm6347, %v10339
      %10374 = vst.msk [vmem:[#allocation5 + $0x70] sm:$0xff] %vm6347, %v10341
      %10375 = vst.msk [vmem:[#allocation5 + $0x78] sm:$0xff] %vm6347, %v10343
      %v10376 = vld [vmem:[#allocation5] sm:$0xff]
      %v10377 = vld [vmem:[#allocation5 + $0x8] sm:$0xff]
      %v10378 = vld [vmem:[#allocation5 + $0x10] sm:$0xff]
      %v10379 = vld [vmem:[#allocation5 + $0x18] sm:$0xff]
      %v10380 = vld [vmem:[#allocation5 + $0x20] sm:$0xff]
      %v10381 = vld [vmem:[#allocation5 + $0x28] sm:$0xff]
      %v10382 = vld [vmem:[#allocation5 + $0x30] sm:$0xff]
      %v10383 = vld [vmem:[#allocation5 + $0x38] sm:$0xff]
      %v10384 = vld [vmem:[#allocation5 + $0x40] sm:$0xff]
      %v10385 = vld [vmem:[#allocation5 + $0x48] sm:$0xff]
      %v10386 = vld [vmem:[#allocation5 + $0x50] sm:$0xff]
      %v10387 = vld [vmem:[#allocation5 + $0x58] sm:$0xff]
      %v10388 = vld [vmem:[#allocation5 + $0x60] sm:$0xff]
      %v10389 = vld [vmem:[#allocation5 + $0x68] sm:$0xff]
      %v10390 = vld [vmem:[#allocation5 + $0x70] sm:$0xff]
      %v10391 = vld [vmem:[#allocation5 + $0x78] sm:$0xff]
      %s10392 = scalar_lea.vmem %s4, 64
      %v10393 = vld [vmem:[%s10392] sm:$0xf]
      %v10394 = vld [vmem:[%s10392 + $0x4] sm:$0xf]
      %v10395 = vld [vmem:[%s10392 + $0x8] sm:$0xf]
      %v10396 = vld [vmem:[%s10392 + $0xc] sm:$0xf]
      %v10397 = vld [vmem:[%s10392 + $0x10] sm:$0xf]
      %v10398 = vld [vmem:[%s10392 + $0x14] sm:$0xf]
      %v10399 = vld [vmem:[%s10392 + $0x18] sm:$0xf]
      %v10400 = vld [vmem:[%s10392 + $0x1c] sm:$0xf]
      %v10409 = vunpack.c.l.b16 %v10393
      %v10410 = vunpack.c.l.b16 %v10394
      %v10411 = vunpack.c.l.b16 %v10395
      %v10412 = vunpack.c.l.b16 %v10396
      %v10413 = vunpack.c.l.b16 %v10397
      %v10414 = vunpack.c.l.b16 %v10398
      %v10415 = vunpack.c.l.b16 %v10399
      %v10416 = vunpack.c.l.b16 %v10400
      %v10417 = vpack.c.b16 %v10410, %v10409
      %v10418 = vpack.c.b16 %v10412, %v10411
      %v10419 = vpack.c.b16 %v10414, %v10413
      %v10420 = vpack.c.b16 %v10416, %v10415
      %v10426 = vsel %vm6418, %v10376, 0
      %v10429 = vsel %vm6418, %v10377, 0
      %v10432 = vsel %vm6418, %v10378, 0
      %v10435 = vsel %vm6418, %v10379, 0
      %v10438 = vsel %vm6418, %v10380, 0
      %v10441 = vsel %vm6418, %v10381, 0
      %v10444 = vsel %vm6418, %v10382, 0
      %v10447 = vsel %vm6418, %v10383, 0
      %v10450 = vsel %vm6418, %v10384, 0
      %v10453 = vsel %vm6418, %v10385, 0
      %v10456 = vsel %vm6418, %v10386, 0
      %v10459 = vsel %vm6418, %v10387, 0
      %v10462 = vsel %vm6418, %v10388, 0
      %v10465 = vsel %vm6418, %v10389, 0
      %v10468 = vsel %vm6418, %v10390, 0
      %v10471 = vsel %vm6418, %v10391, 0
      %10473 = vmatprep.subr.bf16.mxu0 0
      %10474 = vmatpush1.bf16.msra.mxu0 %v10417
      %10475 = vmatprep.subr.bf16.mxu0 0
      %10476 = vmatpush1.bf16.msra.mxu0 %v10418
      %10477 = vmatprep.subr.bf16.mxu0 0
      %10478 = vmatpush1.bf16.msra.mxu0 %v10419
      %10479 = vmatprep.subr.bf16.mxu0 0
      %10480 = vmatpush1.bf16.msra.mxu0 %v10420
      %10481 = vmatprep.subr.bf16.mxu0 0
      %10482 = vmatpush1.bf16.msra.mxu0 0
      %10483 = vmatprep.subr.bf16.mxu0 0
      %10484 = vmatpush1.bf16.msra.mxu0 0
      %10485 = vmatprep.subr.bf16.mxu0 0
      %10486 = vmatpush1.bf16.msra.mxu0 0
      %10487 = vmatprep.subr.bf16.mxu0 0
      %10488 = vmatpush1.bf16.msra.mxu0 0
      %10489 = vmatprep.subr.bf16.mxu0 0
      %10490 = vmatpush1.bf16.msra.mxu0 0
      %10491 = vmatprep.subr.bf16.mxu0 0
      %10492 = vmatpush1.bf16.msra.mxu0 0
      %10493 = vmatprep.subr.bf16.mxu0 0
      %10494 = vmatpush1.bf16.msra.mxu0 0
      %10495 = vmatprep.subr.bf16.mxu0 0
      %10496 = vmatpush1.bf16.msra.mxu0 0
      %10497 = vmatprep.subr.bf16.mxu0 0
      %10498 = vmatpush1.bf16.msra.mxu0 0
      %10499 = vmatprep.subr.bf16.mxu0 0
      %10500 = vmatpush1.bf16.msra.mxu0 0
      %10501 = vmatprep.subr.bf16.mxu0 0
      %10502 = vmatpush1.bf16.msra.mxu0 0
      %10503 = vmatprep.subr.bf16.mxu0 0
      %10504 = vmatpush1.bf16.msra.mxu0 0
      %10505 = vmatprep.mubr.bf16.mxu0 0
      %10506 = vmatmul.mubr.bf16.gmra.mrb[0].mxu0 %v10426
      %v10507 = vpop.f32.mrb[0].mxu0
      %v10508 = vadd.f32 %v6392, %v10507
      %v10509 = vpop.f32.mrb[0].mxu0
      %v10510 = vpop.f32.mrb[0].mxu0
      %v10511 = vadd.f32 %v6392, %v10510
      %v10512 = vpop.f32.mrb[0].mxu0
      %10513 = vmatprep.mubr.bf16.mxu0 0
      %10514 = vmatmul.mubr.bf16.gmra.mrb[0].mxu0 %v10429
      %v10515 = vpop.f32.mrb[0].mxu0
      %v10516 = vadd.f32 %v6392, %v10515
      %v10517 = vpop.f32.mrb[0].mxu0
      %v10518 = vpop.f32.mrb[0].mxu0
      %v10519 = vadd.f32 %v6392, %v10518
      %v10520 = vpop.f32.mrb[0].mxu0
      %10521 = vmatprep.mubr.bf16.mxu0 0
      %10522 = vmatmul.mubr.bf16.gmra.mrb[0].mxu0 %v10432
      %v10523 = vpop.f32.mrb[0].mxu0
      %v10524 = vadd.f32 %v6392, %v10523
      %v10525 = vpop.f32.mrb[0].mxu0
      %v10526 = vpop.f32.mrb[0].mxu0
      %v10527 = vadd.f32 %v6392, %v10526
      %v10528 = vpop.f32.mrb[0].mxu0
      %10529 = vmatprep.mubr.bf16.mxu0 0
      %10530 = vmatmul.mubr.bf16.gmra.mrb[0].mxu0 %v10435
      %v10531 = vpop.f32.mrb[0].mxu0
      %v10532 = vadd.f32 %v6392, %v10531
      %v10533 = vpop.f32.mrb[0].mxu0
      %v10534 = vpop.f32.mrb[0].mxu0
      %v10535 = vadd.f32 %v6392, %v10534
      %v10536 = vpop.f32.mrb[0].mxu0
      %10537 = vmatprep.mubr.bf16.mxu0 0
      %10538 = vmatmul.mubr.bf16.gmra.mrb[0].mxu0 %v10438
      %v10539 = vpop.f32.mrb[0].mxu0
      %v10540 = vadd.f32 %v6392, %v10539
      %v10541 = vpop.f32.mrb[0].mxu0
      %v10542 = vpop.f32.mrb[0].mxu0
      %v10543 = vadd.f32 %v6392, %v10542
      %v10544 = vpop.f32.mrb[0].mxu0
      %10545 = vmatprep.mubr.bf16.mxu0 0
      %10546 = vmatmul.mubr.bf16.gmra.mrb[0].mxu0 %v10441
      %v10547 = vpop.f32.mrb[0].mxu0
      %v10548 = vadd.f32 %v6392, %v10547
      %v10549 = vpop.f32.mrb[0].mxu0
      %v10550 = vpop.f32.mrb[0].mxu0
      %v10551 = vadd.f32 %v6392, %v10550
      %v10552 = vpop.f32.mrb[0].mxu0
      %10553 = vmatprep.mubr.bf16.mxu0 0
      %10554 = vmatmul.mubr.bf16.gmra.mrb[0].mxu0 %v10444
      %v10555 = vpop.f32.mrb[0].mxu0
      %v10556 = vadd.f32 %v6392, %v10555
      %v10557 = vpop.f32.mrb[0].mxu0
      %v10558 = vpop.f32.mrb[0].mxu0
      %v10559 = vadd.f32 %v6392, %v10558
      %v10560 = vpop.f32.mrb[0].mxu0
      %10561 = vmatprep.mubr.bf16.mxu0 0
      %10562 = vmatmul.mubr.bf16.gmra.mrb[0].mxu0 %v10447
      %v10563 = vpop.f32.mrb[0].mxu0
      %v10564 = vadd.f32 %v6392, %v10563
      %v10565 = vpop.f32.mrb[0].mxu0
      %v10566 = vpop.f32.mrb[0].mxu0
      %v10567 = vadd.f32 %v6392, %v10566
      %v10568 = vpop.f32.mrb[0].mxu0
      %10569 = vmatprep.mubr.bf16.mxu0 0
      %10570 = vmatmul.mubr.bf16.gmra.mrb[0].mxu0 %v10450
      %v10571 = vpop.f32.mrb[0].mxu0
      %v10572 = vadd.f32 %v6392, %v10571
      %v10573 = vpop.f32.mrb[0].mxu0
      %v10574 = vpop.f32.mrb[0].mxu0
      %v10575 = vadd.f32 %v6392, %v10574
      %v10576 = vpop.f32.mrb[0].mxu0
      %10577 = vmatprep.mubr.bf16.mxu0 0
      %10578 = vmatmul.mubr.bf16.gmra.mrb[0].mxu0 %v10453
      %v10579 = vpop.f32.mrb[0].mxu0
      %v10580 = vadd.f32 %v6392, %v10579
      %v10581 = vpop.f32.mrb[0].mxu0
      %v10582 = vpop.f32.mrb[0].mxu0
      %v10583 = vadd.f32 %v6392, %v10582
      %v10584 = vpop.f32.mrb[0].mxu0
      %10585 = vmatprep.mubr.bf16.mxu0 0
      %10586 = vmatmul.mubr.bf16.gmra.mrb[0].mxu0 %v10456
      %v10587 = vpop.f32.mrb[0].mxu0
      %v10588 = vadd.f32 %v6392, %v10587
      %v10589 = vpop.f32.mrb[0].mxu0
      %v10590 = vpop.f32.mrb[0].mxu0
      %v10591 = vadd.f32 %v6392, %v10590
      %v10592 = vpop.f32.mrb[0].mxu0
      %10593 = vmatprep.mubr.bf16.mxu0 0
      %10594 = vmatmul.mubr.bf16.gmra.mrb[0].mxu0 %v10459
      %v10595 = vpop.f32.mrb[0].mxu0
      %v10596 = vadd.f32 %v6392, %v10595
      %v10597 = vpop.f32.mrb[0].mxu0
      %v10598 = vpop.f32.mrb[0].mxu0
      %v10599 = vadd.f32 %v6392, %v10598
      %v10600 = vpop.f32.mrb[0].mxu0
      %10601 = vmatprep.mubr.bf16.mxu0 0
      %10602 = vmatmul.mubr.bf16.gmra.mrb[0].mxu0 %v10462
      %v10603 = vpop.f32.mrb[0].mxu0
      %v10604 = vadd.f32 %v6392, %v10603
      %v10605 = vpop.f32.mrb[0].mxu0
      %v10606 = vpop.f32.mrb[0].mxu0
      %v10607 = vadd.f32 %v6392, %v10606
      %v10608 = vpop.f32.mrb[0].mxu0
      %10609 = vmatprep.mubr.bf16.mxu0 0
      %10610 = vmatmul.mubr.bf16.gmra.mrb[0].mxu0 %v10465
      %v10611 = vpop.f32.mrb[0].mxu0
      %v10612 = vadd.f32 %v6392, %v10611
      %v10613 = vpop.f32.mrb[0].mxu0
      %v10614 = vpop.f32.mrb[0].mxu0
      %v10615 = vadd.f32 %v6392, %v10614
      %v10616 = vpop.f32.mrb[0].mxu0
      %10617 = vmatprep.mubr.bf16.mxu0 0
      %10618 = vmatmul.mubr.bf16.gmra.mrb[0].mxu0 %v10468
      %v10619 = vpop.f32.mrb[0].mxu0
      %v10620 = vadd.f32 %v6392, %v10619
      %v10621 = vpop.f32.mrb[0].mxu0
      %v10622 = vpop.f32.mrb[0].mxu0
      %v10623 = vadd.f32 %v6392, %v10622
      %v10624 = vpop.f32.mrb[0].mxu0
      %10625 = vmatprep.mubr.bf16.mxu0 0
      %10626 = vmatmul.mubr.bf16.gmra.mrb[0].mxu0 %v10471
      %v10627 = vpop.f32.mrb[0].mxu0
      %v10628 = vadd.f32 %v6392, %v10627
      %v10629 = vpop.f32.mrb[0].mxu0
      %v10630 = vpop.f32.mrb[0].mxu0
      %v10631 = vadd.f32 %v6392, %v10630
      %v10632 = vpop.f32.mrb[0].mxu0
      %10633 = vdwg.mxu0
      %v10634 = vmax.f32 %v10508, 0.0
      %v10635 = vmax.f32 %v10511, 0.0
      %v10636 = vmax.f32 %v10516, 0.0
      %v10637 = vmax.f32 %v10519, 0.0
      %v10638 = vmax.f32 %v10524, 0.0
      %v10639 = vmax.f32 %v10527, 0.0
      %v10640 = vmax.f32 %v10532, 0.0
      %v10641 = vmax.f32 %v10535, 0.0
      %v10642 = vmax.f32 %v10540, 0.0
      %v10643 = vmax.f32 %v10543, 0.0
      %v10644 = vmax.f32 %v10548, 0.0
      %v10645 = vmax.f32 %v10551, 0.0
      %v10646 = vmax.f32 %v10556, 0.0
      %v10647 = vmax.f32 %v10559, 0.0
      %v10648 = vmax.f32 %v10564, 0.0
      %v10649 = vmax.f32 %v10567, 0.0
      %v10650 = vmax.f32 %v10572, 0.0
      %v10651 = vmax.f32 %v10575, 0.0
      %v10652 = vmax.f32 %v10580, 0.0
      %v10653 = vmax.f32 %v10583, 0.0
      %v10654 = vmax.f32 %v10588, 0.0
      %v10655 = vmax.f32 %v10591, 0.0
      %v10656 = vmax.f32 %v10596, 0.0
      %v10657 = vmax.f32 %v10599, 0.0
      %v10658 = vmax.f32 %v10604, 0.0
      %v10659 = vmax.f32 %v10607, 0.0
      %v10660 = vmax.f32 %v10612, 0.0
      %v10661 = vmax.f32 %v10615, 0.0
      %v10662 = vmax.f32 %v10620, 0.0
      %v10663 = vmax.f32 %v10623, 0.0
      %v10664 = vmax.f32 %v10628, 0.0
      %v10665 = vmax.f32 %v10631, 0.0
      %v10666 = vpack.c.bf16 %v10635, %v10634
      %v10667 = vpack.c.bf16 %v10637, %v10636
      %v10668 = vpack.c.bf16 %v10639, %v10638
      %v10669 = vpack.c.bf16 %v10641, %v10640
      %v10670 = vpack.c.bf16 %v10643, %v10642
      %v10671 = vpack.c.bf16 %v10645, %v10644
      %v10672 = vpack.c.bf16 %v10647, %v10646
      %v10673 = vpack.c.bf16 %v10649, %v10648
      %v10674 = vpack.c.bf16 %v10651, %v10650
      %v10675 = vpack.c.bf16 %v10653, %v10652
      %v10676 = vpack.c.bf16 %v10655, %v10654
      %v10677 = vpack.c.bf16 %v10657, %v10656
      %v10678 = vpack.c.bf16 %v10659, %v10658
      %v10679 = vpack.c.bf16 %v10661, %v10660
      %v10680 = vpack.c.bf16 %v10663, %v10662
      %v10681 = vpack.c.bf16 %v10665, %v10664
      %v10698 = vunpack.c.l.b16 %v10666
      %v10699 = vunpack.c.h.b16 %v10666
      %v10700 = vunpack.c.l.b16 %v10667
      %v10701 = vunpack.c.h.b16 %v10667
      %v10702 = vunpack.c.l.b16 %v10668
      %v10703 = vunpack.c.h.b16 %v10668
      %v10704 = vunpack.c.l.b16 %v10669
      %v10705 = vunpack.c.h.b16 %v10669
      %v10706 = vunpack.c.l.b16 %v10670
      %v10707 = vunpack.c.h.b16 %v10670
      %v10708 = vunpack.c.l.b16 %v10671
      %v10709 = vunpack.c.h.b16 %v10671
      %v10710 = vunpack.c.l.b16 %v10672
      %v10711 = vunpack.c.h.b16 %v10672
      %v10712 = vunpack.c.l.b16 %v10673
      %v10713 = vunpack.c.h.b16 %v10673
      %v10714 = vunpack.c.l.b16 %v10674
      %v10715 = vunpack.c.h.b16 %v10674
      %v10716 = vunpack.c.l.b16 %v10675
      %v10717 = vunpack.c.h.b16 %v10675
      %v10718 = vunpack.c.l.b16 %v10676
      %v10719 = vunpack.c.h.b16 %v10676
      %v10720 = vunpack.c.l.b16 %v10677
      %v10721 = vunpack.c.h.b16 %v10677
      %v10722 = vunpack.c.l.b16 %v10678
      %v10723 = vunpack.c.h.b16 %v10678
      %v10724 = vunpack.c.l.b16 %v10679
      %v10725 = vunpack.c.h.b16 %v10679
      %v10726 = vunpack.c.l.b16 %v10680
      %v10727 = vunpack.c.h.b16 %v10680
      %v10728 = vunpack.c.l.b16 %v10681
      %v10729 = vunpack.c.h.b16 %v10681
      %v10730 = vpack.c.b16 %v10698, %v10698
      %v10731 = vpack.c.b16 %v10699, %v10699
      %v10732 = vpack.c.b16 %v10700, %v10700
      %v10733 = vpack.c.b16 %v10701, %v10701
      %v10734 = vpack.c.b16 %v10702, %v10702
      %v10735 = vpack.c.b16 %v10703, %v10703
      %v10736 = vpack.c.b16 %v10704, %v10704
      %v10737 = vpack.c.b16 %v10705, %v10705
      %v10738 = vpack.c.b16 %v10706, %v10706
      %v10739 = vpack.c.b16 %v10707, %v10707
      %v10740 = vpack.c.b16 %v10708, %v10708
      %v10741 = vpack.c.b16 %v10709, %v10709
      %v10742 = vpack.c.b16 %v10710, %v10710
      %v10743 = vpack.c.b16 %v10711, %v10711
      %v10744 = vpack.c.b16 %v10712, %v10712
      %v10745 = vpack.c.b16 %v10713, %v10713
      %v10746 = vpack.c.b16 %v10714, %v10714
      %v10747 = vpack.c.b16 %v10715, %v10715
      %v10748 = vpack.c.b16 %v10716, %v10716
      %v10749 = vpack.c.b16 %v10717, %v10717
      %v10750 = vpack.c.b16 %v10718, %v10718
      %v10751 = vpack.c.b16 %v10719, %v10719
      %v10752 = vpack.c.b16 %v10720, %v10720
      %v10753 = vpack.c.b16 %v10721, %v10721
      %v10754 = vpack.c.b16 %v10722, %v10722
      %v10755 = vpack.c.b16 %v10723, %v10723
      %v10756 = vpack.c.b16 %v10724, %v10724
      %v10757 = vpack.c.b16 %v10725, %v10725
      %v10758 = vpack.c.b16 %v10726, %v10726
      %v10759 = vpack.c.b16 %v10727, %v10727
      %v10760 = vpack.c.b16 %v10728, %v10728
      %v10761 = vpack.c.b16 %v10729, %v10729
      %s10794 = scalar_lea.vmem %s251, 256
      %10795 = vst.msk [vmem:[%s10794] sm:$0xf] %vm253, %v10730
      %10796 = vst.msk [vmem:[%s10794 + $0x4] sm:$0xf] %vm253, %v10731
      %10797 = vst.msk [vmem:[%s10794 + $0x8] sm:$0xf] %vm253, %v10732
      %10798 = vst.msk [vmem:[%s10794 + $0xc] sm:$0xf] %vm253, %v10733
      %10799 = vst.msk [vmem:[%s10794 + $0x10] sm:$0xf] %vm253, %v10734
      %10800 = vst.msk [vmem:[%s10794 + $0x14] sm:$0xf] %vm253, %v10735
      %10801 = vst.msk [vmem:[%s10794 + $0x18] sm:$0xf] %vm253, %v10736
      %10802 = vst.msk [vmem:[%s10794 + $0x1c] sm:$0xf] %vm253, %v10737
      %10803 = vst.msk [vmem:[%s10794 + $0x20] sm:$0xf] %vm253, %v10738
      %10804 = vst.msk [vmem:[%s10794 + $0x24] sm:$0xf] %vm253, %v10739
      %10805 = vst.msk [vmem:[%s10794 + $0x28] sm:$0xf] %vm253, %v10740
      %10806 = vst.msk [vmem:[%s10794 + $0x2c] sm:$0xf] %vm253, %v10741
      %10807 = vst.msk [vmem:[%s10794 + $0x30] sm:$0xf] %vm253, %v10742
      %10808 = vst.msk [vmem:[%s10794 + $0x34] sm:$0xf] %vm253, %v10743
      %10809 = vst.msk [vmem:[%s10794 + $0x38] sm:$0xf] %vm253, %v10744
      %10810 = vst.msk [vmem:[%s10794 + $0x3c] sm:$0xf] %vm253, %v10745
      %10811 = vst.msk [vmem:[%s10794 + $0x40] sm:$0xf] %vm253, %v10746
      %10812 = vst.msk [vmem:[%s10794 + $0x44] sm:$0xf] %vm253, %v10747
      %10813 = vst.msk [vmem:[%s10794 + $0x48] sm:$0xf] %vm253, %v10748
      %10814 = vst.msk [vmem:[%s10794 + $0x4c] sm:$0xf] %vm253, %v10749
      %10815 = vst.msk [vmem:[%s10794 + $0x50] sm:$0xf] %vm253, %v10750
      %10816 = vst.msk [vmem:[%s10794 + $0x54] sm:$0xf] %vm253, %v10751
      %10817 = vst.msk [vmem:[%s10794 + $0x58] sm:$0xf] %vm253, %v10752
      %10818 = vst.msk [vmem:[%s10794 + $0x5c] sm:$0xf] %vm253, %v10753
      %10819 = vst.msk [vmem:[%s10794 + $0x60] sm:$0xf] %vm253, %v10754
      %10820 = vst.msk [vmem:[%s10794 + $0x64] sm:$0xf] %vm253, %v10755
      %10821 = vst.msk [vmem:[%s10794 + $0x68] sm:$0xf] %vm253, %v10756
      %10822 = vst.msk [vmem:[%s10794 + $0x6c] sm:$0xf] %vm253, %v10757
      %10823 = vst.msk [vmem:[%s10794 + $0x70] sm:$0xf] %vm253, %v10758
      %10824 = vst.msk [vmem:[%s10794 + $0x74] sm:$0xf] %vm253, %v10759
      %10825 = vst.msk [vmem:[%s10794 + $0x78] sm:$0xf] %vm253, %v10760
      %10826 = vst.msk [vmem:[%s10794 + $0x7c] sm:$0xf] %vm253, %v10761
      %v10827 = vld [vmem:[%s373] sm:$0xf]
      %v10828 = vld [vmem:[%s373 + $0x4] sm:$0xf]
      %v10829 = vld [vmem:[%s373 + $0x8] sm:$0x1]
      %v10830 = vld [vmem:[%s373 + $0xc] sm:$0xf]
      %v10831 = vld [vmem:[%s373 + $0x10] sm:$0xf]
      %v10832 = vld [vmem:[%s373 + $0x14] sm:$0x1]
      %v10833 = vld [vmem:[%s373 + $0x18] sm:$0xf]
      %v10834 = vld [vmem:[%s373 + $0x1c] sm:$0xf]
      %v10835 = vld [vmem:[%s373 + $0x20] sm:$0x1]
      %v10836 = vld [vmem:[%s373 + $0x24] sm:$0xf]
      %v10837 = vld [vmem:[%s373 + $0x28] sm:$0xf]
      %v10838 = vld [vmem:[%s373 + $0x2c] sm:$0x1]
      %v10839 = vld [vmem:[%s373 + $0x30] sm:$0xf]
      %v10840 = vld [vmem:[%s373 + $0x34] sm:$0xf]
      %v10841 = vld [vmem:[%s373 + $0x38] sm:$0x1]
      %v10842 = vld [vmem:[%s373 + $0x3c] sm:$0xf]
      %v10843 = vld [vmem:[%s373 + $0x40] sm:$0xf]
      %v10844 = vld [vmem:[%s373 + $0x44] sm:$0x1]
      %v10845 = vld [vmem:[%s373 + $0x48] sm:$0xf]
      %v10846 = vld [vmem:[%s373 + $0x4c] sm:$0xf]
      %v10847 = vld [vmem:[%s373 + $0x50] sm:$0x1]
      %v10848 = vld [vmem:[%s373 + $0x54] sm:$0xf]
      %v10849 = vld [vmem:[%s373 + $0x58] sm:$0xf]
      %v10850 = vld [vmem:[%s373 + $0x5c] sm:$0x1]
      %v10851 = vld [vmem:[%s373 + $0x60] sm:$0xf]
      %v10852 = vld [vmem:[%s373 + $0x64] sm:$0xf]
      %v10853 = vld [vmem:[%s373 + $0x68] sm:$0x1]
      %v10854 = vld [vmem:[%s373 + $0x6c] sm:$0xf]
      %v10855 = vld [vmem:[%s373 + $0x70] sm:$0xf]
      %v10856 = vld [vmem:[%s373 + $0x74] sm:$0x1]
      %v10857 = vld [vmem:[%s373 + $0x78] sm:$0xf]
      %v10858 = vld [vmem:[%s373 + $0x7c] sm:$0xf]
      %v10859 = vld [vmem:[%s373 + $0x80] sm:$0x1]
      %v10860 = vld [vmem:[%s373 + $0x84] sm:$0xf]
      %v10861 = vld [vmem:[%s373 + $0x88] sm:$0xf]
      %v10862 = vld [vmem:[%s373 + $0x8c] sm:$0x1]
      %v10863 = vld [vmem:[%s373 + $0x90] sm:$0xf]
      %v10864 = vld [vmem:[%s373 + $0x94] sm:$0xf]
      %v10865 = vld [vmem:[%s373 + $0x98] sm:$0x1]
      %v10866 = vld [vmem:[%s373 + $0x9c] sm:$0xf]
      %v10867 = vld [vmem:[%s373 + $0xa0] sm:$0xf]
      %v10868 = vld [vmem:[%s373 + $0xa4] sm:$0x1]
      %v10869 = vld [vmem:[%s373 + $0xa8] sm:$0xf]
      %v10870 = vld [vmem:[%s373 + $0xac] sm:$0xf]
      %v10871 = vld [vmem:[%s373 + $0xb0] sm:$0x1]
      %v10872 = vld [vmem:[%s373 + $0xb4] sm:$0xf]
      %v10873 = vld [vmem:[%s373 + $0xb8] sm:$0xf]
      %v10874 = vld [vmem:[%s373 + $0xbc] sm:$0x1]
      %v10876 = vshrl.u32 %v10827, 16
      %v10878 = vrot.slane %v10876, 4
      %v10879 = vshll.u32 %v10827, 16
      %v10881 = vrot.slane %v10879, 5
      %v10882 = vor.u32 %v10878, %v10881
      %v10883 = vrot.slane %v10882, 4
      %v10885 = vshll.u32 %v10828, 16
      %v10887 = vrot.slane %v10885, 5
      %v10888 = vsel %vm1136, %v10883, %v10887
      %v10889 = vshrl.u32 %v10828, 16
      %v10891 = vrot.slane %v10889, 4
      %v10892 = vor.u32 %v10891, %v10887
      %v10893 = vrot.slane %v10892, 4
      %v10895 = vshll.u32 %v10829, 16
      %v10897 = vrot.slane %v10895, 5
      %v10898 = vsel %vm1136, %v10893, %v10897
      %v10900 = vshrl.u32 %v10830, 16
      %v10902 = vrot.slane %v10900, 4
      %v10903 = vshll.u32 %v10830, 16
      %v10905 = vrot.slane %v10903, 5
      %v10906 = vor.u32 %v10902, %v10905
      %v10907 = vrot.slane %v10906, 4
      %v10909 = vshll.u32 %v10831, 16
      %v10911 = vrot.slane %v10909, 5
      %v10912 = vsel %vm1136, %v10907, %v10911
      %v10913 = vshrl.u32 %v10831, 16
      %v10915 = vrot.slane %v10913, 4
      %v10916 = vor.u32 %v10915, %v10911
      %v10917 = vrot.slane %v10916, 4
      %v10919 = vshll.u32 %v10832, 16
      %v10921 = vrot.slane %v10919, 5
      %v10922 = vsel %vm1136, %v10917, %v10921
      %v10924 = vshrl.u32 %v10833, 16
      %v10926 = vrot.slane %v10924, 4
      %v10927 = vshll.u32 %v10833, 16
      %v10929 = vrot.slane %v10927, 5
      %v10930 = vor.u32 %v10926, %v10929
      %v10931 = vrot.slane %v10930, 4
      %v10933 = vshll.u32 %v10834, 16
      %v10935 = vrot.slane %v10933, 5
      %v10936 = vsel %vm1136, %v10931, %v10935
      %v10937 = vshrl.u32 %v10834, 16
      %v10939 = vrot.slane %v10937, 4
      %v10940 = vor.u32 %v10939, %v10935
      %v10941 = vrot.slane %v10940, 4
      %v10943 = vshll.u32 %v10835, 16
      %v10945 = vrot.slane %v10943, 5
      %v10946 = vsel %vm1136, %v10941, %v10945
      %v10948 = vshrl.u32 %v10836, 16
      %v10950 = vrot.slane %v10948, 4
      %v10951 = vshll.u32 %v10836, 16
      %v10953 = vrot.slane %v10951, 5
      %v10954 = vor.u32 %v10950, %v10953
      %v10955 = vrot.slane %v10954, 4
      %v10957 = vshll.u32 %v10837, 16
      %v10959 = vrot.slane %v10957, 5
      %v10960 = vsel %vm1136, %v10955, %v10959
      %v10961 = vshrl.u32 %v10837, 16
      %v10963 = vrot.slane %v10961, 4
      %v10964 = vor.u32 %v10963, %v10959
      %v10965 = vrot.slane %v10964, 4
      %v10967 = vshll.u32 %v10838, 16
      %v10969 = vrot.slane %v10967, 5
      %v10970 = vsel %vm1136, %v10965, %v10969
      %v10972 = vshrl.u32 %v10839, 16
      %v10974 = vrot.slane %v10972, 4
      %v10975 = vshll.u32 %v10839, 16
      %v10977 = vrot.slane %v10975, 5
      %v10978 = vor.u32 %v10974, %v10977
      %v10979 = vrot.slane %v10978, 4
      %v10981 = vshll.u32 %v10840, 16
      %v10983 = vrot.slane %v10981, 5
      %v10984 = vsel %vm1136, %v10979, %v10983
      %v10985 = vshrl.u32 %v10840, 16
      %v10987 = vrot.slane %v10985, 4
      %v10988 = vor.u32 %v10987, %v10983
      %v10989 = vrot.slane %v10988, 4
      %v10991 = vshll.u32 %v10841, 16
      %v10993 = vrot.slane %v10991, 5
      %v10994 = vsel %vm1136, %v10989, %v10993
      %v10996 = vshrl.u32 %v10842, 16
      %v10998 = vrot.slane %v10996, 4
      %v10999 = vshll.u32 %v10842, 16
      %v11001 = vrot.slane %v10999, 5
      %v11002 = vor.u32 %v10998, %v11001
      %v11003 = vrot.slane %v11002, 4
      %v11005 = vshll.u32 %v10843, 16
      %v11007 = vrot.slane %v11005, 5
      %v11008 = vsel %vm1136, %v11003, %v11007
      %v11009 = vshrl.u32 %v10843, 16
      %v11011 = vrot.slane %v11009, 4
      %v11012 = vor.u32 %v11011, %v11007
      %v11013 = vrot.slane %v11012, 4
      %v11015 = vshll.u32 %v10844, 16
      %v11017 = vrot.slane %v11015, 5
      %v11018 = vsel %vm1136, %v11013, %v11017
      %v11020 = vshrl.u32 %v10845, 16
      %v11022 = vrot.slane %v11020, 4
      %v11023 = vshll.u32 %v10845, 16
      %v11025 = vrot.slane %v11023, 5
      %v11026 = vor.u32 %v11022, %v11025
      %v11027 = vrot.slane %v11026, 4
      %v11029 = vshll.u32 %v10846, 16
      %v11031 = vrot.slane %v11029, 5
      %v11032 = vsel %vm1136, %v11027, %v11031
      %v11033 = vshrl.u32 %v10846, 16
      %v11035 = vrot.slane %v11033, 4
      %v11036 = vor.u32 %v11035, %v11031
      %v11037 = vrot.slane %v11036, 4
      %v11039 = vshll.u32 %v10847, 16
      %v11041 = vrot.slane %v11039, 5
      %v11042 = vsel %vm1136, %v11037, %v11041
      %v11044 = vshrl.u32 %v10848, 16
      %v11046 = vrot.slane %v11044, 4
      %v11047 = vshll.u32 %v10848, 16
      %v11049 = vrot.slane %v11047, 5
      %v11050 = vor.u32 %v11046, %v11049
      %v11051 = vrot.slane %v11050, 4
      %v11053 = vshll.u32 %v10849, 16
      %v11055 = vrot.slane %v11053, 5
      %v11056 = vsel %vm1136, %v11051, %v11055
      %v11057 = vshrl.u32 %v10849, 16
      %v11059 = vrot.slane %v11057, 4
      %v11060 = vor.u32 %v11059, %v11055
      %v11061 = vrot.slane %v11060, 4
      %v11063 = vshll.u32 %v10850, 16
      %v11065 = vrot.slane %v11063, 5
      %v11066 = vsel %vm1136, %v11061, %v11065
      %v11068 = vshrl.u32 %v10851, 16
      %v11070 = vrot.slane %v11068, 4
      %v11071 = vshll.u32 %v10851, 16
      %v11073 = vrot.slane %v11071, 5
      %v11074 = vor.u32 %v11070, %v11073
      %v11075 = vrot.slane %v11074, 4
      %v11077 = vshll.u32 %v10852, 16
      %v11079 = vrot.slane %v11077, 5
      %v11080 = vsel %vm1136, %v11075, %v11079
      %v11081 = vshrl.u32 %v10852, 16
      %v11083 = vrot.slane %v11081, 4
      %v11084 = vor.u32 %v11083, %v11079
      %v11085 = vrot.slane %v11084, 4
      %v11087 = vshll.u32 %v10853, 16
      %v11089 = vrot.slane %v11087, 5
      %v11090 = vsel %vm1136, %v11085, %v11089
      %v11092 = vshrl.u32 %v10854, 16
      %v11094 = vrot.slane %v11092, 4
      %v11095 = vshll.u32 %v10854, 16
      %v11097 = vrot.slane %v11095, 5
      %v11098 = vor.u32 %v11094, %v11097
      %v11099 = vrot.slane %v11098, 4
      %v11101 = vshll.u32 %v10855, 16
      %v11103 = vrot.slane %v11101, 5
      %v11104 = vsel %vm1136, %v11099, %v11103
      %v11105 = vshrl.u32 %v10855, 16
      %v11107 = vrot.slane %v11105, 4
      %v11108 = vor.u32 %v11107, %v11103
      %v11109 = vrot.slane %v11108, 4
      %v11111 = vshll.u32 %v10856, 16
      %v11113 = vrot.slane %v11111, 5
      %v11114 = vsel %vm1136, %v11109, %v11113
      %v11116 = vshrl.u32 %v10857, 16
      %v11118 = vrot.slane %v11116, 4
      %v11119 = vshll.u32 %v10857, 16
      %v11121 = vrot.slane %v11119, 5
      %v11122 = vor.u32 %v11118, %v11121
      %v11123 = vrot.slane %v11122, 4
      %v11125 = vshll.u32 %v10858, 16
      %v11127 = vrot.slane %v11125, 5
      %v11128 = vsel %vm1136, %v11123, %v11127
      %v11129 = vshrl.u32 %v10858, 16
      %v11131 = vrot.slane %v11129, 4
      %v11132 = vor.u32 %v11131, %v11127
      %v11133 = vrot.slane %v11132, 4
      %v11135 = vshll.u32 %v10859, 16
      %v11137 = vrot.slane %v11135, 5
      %v11138 = vsel %vm1136, %v11133, %v11137
      %v11140 = vshrl.u32 %v10860, 16
      %v11142 = vrot.slane %v11140, 4
      %v11143 = vshll.u32 %v10860, 16
      %v11145 = vrot.slane %v11143, 5
      %v11146 = vor.u32 %v11142, %v11145
      %v11147 = vrot.slane %v11146, 4
      %v11149 = vshll.u32 %v10861, 16
      %v11151 = vrot.slane %v11149, 5
      %v11152 = vsel %vm1136, %v11147, %v11151
      %v11153 = vshrl.u32 %v10861, 16
      %v11155 = vrot.slane %v11153, 4
      %v11156 = vor.u32 %v11155, %v11151
      %v11157 = vrot.slane %v11156, 4
      %v11159 = vshll.u32 %v10862, 16
      %v11161 = vrot.slane %v11159, 5
      %v11162 = vsel %vm1136, %v11157, %v11161
      %v11164 = vshrl.u32 %v10863, 16
      %v11166 = vrot.slane %v11164, 4
      %v11167 = vshll.u32 %v10863, 16
      %v11169 = vrot.slane %v11167, 5
      %v11170 = vor.u32 %v11166, %v11169
      %v11171 = vrot.slane %v11170, 4
      %v11173 = vshll.u32 %v10864, 16
      %v11175 = vrot.slane %v11173, 5
      %v11176 = vsel %vm1136, %v11171, %v11175
      %v11177 = vshrl.u32 %v10864, 16
      %v11179 = vrot.slane %v11177, 4
      %v11180 = vor.u32 %v11179, %v11175
      %v11181 = vrot.slane %v11180, 4
      %v11183 = vshll.u32 %v10865, 16
      %v11185 = vrot.slane %v11183, 5
      %v11186 = vsel %vm1136, %v11181, %v11185
      %v11188 = vshrl.u32 %v10866, 16
      %v11190 = vrot.slane %v11188, 4
      %v11191 = vshll.u32 %v10866, 16
      %v11193 = vrot.slane %v11191, 5
      %v11194 = vor.u32 %v11190, %v11193
      %v11195 = vrot.slane %v11194, 4
      %v11197 = vshll.u32 %v10867, 16
      %v11199 = vrot.slane %v11197, 5
      %v11200 = vsel %vm1136, %v11195, %v11199
      %v11201 = vshrl.u32 %v10867, 16
      %v11203 = vrot.slane %v11201, 4
      %v11204 = vor.u32 %v11203, %v11199
      %v11205 = vrot.slane %v11204, 4
      %v11207 = vshll.u32 %v10868, 16
      %v11209 = vrot.slane %v11207, 5
      %v11210 = vsel %vm1136, %v11205, %v11209
      %v11212 = vshrl.u32 %v10869, 16
      %v11214 = vrot.slane %v11212, 4
      %v11215 = vshll.u32 %v10869, 16
      %v11217 = vrot.slane %v11215, 5
      %v11218 = vor.u32 %v11214, %v11217
      %v11219 = vrot.slane %v11218, 4
      %v11221 = vshll.u32 %v10870, 16
      %v11223 = vrot.slane %v11221, 5
      %v11224 = vsel %vm1136, %v11219, %v11223
      %v11225 = vshrl.u32 %v10870, 16
      %v11227 = vrot.slane %v11225, 4
      %v11228 = vor.u32 %v11227, %v11223
      %v11229 = vrot.slane %v11228, 4
      %v11231 = vshll.u32 %v10871, 16
      %v11233 = vrot.slane %v11231, 5
      %v11234 = vsel %vm1136, %v11229, %v11233
      %v11236 = vshrl.u32 %v10872, 16
      %v11238 = vrot.slane %v11236, 4
      %v11239 = vshll.u32 %v10872, 16
      %v11241 = vrot.slane %v11239, 5
      %v11242 = vor.u32 %v11238, %v11241
      %v11243 = vrot.slane %v11242, 4
      %v11245 = vshll.u32 %v10873, 16
      %v11247 = vrot.slane %v11245, 5
      %v11248 = vsel %vm1136, %v11243, %v11247
      %v11249 = vshrl.u32 %v10873, 16
      %v11251 = vrot.slane %v11249, 4
      %v11252 = vor.u32 %v11251, %v11247
      %v11253 = vrot.slane %v11252, 4
      %v11255 = vshll.u32 %v10874, 16
      %v11257 = vrot.slane %v11255, 5
      %v11258 = vsel %vm1136, %v11253, %v11257
      %v11259 = vunpack.c.l.b16 %v10888
      %v11260 = vunpack.c.l.b16 %v10898
      %v11261 = vunpack.c.l.b16 %v10912
      %v11262 = vunpack.c.l.b16 %v10922
      %v11263 = vunpack.c.l.b16 %v10936
      %v11264 = vunpack.c.l.b16 %v10946
      %v11265 = vunpack.c.l.b16 %v10960
      %v11266 = vunpack.c.l.b16 %v10970
      %v11267 = vunpack.c.l.b16 %v10984
      %v11268 = vunpack.c.l.b16 %v10994
      %v11269 = vunpack.c.l.b16 %v11008
      %v11270 = vunpack.c.l.b16 %v11018
      %v11271 = vunpack.c.l.b16 %v11032
      %v11272 = vunpack.c.l.b16 %v11042
      %v11273 = vunpack.c.l.b16 %v11056
      %v11274 = vunpack.c.l.b16 %v11066
      %v11275 = vunpack.c.l.b16 %v11080
      %v11276 = vunpack.c.l.b16 %v11090
      %v11277 = vunpack.c.l.b16 %v11104
      %v11278 = vunpack.c.l.b16 %v11114
      %v11279 = vunpack.c.l.b16 %v11128
      %v11280 = vunpack.c.l.b16 %v11138
      %v11281 = vunpack.c.l.b16 %v11152
      %v11282 = vunpack.c.l.b16 %v11162
      %v11283 = vunpack.c.l.b16 %v11176
      %v11284 = vunpack.c.l.b16 %v11186
      %v11285 = vunpack.c.l.b16 %v11200
      %v11286 = vunpack.c.l.b16 %v11210
      %v11287 = vunpack.c.l.b16 %v11224
      %v11288 = vunpack.c.l.b16 %v11234
      %v11289 = vunpack.c.l.b16 %v11248
      %v11290 = vunpack.c.l.b16 %v11258
      %v11291 = vpack.c.b16 %v11260, %v11259
      %v11292 = vpack.c.b16 %v11262, %v11261
      %v11293 = vpack.c.b16 %v11264, %v11263
      %v11294 = vpack.c.b16 %v11266, %v11265
      %v11295 = vpack.c.b16 %v11268, %v11267
      %v11296 = vpack.c.b16 %v11270, %v11269
      %v11297 = vpack.c.b16 %v11272, %v11271
      %v11298 = vpack.c.b16 %v11274, %v11273
      %v11299 = vpack.c.b16 %v11276, %v11275
      %v11300 = vpack.c.b16 %v11278, %v11277
      %v11301 = vpack.c.b16 %v11280, %v11279
      %v11302 = vpack.c.b16 %v11282, %v11281
      %v11303 = vpack.c.b16 %v11284, %v11283
      %v11304 = vpack.c.b16 %v11286, %v11285
      %v11305 = vpack.c.b16 %v11288, %v11287
      %v11306 = vpack.c.b16 %v11290, %v11289
      %11323 = vst.msk [vmem:[#allocation5] sm:$0xff] %vm5080, %v11291
      %11324 = vst.msk [vmem:[#allocation5 + $0x8] sm:$0xff] %vm5080, %v11292
      %11325 = vst.msk [vmem:[#allocation5 + $0x10] sm:$0xff] %vm5080, %v11293
      %11326 = vst.msk [vmem:[#allocation5 + $0x18] sm:$0xff] %vm5080, %v11294
      %11327 = vst.msk [vmem:[#allocation5 + $0x20] sm:$0xff] %vm5080, %v11295
      %11328 = vst.msk [vmem:[#allocation5 + $0x28] sm:$0xff] %vm5080, %v11296
      %11329 = vst.msk [vmem:[#allocation5 + $0x30] sm:$0xff] %vm5080, %v11297
      %11330 = vst.msk [vmem:[#allocation5 + $0x38] sm:$0xff] %vm5080, %v11298
      %11331 = vst.msk [vmem:[#allocation5 + $0x40] sm:$0xff] %vm5080, %v11299
      %11332 = vst.msk [vmem:[#allocation5 + $0x48] sm:$0xff] %vm5080, %v11300
      %11333 = vst.msk [vmem:[#allocation5 + $0x50] sm:$0xff] %vm5080, %v11301
      %11334 = vst.msk [vmem:[#allocation5 + $0x58] sm:$0xff] %vm5080, %v11302
      %11335 = vst.msk [vmem:[#allocation5 + $0x60] sm:$0xff] %vm5080, %v11303
      %11336 = vst.msk [vmem:[#allocation5 + $0x68] sm:$0xff] %vm5080, %v11304
      %11337 = vst.msk [vmem:[#allocation5 + $0x70] sm:$0xff] %vm5080, %v11305
      %11338 = vst.msk [vmem:[#allocation5 + $0x78] sm:$0xff] %vm5080, %v11306
      %v11339 = vld [vmem:[%s373] sm:$0xe]
      %v11340 = vld [vmem:[%s373 + $0x4] sm:$0xf]
      %v11341 = vld [vmem:[%s373 + $0x8] sm:$0x1]
      %v11342 = vld [vmem:[%s373 + $0xc] sm:$0xe]
      %v11343 = vld [vmem:[%s373 + $0x10] sm:$0xf]
      %v11344 = vld [vmem:[%s373 + $0x14] sm:$0x1]
      %v11345 = vld [vmem:[%s373 + $0x18] sm:$0xe]
      %v11346 = vld [vmem:[%s373 + $0x1c] sm:$0xf]
      %v11347 = vld [vmem:[%s373 + $0x20] sm:$0x1]
      %v11348 = vld [vmem:[%s373 + $0x24] sm:$0xe]
      %v11349 = vld [vmem:[%s373 + $0x28] sm:$0xf]
      %v11350 = vld [vmem:[%s373 + $0x2c] sm:$0x1]
      %v11351 = vld [vmem:[%s373 + $0x30] sm:$0xe]
      %v11352 = vld [vmem:[%s373 + $0x34] sm:$0xf]
      %v11353 = vld [vmem:[%s373 + $0x38] sm:$0x1]
      %v11354 = vld [vmem:[%s373 + $0x3c] sm:$0xe]
      %v11355 = vld [vmem:[%s373 + $0x40] sm:$0xf]
      %v11356 = vld [vmem:[%s373 + $0x44] sm:$0x1]
      %v11357 = vld [vmem:[%s373 + $0x48] sm:$0xe]
      %v11358 = vld [vmem:[%s373 + $0x4c] sm:$0xf]
      %v11359 = vld [vmem:[%s373 + $0x50] sm:$0x1]
      %v11360 = vld [vmem:[%s373 + $0x54] sm:$0xe]
      %v11361 = vld [vmem:[%s373 + $0x58] sm:$0xf]
      %v11362 = vld [vmem:[%s373 + $0x5c] sm:$0x1]
      %v11363 = vld [vmem:[%s373 + $0x60] sm:$0xe]
      %v11364 = vld [vmem:[%s373 + $0x64] sm:$0xf]
      %v11365 = vld [vmem:[%s373 + $0x68] sm:$0x1]
      %v11366 = vld [vmem:[%s373 + $0x6c] sm:$0xe]
      %v11367 = vld [vmem:[%s373 + $0x70] sm:$0xf]
      %v11368 = vld [vmem:[%s373 + $0x74] sm:$0x1]
      %v11369 = vld [vmem:[%s373 + $0x78] sm:$0xe]
      %v11370 = vld [vmem:[%s373 + $0x7c] sm:$0xf]
      %v11371 = vld [vmem:[%s373 + $0x80] sm:$0x1]
      %v11372 = vld [vmem:[%s373 + $0x84] sm:$0xe]
      %v11373 = vld [vmem:[%s373 + $0x88] sm:$0xf]
      %v11374 = vld [vmem:[%s373 + $0x8c] sm:$0x1]
      %v11375 = vld [vmem:[%s373 + $0x90] sm:$0xe]
      %v11376 = vld [vmem:[%s373 + $0x94] sm:$0xf]
      %v11377 = vld [vmem:[%s373 + $0x98] sm:$0x1]
      %v11378 = vld [vmem:[%s373 + $0x9c] sm:$0xe]
      %v11379 = vld [vmem:[%s373 + $0xa0] sm:$0xf]
      %v11380 = vld [vmem:[%s373 + $0xa4] sm:$0x1]
      %v11381 = vld [vmem:[%s373 + $0xa8] sm:$0xe]
      %v11382 = vld [vmem:[%s373 + $0xac] sm:$0xf]
      %v11383 = vld [vmem:[%s373 + $0xb0] sm:$0x1]
      %v11384 = vld [vmem:[%s373 + $0xb4] sm:$0xe]
      %v11385 = vld [vmem:[%s373 + $0xb8] sm:$0xf]
      %v11386 = vld [vmem:[%s373 + $0xbc] sm:$0x1]
      %v11435 = vrot.slane %v11339, 5
      %v11436 = vrot.slane %v11435, 4
      %v11437 = vrot.slane %v11340, 5
      %v11438 = vsel %vm1732, %v11436, %v11437
      %v11439 = vrot.slane %v11437, 4
      %v11440 = vrot.slane %v11341, 5
      %v11441 = vsel %vm1732, %v11439, %v11440
      %v11442 = vrot.slane %v11342, 5
      %v11443 = vrot.slane %v11442, 4
      %v11444 = vrot.slane %v11343, 5
      %v11445 = vsel %vm1732, %v11443, %v11444
      %v11446 = vrot.slane %v11444, 4
      %v11447 = vrot.slane %v11344, 5
      %v11448 = vsel %vm1732, %v11446, %v11447
      %v11449 = vrot.slane %v11345, 5
      %v11450 = vrot.slane %v11449, 4
      %v11451 = vrot.slane %v11346, 5
      %v11452 = vsel %vm1732, %v11450, %v11451
      %v11453 = vrot.slane %v11451, 4
      %v11454 = vrot.slane %v11347, 5
      %v11455 = vsel %vm1732, %v11453, %v11454
      %v11456 = vrot.slane %v11348, 5
      %v11457 = vrot.slane %v11456, 4
      %v11458 = vrot.slane %v11349, 5
      %v11459 = vsel %vm1732, %v11457, %v11458
      %v11460 = vrot.slane %v11458, 4
      %v11461 = vrot.slane %v11350, 5
      %v11462 = vsel %vm1732, %v11460, %v11461
      %v11463 = vrot.slane %v11351, 5
      %v11464 = vrot.slane %v11463, 4
      %v11465 = vrot.slane %v11352, 5
      %v11466 = vsel %vm1732, %v11464, %v11465
      %v11467 = vrot.slane %v11465, 4
      %v11468 = vrot.slane %v11353, 5
      %v11469 = vsel %vm1732, %v11467, %v11468
      %v11470 = vrot.slane %v11354, 5
      %v11471 = vrot.slane %v11470, 4
      %v11472 = vrot.slane %v11355, 5
      %v11473 = vsel %vm1732, %v11471, %v11472
      %v11474 = vrot.slane %v11472, 4
      %v11475 = vrot.slane %v11356, 5
      %v11476 = vsel %vm1732, %v11474, %v11475
      %v11477 = vrot.slane %v11357, 5
      %v11478 = vrot.slane %v11477, 4
      %v11479 = vrot.slane %v11358, 5
      %v11480 = vsel %vm1732, %v11478, %v11479
      %v11481 = vrot.slane %v11479, 4
      %v11482 = vrot.slane %v11359, 5
      %v11483 = vsel %vm1732, %v11481, %v11482
      %v11484 = vrot.slane %v11360, 5
      %v11485 = vrot.slane %v11484, 4
      %v11486 = vrot.slane %v11361, 5
      %v11487 = vsel %vm1732, %v11485, %v11486
      %v11488 = vrot.slane %v11486, 4
      %v11489 = vrot.slane %v11362, 5
      %v11490 = vsel %vm1732, %v11488, %v11489
      %v11491 = vrot.slane %v11363, 5
      %v11492 = vrot.slane %v11491, 4
      %v11493 = vrot.slane %v11364, 5
      %v11494 = vsel %vm1732, %v11492, %v11493
      %v11495 = vrot.slane %v11493, 4
      %v11496 = vrot.slane %v11365, 5
      %v11497 = vsel %vm1732, %v11495, %v11496
      %v11498 = vrot.slane %v11366, 5
      %v11499 = vrot.slane %v11498, 4
      %v11500 = vrot.slane %v11367, 5
      %v11501 = vsel %vm1732, %v11499, %v11500
      %v11502 = vrot.slane %v11500, 4
      %v11503 = vrot.slane %v11368, 5
      %v11504 = vsel %vm1732, %v11502, %v11503
      %v11505 = vrot.slane %v11369, 5
      %v11506 = vrot.slane %v11505, 4
      %v11507 = vrot.slane %v11370, 5
      %v11508 = vsel %vm1732, %v11506, %v11507
      %v11509 = vrot.slane %v11507, 4
      %v11510 = vrot.slane %v11371, 5
      %v11511 = vsel %vm1732, %v11509, %v11510
      %v11512 = vrot.slane %v11372, 5
      %v11513 = vrot.slane %v11512, 4
      %v11514 = vrot.slane %v11373, 5
      %v11515 = vsel %vm1732, %v11513, %v11514
      %v11516 = vrot.slane %v11514, 4
      %v11517 = vrot.slane %v11374, 5
      %v11518 = vsel %vm1732, %v11516, %v11517
      %v11519 = vrot.slane %v11375, 5
      %v11520 = vrot.slane %v11519, 4
      %v11521 = vrot.slane %v11376, 5
      %v11522 = vsel %vm1732, %v11520, %v11521
      %v11523 = vrot.slane %v11521, 4
      %v11524 = vrot.slane %v11377, 5
      %v11525 = vsel %vm1732, %v11523, %v11524
      %v11526 = vrot.slane %v11378, 5
      %v11527 = vrot.slane %v11526, 4
      %v11528 = vrot.slane %v11379, 5
      %v11529 = vsel %vm1732, %v11527, %v11528
      %v11530 = vrot.slane %v11528, 4
      %v11531 = vrot.slane %v11380, 5
      %v11532 = vsel %vm1732, %v11530, %v11531
      %v11533 = vrot.slane %v11381, 5
      %v11534 = vrot.slane %v11533, 4
      %v11535 = vrot.slane %v11382, 5
      %v11536 = vsel %vm1732, %v11534, %v11535
      %v11537 = vrot.slane %v11535, 4
      %v11538 = vrot.slane %v11383, 5
      %v11539 = vsel %vm1732, %v11537, %v11538
      %v11540 = vrot.slane %v11384, 5
      %v11541 = vrot.slane %v11540, 4
      %v11542 = vrot.slane %v11385, 5
      %v11543 = vsel %vm1732, %v11541, %v11542
      %v11544 = vrot.slane %v11542, 4
      %v11545 = vrot.slane %v11386, 5
      %v11546 = vsel %vm1732, %v11544, %v11545
      %v11547 = vunpack.c.l.b16 %v11438
      %v11548 = vunpack.c.l.b16 %v11441
      %v11549 = vunpack.c.l.b16 %v11445
      %v11550 = vunpack.c.l.b16 %v11448
      %v11551 = vunpack.c.l.b16 %v11452
      %v11552 = vunpack.c.l.b16 %v11455
      %v11553 = vunpack.c.l.b16 %v11459
      %v11554 = vunpack.c.l.b16 %v11462
      %v11555 = vunpack.c.l.b16 %v11466
      %v11556 = vunpack.c.l.b16 %v11469
      %v11557 = vunpack.c.l.b16 %v11473
      %v11558 = vunpack.c.l.b16 %v11476
      %v11559 = vunpack.c.l.b16 %v11480
      %v11560 = vunpack.c.l.b16 %v11483
      %v11561 = vunpack.c.l.b16 %v11487
      %v11562 = vunpack.c.l.b16 %v11490
      %v11563 = vunpack.c.l.b16 %v11494
      %v11564 = vunpack.c.l.b16 %v11497
      %v11565 = vunpack.c.l.b16 %v11501
      %v11566 = vunpack.c.l.b16 %v11504
      %v11567 = vunpack.c.l.b16 %v11508
      %v11568 = vunpack.c.l.b16 %v11511
      %v11569 = vunpack.c.l.b16 %v11515
      %v11570 = vunpack.c.l.b16 %v11518
      %v11571 = vunpack.c.l.b16 %v11522
      %v11572 = vunpack.c.l.b16 %v11525
      %v11573 = vunpack.c.l.b16 %v11529
      %v11574 = vunpack.c.l.b16 %v11532
      %v11575 = vunpack.c.l.b16 %v11536
      %v11576 = vunpack.c.l.b16 %v11539
      %v11577 = vunpack.c.l.b16 %v11543
      %v11578 = vunpack.c.l.b16 %v11546
      %v11579 = vpack.c.b16 %v11548, %v11547
      %v11580 = vpack.c.b16 %v11550, %v11549
      %v11581 = vpack.c.b16 %v11552, %v11551
      %v11582 = vpack.c.b16 %v11554, %v11553
      %v11583 = vpack.c.b16 %v11556, %v11555
      %v11584 = vpack.c.b16 %v11558, %v11557
      %v11585 = vpack.c.b16 %v11560, %v11559
      %v11586 = vpack.c.b16 %v11562, %v11561
      %v11587 = vpack.c.b16 %v11564, %v11563
      %v11588 = vpack.c.b16 %v11566, %v11565
      %v11589 = vpack.c.b16 %v11568, %v11567
      %v11590 = vpack.c.b16 %v11570, %v11569
      %v11591 = vpack.c.b16 %v11572, %v11571
      %v11592 = vpack.c.b16 %v11574, %v11573
      %v11593 = vpack.c.b16 %v11576, %v11575
      %v11594 = vpack.c.b16 %v11578, %v11577
      %11595 = vrot.lane.b32.xlu0 %v11579, 16
      %v11596 = vpop.permute.xlu0 %11595
      %11597 = vrot.lane.b32.xlu0 %v11580, 16
      %v11598 = vpop.permute.xlu0 %11597
      %11599 = vrot.lane.b32.xlu0 %v11581, 16
      %v11600 = vpop.permute.xlu0 %11599
      %11601 = vrot.lane.b32.xlu0 %v11582, 16
      %v11602 = vpop.permute.xlu0 %11601
      %11603 = vrot.lane.b32.xlu0 %v11583, 16
      %v11604 = vpop.permute.xlu0 %11603
      %11605 = vrot.lane.b32.xlu0 %v11584, 16
      %v11606 = vpop.permute.xlu0 %11605
      %11607 = vrot.lane.b32.xlu0 %v11585, 16
      %v11608 = vpop.permute.xlu0 %11607
      %11609 = vrot.lane.b32.xlu0 %v11586, 16
      %v11610 = vpop.permute.xlu0 %11609
      %11611 = vrot.lane.b32.xlu0 %v11587, 16
      %v11612 = vpop.permute.xlu0 %11611
      %11613 = vrot.lane.b32.xlu0 %v11588, 16
      %v11614 = vpop.permute.xlu0 %11613
      %11615 = vrot.lane.b32.xlu0 %v11589, 16
      %v11616 = vpop.permute.xlu0 %11615
      %11617 = vrot.lane.b32.xlu0 %v11590, 16
      %v11618 = vpop.permute.xlu0 %11617
      %11619 = vrot.lane.b32.xlu0 %v11591, 16
      %v11620 = vpop.permute.xlu0 %11619
      %11621 = vrot.lane.b32.xlu0 %v11592, 16
      %v11622 = vpop.permute.xlu0 %11621
      %11623 = vrot.lane.b32.xlu0 %v11593, 16
      %v11624 = vpop.permute.xlu0 %11623
      %11625 = vrot.lane.b32.xlu0 %v11594, 16
      %v11626 = vpop.permute.xlu0 %11625
      %11643 = vst.msk [vmem:[#allocation5] sm:$0xff] %vm5625, %v11596
      %11644 = vst.msk [vmem:[#allocation5 + $0x8] sm:$0xff] %vm5625, %v11598
      %11645 = vst.msk [vmem:[#allocation5 + $0x10] sm:$0xff] %vm5625, %v11600
      %11646 = vst.msk [vmem:[#allocation5 + $0x18] sm:$0xff] %vm5625, %v11602
      %11647 = vst.msk [vmem:[#allocation5 + $0x20] sm:$0xff] %vm5625, %v11604
      %11648 = vst.msk [vmem:[#allocation5 + $0x28] sm:$0xff] %vm5625, %v11606
      %11649 = vst.msk [vmem:[#allocation5 + $0x30] sm:$0xff] %vm5625, %v11608
      %11650 = vst.msk [vmem:[#allocation5 + $0x38] sm:$0xff] %vm5625, %v11610
      %11651 = vst.msk [vmem:[#allocation5 + $0x40] sm:$0xff] %vm5625, %v11612
      %11652 = vst.msk [vmem:[#allocation5 + $0x48] sm:$0xff] %vm5625, %v11614
      %11653 = vst.msk [vmem:[#allocation5 + $0x50] sm:$0xff] %vm5625, %v11616
      %11654 = vst.msk [vmem:[#allocation5 + $0x58] sm:$0xff] %vm5625, %v11618
      %11655 = vst.msk [vmem:[#allocation5 + $0x60] sm:$0xff] %vm5625, %v11620
      %11656 = vst.msk [vmem:[#allocation5 + $0x68] sm:$0xff] %vm5625, %v11622
      %11657 = vst.msk [vmem:[#allocation5 + $0x70] sm:$0xff] %vm5625, %v11624
      %11658 = vst.msk [vmem:[#allocation5 + $0x78] sm:$0xff] %vm5625, %v11626
      %v11659 = vld [vmem:[%s9655] sm:$0xf]
      %v11660 = vld [vmem:[%s9655 + $0x4] sm:$0xf]
      %v11661 = vld [vmem:[%s9655 + $0x8] sm:$0x1]
      %v11662 = vld [vmem:[%s9655 + $0xc] sm:$0xf]
      %v11663 = vld [vmem:[%s9655 + $0x10] sm:$0xf]
      %v11664 = vld [vmem:[%s9655 + $0x14] sm:$0x1]
      %v11665 = vld [vmem:[%s9655 + $0x18] sm:$0xf]
      %v11666 = vld [vmem:[%s9655 + $0x1c] sm:$0xf]
      %v11667 = vld [vmem:[%s9655 + $0x20] sm:$0x1]
      %v11668 = vld [vmem:[%s9655 + $0x24] sm:$0xf]
      %v11669 = vld [vmem:[%s9655 + $0x28] sm:$0xf]
      %v11670 = vld [vmem:[%s9655 + $0x2c] sm:$0x1]
      %v11671 = vld [vmem:[%s9655 + $0x30] sm:$0xf]
      %v11672 = vld [vmem:[%s9655 + $0x34] sm:$0xf]
      %v11673 = vld [vmem:[%s9655 + $0x38] sm:$0x1]
      %v11674 = vld [vmem:[%s9655 + $0x3c] sm:$0xf]
      %v11675 = vld [vmem:[%s9655 + $0x40] sm:$0xf]
      %v11676 = vld [vmem:[%s9655 + $0x44] sm:$0x1]
      %v11677 = vld [vmem:[%s9655 + $0x48] sm:$0xf]
      %v11678 = vld [vmem:[%s9655 + $0x4c] sm:$0xf]
      %v11679 = vld [vmem:[%s9655 + $0x50] sm:$0x1]
      %v11680 = vld [vmem:[%s9655 + $0x54] sm:$0xf]
      %v11681 = vld [vmem:[%s9655 + $0x58] sm:$0xf]
      %v11682 = vld [vmem:[%s9655 + $0x5c] sm:$0x1]
      %v11683 = vld [vmem:[%s9655 + $0x60] sm:$0xf]
      %v11684 = vld [vmem:[%s9655 + $0x64] sm:$0xf]
      %v11685 = vld [vmem:[%s9655 + $0x68] sm:$0x1]
      %v11686 = vld [vmem:[%s9655 + $0x6c] sm:$0xf]
      %v11687 = vld [vmem:[%s9655 + $0x70] sm:$0xf]
      %v11688 = vld [vmem:[%s9655 + $0x74] sm:$0x1]
      %v11689 = vld [vmem:[%s9655 + $0x78] sm:$0xf]
      %v11690 = vld [vmem:[%s9655 + $0x7c] sm:$0xf]
      %v11691 = vld [vmem:[%s9655 + $0x80] sm:$0x1]
      %v11692 = vld [vmem:[%s9655 + $0x84] sm:$0xf]
      %v11693 = vld [vmem:[%s9655 + $0x88] sm:$0xf]
      %v11694 = vld [vmem:[%s9655 + $0x8c] sm:$0x1]
      %v11695 = vld [vmem:[%s9655 + $0x90] sm:$0xf]
      %v11696 = vld [vmem:[%s9655 + $0x94] sm:$0xf]
      %v11697 = vld [vmem:[%s9655 + $0x98] sm:$0x1]
      %v11698 = vld [vmem:[%s9655 + $0x9c] sm:$0xf]
      %v11699 = vld [vmem:[%s9655 + $0xa0] sm:$0xf]
      %v11700 = vld [vmem:[%s9655 + $0xa4] sm:$0x1]
      %v11701 = vld [vmem:[%s9655 + $0xa8] sm:$0xf]
      %v11702 = vld [vmem:[%s9655 + $0xac] sm:$0xf]
      %v11703 = vld [vmem:[%s9655 + $0xb0] sm:$0x1]
      %v11704 = vld [vmem:[%s9655 + $0xb4] sm:$0xf]
      %v11705 = vld [vmem:[%s9655 + $0xb8] sm:$0xf]
      %v11706 = vld [vmem:[%s9655 + $0xbc] sm:$0x1]
      %v11708 = vshrl.u32 %v11659, 16
      %v11710 = vrot.slane %v11708, 4
      %v11711 = vshll.u32 %v11659, 16
      %v11713 = vrot.slane %v11711, 5
      %v11714 = vor.u32 %v11710, %v11713
      %v11715 = vrot.slane %v11714, 4
      %v11717 = vshll.u32 %v11660, 16
      %v11719 = vrot.slane %v11717, 5
      %v11720 = vsel %vm1136, %v11715, %v11719
      %v11721 = vshrl.u32 %v11660, 16
      %v11723 = vrot.slane %v11721, 4
      %v11724 = vor.u32 %v11723, %v11719
      %v11725 = vrot.slane %v11724, 4
      %v11727 = vshll.u32 %v11661, 16
      %v11729 = vrot.slane %v11727, 5
      %v11730 = vsel %vm1136, %v11725, %v11729
      %v11732 = vshrl.u32 %v11662, 16
      %v11734 = vrot.slane %v11732, 4
      %v11735 = vshll.u32 %v11662, 16
      %v11737 = vrot.slane %v11735, 5
      %v11738 = vor.u32 %v11734, %v11737
      %v11739 = vrot.slane %v11738, 4
      %v11741 = vshll.u32 %v11663, 16
      %v11743 = vrot.slane %v11741, 5
      %v11744 = vsel %vm1136, %v11739, %v11743
      %v11745 = vshrl.u32 %v11663, 16
      %v11747 = vrot.slane %v11745, 4
      %v11748 = vor.u32 %v11747, %v11743
      %v11749 = vrot.slane %v11748, 4
      %v11751 = vshll.u32 %v11664, 16
      %v11753 = vrot.slane %v11751, 5
      %v11754 = vsel %vm1136, %v11749, %v11753
      %v11756 = vshrl.u32 %v11665, 16
      %v11758 = vrot.slane %v11756, 4
      %v11759 = vshll.u32 %v11665, 16
      %v11761 = vrot.slane %v11759, 5
      %v11762 = vor.u32 %v11758, %v11761
      %v11763 = vrot.slane %v11762, 4
      %v11765 = vshll.u32 %v11666, 16
      %v11767 = vrot.slane %v11765, 5
      %v11768 = vsel %vm1136, %v11763, %v11767
      %v11769 = vshrl.u32 %v11666, 16
      %v11771 = vrot.slane %v11769, 4
      %v11772 = vor.u32 %v11771, %v11767
      %v11773 = vrot.slane %v11772, 4
      %v11775 = vshll.u32 %v11667, 16
      %v11777 = vrot.slane %v11775, 5
      %v11778 = vsel %vm1136, %v11773, %v11777
      %v11780 = vshrl.u32 %v11668, 16
      %v11782 = vrot.slane %v11780, 4
      %v11783 = vshll.u32 %v11668, 16
      %v11785 = vrot.slane %v11783, 5
      %v11786 = vor.u32 %v11782, %v11785
      %v11787 = vrot.slane %v11786, 4
      %v11789 = vshll.u32 %v11669, 16
      %v11791 = vrot.slane %v11789, 5
      %v11792 = vsel %vm1136, %v11787, %v11791
      %v11793 = vshrl.u32 %v11669, 16
      %v11795 = vrot.slane %v11793, 4
      %v11796 = vor.u32 %v11795, %v11791
      %v11797 = vrot.slane %v11796, 4
      %v11799 = vshll.u32 %v11670, 16
      %v11801 = vrot.slane %v11799, 5
      %v11802 = vsel %vm1136, %v11797, %v11801
      %v11804 = vshrl.u32 %v11671, 16
      %v11806 = vrot.slane %v11804, 4
      %v11807 = vshll.u32 %v11671, 16
      %v11809 = vrot.slane %v11807, 5
      %v11810 = vor.u32 %v11806, %v11809
      %v11811 = vrot.slane %v11810, 4
      %v11813 = vshll.u32 %v11672, 16
      %v11815 = vrot.slane %v11813, 5
      %v11816 = vsel %vm1136, %v11811, %v11815
      %v11817 = vshrl.u32 %v11672, 16
      %v11819 = vrot.slane %v11817, 4
      %v11820 = vor.u32 %v11819, %v11815
      %v11821 = vrot.slane %v11820, 4
      %v11823 = vshll.u32 %v11673, 16
      %v11825 = vrot.slane %v11823, 5
      %v11826 = vsel %vm1136, %v11821, %v11825
      %v11828 = vshrl.u32 %v11674, 16
      %v11830 = vrot.slane %v11828, 4
      %v11831 = vshll.u32 %v11674, 16
      %v11833 = vrot.slane %v11831, 5
      %v11834 = vor.u32 %v11830, %v11833
      %v11835 = vrot.slane %v11834, 4
      %v11837 = vshll.u32 %v11675, 16
      %v11839 = vrot.slane %v11837, 5
      %v11840 = vsel %vm1136, %v11835, %v11839
      %v11841 = vshrl.u32 %v11675, 16
      %v11843 = vrot.slane %v11841, 4
      %v11844 = vor.u32 %v11843, %v11839
      %v11845 = vrot.slane %v11844, 4
      %v11847 = vshll.u32 %v11676, 16
      %v11849 = vrot.slane %v11847, 5
      %v11850 = vsel %vm1136, %v11845, %v11849
      %v11852 = vshrl.u32 %v11677, 16
      %v11854 = vrot.slane %v11852, 4
      %v11855 = vshll.u32 %v11677, 16
      %v11857 = vrot.slane %v11855, 5
      %v11858 = vor.u32 %v11854, %v11857
      %v11859 = vrot.slane %v11858, 4
      %v11861 = vshll.u32 %v11678, 16
      %v11863 = vrot.slane %v11861, 5
      %v11864 = vsel %vm1136, %v11859, %v11863
      %v11865 = vshrl.u32 %v11678, 16
      %v11867 = vrot.slane %v11865, 4
      %v11868 = vor.u32 %v11867, %v11863
      %v11869 = vrot.slane %v11868, 4
      %v11871 = vshll.u32 %v11679, 16
      %v11873 = vrot.slane %v11871, 5
      %v11874 = vsel %vm1136, %v11869, %v11873
      %v11876 = vshrl.u32 %v11680, 16
      %v11878 = vrot.slane %v11876, 4
      %v11879 = vshll.u32 %v11680, 16
      %v11881 = vrot.slane %v11879, 5
      %v11882 = vor.u32 %v11878, %v11881
      %v11883 = vrot.slane %v11882, 4
      %v11885 = vshll.u32 %v11681, 16
      %v11887 = vrot.slane %v11885, 5
      %v11888 = vsel %vm1136, %v11883, %v11887
      %v11889 = vshrl.u32 %v11681, 16
      %v11891 = vrot.slane %v11889, 4
      %v11892 = vor.u32 %v11891, %v11887
      %v11893 = vrot.slane %v11892, 4
      %v11895 = vshll.u32 %v11682, 16
      %v11897 = vrot.slane %v11895, 5
      %v11898 = vsel %vm1136, %v11893, %v11897
      %v11900 = vshrl.u32 %v11683, 16
      %v11902 = vrot.slane %v11900, 4
      %v11903 = vshll.u32 %v11683, 16
      %v11905 = vrot.slane %v11903, 5
      %v11906 = vor.u32 %v11902, %v11905
      %v11907 = vrot.slane %v11906, 4
      %v11909 = vshll.u32 %v11684, 16
      %v11911 = vrot.slane %v11909, 5
      %v11912 = vsel %vm1136, %v11907, %v11911
      %v11913 = vshrl.u32 %v11684, 16
      %v11915 = vrot.slane %v11913, 4
      %v11916 = vor.u32 %v11915, %v11911
      %v11917 = vrot.slane %v11916, 4
      %v11919 = vshll.u32 %v11685, 16
      %v11921 = vrot.slane %v11919, 5
      %v11922 = vsel %vm1136, %v11917, %v11921
      %v11924 = vshrl.u32 %v11686, 16
      %v11926 = vrot.slane %v11924, 4
      %v11927 = vshll.u32 %v11686, 16
      %v11929 = vrot.slane %v11927, 5
      %v11930 = vor.u32 %v11926, %v11929
      %v11931 = vrot.slane %v11930, 4
      %v11933 = vshll.u32 %v11687, 16
      %v11935 = vrot.slane %v11933, 5
      %v11936 = vsel %vm1136, %v11931, %v11935
      %v11937 = vshrl.u32 %v11687, 16
      %v11939 = vrot.slane %v11937, 4
      %v11940 = vor.u32 %v11939, %v11935
      %v11941 = vrot.slane %v11940, 4
      %v11943 = vshll.u32 %v11688, 16
      %v11945 = vrot.slane %v11943, 5
      %v11946 = vsel %vm1136, %v11941, %v11945
      %v11948 = vshrl.u32 %v11689, 16
      %v11950 = vrot.slane %v11948, 4
      %v11951 = vshll.u32 %v11689, 16
      %v11953 = vrot.slane %v11951, 5
      %v11954 = vor.u32 %v11950, %v11953
      %v11955 = vrot.slane %v11954, 4
      %v11957 = vshll.u32 %v11690, 16
      %v11959 = vrot.slane %v11957, 5
      %v11960 = vsel %vm1136, %v11955, %v11959
      %v11961 = vshrl.u32 %v11690, 16
      %v11963 = vrot.slane %v11961, 4
      %v11964 = vor.u32 %v11963, %v11959
      %v11965 = vrot.slane %v11964, 4
      %v11967 = vshll.u32 %v11691, 16
      %v11969 = vrot.slane %v11967, 5
      %v11970 = vsel %vm1136, %v11965, %v11969
      %v11972 = vshrl.u32 %v11692, 16
      %v11974 = vrot.slane %v11972, 4
      %v11975 = vshll.u32 %v11692, 16
      %v11977 = vrot.slane %v11975, 5
      %v11978 = vor.u32 %v11974, %v11977
      %v11979 = vrot.slane %v11978, 4
      %v11981 = vshll.u32 %v11693, 16
      %v11983 = vrot.slane %v11981, 5
      %v11984 = vsel %vm1136, %v11979, %v11983
      %v11985 = vshrl.u32 %v11693, 16
      %v11987 = vrot.slane %v11985, 4
      %v11988 = vor.u32 %v11987, %v11983
      %v11989 = vrot.slane %v11988, 4
      %v11991 = vshll.u32 %v11694, 16
      %v11993 = vrot.slane %v11991, 5
      %v11994 = vsel %vm1136, %v11989, %v11993
      %v11996 = vshrl.u32 %v11695, 16
      %v11998 = vrot.slane %v11996, 4
      %v11999 = vshll.u32 %v11695, 16
      %v12001 = vrot.slane %v11999, 5
      %v12002 = vor.u32 %v11998, %v12001
      %v12003 = vrot.slane %v12002, 4
      %v12005 = vshll.u32 %v11696, 16
      %v12007 = vrot.slane %v12005, 5
      %v12008 = vsel %vm1136, %v12003, %v12007
      %v12009 = vshrl.u32 %v11696, 16
      %v12011 = vrot.slane %v12009, 4
      %v12012 = vor.u32 %v12011, %v12007
      %v12013 = vrot.slane %v12012, 4
      %v12015 = vshll.u32 %v11697, 16
      %v12017 = vrot.slane %v12015, 5
      %v12018 = vsel %vm1136, %v12013, %v12017
      %v12020 = vshrl.u32 %v11698, 16
      %v12022 = vrot.slane %v12020, 4
      %v12023 = vshll.u32 %v11698, 16
      %v12025 = vrot.slane %v12023, 5
      %v12026 = vor.u32 %v12022, %v12025
      %v12027 = vrot.slane %v12026, 4
      %v12029 = vshll.u32 %v11699, 16
      %v12031 = vrot.slane %v12029, 5
      %v12032 = vsel %vm1136, %v12027, %v12031
      %v12033 = vshrl.u32 %v11699, 16
      %v12035 = vrot.slane %v12033, 4
      %v12036 = vor.u32 %v12035, %v12031
      %v12037 = vrot.slane %v12036, 4
      %v12039 = vshll.u32 %v11700, 16
      %v12041 = vrot.slane %v12039, 5
      %v12042 = vsel %vm1136, %v12037, %v12041
      %v12044 = vshrl.u32 %v11701, 16
      %v12046 = vrot.slane %v12044, 4
      %v12047 = vshll.u32 %v11701, 16
      %v12049 = vrot.slane %v12047, 5
      %v12050 = vor.u32 %v12046, %v12049
      %v12051 = vrot.slane %v12050, 4
      %v12053 = vshll.u32 %v11702, 16
      %v12055 = vrot.slane %v12053, 5
      %v12056 = vsel %vm1136, %v12051, %v12055
      %v12057 = vshrl.u32 %v11702, 16
      %v12059 = vrot.slane %v12057, 4
      %v12060 = vor.u32 %v12059, %v12055
      %v12061 = vrot.slane %v12060, 4
      %v12063 = vshll.u32 %v11703, 16
      %v12065 = vrot.slane %v12063, 5
      %v12066 = vsel %vm1136, %v12061, %v12065
      %v12068 = vshrl.u32 %v11704, 16
      %v12070 = vrot.slane %v12068, 4
      %v12071 = vshll.u32 %v11704, 16
      %v12073 = vrot.slane %v12071, 5
      %v12074 = vor.u32 %v12070, %v12073
      %v12075 = vrot.slane %v12074, 4
      %v12077 = vshll.u32 %v11705, 16
      %v12079 = vrot.slane %v12077, 5
      %v12080 = vsel %vm1136, %v12075, %v12079
      %v12081 = vshrl.u32 %v11705, 16
      %v12083 = vrot.slane %v12081, 4
      %v12084 = vor.u32 %v12083, %v12079
      %v12085 = vrot.slane %v12084, 4
      %v12087 = vshll.u32 %v11706, 16
      %v12089 = vrot.slane %v12087, 5
      %v12090 = vsel %vm1136, %v12085, %v12089
      %v12091 = vunpack.c.l.b16 %v11720
      %v12092 = vunpack.c.l.b16 %v11730
      %v12093 = vunpack.c.l.b16 %v11744
      %v12094 = vunpack.c.l.b16 %v11754
      %v12095 = vunpack.c.l.b16 %v11768
      %v12096 = vunpack.c.l.b16 %v11778
      %v12097 = vunpack.c.l.b16 %v11792
      %v12098 = vunpack.c.l.b16 %v11802
      %v12099 = vunpack.c.l.b16 %v11816
      %v12100 = vunpack.c.l.b16 %v11826
      %v12101 = vunpack.c.l.b16 %v11840
      %v12102 = vunpack.c.l.b16 %v11850
      %v12103 = vunpack.c.l.b16 %v11864
      %v12104 = vunpack.c.l.b16 %v11874
      %v12105 = vunpack.c.l.b16 %v11888
      %v12106 = vunpack.c.l.b16 %v11898
      %v12107 = vunpack.c.l.b16 %v11912
      %v12108 = vunpack.c.l.b16 %v11922
      %v12109 = vunpack.c.l.b16 %v11936
      %v12110 = vunpack.c.l.b16 %v11946
      %v12111 = vunpack.c.l.b16 %v11960
      %v12112 = vunpack.c.l.b16 %v11970
      %v12113 = vunpack.c.l.b16 %v11984
      %v12114 = vunpack.c.l.b16 %v11994
      %v12115 = vunpack.c.l.b16 %v12008
      %v12116 = vunpack.c.l.b16 %v12018
      %v12117 = vunpack.c.l.b16 %v12032
      %v12118 = vunpack.c.l.b16 %v12042
      %v12119 = vunpack.c.l.b16 %v12056
      %v12120 = vunpack.c.l.b16 %v12066
      %v12121 = vunpack.c.l.b16 %v12080
      %v12122 = vunpack.c.l.b16 %v12090
      %v12123 = vpack.c.b16 %v12092, %v12091
      %v12124 = vpack.c.b16 %v12094, %v12093
      %v12125 = vpack.c.b16 %v12096, %v12095
      %v12126 = vpack.c.b16 %v12098, %v12097
      %v12127 = vpack.c.b16 %v12100, %v12099
      %v12128 = vpack.c.b16 %v12102, %v12101
      %v12129 = vpack.c.b16 %v12104, %v12103
      %v12130 = vpack.c.b16 %v12106, %v12105
      %v12131 = vpack.c.b16 %v12108, %v12107
      %v12132 = vpack.c.b16 %v12110, %v12109
      %v12133 = vpack.c.b16 %v12112, %v12111
      %v12134 = vpack.c.b16 %v12114, %v12113
      %v12135 = vpack.c.b16 %v12116, %v12115
      %v12136 = vpack.c.b16 %v12118, %v12117
      %v12137 = vpack.c.b16 %v12120, %v12119
      %v12138 = vpack.c.b16 %v12122, %v12121
      %12139 = vrot.lane.b32.xlu0 %v12123, 32
      %v12140 = vpop.permute.xlu0 %12139
      %12141 = vrot.lane.b32.xlu0 %v12124, 32
      %v12142 = vpop.permute.xlu0 %12141
      %12143 = vrot.lane.b32.xlu0 %v12125, 32
      %v12144 = vpop.permute.xlu0 %12143
      %12145 = vrot.lane.b32.xlu0 %v12126, 32
      %v12146 = vpop.permute.xlu0 %12145
      %12147 = vrot.lane.b32.xlu0 %v12127, 32
      %v12148 = vpop.permute.xlu0 %12147
      %12149 = vrot.lane.b32.xlu0 %v12128, 32
      %v12150 = vpop.permute.xlu0 %12149
      %12151 = vrot.lane.b32.xlu0 %v12129, 32
      %v12152 = vpop.permute.xlu0 %12151
      %12153 = vrot.lane.b32.xlu0 %v12130, 32
      %v12154 = vpop.permute.xlu0 %12153
      %12155 = vrot.lane.b32.xlu0 %v12131, 32
      %v12156 = vpop.permute.xlu0 %12155
      %12157 = vrot.lane.b32.xlu0 %v12132, 32
      %v12158 = vpop.permute.xlu0 %12157
      %12159 = vrot.lane.b32.xlu0 %v12133, 32
      %v12160 = vpop.permute.xlu0 %12159
      %12161 = vrot.lane.b32.xlu0 %v12134, 32
      %v12162 = vpop.permute.xlu0 %12161
      %12163 = vrot.lane.b32.xlu0 %v12135, 32
      %v12164 = vpop.permute.xlu0 %12163
      %12165 = vrot.lane.b32.xlu0 %v12136, 32
      %v12166 = vpop.permute.xlu0 %12165
      %12167 = vrot.lane.b32.xlu0 %v12137, 32
      %v12168 = vpop.permute.xlu0 %12167
      %12169 = vrot.lane.b32.xlu0 %v12138, 32
      %v12170 = vpop.permute.xlu0 %12169
      %12187 = vst.msk [vmem:[#allocation5] sm:$0xff] %vm5802, %v12140
      %12188 = vst.msk [vmem:[#allocation5 + $0x8] sm:$0xff] %vm5802, %v12142
      %12189 = vst.msk [vmem:[#allocation5 + $0x10] sm:$0xff] %vm5802, %v12144
      %12190 = vst.msk [vmem:[#allocation5 + $0x18] sm:$0xff] %vm5802, %v12146
      %12191 = vst.msk [vmem:[#allocation5 + $0x20] sm:$0xff] %vm5802, %v12148
      %12192 = vst.msk [vmem:[#allocation5 + $0x28] sm:$0xff] %vm5802, %v12150
      %12193 = vst.msk [vmem:[#allocation5 + $0x30] sm:$0xff] %vm5802, %v12152
      %12194 = vst.msk [vmem:[#allocation5 + $0x38] sm:$0xff] %vm5802, %v12154
      %12195 = vst.msk [vmem:[#allocation5 + $0x40] sm:$0xff] %vm5802, %v12156
      %12196 = vst.msk [vmem:[#allocation5 + $0x48] sm:$0xff] %vm5802, %v12158
      %12197 = vst.msk [vmem:[#allocation5 + $0x50] sm:$0xff] %vm5802, %v12160
      %12198 = vst.msk [vmem:[#allocation5 + $0x58] sm:$0xff] %vm5802, %v12162
      %12199 = vst.msk [vmem:[#allocation5 + $0x60] sm:$0xff] %vm5802, %v12164
      %12200 = vst.msk [vmem:[#allocation5 + $0x68] sm:$0xff] %vm5802, %v12166
      %12201 = vst.msk [vmem:[#allocation5 + $0x70] sm:$0xff] %vm5802, %v12168
      %12202 = vst.msk [vmem:[#allocation5 + $0x78] sm:$0xff] %vm5802, %v12170
      %v12203 = vld [vmem:[%s9655] sm:$0xe]
      %v12204 = vld [vmem:[%s9655 + $0x4] sm:$0xf]
      %v12205 = vld [vmem:[%s9655 + $0x8] sm:$0x1]
      %v12206 = vld [vmem:[%s9655 + $0xc] sm:$0xe]
      %v12207 = vld [vmem:[%s9655 + $0x10] sm:$0xf]
      %v12208 = vld [vmem:[%s9655 + $0x14] sm:$0x1]
      %v12209 = vld [vmem:[%s9655 + $0x18] sm:$0xe]
      %v12210 = vld [vmem:[%s9655 + $0x1c] sm:$0xf]
      %v12211 = vld [vmem:[%s9655 + $0x20] sm:$0x1]
      %v12212 = vld [vmem:[%s9655 + $0x24] sm:$0xe]
      %v12213 = vld [vmem:[%s9655 + $0x28] sm:$0xf]
      %v12214 = vld [vmem:[%s9655 + $0x2c] sm:$0x1]
      %v12215 = vld [vmem:[%s9655 + $0x30] sm:$0xe]
      %v12216 = vld [vmem:[%s9655 + $0x34] sm:$0xf]
      %v12217 = vld [vmem:[%s9655 + $0x38] sm:$0x1]
      %v12218 = vld [vmem:[%s9655 + $0x3c] sm:$0xe]
      %v12219 = vld [vmem:[%s9655 + $0x40] sm:$0xf]
      %v12220 = vld [vmem:[%s9655 + $0x44] sm:$0x1]
      %v12221 = vld [vmem:[%s9655 + $0x48] sm:$0xe]
      %v12222 = vld [vmem:[%s9655 + $0x4c] sm:$0xf]
      %v12223 = vld [vmem:[%s9655 + $0x50] sm:$0x1]
      %v12224 = vld [vmem:[%s9655 + $0x54] sm:$0xe]
      %v12225 = vld [vmem:[%s9655 + $0x58] sm:$0xf]
      %v12226 = vld [vmem:[%s9655 + $0x5c] sm:$0x1]
      %v12227 = vld [vmem:[%s9655 + $0x60] sm:$0xe]
      %v12228 = vld [vmem:[%s9655 + $0x64] sm:$0xf]
      %v12229 = vld [vmem:[%s9655 + $0x68] sm:$0x1]
      %v12230 = vld [vmem:[%s9655 + $0x6c] sm:$0xe]
      %v12231 = vld [vmem:[%s9655 + $0x70] sm:$0xf]
      %v12232 = vld [vmem:[%s9655 + $0x74] sm:$0x1]
      %v12233 = vld [vmem:[%s9655 + $0x78] sm:$0xe]
      %v12234 = vld [vmem:[%s9655 + $0x7c] sm:$0xf]
      %v12235 = vld [vmem:[%s9655 + $0x80] sm:$0x1]
      %v12236 = vld [vmem:[%s9655 + $0x84] sm:$0xe]
      %v12237 = vld [vmem:[%s9655 + $0x88] sm:$0xf]
      %v12238 = vld [vmem:[%s9655 + $0x8c] sm:$0x1]
      %v12239 = vld [vmem:[%s9655 + $0x90] sm:$0xe]
      %v12240 = vld [vmem:[%s9655 + $0x94] sm:$0xf]
      %v12241 = vld [vmem:[%s9655 + $0x98] sm:$0x1]
      %v12242 = vld [vmem:[%s9655 + $0x9c] sm:$0xe]
      %v12243 = vld [vmem:[%s9655 + $0xa0] sm:$0xf]
      %v12244 = vld [vmem:[%s9655 + $0xa4] sm:$0x1]
      %v12245 = vld [vmem:[%s9655 + $0xa8] sm:$0xe]
      %v12246 = vld [vmem:[%s9655 + $0xac] sm:$0xf]
      %v12247 = vld [vmem:[%s9655 + $0xb0] sm:$0x1]
      %v12248 = vld [vmem:[%s9655 + $0xb4] sm:$0xe]
      %v12249 = vld [vmem:[%s9655 + $0xb8] sm:$0xf]
      %v12250 = vld [vmem:[%s9655 + $0xbc] sm:$0x1]
      %v12299 = vrot.slane %v12203, 5
      %v12300 = vrot.slane %v12299, 4
      %v12301 = vrot.slane %v12204, 5
      %v12302 = vsel %vm1732, %v12300, %v12301
      %v12303 = vrot.slane %v12301, 4
      %v12304 = vrot.slane %v12205, 5
      %v12305 = vsel %vm1732, %v12303, %v12304
      %v12306 = vrot.slane %v12206, 5
      %v12307 = vrot.slane %v12306, 4
      %v12308 = vrot.slane %v12207, 5
      %v12309 = vsel %vm1732, %v12307, %v12308
      %v12310 = vrot.slane %v12308, 4
      %v12311 = vrot.slane %v12208, 5
      %v12312 = vsel %vm1732, %v12310, %v12311
      %v12313 = vrot.slane %v12209, 5
      %v12314 = vrot.slane %v12313, 4
      %v12315 = vrot.slane %v12210, 5
      %v12316 = vsel %vm1732, %v12314, %v12315
      %v12317 = vrot.slane %v12315, 4
      %v12318 = vrot.slane %v12211, 5
      %v12319 = vsel %vm1732, %v12317, %v12318
      %v12320 = vrot.slane %v12212, 5
      %v12321 = vrot.slane %v12320, 4
      %v12322 = vrot.slane %v12213, 5
      %v12323 = vsel %vm1732, %v12321, %v12322
      %v12324 = vrot.slane %v12322, 4
      %v12325 = vrot.slane %v12214, 5
      %v12326 = vsel %vm1732, %v12324, %v12325
      %v12327 = vrot.slane %v12215, 5
      %v12328 = vrot.slane %v12327, 4
      %v12329 = vrot.slane %v12216, 5
      %v12330 = vsel %vm1732, %v12328, %v12329
      %v12331 = vrot.slane %v12329, 4
      %v12332 = vrot.slane %v12217, 5
      %v12333 = vsel %vm1732, %v12331, %v12332
      %v12334 = vrot.slane %v12218, 5
      %v12335 = vrot.slane %v12334, 4
      %v12336 = vrot.slane %v12219, 5
      %v12337 = vsel %vm1732, %v12335, %v12336
      %v12338 = vrot.slane %v12336, 4
      %v12339 = vrot.slane %v12220, 5
      %v12340 = vsel %vm1732, %v12338, %v12339
      %v12341 = vrot.slane %v12221, 5
      %v12342 = vrot.slane %v12341, 4
      %v12343 = vrot.slane %v12222, 5
      %v12344 = vsel %vm1732, %v12342, %v12343
      %v12345 = vrot.slane %v12343, 4
      %v12346 = vrot.slane %v12223, 5
      %v12347 = vsel %vm1732, %v12345, %v12346
      %v12348 = vrot.slane %v12224, 5
      %v12349 = vrot.slane %v12348, 4
      %v12350 = vrot.slane %v12225, 5
      %v12351 = vsel %vm1732, %v12349, %v12350
      %v12352 = vrot.slane %v12350, 4
      %v12353 = vrot.slane %v12226, 5
      %v12354 = vsel %vm1732, %v12352, %v12353
      %v12355 = vrot.slane %v12227, 5
      %v12356 = vrot.slane %v12355, 4
      %v12357 = vrot.slane %v12228, 5
      %v12358 = vsel %vm1732, %v12356, %v12357
      %v12359 = vrot.slane %v12357, 4
      %v12360 = vrot.slane %v12229, 5
      %v12361 = vsel %vm1732, %v12359, %v12360
      %v12362 = vrot.slane %v12230, 5
      %v12363 = vrot.slane %v12362, 4
      %v12364 = vrot.slane %v12231, 5
      %v12365 = vsel %vm1732, %v12363, %v12364
      %v12366 = vrot.slane %v12364, 4
      %v12367 = vrot.slane %v12232, 5
      %v12368 = vsel %vm1732, %v12366, %v12367
      %v12369 = vrot.slane %v12233, 5
      %v12370 = vrot.slane %v12369, 4
      %v12371 = vrot.slane %v12234, 5
      %v12372 = vsel %vm1732, %v12370, %v12371
      %v12373 = vrot.slane %v12371, 4
      %v12374 = vrot.slane %v12235, 5
      %v12375 = vsel %vm1732, %v12373, %v12374
      %v12376 = vrot.slane %v12236, 5
      %v12377 = vrot.slane %v12376, 4
      %v12378 = vrot.slane %v12237, 5
      %v12379 = vsel %vm1732, %v12377, %v12378
      %v12380 = vrot.slane %v12378, 4
      %v12381 = vrot.slane %v12238, 5
      %v12382 = vsel %vm1732, %v12380, %v12381
      %v12383 = vrot.slane %v12239, 5
      %v12384 = vrot.slane %v12383, 4
      %v12385 = vrot.slane %v12240, 5
      %v12386 = vsel %vm1732, %v12384, %v12385
      %v12387 = vrot.slane %v12385, 4
      %v12388 = vrot.slane %v12241, 5
      %v12389 = vsel %vm1732, %v12387, %v12388
      %v12390 = vrot.slane %v12242, 5
      %v12391 = vrot.slane %v12390, 4
      %v12392 = vrot.slane %v12243, 5
      %v12393 = vsel %vm1732, %v12391, %v12392
      %v12394 = vrot.slane %v12392, 4
      %v12395 = vrot.slane %v12244, 5
      %v12396 = vsel %vm1732, %v12394, %v12395
      %v12397 = vrot.slane %v12245, 5
      %v12398 = vrot.slane %v12397, 4
      %v12399 = vrot.slane %v12246, 5
      %v12400 = vsel %vm1732, %v12398, %v12399
      %v12401 = vrot.slane %v12399, 4
      %v12402 = vrot.slane %v12247, 5
      %v12403 = vsel %vm1732, %v12401, %v12402
      %v12404 = vrot.slane %v12248, 5
      %v12405 = vrot.slane %v12404, 4
      %v12406 = vrot.slane %v12249, 5
      %v12407 = vsel %vm1732, %v12405, %v12406
      %v12408 = vrot.slane %v12406, 4
      %v12409 = vrot.slane %v12250, 5
      %v12410 = vsel %vm1732, %v12408, %v12409
      %v12411 = vunpack.c.l.b16 %v12302
      %v12412 = vunpack.c.l.b16 %v12305
      %v12413 = vunpack.c.l.b16 %v12309
      %v12414 = vunpack.c.l.b16 %v12312
      %v12415 = vunpack.c.l.b16 %v12316
      %v12416 = vunpack.c.l.b16 %v12319
      %v12417 = vunpack.c.l.b16 %v12323
      %v12418 = vunpack.c.l.b16 %v12326
      %v12419 = vunpack.c.l.b16 %v12330
      %v12420 = vunpack.c.l.b16 %v12333
      %v12421 = vunpack.c.l.b16 %v12337
      %v12422 = vunpack.c.l.b16 %v12340
      %v12423 = vunpack.c.l.b16 %v12344
      %v12424 = vunpack.c.l.b16 %v12347
      %v12425 = vunpack.c.l.b16 %v12351
      %v12426 = vunpack.c.l.b16 %v12354
      %v12427 = vunpack.c.l.b16 %v12358
      %v12428 = vunpack.c.l.b16 %v12361
      %v12429 = vunpack.c.l.b16 %v12365
      %v12430 = vunpack.c.l.b16 %v12368
      %v12431 = vunpack.c.l.b16 %v12372
      %v12432 = vunpack.c.l.b16 %v12375
      %v12433 = vunpack.c.l.b16 %v12379
      %v12434 = vunpack.c.l.b16 %v12382
      %v12435 = vunpack.c.l.b16 %v12386
      %v12436 = vunpack.c.l.b16 %v12389
      %v12437 = vunpack.c.l.b16 %v12393
      %v12438 = vunpack.c.l.b16 %v12396
      %v12439 = vunpack.c.l.b16 %v12400
      %v12440 = vunpack.c.l.b16 %v12403
      %v12441 = vunpack.c.l.b16 %v12407
      %v12442 = vunpack.c.l.b16 %v12410
      %v12443 = vpack.c.b16 %v12412, %v12411
      %v12444 = vpack.c.b16 %v12414, %v12413
      %v12445 = vpack.c.b16 %v12416, %v12415
      %v12446 = vpack.c.b16 %v12418, %v12417
      %v12447 = vpack.c.b16 %v12420, %v12419
      %v12448 = vpack.c.b16 %v12422, %v12421
      %v12449 = vpack.c.b16 %v12424, %v12423
      %v12450 = vpack.c.b16 %v12426, %v12425
      %v12451 = vpack.c.b16 %v12428, %v12427
      %v12452 = vpack.c.b16 %v12430, %v12429
      %v12453 = vpack.c.b16 %v12432, %v12431
      %v12454 = vpack.c.b16 %v12434, %v12433
      %v12455 = vpack.c.b16 %v12436, %v12435
      %v12456 = vpack.c.b16 %v12438, %v12437
      %v12457 = vpack.c.b16 %v12440, %v12439
      %v12458 = vpack.c.b16 %v12442, %v12441
      %12459 = vrot.lane.b32.xlu0 %v12443, 48
      %v12460 = vpop.permute.xlu0 %12459
      %12461 = vrot.lane.b32.xlu0 %v12444, 48
      %v12462 = vpop.permute.xlu0 %12461
      %12463 = vrot.lane.b32.xlu0 %v12445, 48
      %v12464 = vpop.permute.xlu0 %12463
      %12465 = vrot.lane.b32.xlu0 %v12446, 48
      %v12466 = vpop.permute.xlu0 %12465
      %12467 = vrot.lane.b32.xlu0 %v12447, 48
      %v12468 = vpop.permute.xlu0 %12467
      %12469 = vrot.lane.b32.xlu0 %v12448, 48
      %v12470 = vpop.permute.xlu0 %12469
      %12471 = vrot.lane.b32.xlu0 %v12449, 48
      %v12472 = vpop.permute.xlu0 %12471
      %12473 = vrot.lane.b32.xlu0 %v12450, 48
      %v12474 = vpop.permute.xlu0 %12473
      %12475 = vrot.lane.b32.xlu0 %v12451, 48
      %v12476 = vpop.permute.xlu0 %12475
      %12477 = vrot.lane.b32.xlu0 %v12452, 48
      %v12478 = vpop.permute.xlu0 %12477
      %12479 = vrot.lane.b32.xlu0 %v12453, 48
      %v12480 = vpop.permute.xlu0 %12479
      %12481 = vrot.lane.b32.xlu0 %v12454, 48
      %v12482 = vpop.permute.xlu0 %12481
      %12483 = vrot.lane.b32.xlu0 %v12455, 48
      %v12484 = vpop.permute.xlu0 %12483
      %12485 = vrot.lane.b32.xlu0 %v12456, 48
      %v12486 = vpop.permute.xlu0 %12485
      %12487 = vrot.lane.b32.xlu0 %v12457, 48
      %v12488 = vpop.permute.xlu0 %12487
      %12489 = vrot.lane.b32.xlu0 %v12458, 48
      %v12490 = vpop.permute.xlu0 %12489
      %12507 = vst.msk [vmem:[#allocation5] sm:$0xff] %vm6347, %v12460
      %12508 = vst.msk [vmem:[#allocation5 + $0x8] sm:$0xff] %vm6347, %v12462
      %12509 = vst.msk [vmem:[#allocation5 + $0x10] sm:$0xff] %vm6347, %v12464
      %12510 = vst.msk [vmem:[#allocation5 + $0x18] sm:$0xff] %vm6347, %v12466
      %12511 = vst.msk [vmem:[#allocation5 + $0x20] sm:$0xff] %vm6347, %v12468
      %12512 = vst.msk [vmem:[#allocation5 + $0x28] sm:$0xff] %vm6347, %v12470
      %12513 = vst.msk [vmem:[#allocation5 + $0x30] sm:$0xff] %vm6347, %v12472
      %12514 = vst.msk [vmem:[#allocation5 + $0x38] sm:$0xff] %vm6347, %v12474
      %12515 = vst.msk [vmem:[#allocation5 + $0x40] sm:$0xff] %vm6347, %v12476
      %12516 = vst.msk [vmem:[#allocation5 + $0x48] sm:$0xff] %vm6347, %v12478
      %12517 = vst.msk [vmem:[#allocation5 + $0x50] sm:$0xff] %vm6347, %v12480
      %12518 = vst.msk [vmem:[#allocation5 + $0x58] sm:$0xff] %vm6347, %v12482
      %12519 = vst.msk [vmem:[#allocation5 + $0x60] sm:$0xff] %vm6347, %v12484
      %12520 = vst.msk [vmem:[#allocation5 + $0x68] sm:$0xff] %vm6347, %v12486
      %12521 = vst.msk [vmem:[#allocation5 + $0x70] sm:$0xff] %vm6347, %v12488
      %12522 = vst.msk [vmem:[#allocation5 + $0x78] sm:$0xff] %vm6347, %v12490
      %v12523 = vld [vmem:[#allocation5] sm:$0xff]
      %v12524 = vld [vmem:[#allocation5 + $0x8] sm:$0xff]
      %v12525 = vld [vmem:[#allocation5 + $0x10] sm:$0xff]
      %v12526 = vld [vmem:[#allocation5 + $0x18] sm:$0xff]
      %v12527 = vld [vmem:[#allocation5 + $0x20] sm:$0xff]
      %v12528 = vld [vmem:[#allocation5 + $0x28] sm:$0xff]
      %v12529 = vld [vmem:[#allocation5 + $0x30] sm:$0xff]
      %v12530 = vld [vmem:[#allocation5 + $0x38] sm:$0xff]
      %v12531 = vld [vmem:[#allocation5 + $0x40] sm:$0xff]
      %v12532 = vld [vmem:[#allocation5 + $0x48] sm:$0xff]
      %v12533 = vld [vmem:[#allocation5 + $0x50] sm:$0xff]
      %v12534 = vld [vmem:[#allocation5 + $0x58] sm:$0xff]
      %v12535 = vld [vmem:[#allocation5 + $0x60] sm:$0xff]
      %v12536 = vld [vmem:[#allocation5 + $0x68] sm:$0xff]
      %v12537 = vld [vmem:[#allocation5 + $0x70] sm:$0xff]
      %v12538 = vld [vmem:[#allocation5 + $0x78] sm:$0xff]
      %s12539 = scalar_lea.vmem %s4, 96
      %v12540 = vld [vmem:[%s12539] sm:$0xf]
      %v12541 = vld [vmem:[%s12539 + $0x4] sm:$0xf]
      %v12542 = vld [vmem:[%s12539 + $0x8] sm:$0xf]
      %v12543 = vld [vmem:[%s12539 + $0xc] sm:$0xf]
      %v12544 = vld [vmem:[%s12539 + $0x10] sm:$0xf]
      %v12545 = vld [vmem:[%s12539 + $0x14] sm:$0xf]
      %v12546 = vld [vmem:[%s12539 + $0x18] sm:$0xf]
      %v12547 = vld [vmem:[%s12539 + $0x1c] sm:$0xf]
      %v12556 = vunpack.c.l.b16 %v12540
      %v12557 = vunpack.c.l.b16 %v12541
      %v12558 = vunpack.c.l.b16 %v12542
      %v12559 = vunpack.c.l.b16 %v12543
      %v12560 = vunpack.c.l.b16 %v12544
      %v12561 = vunpack.c.l.b16 %v12545
      %v12562 = vunpack.c.l.b16 %v12546
      %v12563 = vunpack.c.l.b16 %v12547
      %v12564 = vpack.c.b16 %v12557, %v12556
      %v12565 = vpack.c.b16 %v12559, %v12558
      %v12566 = vpack.c.b16 %v12561, %v12560
      %v12567 = vpack.c.b16 %v12563, %v12562
      %v12573 = vsel %vm6418, %v12523, 0
      %v12576 = vsel %vm6418, %v12524, 0
      %v12579 = vsel %vm6418, %v12525, 0
      %v12582 = vsel %vm6418, %v12526, 0
      %v12585 = vsel %vm6418, %v12527, 0
      %v12588 = vsel %vm6418, %v12528, 0
      %v12591 = vsel %vm6418, %v12529, 0
      %v12594 = vsel %vm6418, %v12530, 0
      %v12597 = vsel %vm6418, %v12531, 0
      %v12600 = vsel %vm6418, %v12532, 0
      %v12603 = vsel %vm6418, %v12533, 0
      %v12606 = vsel %vm6418, %v12534, 0
      %v12609 = vsel %vm6418, %v12535, 0
      %v12612 = vsel %vm6418, %v12536, 0
      %v12615 = vsel %vm6418, %v12537, 0
      %v12618 = vsel %vm6418, %v12538, 0
      %12620 = vmatprep.subr.bf16.mxu0 0
      %12621 = vmatpush1.bf16.msra.mxu0 %v12564
      %12622 = vmatprep.subr.bf16.mxu0 0
      %12623 = vmatpush1.bf16.msra.mxu0 %v12565
      %12624 = vmatprep.subr.bf16.mxu0 0
      %12625 = vmatpush1.bf16.msra.mxu0 %v12566
      %12626 = vmatprep.subr.bf16.mxu0 0
      %12627 = vmatpush1.bf16.msra.mxu0 %v12567
      %12628 = vmatprep.subr.bf16.mxu0 0
      %12629 = vmatpush1.bf16.msra.mxu0 0
      %12630 = vmatprep.subr.bf16.mxu0 0
      %12631 = vmatpush1.bf16.msra.mxu0 0
      %12632 = vmatprep.subr.bf16.mxu0 0
      %12633 = vmatpush1.bf16.msra.mxu0 0
      %12634 = vmatprep.subr.bf16.mxu0 0
      %12635 = vmatpush1.bf16.msra.mxu0 0
      %12636 = vmatprep.subr.bf16.mxu0 0
      %12637 = vmatpush1.bf16.msra.mxu0 0
      %12638 = vmatprep.subr.bf16.mxu0 0
      %12639 = vmatpush1.bf16.msra.mxu0 0
      %12640 = vmatprep.subr.bf16.mxu0 0
      %12641 = vmatpush1.bf16.msra.mxu0 0
      %12642 = vmatprep.subr.bf16.mxu0 0
      %12643 = vmatpush1.bf16.msra.mxu0 0
      %12644 = vmatprep.subr.bf16.mxu0 0
      %12645 = vmatpush1.bf16.msra.mxu0 0
      %12646 = vmatprep.subr.bf16.mxu0 0
      %12647 = vmatpush1.bf16.msra.mxu0 0
      %12648 = vmatprep.subr.bf16.mxu0 0
      %12649 = vmatpush1.bf16.msra.mxu0 0
      %12650 = vmatprep.subr.bf16.mxu0 0
      %12651 = vmatpush1.bf16.msra.mxu0 0
      %12652 = vmatprep.mubr.bf16.mxu0 0
      %12653 = vmatmul.mubr.bf16.gmra.mrb[0].mxu0 %v12573
      %v12654 = vpop.f32.mrb[0].mxu0
      %v12655 = vadd.f32 %v6392, %v12654
      %v12656 = vpop.f32.mrb[0].mxu0
      %v12657 = vpop.f32.mrb[0].mxu0
      %v12658 = vadd.f32 %v6392, %v12657
      %v12659 = vpop.f32.mrb[0].mxu0
      %12660 = vmatprep.mubr.bf16.mxu0 0
      %12661 = vmatmul.mubr.bf16.gmra.mrb[0].mxu0 %v12576
      %v12662 = vpop.f32.mrb[0].mxu0
      %v12663 = vadd.f32 %v6392, %v12662
      %v12664 = vpop.f32.mrb[0].mxu0
      %v12665 = vpop.f32.mrb[0].mxu0
      %v12666 = vadd.f32 %v6392, %v12665
      %v12667 = vpop.f32.mrb[0].mxu0
      %12668 = vmatprep.mubr.bf16.mxu0 0
      %12669 = vmatmul.mubr.bf16.gmra.mrb[0].mxu0 %v12579
      %v12670 = vpop.f32.mrb[0].mxu0
      %v12671 = vadd.f32 %v6392, %v12670
      %v12672 = vpop.f32.mrb[0].mxu0
      %v12673 = vpop.f32.mrb[0].mxu0
      %v12674 = vadd.f32 %v6392, %v12673
      %v12675 = vpop.f32.mrb[0].mxu0
      %12676 = vmatprep.mubr.bf16.mxu0 0
      %12677 = vmatmul.mubr.bf16.gmra.mrb[0].mxu0 %v12582
      %v12678 = vpop.f32.mrb[0].mxu0
      %v12679 = vadd.f32 %v6392, %v12678
      %v12680 = vpop.f32.mrb[0].mxu0
      %v12681 = vpop.f32.mrb[0].mxu0
      %v12682 = vadd.f32 %v6392, %v12681
      %v12683 = vpop.f32.mrb[0].mxu0
      %12684 = vmatprep.mubr.bf16.mxu0 0
      %12685 = vmatmul.mubr.bf16.gmra.mrb[0].mxu0 %v12585
      %v12686 = vpop.f32.mrb[0].mxu0
      %v12687 = vadd.f32 %v6392, %v12686
      %v12688 = vpop.f32.mrb[0].mxu0
      %v12689 = vpop.f32.mrb[0].mxu0
      %v12690 = vadd.f32 %v6392, %v12689
      %v12691 = vpop.f32.mrb[0].mxu0
      %12692 = vmatprep.mubr.bf16.mxu0 0
      %12693 = vmatmul.mubr.bf16.gmra.mrb[0].mxu0 %v12588
      %v12694 = vpop.f32.mrb[0].mxu0
      %v12695 = vadd.f32 %v6392, %v12694
      %v12696 = vpop.f32.mrb[0].mxu0
      %v12697 = vpop.f32.mrb[0].mxu0
      %v12698 = vadd.f32 %v6392, %v12697
      %v12699 = vpop.f32.mrb[0].mxu0
      %12700 = vmatprep.mubr.bf16.mxu0 0
      %12701 = vmatmul.mubr.bf16.gmra.mrb[0].mxu0 %v12591
      %v12702 = vpop.f32.mrb[0].mxu0
      %v12703 = vadd.f32 %v6392, %v12702
      %v12704 = vpop.f32.mrb[0].mxu0
      %v12705 = vpop.f32.mrb[0].mxu0
      %v12706 = vadd.f32 %v6392, %v12705
      %v12707 = vpop.f32.mrb[0].mxu0
      %12708 = vmatprep.mubr.bf16.mxu0 0
      %12709 = vmatmul.mubr.bf16.gmra.mrb[0].mxu0 %v12594
      %v12710 = vpop.f32.mrb[0].mxu0
      %v12711 = vadd.f32 %v6392, %v12710
      %v12712 = vpop.f32.mrb[0].mxu0
      %v12713 = vpop.f32.mrb[0].mxu0
      %v12714 = vadd.f32 %v6392, %v12713
      %v12715 = vpop.f32.mrb[0].mxu0
      %12716 = vmatprep.mubr.bf16.mxu0 0
      %12717 = vmatmul.mubr.bf16.gmra.mrb[0].mxu0 %v12597
      %v12718 = vpop.f32.mrb[0].mxu0
      %v12719 = vadd.f32 %v6392, %v12718
      %v12720 = vpop.f32.mrb[0].mxu0
      %v12721 = vpop.f32.mrb[0].mxu0
      %v12722 = vadd.f32 %v6392, %v12721
      %v12723 = vpop.f32.mrb[0].mxu0
      %12724 = vmatprep.mubr.bf16.mxu0 0
      %12725 = vmatmul.mubr.bf16.gmra.mrb[0].mxu0 %v12600
      %v12726 = vpop.f32.mrb[0].mxu0
      %v12727 = vadd.f32 %v6392, %v12726
      %v12728 = vpop.f32.mrb[0].mxu0
      %v12729 = vpop.f32.mrb[0].mxu0
      %v12730 = vadd.f32 %v6392, %v12729
      %v12731 = vpop.f32.mrb[0].mxu0
      %12732 = vmatprep.mubr.bf16.mxu0 0
      %12733 = vmatmul.mubr.bf16.gmra.mrb[0].mxu0 %v12603
      %v12734 = vpop.f32.mrb[0].mxu0
      %v12735 = vadd.f32 %v6392, %v12734
      %v12736 = vpop.f32.mrb[0].mxu0
      %v12737 = vpop.f32.mrb[0].mxu0
      %v12738 = vadd.f32 %v6392, %v12737
      %v12739 = vpop.f32.mrb[0].mxu0
      %12740 = vmatprep.mubr.bf16.mxu0 0
      %12741 = vmatmul.mubr.bf16.gmra.mrb[0].mxu0 %v12606
      %v12742 = vpop.f32.mrb[0].mxu0
      %v12743 = vadd.f32 %v6392, %v12742
      %v12744 = vpop.f32.mrb[0].mxu0
      %v12745 = vpop.f32.mrb[0].mxu0
      %v12746 = vadd.f32 %v6392, %v12745
      %v12747 = vpop.f32.mrb[0].mxu0
      %12748 = vmatprep.mubr.bf16.mxu0 0
      %12749 = vmatmul.mubr.bf16.gmra.mrb[0].mxu0 %v12609
      %v12750 = vpop.f32.mrb[0].mxu0
      %v12751 = vadd.f32 %v6392, %v12750
      %v12752 = vpop.f32.mrb[0].mxu0
      %v12753 = vpop.f32.mrb[0].mxu0
      %v12754 = vadd.f32 %v6392, %v12753
      %v12755 = vpop.f32.mrb[0].mxu0
      %12756 = vmatprep.mubr.bf16.mxu0 0
      %12757 = vmatmul.mubr.bf16.gmra.mrb[0].mxu0 %v12612
      %v12758 = vpop.f32.mrb[0].mxu0
      %v12759 = vadd.f32 %v6392, %v12758
      %v12760 = vpop.f32.mrb[0].mxu0
      %v12761 = vpop.f32.mrb[0].mxu0
      %v12762 = vadd.f32 %v6392, %v12761
      %v12763 = vpop.f32.mrb[0].mxu0
      %12764 = vmatprep.mubr.bf16.mxu0 0
      %12765 = vmatmul.mubr.bf16.gmra.mrb[0].mxu0 %v12615
      %v12766 = vpop.f32.mrb[0].mxu0
      %v12767 = vadd.f32 %v6392, %v12766
      %v12768 = vpop.f32.mrb[0].mxu0
      %v12769 = vpop.f32.mrb[0].mxu0
      %v12770 = vadd.f32 %v6392, %v12769
      %v12771 = vpop.f32.mrb[0].mxu0
      %12772 = vmatprep.mubr.bf16.mxu0 0
      %12773 = vmatmul.mubr.bf16.gmra.mrb[0].mxu0 %v12618
      %v12774 = vpop.f32.mrb[0].mxu0
      %v12775 = vadd.f32 %v6392, %v12774
      %v12776 = vpop.f32.mrb[0].mxu0
      %v12777 = vpop.f32.mrb[0].mxu0
      %v12778 = vadd.f32 %v6392, %v12777
      %v12779 = vpop.f32.mrb[0].mxu0
      %12780 = vdwg.mxu0
      %v12781 = vmax.f32 %v12655, 0.0
      %v12782 = vmax.f32 %v12658, 0.0
      %v12783 = vmax.f32 %v12663, 0.0
      %v12784 = vmax.f32 %v12666, 0.0
      %v12785 = vmax.f32 %v12671, 0.0
      %v12786 = vmax.f32 %v12674, 0.0
      %v12787 = vmax.f32 %v12679, 0.0
      %v12788 = vmax.f32 %v12682, 0.0
      %v12789 = vmax.f32 %v12687, 0.0
      %v12790 = vmax.f32 %v12690, 0.0
      %v12791 = vmax.f32 %v12695, 0.0
      %v12792 = vmax.f32 %v12698, 0.0
      %v12793 = vmax.f32 %v12703, 0.0
      %v12794 = vmax.f32 %v12706, 0.0
      %v12795 = vmax.f32 %v12711, 0.0
      %v12796 = vmax.f32 %v12714, 0.0
      %v12797 = vmax.f32 %v12719, 0.0
      %v12798 = vmax.f32 %v12722, 0.0
      %v12799 = vmax.f32 %v12727, 0.0
      %v12800 = vmax.f32 %v12730, 0.0
      %v12801 = vmax.f32 %v12735, 0.0
      %v12802 = vmax.f32 %v12738, 0.0
      %v12803 = vmax.f32 %v12743, 0.0
      %v12804 = vmax.f32 %v12746, 0.0
      %v12805 = vmax.f32 %v12751, 0.0
      %v12806 = vmax.f32 %v12754, 0.0
      %v12807 = vmax.f32 %v12759, 0.0
      %v12808 = vmax.f32 %v12762, 0.0
      %v12809 = vmax.f32 %v12767, 0.0
      %v12810 = vmax.f32 %v12770, 0.0
      %v12811 = vmax.f32 %v12775, 0.0
      %v12812 = vmax.f32 %v12778, 0.0
      %v12813 = vpack.c.bf16 %v12782, %v12781
      %v12814 = vpack.c.bf16 %v12784, %v12783
      %v12815 = vpack.c.bf16 %v12786, %v12785
      %v12816 = vpack.c.bf16 %v12788, %v12787
      %v12817 = vpack.c.bf16 %v12790, %v12789
      %v12818 = vpack.c.bf16 %v12792, %v12791
      %v12819 = vpack.c.bf16 %v12794, %v12793
      %v12820 = vpack.c.bf16 %v12796, %v12795
      %v12821 = vpack.c.bf16 %v12798, %v12797
      %v12822 = vpack.c.bf16 %v12800, %v12799
      %v12823 = vpack.c.bf16 %v12802, %v12801
      %v12824 = vpack.c.bf16 %v12804, %v12803
      %v12825 = vpack.c.bf16 %v12806, %v12805
      %v12826 = vpack.c.bf16 %v12808, %v12807
      %v12827 = vpack.c.bf16 %v12810, %v12809
      %v12828 = vpack.c.bf16 %v12812, %v12811
      %v12845 = vunpack.c.l.b16 %v12813
      %v12846 = vunpack.c.h.b16 %v12813
      %v12847 = vunpack.c.l.b16 %v12814
      %v12848 = vunpack.c.h.b16 %v12814
      %v12849 = vunpack.c.l.b16 %v12815
      %v12850 = vunpack.c.h.b16 %v12815
      %v12851 = vunpack.c.l.b16 %v12816
      %v12852 = vunpack.c.h.b16 %v12816
      %v12853 = vunpack.c.l.b16 %v12817
      %v12854 = vunpack.c.h.b16 %v12817
      %v12855 = vunpack.c.l.b16 %v12818
      %v12856 = vunpack.c.h.b16 %v12818
      %v12857 = vunpack.c.l.b16 %v12819
      %v12858 = vunpack.c.h.b16 %v12819
      %v12859 = vunpack.c.l.b16 %v12820
      %v12860 = vunpack.c.h.b16 %v12820
      %v12861 = vunpack.c.l.b16 %v12821
      %v12862 = vunpack.c.h.b16 %v12821
      %v12863 = vunpack.c.l.b16 %v12822
      %v12864 = vunpack.c.h.b16 %v12822
      %v12865 = vunpack.c.l.b16 %v12823
      %v12866 = vunpack.c.h.b16 %v12823
      %v12867 = vunpack.c.l.b16 %v12824
      %v12868 = vunpack.c.h.b16 %v12824
      %v12869 = vunpack.c.l.b16 %v12825
      %v12870 = vunpack.c.h.b16 %v12825
      %v12871 = vunpack.c.l.b16 %v12826
      %v12872 = vunpack.c.h.b16 %v12826
      %v12873 = vunpack.c.l.b16 %v12827
      %v12874 = vunpack.c.h.b16 %v12827
      %v12875 = vunpack.c.l.b16 %v12828
      %v12876 = vunpack.c.h.b16 %v12828
      %v12877 = vpack.c.b16 %v12845, %v12845
      %v12878 = vpack.c.b16 %v12846, %v12846
      %v12879 = vpack.c.b16 %v12847, %v12847
      %v12880 = vpack.c.b16 %v12848, %v12848
      %v12881 = vpack.c.b16 %v12849, %v12849
      %v12882 = vpack.c.b16 %v12850, %v12850
      %v12883 = vpack.c.b16 %v12851, %v12851
      %v12884 = vpack.c.b16 %v12852, %v12852
      %v12885 = vpack.c.b16 %v12853, %v12853
      %v12886 = vpack.c.b16 %v12854, %v12854
      %v12887 = vpack.c.b16 %v12855, %v12855
      %v12888 = vpack.c.b16 %v12856, %v12856
      %v12889 = vpack.c.b16 %v12857, %v12857
      %v12890 = vpack.c.b16 %v12858, %v12858
      %v12891 = vpack.c.b16 %v12859, %v12859
      %v12892 = vpack.c.b16 %v12860, %v12860
      %v12893 = vpack.c.b16 %v12861, %v12861
      %v12894 = vpack.c.b16 %v12862, %v12862
      %v12895 = vpack.c.b16 %v12863, %v12863
      %v12896 = vpack.c.b16 %v12864, %v12864
      %v12897 = vpack.c.b16 %v12865, %v12865
      %v12898 = vpack.c.b16 %v12866, %v12866
      %v12899 = vpack.c.b16 %v12867, %v12867
      %v12900 = vpack.c.b16 %v12868, %v12868
      %v12901 = vpack.c.b16 %v12869, %v12869
      %v12902 = vpack.c.b16 %v12870, %v12870
      %v12903 = vpack.c.b16 %v12871, %v12871
      %v12904 = vpack.c.b16 %v12872, %v12872
      %v12905 = vpack.c.b16 %v12873, %v12873
      %v12906 = vpack.c.b16 %v12874, %v12874
      %v12907 = vpack.c.b16 %v12875, %v12875
      %v12908 = vpack.c.b16 %v12876, %v12876
      %s12941 = scalar_lea.vmem %s251, 384
      %12942 = vst.msk [vmem:[%s12941] sm:$0xf] %vm253, %v12877
      %12943 = vst.msk [vmem:[%s12941 + $0x4] sm:$0xf] %vm253, %v12878
      %12944 = vst.msk [vmem:[%s12941 + $0x8] sm:$0xf] %vm253, %v12879
      %12945 = vst.msk [vmem:[%s12941 + $0xc] sm:$0xf] %vm253, %v12880
      %12946 = vst.msk [vmem:[%s12941 + $0x10] sm:$0xf] %vm253, %v12881
      %12947 = vst.msk [vmem:[%s12941 + $0x14] sm:$0xf] %vm253, %v12882
      %12948 = vst.msk [vmem:[%s12941 + $0x18] sm:$0xf] %vm253, %v12883
      %12949 = vst.msk [vmem:[%s12941 + $0x1c] sm:$0xf] %vm253, %v12884
      %12950 = vst.msk [vmem:[%s12941 + $0x20] sm:$0xf] %vm253, %v12885
      %12951 = vst.msk [vmem:[%s12941 + $0x24] sm:$0xf] %vm253, %v12886
      %12952 = vst.msk [vmem:[%s12941 + $0x28] sm:$0xf] %vm253, %v12887
      %12953 = vst.msk [vmem:[%s12941 + $0x2c] sm:$0xf] %vm253, %v12888
      %12954 = vst.msk [vmem:[%s12941 + $0x30] sm:$0xf] %vm253, %v12889
      %12955 = vst.msk [vmem:[%s12941 + $0x34] sm:$0xf] %vm253, %v12890
      %12956 = vst.msk [vmem:[%s12941 + $0x38] sm:$0xf] %vm253, %v12891
      %12957 = vst.msk [vmem:[%s12941 + $0x3c] sm:$0xf] %vm253, %v12892
      %12958 = vst.msk [vmem:[%s12941 + $0x40] sm:$0xf] %vm253, %v12893
      %12959 = vst.msk [vmem:[%s12941 + $0x44] sm:$0xf] %vm253, %v12894
      %12960 = vst.msk [vmem:[%s12941 + $0x48] sm:$0xf] %vm253, %v12895
      %12961 = vst.msk [vmem:[%s12941 + $0x4c] sm:$0xf] %vm253, %v12896
      %12962 = vst.msk [vmem:[%s12941 + $0x50] sm:$0xf] %vm253, %v12897
      %12963 = vst.msk [vmem:[%s12941 + $0x54] sm:$0xf] %vm253, %v12898
      %12964 = vst.msk [vmem:[%s12941 + $0x58] sm:$0xf] %vm253, %v12899
      %12965 = vst.msk [vmem:[%s12941 + $0x5c] sm:$0xf] %vm253, %v12900
      %12966 = vst.msk [vmem:[%s12941 + $0x60] sm:$0xf] %vm253, %v12901
      %12967 = vst.msk [vmem:[%s12941 + $0x64] sm:$0xf] %vm253, %v12902
      %12968 = vst.msk [vmem:[%s12941 + $0x68] sm:$0xf] %vm253, %v12903
      %12969 = vst.msk [vmem:[%s12941 + $0x6c] sm:$0xf] %vm253, %v12904
      %12970 = vst.msk [vmem:[%s12941 + $0x70] sm:$0xf] %vm253, %v12905
      %12971 = vst.msk [vmem:[%s12941 + $0x74] sm:$0xf] %vm253, %v12906
      %12972 = vst.msk [vmem:[%s12941 + $0x78] sm:$0xf] %vm253, %v12907
      %12973 = vst.msk [vmem:[%s12941 + $0x7c] sm:$0xf] %vm253, %v12908
      %p12974 = scmp.lt.s32.totalorder %s17, 1
      %s12975 = scalar_select %p12974, %s17, 1
      %s12976 = smul.addr %s12975, 128
      %s12977 = smul.addr %s12976, 4
      %s12978 = scalar_lea.vmem %s6, %s12977
      // Predicated region
      $region45: #{decoder_block.1} parent=43 // pred_check
        %p12979 = pneg %p166
      $region46: #{decoder_block.1} parent=43 // pred_check_branch
        %12981 = sbr.rel (%p12979) target = $region48
      $region47: #{decoder_block.1} parent=43 // pred_region
        _
      $region48: #{decoder_block.1} parent=43 // pred_fallthru
        _
    $region44: #{decoder_block.1} parent=5 // pred_fallthru
      _
    %p12982 = scmp.le.s32.totalorder 2, %s12
    // Predicated region
    $region49: #{decoder_block.1} parent=5 // pred_check
      %p12983 = pneg %p12982
    $region50: #{decoder_block.1} parent=5 // pred_check_branch
      %12985 = sbr.rel (%p12983) target = $region52
    $region51: #{decoder_block.1} parent=5 // pred_region
      %s12986 = ssub.s32 %s12, 2
      // Predicated region
      $region53: #{decoder_block.1} parent=51 // pred_check
        %p12987 = pneg %p172
      $region54: #{decoder_block.1} parent=51 // pred_check_branch
        %12989 = sbr.rel (%p12987) target = $region56
      $region55: #{decoder_block.1} parent=51 // pred_region
        %p12990 = scmp.lt.s32.totalorder %s18, 1
        %s12991 = scalar_select %p12990, %s18, 1
        %s12992 = smul.addr %s12991, 128
        %s12993 = smul.addr %s12992, 4
        %s12994 = scalar_lea.vmem %s6, %s12993
      $region56: #{decoder_block.1} parent=51 // pred_fallthru
        _
    $region52: #{decoder_block.1} parent=5 // pred_fallthru
      _
  $region6: #{decoder_block.1} parent=0 // loop_footer
    %s16 = sadd.s32 1, %s12
  $region7: #{decoder_block.1} parent=0 // loop_footer_branch
    %11 = sbr.rel target = $region3
  $region8: #{decoder_block.1} parent=0 // loop_exit
    _

</llo_original>
